<compile_context>
chip_gen: v7x
topology: tpu7x:2x2x1
jax: 0.10.0
libtpu: 0.0.40
codegen_flags: <defaults>
</compile_context>

<pallas_src>
import functools

import numpy as np
import jax
import jax.numpy as jnp
from jax.experimental import pallas as pl
from jax.experimental.pallas import tpu as pltpu

CHANNELS = 3                                   # the module hardcodes channels=3
SKIP_C = (64, 32, 16, 8, 4)                    # channels of x5, x4, x3, x2, x1
COUT = (CHANNELS, 2 * CHANNELS, 3 * CHANNELS,  # conv5..conv1 output channels
        4 * CHANNELS, 5 * CHANNELS)


def _round_up(n, m):
    return ((n + m - 1) // m) * m


def _interp_matrix_1d(n_in: int) -> np.ndarray:
    """PyTorch F.interpolate(scale_factor=2, mode='bilinear', align_corners=True)
    along one axis, expressed as a (2*n_in, n_in) matrix (rows sum to 1)."""
    n_out = 2 * n_in
    m = np.zeros((n_out, n_in), dtype=np.float32)
    if n_in == 1:
        m[:, 0] = 1.0
        return m
    scale = (n_in - 1) / (n_out - 1)
    for i in range(n_out):
        src = i * scale
        i0 = min(int(np.floor(src)), n_in - 1)
        i1 = min(i0 + 1, n_in - 1)
        f = src - i0
        m[i, i0] += 1.0 - f
        m[i, i1] += f
    return m


# --------------------------------- fused kernel --------------------------------------
#
# State z_s lives in the (C_pad*H, W) layout (channel-major rows, spatial W on lanes).
# Recursion (exactly equivalent to the PyTorch forward):
#   z5 = W5 @ x5 + b5
#   z_s = (kron(Wy_s, Mh) @ z_{s+1}) @ Mw^T  +  kron(Wskip_s, I_H) @ x_s  +  b_s
#   out = (kron(I_C, Mh) @ z1) @ Mw^T
# where kron(Wy, Mh) fuses the carry-path 1x1 conv with the row (H) upsample and
# Mw^T performs the column (W) upsample.

def _cdff_fused_kernel(x5, x4, x3, x2, x1,
                       kws5, b5,
                       l4, kws4, b4, mw4,
                       l3, kws3, b3, mw3,
                       l2, kws2, b2, mw2,
                       l1, kws1, b1, mw1,
                       khf, mwf,
                       o_ref):
    dot = functools.partial(jnp.dot, preferred_element_type=jnp.float32)

    # conv5 at x5's native resolution (its 2x upsample is folded into the next stage).
    z = dot(kws5[...], x5[...]) + b5[...]

    # conv4..conv1:  z <- up2x(Wy @ z) + Wskip @ skip + b
    for lref, kwsref, bref, mwref, skip in ((l4, kws4, b4, mw4, x4),
                                            (l3, kws3, b3, mw3, x3),
                                            (l2, kws2, b2, mw2, x2),
                                            (l1, kws1, b1, mw1, x1)):
        a = dot(dot(lref[...], z), mwref[...])          # fused conv + separable 2x up
        z = a + dot(kwsref[...], skip[...]) + bref[...]

    # trailing bilinear 2x upsample of conv1's output.
    o_ref[...] = dot(dot(khf[...], z), mwf[...])


# ----------------------------------- wrapper ------------------------------------------

def cdff_block_forward(params, x1, x2, x3, x4, x5):
    """Pallas forward of CDFFBlock.  params: w5..w1 (cout, cin), b5..b1 (cout,)."""
    f32 = jnp.float32
    B = x5.shape[0]
    H5, W5 = x5.shape[2], x5.shape[3]
    hs = [H5 * 2 ** i for i in range(5)]      # input H of conv5..conv1 stages
    ws = [W5 * 2 ** i for i in range(5)]
    coutp = [_round_up(c, 8) for c in COUT]   # 8, 8, 16, 16, 16

    wlist = [params["w5"], params["w4"], params["w3"], params["w2"], params["w1"]]
    blist = [params["b5"], params["b4"], params["b3"], params["b2"], params["b1"]]
    skips = [x5, x4, x3, x2, x1]

    def padded(w, rows, cols):
        return jnp.pad(w.astype(f32), ((0, rows - w.shape[0]), (0, cols - w.shape[1])))

    def bias_col(b, cout, cout_p, h):
        return jnp.repeat(jnp.pad(b.astype(f32), (0, cout_p - cout)), h)[:, None]

    eye = lambda n: jnp.eye(n, dtype=f32)

    # ---- host-side operator construction (pure layout/parameter math) ----
    ops = []
    w5p = padded(wlist[0], coutp[0], SKIP_C[0])                      # (8, 64)
    ops += [jnp.kron(w5p, eye(hs[0])),                               # (8*H5, 64*H5)
            bias_col(blist[0], COUT[0], coutp[0], hs[0])]
    for s in range(1, 5):
        h_in, w_in = hs[s - 1], ws[s - 1]        # resolution of incoming state z
        h_out = hs[s]                            # resolution after the 2x upsample
        mh = jnp.asarray(_interp_matrix_1d(h_in))            # (2*h_in, h_in)
        mwT = jnp.asarray(_interp_matrix_1d(w_in).T)          # (w_in, 2*w_in)
        wy = padded(wlist[s][:, :COUT[s - 1]], coutp[s], coutp[s - 1])
        wsk = padded(wlist[s][:, COUT[s - 1]:], coutp[s], SKIP_C[s])
        ops += [jnp.kron(wy, mh),                             # fused conv + H-upsample
                jnp.kron(wsk, eye(h_out)),                    # skip-path conv
                bias_col(blist[s], COUT[s], coutp[s], h_out),
                mwT]
    mh_f = jnp.asarray(_interp_matrix_1d(hs[4]))
    mwT_f = jnp.asarray(_interp_matrix_1d(ws[4]).T)
    ops += [jnp.kron(eye(coutp[4]), mh_f), mwT_f]             # trailing 2x upsample

    # ---- skips reshaped to the per-batch (C*H, W) layout (pure metadata reshape) ----
    skips2d = [s.astype(f32).reshape(B, s.shape[1] * s.shape[2], s.shape[3])
               for s in skips]

    h_fin, w_fin = 2 * hs[4], 2 * ws[4]
    out_rows = coutp[4] * h_fin

    in_specs = [pl.BlockSpec((None,) + s.shape[1:], lambda b: (b, 0, 0))
                for s in skips2d]
    in_specs += [pl.BlockSpec(op.shape, lambda b: (0, 0)) for op in ops]

    out = pl.pallas_call(
        _cdff_fused_kernel,
        out_shape=jax.ShapeDtypeStruct((B, out_rows, w_fin), f32),
        grid_spec=pltpu.PrefetchScalarGridSpec(
            num_scalar_prefetch=0,
            grid=(B,),
            in_specs=in_specs,
            out_specs=pl.BlockSpec((None, out_rows, w_fin), lambda b: (b, 0, 0)),
        ),
        compiler_params=pltpu.CompilerParams(
            dimension_semantics=("parallel",),
            vmem_limit_bytes=32 << 20,
        ),
    )(*skips2d, *ops)

    # drop channel padding, back to NCHW
    out = out.reshape(B, coutp[4], h_fin, w_fin)[:, :COUT[4]]
    return out


# ------------------------- independent pure-JAX reference -----------------------------

def _upsample2x_bilinear_ref(x):
    """NCHW bilinear 2x upsample, align_corners=True (PyTorch semantics), via gather."""
    def interp_axis(a, axis):
        n_in = a.shape[axis]
        n_out = 2 * n_in
        if n_in == 1:
            return jnp.repeat(a, 2, axis=axis)
        src = jnp.arange(n_out, dtype=jnp.float32) * (n_in - 1) / (n_out - 1)
        i0 = jnp.clip(jnp.floor(src).astype(jnp.int32), 0, n_in - 1)
        i1 = jnp.clip(i0 + 1, 0, n_in - 1)
        frac = src - i0.astype(jnp.float32)
        shp = [1] * a.ndim
        shp[axis] = n_out
        frac = frac.reshape(shp)
        return jnp.take(a, i0, axis=axis) * (1.0 - frac) + jnp.take(a, i1, axis=axis) * frac
    return interp_axis(interp_axis(x, 2), 3)


def _reference_forward(params, x1, x2, x3, x4, x5):
    def conv1x1(x, w, b):
        return jnp.einsum("oc,bchw->bohw", w, x) + b[None, :, None, None]

    x = conv1x1(_upsample2x_bilinear_ref(x5), params["w5"], params["b5"])
    x = jnp.concatenate([x, x4], axis=1)
    x = conv1x1(_upsample2x_bilinear_ref(x), params["w4"], params["b4"])
    x = jnp.concatenate([x, x3], axis=1)
    x = conv1x1(_upsample2x_bilinear_ref(x), params["w3"], params["b3"])
    x = jnp.concatenate([x, x2], axis=1)
    x = conv1x1(_upsample2x_bilinear_ref(x), params["w2"], params["b2"])
    x = jnp.concatenate([x, x1], axis=1)
    x = conv1x1(_upsample2x_bilinear_ref(x), params["w1"], params["b1"])
    return x


# ------------------------------------- main --------------------------------------------

if __name__ == "__main__":
    key = jax.random.PRNGKey(0)
    keys = jax.random.split(key, 10)

    B = 2
    H5 = W5 = 2  # smallest feature map; final output spatial = 32*H5 = 64

    x5 = jax.random.normal(keys[0], (B, 64, H5, W5), jnp.float32)
    x4 = jax.random.normal(keys[1], (B, 32, 2 * H5, 2 * W5), jnp.float32)
    x3 = jax.random.normal(keys[2], (B, 16, 4 * H5, 4 * W5), jnp.float32)
    x2 = jax.random.normal(keys[3], (B, 8, 8 * H5, 8 * W5), jnp.float32)
    x1 = jax.random.normal(keys[4], (B, 4, 16 * H5, 16 * W5), jnp.float32)

    def conv_params(k, cin, cout):
        kw, kb = jax.random.split(k)
        w = jax.random.normal(kw, (cout, cin), jnp.float32) * 0.1
        b = jax.random.normal(kb, (cout,), jnp.float32) * 0.1
        return w, b

    c = CHANNELS
    w5, b5 = conv_params(keys[5], 64, c)              # conv5: 64 -> 3
    w4, b4 = conv_params(keys[6], 32 + c, 2 * c)      # conv4: 35 -> 6
    w3, b3 = conv_params(keys[7], 16 + 2 * c, 3 * c)  # conv3: 22 -> 9
    w2, b2 = conv_params(keys[8], 8 + 3 * c, 4 * c)   # conv2: 17 -> 12
    w1, b1 = conv_params(keys[9], 4 + 4 * c, 5 * c)   # conv1: 16 -> 15

    params = dict(w5=w5, b5=b5, w4=w4, b4=b4, w3=w3, b3=b3,
                  w2=w2, b2=b2, w1=w1, b1=b1)

    out = jax.block_until_ready(cdff_block_forward(params, x1, x2, x3, x4, x5))
    assert out.shape == (B, 5 * c, 32 * H5, 32 * W5), out.shape

    ref = jax.block_until_ready(_reference_forward(params, x1, x2, x3, x4, x5))
    np.testing.assert_allclose(np.asarray(out), np.asarray(ref), rtol=2e-2, atol=2e-2)

    print("KERNEL_OK")
</pallas_src>

<mosaic_0001>
module attributes {stable_mosaic.version = 11 : i64} {
  func.func @_cdff_fused_kernel(%arg0: i32, %arg1: memref<1x128x2xf32, #tpu.memory_space<vmem>>, %arg2: memref<1x128x4xf32, #tpu.memory_space<vmem>>, %arg3: memref<1x128x8xf32, #tpu.memory_space<vmem>>, %arg4: memref<1x128x16xf32, #tpu.memory_space<vmem>>, %arg5: memref<1x128x32xf32, #tpu.memory_space<vmem>>, %arg6: memref<16x128xf32, #tpu.memory_space<vmem>>, %arg7: memref<16x1xf32, #tpu.memory_space<vmem>>, %arg8: memref<32x16xf32, #tpu.memory_space<vmem>>, %arg9: memref<32x128xf32, #tpu.memory_space<vmem>>, %arg10: memref<32x1xf32, #tpu.memory_space<vmem>>, %arg11: memref<2x4xf32, #tpu.memory_space<vmem>>, %arg12: memref<128x32xf32, #tpu.memory_space<vmem>>, %arg13: memref<128x128xf32, #tpu.memory_space<vmem>>, %arg14: memref<128x1xf32, #tpu.memory_space<vmem>>, %arg15: memref<4x8xf32, #tpu.memory_space<vmem>>, %arg16: memref<256x128xf32, #tpu.memory_space<vmem>>, %arg17: memref<256x128xf32, #tpu.memory_space<vmem>>, %arg18: memref<256x1xf32, #tpu.memory_space<vmem>>, %arg19: memref<8x16xf32, #tpu.memory_space<vmem>>, %arg20: memref<512x256xf32, #tpu.memory_space<vmem>>, %arg21: memref<512x128xf32, #tpu.memory_space<vmem>>, %arg22: memref<512x1xf32, #tpu.memory_space<vmem>>, %arg23: memref<16x32xf32, #tpu.memory_space<vmem>>, %arg24: memref<1024x512xf32, #tpu.memory_space<vmem>>, %arg25: memref<32x64xf32, #tpu.memory_space<vmem>>, %arg26: memref<1x1024x64xf32, #tpu.memory_space<vmem>>) attributes {dimension_semantics = [#tpu.dimension_semantics<parallel>], iteration_bounds = array<i64: 2>, scalar_prefetch = 0 : i64, scratch_operands = 0 : i64, tpu.core_type = #tpu.core_type<tc>, window_params = [{transform_indices = @transform_0, window_bounds = array<i64: 1, 128, 2>}, {transform_indices = @transform_1, window_bounds = array<i64: 1, 128, 4>}, {transform_indices = @transform_2, window_bounds = array<i64: 1, 128, 8>}, {transform_indices = @transform_3, window_bounds = array<i64: 1, 128, 16>}, {transform_indices = @transform_4, window_bounds = array<i64: 1, 128, 32>}, {pipeline_mode = #tpu.pipeline_mode<synchronous>, transform_indices = @transform_5, window_bounds = array<i64: 16, 128>}, {pipeline_mode = #tpu.pipeline_mode<synchronous>, transform_indices = @transform_6, window_bounds = array<i64: 16, 1>}, {pipeline_mode = #tpu.pipeline_mode<synchronous>, transform_indices = @transform_7, window_bounds = array<i64: 32, 16>}, {pipeline_mode = #tpu.pipeline_mode<synchronous>, transform_indices = @transform_8, window_bounds = array<i64: 32, 128>}, {pipeline_mode = #tpu.pipeline_mode<synchronous>, transform_indices = @transform_9, window_bounds = array<i64: 32, 1>}, {pipeline_mode = #tpu.pipeline_mode<synchronous>, transform_indices = @transform_10, window_bounds = array<i64: 2, 4>}, {pipeline_mode = #tpu.pipeline_mode<synchronous>, transform_indices = @transform_11, window_bounds = array<i64: 128, 32>}, {pipeline_mode = #tpu.pipeline_mode<synchronous>, transform_indices = @transform_12, window_bounds = array<i64: 128, 128>}, {pipeline_mode = #tpu.pipeline_mode<synchronous>, transform_indices = @transform_13, window_bounds = array<i64: 128, 1>}, {pipeline_mode = #tpu.pipeline_mode<synchronous>, transform_indices = @transform_14, window_bounds = array<i64: 4, 8>}, {pipeline_mode = #tpu.pipeline_mode<synchronous>, transform_indices = @transform_15, window_bounds = array<i64: 256, 128>}, {pipeline_mode = #tpu.pipeline_mode<synchronous>, transform_indices = @transform_16, window_bounds = array<i64: 256, 128>}, {pipeline_mode = #tpu.pipeline_mode<synchronous>, transform_indices = @transform_17, window_bounds = array<i64: 256, 1>}, {pipeline_mode = #tpu.pipeline_mode<synchronous>, transform_indices = @transform_18, window_bounds = array<i64: 8, 16>}, {pipeline_mode = #tpu.pipeline_mode<synchronous>, transform_indices = @transform_19, window_bounds = array<i64: 512, 256>}, {pipeline_mode = #tpu.pipeline_mode<synchronous>, transform_indices = @transform_20, window_bounds = array<i64: 512, 128>}, {pipeline_mode = #tpu.pipeline_mode<synchronous>, transform_indices = @transform_21, window_bounds = array<i64: 512, 1>}, {pipeline_mode = #tpu.pipeline_mode<synchronous>, transform_indices = @transform_22, window_bounds = array<i64: 16, 32>}, {pipeline_mode = #tpu.pipeline_mode<synchronous>, transform_indices = @transform_23, window_bounds = array<i64: 1024, 512>}, {pipeline_mode = #tpu.pipeline_mode<synchronous>, transform_indices = @transform_24, window_bounds = array<i64: 32, 64>}, {transform_indices = @transform_25, window_bounds = array<i64: 1, 1024, 64>}]} {
    %c0 = arith.constant 0 : index
    %c0_0 = arith.constant 0 : index
    %0 = vector.load %arg6[%c0, %c0_0] : memref<16x128xf32, #tpu.memory_space<vmem>>, vector<16x128xf32>
    %c0_1 = arith.constant 0 : index
    %c0_2 = arith.constant 0 : index
    %c0_3 = arith.constant 0 : index
    %1 = vector.load %arg1[%c0_1, %c0_2, %c0_3] : memref<1x128x2xf32, #tpu.memory_space<vmem>>, vector<1x128x2xf32>
    %2 = vector.shape_cast %1 : vector<1x128x2xf32> to vector<128x2xf32>
    %cst = arith.constant dense<0.000000e+00> : vector<16x2xf32>
    %3 = tpu.matmul %0, %2, %cst {dimension_numbers = #tpu.dot_dimension_numbers<[1], [0], [0], [1], [0, 0, 1, 1], [], []>} : vector<16x128xf32>, vector<128x2xf32>, vector<16x2xf32> -> vector<16x2xf32>
    %c0_4 = arith.constant 0 : index
    %c0_5 = arith.constant 0 : index
    %4 = vector.load %arg7[%c0_4, %c0_5] : memref<16x1xf32, #tpu.memory_space<vmem>>, vector<16x1xf32>
    %5 = vector.broadcast %4 : vector<16x1xf32> to vector<16x2xf32>
    %6 = arith.addf %3, %5 : vector<16x2xf32>
    %c0_6 = arith.constant 0 : index
    %c0_7 = arith.constant 0 : index
    %7 = vector.load %arg8[%c0_6, %c0_7] : memref<32x16xf32, #tpu.memory_space<vmem>>, vector<32x16xf32>
    %cst_8 = arith.constant dense<0.000000e+00> : vector<32x2xf32>
    %8 = tpu.matmul %7, %6, %cst_8 {dimension_numbers = #tpu.dot_dimension_numbers<[1], [0], [0], [1], [0, 0, 1, 1], [], []>} : vector<32x16xf32>, vector<16x2xf32>, vector<32x2xf32> -> vector<32x2xf32>
    %c0_9 = arith.constant 0 : index
    %c0_10 = arith.constant 0 : index
    %9 = vector.load %arg11[%c0_9, %c0_10] : memref<2x4xf32, #tpu.memory_space<vmem>>, vector<2x4xf32>
    %cst_11 = arith.constant dense<0.000000e+00> : vector<32x4xf32>
    %10 = tpu.matmul %8, %9, %cst_11 {dimension_numbers = #tpu.dot_dimension_numbers<[1], [0], [0], [1], [0, 0, 1, 1], [], []>} : vector<32x2xf32>, vector<2x4xf32>, vector<32x4xf32> -> vector<32x4xf32>
    %c0_12 = arith.constant 0 : index
    %c0_13 = arith.constant 0 : index
    %11 = vector.load %arg9[%c0_12, %c0_13] : memref<32x128xf32, #tpu.memory_space<vmem>>, vector<32x128xf32>
    %c0_14 = arith.constant 0 : index
    %c0_15 = arith.constant 0 : index
    %c0_16 = arith.constant 0 : index
    %12 = vector.load %arg2[%c0_14, %c0_15, %c0_16] : memref<1x128x4xf32, #tpu.memory_space<vmem>>, vector<1x128x4xf32>
    %13 = vector.shape_cast %12 : vector<1x128x4xf32> to vector<128x4xf32>
    %cst_17 = arith.constant dense<0.000000e+00> : vector<32x4xf32>
    %14 = tpu.matmul %11, %13, %cst_17 {dimension_numbers = #tpu.dot_dimension_numbers<[1], [0], [0], [1], [0, 0, 1, 1], [], []>} : vector<32x128xf32>, vector<128x4xf32>, vector<32x4xf32> -> vector<32x4xf32>
    %15 = arith.addf %10, %14 : vector<32x4xf32>
    %c0_18 = arith.constant 0 : index
    %c0_19 = arith.constant 0 : index
    %16 = vector.load %arg10[%c0_18, %c0_19] : memref<32x1xf32, #tpu.memory_space<vmem>>, vector<32x1xf32>
    %17 = vector.broadcast %16 : vector<32x1xf32> to vector<32x4xf32>
    %18 = arith.addf %15, %17 : vector<32x4xf32>
    %c0_20 = arith.constant 0 : index
    %c0_21 = arith.constant 0 : index
    %19 = vector.load %arg12[%c0_20, %c0_21] : memref<128x32xf32, #tpu.memory_space<vmem>>, vector<128x32xf32>
    %cst_22 = arith.constant dense<0.000000e+00> : vector<128x4xf32>
    %20 = tpu.matmul %19, %18, %cst_22 {dimension_numbers = #tpu.dot_dimension_numbers<[1], [0], [0], [1], [0, 0, 1, 1], [], []>} : vector<128x32xf32>, vector<32x4xf32>, vector<128x4xf32> -> vector<128x4xf32>
    %c0_23 = arith.constant 0 : index
    %c0_24 = arith.constant 0 : index
    %21 = vector.load %arg15[%c0_23, %c0_24] : memref<4x8xf32, #tpu.memory_space<vmem>>, vector<4x8xf32>
    %cst_25 = arith.constant dense<0.000000e+00> : vector<128x8xf32>
    %22 = tpu.matmul %20, %21, %cst_25 {dimension_numbers = #tpu.dot_dimension_numbers<[1], [0], [0], [1], [0, 0, 1, 1], [], []>} : vector<128x4xf32>, vector<4x8xf32>, vector<128x8xf32> -> vector<128x8xf32>
    %c0_26 = arith.constant 0 : index
    %c0_27 = arith.constant 0 : index
    %23 = vector.load %arg13[%c0_26, %c0_27] : memref<128x128xf32, #tpu.memory_space<vmem>>, vector<128x128xf32>
    %c0_28 = arith.constant 0 : index
    %c0_29 = arith.constant 0 : index
    %c0_30 = arith.constant 0 : index
    %24 = vector.load %arg3[%c0_28, %c0_29, %c0_30] : memref<1x128x8xf32, #tpu.memory_space<vmem>>, vector<1x128x8xf32>
    %25 = vector.shape_cast %24 : vector<1x128x8xf32> to vector<128x8xf32>
    %cst_31 = arith.constant dense<0.000000e+00> : vector<128x8xf32>
    %26 = tpu.matmul %23, %25, %cst_31 {dimension_numbers = #tpu.dot_dimension_numbers<[1], [0], [0], [1], [0, 0, 1, 1], [], []>} : vector<128x128xf32>, vector<128x8xf32>, vector<128x8xf32> -> vector<128x8xf32>
    %27 = arith.addf %22, %26 : vector<128x8xf32>
    %c0_32 = arith.constant 0 : index
    %c0_33 = arith.constant 0 : index
    %28 = vector.load %arg14[%c0_32, %c0_33] : memref<128x1xf32, #tpu.memory_space<vmem>>, vector<128x1xf32>
    %29 = vector.broadcast %28 : vector<128x1xf32> to vector<128x8xf32>
    %30 = arith.addf %27, %29 : vector<128x8xf32>
    %c0_34 = arith.constant 0 : index
    %c0_35 = arith.constant 0 : index
    %31 = vector.load %arg16[%c0_34, %c0_35] : memref<256x128xf32, #tpu.memory_space<vmem>>, vector<256x128xf32>
    %cst_36 = arith.constant dense<0.000000e+00> : vector<256x8xf32>
    %32 = tpu.matmul %31, %30, %cst_36 {dimension_numbers = #tpu.dot_dimension_numbers<[1], [0], [0], [1], [0, 0, 1, 1], [], []>} : vector<256x128xf32>, vector<128x8xf32>, vector<256x8xf32> -> vector<256x8xf32>
    %c0_37 = arith.constant 0 : index
    %c0_38 = arith.constant 0 : index
    %33 = vector.load %arg19[%c0_37, %c0_38] : memref<8x16xf32, #tpu.memory_space<vmem>>, vector<8x16xf32>
    %cst_39 = arith.constant dense<0.000000e+00> : vector<256x16xf32>
    %34 = tpu.matmul %32, %33, %cst_39 {dimension_numbers = #tpu.dot_dimension_numbers<[1], [0], [0], [1], [0, 0, 1, 1], [], []>} : vector<256x8xf32>, vector<8x16xf32>, vector<256x16xf32> -> vector<256x16xf32>
    %c0_40 = arith.constant 0 : index
    %c0_41 = arith.constant 0 : index
    %35 = vector.load %arg17[%c0_40, %c0_41] : memref<256x128xf32, #tpu.memory_space<vmem>>, vector<256x128xf32>
    %c0_42 = arith.constant 0 : index
    %c0_43 = arith.constant 0 : index
    %c0_44 = arith.constant 0 : index
    %36 = vector.load %arg4[%c0_42, %c0_43, %c0_44] : memref<1x128x16xf32, #tpu.memory_space<vmem>>, vector<1x128x16xf32>
    %37 = vector.shape_cast %36 : vector<1x128x16xf32> to vector<128x16xf32>
    %cst_45 = arith.constant dense<0.000000e+00> : vector<256x16xf32>
    %38 = tpu.matmul %35, %37, %cst_45 {dimension_numbers = #tpu.dot_dimension_numbers<[1], [0], [0], [1], [0, 0, 1, 1], [], []>} : vector<256x128xf32>, vector<128x16xf32>, vector<256x16xf32> -> vector<256x16xf32>
    %39 = arith.addf %34, %38 : vector<256x16xf32>
    %c0_46 = arith.constant 0 : index
    %c0_47 = arith.constant 0 : index
    %40 = vector.load %arg18[%c0_46, %c0_47] : memref<256x1xf32, #tpu.memory_space<vmem>>, vector<256x1xf32>
    %41 = vector.broadcast %40 : vector<256x1xf32> to vector<256x16xf32>
    %42 = arith.addf %39, %41 : vector<256x16xf32>
    %c0_48 = arith.constant 0 : index
    %c0_49 = arith.constant 0 : index
    %43 = vector.load %arg20[%c0_48, %c0_49] : memref<512x256xf32, #tpu.memory_space<vmem>>, vector<512x256xf32>
    %cst_50 = arith.constant dense<0.000000e+00> : vector<512x16xf32>
    %44 = tpu.matmul %43, %42, %cst_50 {dimension_numbers = #tpu.dot_dimension_numbers<[1], [0], [0], [1], [0, 0, 1, 1], [], []>} : vector<512x256xf32>, vector<256x16xf32>, vector<512x16xf32> -> vector<512x16xf32>
    %c0_51 = arith.constant 0 : index
    %c0_52 = arith.constant 0 : index
    %45 = vector.load %arg23[%c0_51, %c0_52] : memref<16x32xf32, #tpu.memory_space<vmem>>, vector<16x32xf32>
    %cst_53 = arith.constant dense<0.000000e+00> : vector<512x32xf32>
    %46 = tpu.matmul %44, %45, %cst_53 {dimension_numbers = #tpu.dot_dimension_numbers<[1], [0], [0], [1], [0, 0, 1, 1], [], []>} : vector<512x16xf32>, vector<16x32xf32>, vector<512x32xf32> -> vector<512x32xf32>
    %c0_54 = arith.constant 0 : index
    %c0_55 = arith.constant 0 : index
    %47 = vector.load %arg21[%c0_54, %c0_55] : memref<512x128xf32, #tpu.memory_space<vmem>>, vector<512x128xf32>
    %c0_56 = arith.constant 0 : index
    %c0_57 = arith.constant 0 : index
    %c0_58 = arith.constant 0 : index
    %48 = vector.load %arg5[%c0_56, %c0_57, %c0_58] : memref<1x128x32xf32, #tpu.memory_space<vmem>>, vector<1x128x32xf32>
    %49 = vector.shape_cast %48 : vector<1x128x32xf32> to vector<128x32xf32>
    %cst_59 = arith.constant dense<0.000000e+00> : vector<512x32xf32>
    %50 = tpu.matmul %47, %49, %cst_59 {dimension_numbers = #tpu.dot_dimension_numbers<[1], [0], [0], [1], [0, 0, 1, 1], [], []>} : vector<512x128xf32>, vector<128x32xf32>, vector<512x32xf32> -> vector<512x32xf32>
    %51 = arith.addf %46, %50 : vector<512x32xf32>
    %c0_60 = arith.constant 0 : index
    %c0_61 = arith.constant 0 : index
    %52 = vector.load %arg22[%c0_60, %c0_61] : memref<512x1xf32, #tpu.memory_space<vmem>>, vector<512x1xf32>
    %53 = vector.broadcast %52 : vector<512x1xf32> to vector<512x32xf32>
    %54 = arith.addf %51, %53 : vector<512x32xf32>
    %c0_62 = arith.constant 0 : index
    %c0_63 = arith.constant 0 : index
    %55 = vector.load %arg24[%c0_62, %c0_63] : memref<1024x512xf32, #tpu.memory_space<vmem>>, vector<1024x512xf32>
    %cst_64 = arith.constant dense<0.000000e+00> : vector<1024x32xf32>
    %56 = tpu.matmul %55, %54, %cst_64 {dimension_numbers = #tpu.dot_dimension_numbers<[1], [0], [0], [1], [0, 0, 1, 1], [], []>} : vector<1024x512xf32>, vector<512x32xf32>, vector<1024x32xf32> -> vector<1024x32xf32>
    %c0_65 = arith.constant 0 : index
    %c0_66 = arith.constant 0 : index
    %57 = vector.load %arg25[%c0_65, %c0_66] : memref<32x64xf32, #tpu.memory_space<vmem>>, vector<32x64xf32>
    %cst_67 = arith.constant dense<0.000000e+00> : vector<1024x64xf32>
    %58 = tpu.matmul %56, %57, %cst_67 {dimension_numbers = #tpu.dot_dimension_numbers<[1], [0], [0], [1], [0, 0, 1, 1], [], []>} : vector<1024x32xf32>, vector<32x64xf32>, vector<1024x64xf32> -> vector<1024x64xf32>
    %c0_68 = arith.constant 0 : index
    %c0_69 = arith.constant 0 : index
    %c0_70 = arith.constant 0 : index
    %59 = vector.load %arg26[%c0_68, %c0_69, %c0_70] : memref<1x1024x64xf32, #tpu.memory_space<vmem>>, vector<1x1024x64xf32>
    %60 = vector.shape_cast %59 : vector<1x1024x64xf32> to vector<1024x64xf32>
    %61 = vector.shape_cast %58 : vector<1024x64xf32> to vector<1x1024x64xf32>
    tpu.vector_store %arg26[%c0_68, %c0_69, %c0_70], %61 {strides = array<i32>} : memref<1x1024x64xf32, #tpu.memory_space<vmem>>, vector<1x1024x64xf32>,
    return
  }
  func.func @transform_0(%arg0: i32) -> (i32, i32, i32) {
    %c0_i32 = arith.constant 0 : i32
    %c0_i32_0 = arith.constant 0 : i32
    %c0_i32_1 = arith.constant 0 : i32
    return %arg0, %c0_i32, %c0_i32_0 : i32, i32, i32
  }
  func.func @transform_1(%arg0: i32) -> (i32, i32, i32) {
    %c0_i32 = arith.constant 0 : i32
    %c0_i32_0 = arith.constant 0 : i32
    %c0_i32_1 = arith.constant 0 : i32
    return %arg0, %c0_i32, %c0_i32_0 : i32, i32, i32
  }
  func.func @transform_2(%arg0: i32) -> (i32, i32, i32) {
    %c0_i32 = arith.constant 0 : i32
    %c0_i32_0 = arith.constant 0 : i32
    %c0_i32_1 = arith.constant 0 : i32
    return %arg0, %c0_i32, %c0_i32_0 : i32, i32, i32
  }
  func.func @transform_3(%arg0: i32) -> (i32, i32, i32) {
    %c0_i32 = arith.constant 0 : i32
    %c0_i32_0 = arith.constant 0 : i32
    %c0_i32_1 = arith.constant 0 : i32
    return %arg0, %c0_i32, %c0_i32_0 : i32, i32, i32
  }
  func.func @transform_4(%arg0: i32) -> (i32, i32, i32) {
    %c0_i32 = arith.constant 0 : i32
    %c0_i32_0 = arith.constant 0 : i32
    %c0_i32_1 = arith.constant 0 : i32
    return %arg0, %c0_i32, %c0_i32_0 : i32, i32, i32
  }
  func.func @transform_5(%arg0: i32) -> (i32, i32) {
    %c0_i32 = arith.constant 0 : i32
    %c0_i32_0 = arith.constant 0 : i32
    %c0_i32_1 = arith.constant 0 : i32
    return %c0_i32, %c0_i32_0 : i32, i32
  }
  func.func @transform_6(%arg0: i32) -> (i32, i32) {
    %c0_i32 = arith.constant 0 : i32
    %c0_i32_0 = arith.constant 0 : i32
    %c0_i32_1 = arith.constant 0 : i32
    return %c0_i32, %c0_i32_0 : i32, i32
  }
  func.func @transform_7(%arg0: i32) -> (i32, i32) {
    %c0_i32 = arith.constant 0 : i32
    %c0_i32_0 = arith.constant 0 : i32
    %c0_i32_1 = arith.constant 0 : i32
    return %c0_i32, %c0_i32_0 : i32, i32
  }
  func.func @transform_8(%arg0: i32) -> (i32, i32) {
    %c0_i32 = arith.constant 0 : i32
    %c0_i32_0 = arith.constant 0 : i32
    %c0_i32_1 = arith.constant 0 : i32
    return %c0_i32, %c0_i32_0 : i32, i32
  }
  func.func @transform_9(%arg0: i32) -> (i32, i32) {
    %c0_i32 = arith.constant 0 : i32
    %c0_i32_0 = arith.constant 0 : i32
    %c0_i32_1 = arith.constant 0 : i32
    return %c0_i32, %c0_i32_0 : i32, i32
  }
  func.func @transform_10(%arg0: i32) -> (i32, i32) {
    %c0_i32 = arith.constant 0 : i32
    %c0_i32_0 = arith.constant 0 : i32
    %c0_i32_1 = arith.constant 0 : i32
    return %c0_i32, %c0_i32_0 : i32, i32
  }
  func.func @transform_11(%arg0: i32) -> (i32, i32) {
    %c0_i32 = arith.constant 0 : i32
    %c0_i32_0 = arith.constant 0 : i32
    %c0_i32_1 = arith.constant 0 : i32
    return %c0_i32, %c0_i32_0 : i32, i32
  }
  func.func @transform_12(%arg0: i32) -> (i32, i32) {
    %c0_i32 = arith.constant 0 : i32
    %c0_i32_0 = arith.constant 0 : i32
    %c0_i32_1 = arith.constant 0 : i32
    return %c0_i32, %c0_i32_0 : i32, i32
  }
  func.func @transform_13(%arg0: i32) -> (i32, i32) {
    %c0_i32 = arith.constant 0 : i32
    %c0_i32_0 = arith.constant 0 : i32
    %c0_i32_1 = arith.constant 0 : i32
    return %c0_i32, %c0_i32_0 : i32, i32
  }
  func.func @transform_14(%arg0: i32) -> (i32, i32) {
    %c0_i32 = arith.constant 0 : i32
    %c0_i32_0 = arith.constant 0 : i32
    %c0_i32_1 = arith.constant 0 : i32
    return %c0_i32, %c0_i32_0 : i32, i32
  }
  func.func @transform_15(%arg0: i32) -> (i32, i32) {
    %c0_i32 = arith.constant 0 : i32
    %c0_i32_0 = arith.constant 0 : i32
    %c0_i32_1 = arith.constant 0 : i32
    return %c0_i32, %c0_i32_0 : i32, i32
  }
  func.func @transform_16(%arg0: i32) -> (i32, i32) {
    %c0_i32 = arith.constant 0 : i32
    %c0_i32_0 = arith.constant 0 : i32
    %c0_i32_1 = arith.constant 0 : i32
    return %c0_i32, %c0_i32_0 : i32, i32
  }
  func.func @transform_17(%arg0: i32) -> (i32, i32) {
    %c0_i32 = arith.constant 0 : i32
    %c0_i32_0 = arith.constant 0 : i32
    %c0_i32_1 = arith.constant 0 : i32
    return %c0_i32, %c0_i32_0 : i32, i32
  }
  func.func @transform_18(%arg0: i32) -> (i32, i32) {
    %c0_i32 = arith.constant 0 : i32
    %c0_i32_0 = arith.constant 0 : i32
    %c0_i32_1 = arith.constant 0 : i32
    return %c0_i32, %c0_i32_0 : i32, i32
  }
  func.func @transform_19(%arg0: i32) -> (i32, i32) {
    %c0_i32 = arith.constant 0 : i32
    %c0_i32_0 = arith.constant 0 : i32
    %c0_i32_1 = arith.constant 0 : i32
    return %c0_i32, %c0_i32_0 : i32, i32
  }
  func.func @transform_20(%arg0: i32) -> (i32, i32) {
    %c0_i32 = arith.constant 0 : i32
    %c0_i32_0 = arith.constant 0 : i32
    %c0_i32_1 = arith.constant 0 : i32
    return %c0_i32, %c0_i32_0 : i32, i32
  }
  func.func @transform_21(%arg0: i32) -> (i32, i32) {
    %c0_i32 = arith.constant 0 : i32
    %c0_i32_0 = arith.constant 0 : i32
    %c0_i32_1 = arith.constant 0 : i32
    return %c0_i32, %c0_i32_0 : i32, i32
  }
  func.func @transform_22(%arg0: i32) -> (i32, i32) {
    %c0_i32 = arith.constant 0 : i32
    %c0_i32_0 = arith.constant 0 : i32
    %c0_i32_1 = arith.constant 0 : i32
    return %c0_i32, %c0_i32_0 : i32, i32
  }
  func.func @transform_23(%arg0: i32) -> (i32, i32) {
    %c0_i32 = arith.constant 0 : i32
    %c0_i32_0 = arith.constant 0 : i32
    %c0_i32_1 = arith.constant 0 : i32
    return %c0_i32, %c0_i32_0 : i32, i32
  }
  func.func @transform_24(%arg0: i32) -> (i32, i32) {
    %c0_i32 = arith.constant 0 : i32
    %c0_i32_0 = arith.constant 0 : i32
    %c0_i32_1 = arith.constant 0 : i32
    return %c0_i32, %c0_i32_0 : i32, i32
  }
  func.func @transform_25(%arg0: i32) -> (i32, i32, i32) {
    %c0_i32 = arith.constant 0 : i32
    %c0_i32_0 = arith.constant 0 : i32
    %c0_i32_1 = arith.constant 0 : i32
    return %arg0, %c0_i32, %c0_i32_0 : i32, i32, i32
  }
}

</mosaic_0001>

<llo_original>
// kernel: tpu_custom_call.1
$region0: #{tpu_custom_call.1}
  #allocation0 [shape = 'u32[]', space=smem, size = 0x4, offset = 0x4, fixed_abs, tag = 'smem constant byte address 0x4 - core index']
  #allocation1 [shape = 'u32[144,128]{1,0:T(1,128)}', space=vmem, size = 0x12000, scoped, tag = 'internal scratch']
  %s0 = inlined_call_operand.vmem [shape: f32[2,128,2], index: 0, kind: input, shape index: {}]
  %s1 = inlined_call_operand.vmem [shape: f32[2,128,4], index: 1, kind: input, shape index: {}]
  %s2 = inlined_call_operand.vmem [shape: f32[2,128,8], index: 2, kind: input, shape index: {}]
  %s3 = inlined_call_operand.vmem [shape: f32[2,128,16], index: 3, kind: input, shape index: {}]
  %s4 = inlined_call_operand.vmem [shape: f32[2,128,32], index: 4, kind: input, shape index: {}]
  %s5 = inlined_call_operand.hbm [shape: f32[16,128], index: 5, kind: input, shape index: {}]
  %s6 = inlined_call_operand.vmem [shape: f32[16,1], index: 6, kind: input, shape index: {}]
  %s7 = inlined_call_operand.vmem [shape: f32[32,16], index: 7, kind: input, shape index: {}]
  %s8 = inlined_call_operand.hbm [shape: f32[32,128], index: 8, kind: input, shape index: {}]
  %s9 = inlined_call_operand.vmem [shape: f32[32,1], index: 9, kind: input, shape index: {}]
  %s10 = inlined_call_operand.hbm [shape: f32[2,4], index: 10, kind: input, shape index: {}]
  %s11 = inlined_call_operand.vmem [shape: f32[128,32], index: 11, kind: input, shape index: {}]
  %s12 = inlined_call_operand.hbm [shape: f32[128,128], index: 12, kind: input, shape index: {}]
  %s13 = inlined_call_operand.vmem [shape: f32[128,1], index: 13, kind: input, shape index: {}]
  %s14 = inlined_call_operand.hbm [shape: f32[4,8], index: 14, kind: input, shape index: {}]
  %s15 = inlined_call_operand.hbm [shape: f32[256,128], index: 15, kind: input, shape index: {}]
  %s16 = inlined_call_operand.hbm [shape: f32[256,128], index: 16, kind: input, shape index: {}]
  %s17 = inlined_call_operand.vmem [shape: f32[256,1], index: 17, kind: input, shape index: {}]
  %s18 = inlined_call_operand.hbm [shape: f32[8,16], index: 18, kind: input, shape index: {}]
  %s19 = inlined_call_operand.hbm [shape: f32[512,256], index: 19, kind: input, shape index: {}]
  %s20 = inlined_call_operand.hbm [shape: f32[512,128], index: 20, kind: input, shape index: {}]
  %s21 = inlined_call_operand.vmem [shape: f32[512,1], index: 21, kind: input, shape index: {}]
  %s22 = inlined_call_operand.hbm [shape: f32[16,32], index: 22, kind: input, shape index: {}]
  %s23 = inlined_call_operand.hbm [shape: f32[1024,512], index: 23, kind: input, shape index: {}]
  %s24 = inlined_call_operand.hbm [shape: f32[32,64], index: 24, kind: input, shape index: {}]
  %s25 = inlined_call_operand.vmem [shape: f32[2,1024,64], index: 25, kind: output, shape index: {}]
  %s26 = sld [smem:[#allocation0]]
  $region185: #{tpu_custom_call.1} parent=0
    _
  %s28 = ssub.s32 1, %s26
  %s29 = scalar_select 0, %s28, %s26
  $region1: #{tpu_custom_call.1} parent=0
    #allocation2 [shape = 'u8[8192]{0}', space=vmem, size = 0x2000, scoped, tag = 'input window, operand 5, single buffered']
    #allocation3 [shape = 's32[2]{0}', space=sflag, size = 0x8, scoped, tag = 'scoped memory for tpu_custom_call.1']
    #allocation4 [shape = 'u8[16384]{0}', space=vmem, size = 0x4000, scoped, tag = 'input window, operand 8, single buffered']
    #allocation5 [shape = 's32[1]{0}', space=sflag, size = 0x4, scoped, tag = 'scoped memory for tpu_custom_call.1']
    #allocation6 [shape = 'u8[1024]{0}', space=vmem, size = 0x400, scoped, tag = 'input window, operand 10, single buffered']
    #allocation7 [shape = 'u8[65536]{0}', space=vmem, size = 0x10000, scoped, tag = 'input window, operand 12, single buffered']
    #allocation8 [shape = 's32[1]{0}', space=sflag, size = 0x4, scoped, tag = 'scoped memory for tpu_custom_call.1']
    #allocation9 [shape = 'u8[2048]{0}', space=vmem, size = 0x800, scoped, tag = 'input window, operand 14, single buffered']
    #allocation10 [shape = 'u8[131072]{0}', space=vmem, size = 0x20000, scoped, tag = 'input window, operand 15, single buffered']
    #allocation11 [shape = 's32[1]{0}', space=sflag, size = 0x4, scoped, tag = 'scoped memory for tpu_custom_call.1']
    #allocation12 [shape = 'u8[131072]{0}', space=vmem, size = 0x20000, scoped, tag = 'input window, operand 16, single buffered']
    #allocation13 [shape = 'u8[4096]{0}', space=vmem, size = 0x1000, scoped, tag = 'input window, operand 18, single buffered']
    #allocation14 [shape = 's32[1]{0}', space=sflag, size = 0x4, scoped, tag = 'scoped memory for tpu_custom_call.1']
    #allocation15 [shape = 'u8[524288]{0}', space=vmem, size = 0x80000, scoped, tag = 'input window, operand 19, single buffered']
    #allocation16 [shape = 'u8[262144]{0}', space=vmem, size = 0x40000, scoped, tag = 'input window, operand 20, single buffered']
    #allocation17 [shape = 's32[1]{0}', space=sflag, size = 0x4, scoped, tag = 'scoped memory for tpu_custom_call.1']
    #allocation18 [shape = 'u8[8192]{0}', space=vmem, size = 0x2000, scoped, tag = 'input window, operand 22, single buffered']
    #allocation19 [shape = 'u8[2097152]{0}', space=vmem, size = 0x200000, scoped, tag = 'input window, operand 23, single buffered']
    #allocation20 [shape = 's32[1]{0}', space=sflag, size = 0x4, scoped, tag = 'scoped memory for tpu_custom_call.1']
    #allocation21 [shape = 'u8[16384]{0}', space=vmem, size = 0x4000, scoped, tag = 'input window, operand 24, single buffered']
    %30 = vsyncpa [#allocation3], 0
    %31 = vsyncpa [#allocation5], 0
    %32 = vsyncpa [#allocation8], 0
    %33 = vsyncpa [#allocation11], 0
    %34 = vsyncpa [#allocation14], 0
    %35 = vsyncpa [#allocation17], 0
    %36 = vsyncpa [#allocation20], 0
    loop: start=0, step=1, limit=4
    $region2: #{tpu_custom_call.1} parent=1 // loop_pre_header
      _
    $region3: #{tpu_custom_call.1} parent=1 // loop_header
      %s38 = sphi 0, %s42
      %p39 = scmp.ge.s32.totalorder %s38, 4
      %s48 = sphi 0, %s50
      %s51 = sphi 0, %s48
      %s52 = sphi 0, %s51
      %s68 = sphi 0, %s52
      %s74 = sphi 0, %s76
      %s77 = sphi 0, %s74
      %s78 = sphi 0, %s77
      %s94 = sphi 0, %s78
      %s100 = sphi 0, %s102
      %s103 = sphi 0, %s100
      %s104 = sphi 0, %s103
      %s120 = sphi 0, %s104
      %s126 = sphi 0, %s128
      %s129 = sphi 0, %s126
      %s130 = sphi 0, %s129
      %s146 = sphi 0, %s130
      %s152 = sphi 0, %s154
      %s155 = sphi 0, %s152
      %s156 = sphi 0, %s155
      %s172 = sphi 0, %s156
      %s176 = sphi 0, %s176
      %s178 = sphi 0, %s176
      %s179 = sphi 0, %s178
      %s193 = sphi 0, %s179
      %s197 = sphi 0, %s197
      %s199 = sphi 0, %s197
      %s200 = sphi 0, %s199
      %s214 = sphi 0, %s200
      %s218 = sphi 0, %s218
      %s220 = sphi 0, %s218
      %s221 = sphi 0, %s220
      %s235 = sphi 0, %s221
      %s239 = sphi 0, %s239
      %s241 = sphi 0, %s239
      %s242 = sphi 0, %s241
      %s256 = sphi 0, %s242
      %s260 = sphi 0, %s260
      %s262 = sphi 0, %s260
      %s263 = sphi 0, %s262
      %s277 = sphi 0, %s263
      %s281 = sphi 0, %s281
      %s283 = sphi 0, %s281
      %s284 = sphi 0, %s283
      %s298 = sphi 0, %s284
      %s302 = sphi 0, %s302
      %s304 = sphi 0, %s302
      %s305 = sphi 0, %s304
      %s319 = sphi 0, %s305
      %s323 = sphi 0, %s323
      %s325 = sphi 0, %s323
      %s326 = sphi 0, %s325
      %s340 = sphi 0, %s326
      %s344 = sphi 0, %s344
      %s346 = sphi 0, %s344
      %s347 = sphi 0, %s346
      %s361 = sphi 0, %s347
      %s365 = sphi 0, %s365
      %s367 = sphi 0, %s365
      %s368 = sphi 0, %s367
      %s382 = sphi 0, %s368
      %s386 = sphi 0, %s386
      %s388 = sphi 0, %s386
      %s389 = sphi 0, %s388
      %s403 = sphi 0, %s389
      %s407 = sphi 0, %s407
      %s409 = sphi 0, %s407
      %s410 = sphi 0, %s409
      %s424 = sphi 0, %s410
      %s428 = sphi 0, %s428
      %s430 = sphi 0, %s428
      %s431 = sphi 0, %s430
      %s445 = sphi 0, %s431
      %s449 = sphi 0, %s449
      %s451 = sphi 0, %s449
      %s452 = sphi 0, %s451
      %s466 = sphi 0, %s452
      %s470 = sphi 0, %s470
      %s472 = sphi 0, %s470
      %s473 = sphi 0, %s472
      %s487 = sphi 0, %s473
      %s491 = sphi 0, %s491
      %s493 = sphi 0, %s491
      %s494 = sphi 0, %s493
      %s508 = sphi 0, %s494
      %s512 = sphi 0, %s512
      %s514 = sphi 0, %s512
      %s515 = sphi 0, %s514
      %s529 = sphi 0, %s515
      %s533 = sphi 0, %s533
      %s535 = sphi 0, %s533
      %s536 = sphi 0, %s535
      %s550 = sphi 0, %s536
      %s554 = sphi 0, %s554
      %s556 = sphi 0, %s554
      %s557 = sphi 0, %s556
      %s571 = sphi 0, %s557
      %s575 = sphi 0, %s575
      %s577 = sphi 0, %s575
      %s578 = sphi 0, %s577
      %s592 = sphi 0, %s578
      %s598 = sphi 0, %s600
      %s601 = sphi 0, %s598
      %s602 = sphi 0, %s601
      %s618 = sphi 0, %s602
    $region4: #{tpu_custom_call.1} parent=1 // loop_header_branch
      %41 = sbr.rel (%p39) target = $region8
    $region5: #{tpu_custom_call.1} parent=1 // loop_body
      %s43 = ssub.s32 %s38, 1
      %s44 = ssub.s32 %s38, 2
      %s45 = sadd.s32 %s38, 1
      %s46 = ssub.s32 %s38, %s45
      %p47 = scmp.eq.s32.totalorder %s46, 0
      %s49 = sadd.s32 %s48, 1
      %s50 = scalar_select %p47, %s48, %s49
      %p53 = pneg %p47
      %p54 = scmp.eq.s32.totalorder %s38, 1
      %p55 = por %p53, %p54
      %p56 = scmp.ne.s32.totalorder %s48, %s51
      %p57 = scmp.eq.s32.totalorder %s38, 0
      %p58 = por %p56, %p57
      %p59 = scmp.ne.s32.totalorder %s48, %s51
      %p60 = scmp.eq.s32.totalorder %s43, 1
      %p61 = por %p59, %p60
      %p62 = scmp.ne.s32.totalorder %s51, %s52
      %p63 = scmp.eq.s32.totalorder %s43, 0
      %p64 = por %p62, %p63
      %p65 = scmp.ne.s32.totalorder %s51, %s52
      %p66 = scmp.eq.s32.totalorder %s44, 1
      %p67 = por %p65, %p66
      %p69 = scmp.ne.s32.totalorder %s52, %s68
      %p70 = scmp.eq.s32.totalorder %s44, 0
      %p71 = por %p69, %p70
      %s72 = ssub.s32 %s38, %s45
      %p73 = scmp.eq.s32.totalorder %s72, 0
      %s75 = sadd.s32 %s74, 1
      %s76 = scalar_select %p73, %s74, %s75
      %p79 = pneg %p73
      %p80 = scmp.eq.s32.totalorder %s38, 1
      %p81 = por %p79, %p80
      %p82 = scmp.ne.s32.totalorder %s74, %s77
      %p83 = scmp.eq.s32.totalorder %s38, 0
      %p84 = por %p82, %p83
      %p85 = scmp.ne.s32.totalorder %s74, %s77
      %p86 = scmp.eq.s32.totalorder %s43, 1
      %p87 = por %p85, %p86
      %p88 = scmp.ne.s32.totalorder %s77, %s78
      %p89 = scmp.eq.s32.totalorder %s43, 0
      %p90 = por %p88, %p89
      %p91 = scmp.ne.s32.totalorder %s77, %s78
      %p92 = scmp.eq.s32.totalorder %s44, 1
      %p93 = por %p91, %p92
      %p95 = scmp.ne.s32.totalorder %s78, %s94
      %p96 = scmp.eq.s32.totalorder %s44, 0
      %p97 = por %p95, %p96
      %s98 = ssub.s32 %s38, %s45
      %p99 = scmp.eq.s32.totalorder %s98, 0
      %s101 = sadd.s32 %s100, 1
      %s102 = scalar_select %p99, %s100, %s101
      %p105 = pneg %p99
      %p106 = scmp.eq.s32.totalorder %s38, 1
      %p107 = por %p105, %p106
      %p108 = scmp.ne.s32.totalorder %s100, %s103
      %p109 = scmp.eq.s32.totalorder %s38, 0
      %p110 = por %p108, %p109
      %p111 = scmp.ne.s32.totalorder %s100, %s103
      %p112 = scmp.eq.s32.totalorder %s43, 1
      %p113 = por %p111, %p112
      %p114 = scmp.ne.s32.totalorder %s103, %s104
      %p115 = scmp.eq.s32.totalorder %s43, 0
      %p116 = por %p114, %p115
      %p117 = scmp.ne.s32.totalorder %s103, %s104
      %p118 = scmp.eq.s32.totalorder %s44, 1
      %p119 = por %p117, %p118
      %p121 = scmp.ne.s32.totalorder %s104, %s120
      %p122 = scmp.eq.s32.totalorder %s44, 0
      %p123 = por %p121, %p122
      %s124 = ssub.s32 %s38, %s45
      %p125 = scmp.eq.s32.totalorder %s124, 0
      %s127 = sadd.s32 %s126, 1
      %s128 = scalar_select %p125, %s126, %s127
      %p131 = pneg %p125
      %p132 = scmp.eq.s32.totalorder %s38, 1
      %p133 = por %p131, %p132
      %p134 = scmp.ne.s32.totalorder %s126, %s129
      %p135 = scmp.eq.s32.totalorder %s38, 0
      %p136 = por %p134, %p135
      %p137 = scmp.ne.s32.totalorder %s126, %s129
      %p138 = scmp.eq.s32.totalorder %s43, 1
      %p139 = por %p137, %p138
      %p140 = scmp.ne.s32.totalorder %s129, %s130
      %p141 = scmp.eq.s32.totalorder %s43, 0
      %p142 = por %p140, %p141
      %p143 = scmp.ne.s32.totalorder %s129, %s130
      %p144 = scmp.eq.s32.totalorder %s44, 1
      %p145 = por %p143, %p144
      %p147 = scmp.ne.s32.totalorder %s130, %s146
      %p148 = scmp.eq.s32.totalorder %s44, 0
      %p149 = por %p147, %p148
      %s150 = ssub.s32 %s38, %s45
      %p151 = scmp.eq.s32.totalorder %s150, 0
      %s153 = sadd.s32 %s152, 1
      %s154 = scalar_select %p151, %s152, %s153
      %p157 = pneg %p151
      %p158 = scmp.eq.s32.totalorder %s38, 1
      %p159 = por %p157, %p158
      %p160 = scmp.ne.s32.totalorder %s152, %s155
      %p161 = scmp.eq.s32.totalorder %s38, 0
      %p162 = por %p160, %p161
      %p163 = scmp.ne.s32.totalorder %s152, %s155
      %p164 = scmp.eq.s32.totalorder %s43, 1
      %p165 = por %p163, %p164
      %p166 = scmp.ne.s32.totalorder %s155, %s156
      %p167 = scmp.eq.s32.totalorder %s43, 0
      %p168 = por %p166, %p167
      %p169 = scmp.ne.s32.totalorder %s155, %s156
      %p170 = scmp.eq.s32.totalorder %s44, 1
      %p171 = por %p169, %p170
      %p173 = scmp.ne.s32.totalorder %s156, %s172
      %p174 = scmp.eq.s32.totalorder %s44, 0
      %p175 = por %p173, %p174
      %s177 = sadd.s32 %s176, 1
      %p180 = scmp.eq.s32.totalorder %s38, 1
      %p181 = scmp.ne.s32.totalorder %s176, %s178
      %p182 = scmp.eq.s32.totalorder %s38, 0
      %p183 = por %p181, %p182
      %p184 = scmp.ne.s32.totalorder %s176, %s178
      %p185 = scmp.eq.s32.totalorder %s43, 1
      %p186 = por %p184, %p185
      %p187 = scmp.ne.s32.totalorder %s178, %s179
      %p188 = scmp.eq.s32.totalorder %s43, 0
      %p189 = por %p187, %p188
      %p190 = scmp.ne.s32.totalorder %s178, %s179
      %p191 = scmp.eq.s32.totalorder %s44, 1
      %p192 = por %p190, %p191
      %p194 = scmp.ne.s32.totalorder %s179, %s193
      %p195 = scmp.eq.s32.totalorder %s44, 0
      %p196 = por %p194, %p195
      %s198 = sadd.s32 %s197, 1
      %p201 = scmp.eq.s32.totalorder %s38, 1
      %p202 = scmp.ne.s32.totalorder %s197, %s199
      %p203 = scmp.eq.s32.totalorder %s38, 0
      %p204 = por %p202, %p203
      %p205 = scmp.ne.s32.totalorder %s197, %s199
      %p206 = scmp.eq.s32.totalorder %s43, 1
      %p207 = por %p205, %p206
      %p208 = scmp.ne.s32.totalorder %s199, %s200
      %p209 = scmp.eq.s32.totalorder %s43, 0
      %p210 = por %p208, %p209
      %p211 = scmp.ne.s32.totalorder %s199, %s200
      %p212 = scmp.eq.s32.totalorder %s44, 1
      %p213 = por %p211, %p212
      %p215 = scmp.ne.s32.totalorder %s200, %s214
      %p216 = scmp.eq.s32.totalorder %s44, 0
      %p217 = por %p215, %p216
      %s219 = sadd.s32 %s218, 1
      %p222 = scmp.eq.s32.totalorder %s38, 1
      %p223 = scmp.ne.s32.totalorder %s218, %s220
      %p224 = scmp.eq.s32.totalorder %s38, 0
      %p225 = por %p223, %p224
      %p226 = scmp.ne.s32.totalorder %s218, %s220
      %p227 = scmp.eq.s32.totalorder %s43, 1
      %p228 = por %p226, %p227
      %p229 = scmp.ne.s32.totalorder %s220, %s221
      %p230 = scmp.eq.s32.totalorder %s43, 0
      %p231 = por %p229, %p230
      %p232 = scmp.ne.s32.totalorder %s220, %s221
      %p233 = scmp.eq.s32.totalorder %s44, 1
      %p234 = por %p232, %p233
      %p236 = scmp.ne.s32.totalorder %s221, %s235
      %p237 = scmp.eq.s32.totalorder %s44, 0
      %p238 = por %p236, %p237
      %s240 = sadd.s32 %s239, 1
      %p243 = scmp.eq.s32.totalorder %s38, 1
      %p244 = scmp.ne.s32.totalorder %s239, %s241
      %p245 = scmp.eq.s32.totalorder %s38, 0
      %p246 = por %p244, %p245
      %p247 = scmp.ne.s32.totalorder %s239, %s241
      %p248 = scmp.eq.s32.totalorder %s43, 1
      %p249 = por %p247, %p248
      %p250 = scmp.ne.s32.totalorder %s241, %s242
      %p251 = scmp.eq.s32.totalorder %s43, 0
      %p252 = por %p250, %p251
      %p253 = scmp.ne.s32.totalorder %s241, %s242
      %p254 = scmp.eq.s32.totalorder %s44, 1
      %p255 = por %p253, %p254
      %p257 = scmp.ne.s32.totalorder %s242, %s256
      %p258 = scmp.eq.s32.totalorder %s44, 0
      %p259 = por %p257, %p258
      %s261 = sadd.s32 %s260, 1
      %p264 = scmp.eq.s32.totalorder %s38, 1
      %p265 = scmp.ne.s32.totalorder %s260, %s262
      %p266 = scmp.eq.s32.totalorder %s38, 0
      %p267 = por %p265, %p266
      %p268 = scmp.ne.s32.totalorder %s260, %s262
      %p269 = scmp.eq.s32.totalorder %s43, 1
      %p270 = por %p268, %p269
      %p271 = scmp.ne.s32.totalorder %s262, %s263
      %p272 = scmp.eq.s32.totalorder %s43, 0
      %p273 = por %p271, %p272
      %p274 = scmp.ne.s32.totalorder %s262, %s263
      %p275 = scmp.eq.s32.totalorder %s44, 1
      %p276 = por %p274, %p275
      %p278 = scmp.ne.s32.totalorder %s263, %s277
      %p279 = scmp.eq.s32.totalorder %s44, 0
      %p280 = por %p278, %p279
      %s282 = sadd.s32 %s281, 1
      %p285 = scmp.eq.s32.totalorder %s38, 1
      %p286 = scmp.ne.s32.totalorder %s281, %s283
      %p287 = scmp.eq.s32.totalorder %s38, 0
      %p288 = por %p286, %p287
      %p289 = scmp.ne.s32.totalorder %s281, %s283
      %p290 = scmp.eq.s32.totalorder %s43, 1
      %p291 = por %p289, %p290
      %p292 = scmp.ne.s32.totalorder %s283, %s284
      %p293 = scmp.eq.s32.totalorder %s43, 0
      %p294 = por %p292, %p293
      %p295 = scmp.ne.s32.totalorder %s283, %s284
      %p296 = scmp.eq.s32.totalorder %s44, 1
      %p297 = por %p295, %p296
      %p299 = scmp.ne.s32.totalorder %s284, %s298
      %p300 = scmp.eq.s32.totalorder %s44, 0
      %p301 = por %p299, %p300
      %s303 = sadd.s32 %s302, 1
      %p306 = scmp.eq.s32.totalorder %s38, 1
      %p307 = scmp.ne.s32.totalorder %s302, %s304
      %p308 = scmp.eq.s32.totalorder %s38, 0
      %p309 = por %p307, %p308
      %p310 = scmp.ne.s32.totalorder %s302, %s304
      %p311 = scmp.eq.s32.totalorder %s43, 1
      %p312 = por %p310, %p311
      %p313 = scmp.ne.s32.totalorder %s304, %s305
      %p314 = scmp.eq.s32.totalorder %s43, 0
      %p315 = por %p313, %p314
      %p316 = scmp.ne.s32.totalorder %s304, %s305
      %p317 = scmp.eq.s32.totalorder %s44, 1
      %p318 = por %p316, %p317
      %p320 = scmp.ne.s32.totalorder %s305, %s319
      %p321 = scmp.eq.s32.totalorder %s44, 0
      %p322 = por %p320, %p321
      %s324 = sadd.s32 %s323, 1
      %p327 = scmp.eq.s32.totalorder %s38, 1
      %p328 = scmp.ne.s32.totalorder %s323, %s325
      %p329 = scmp.eq.s32.totalorder %s38, 0
      %p330 = por %p328, %p329
      %p331 = scmp.ne.s32.totalorder %s323, %s325
      %p332 = scmp.eq.s32.totalorder %s43, 1
      %p333 = por %p331, %p332
      %p334 = scmp.ne.s32.totalorder %s325, %s326
      %p335 = scmp.eq.s32.totalorder %s43, 0
      %p336 = por %p334, %p335
      %p337 = scmp.ne.s32.totalorder %s325, %s326
      %p338 = scmp.eq.s32.totalorder %s44, 1
      %p339 = por %p337, %p338
      %p341 = scmp.ne.s32.totalorder %s326, %s340
      %p342 = scmp.eq.s32.totalorder %s44, 0
      %p343 = por %p341, %p342
      %s345 = sadd.s32 %s344, 1
      %p348 = scmp.eq.s32.totalorder %s38, 1
      %p349 = scmp.ne.s32.totalorder %s344, %s346
      %p350 = scmp.eq.s32.totalorder %s38, 0
      %p351 = por %p349, %p350
      %p352 = scmp.ne.s32.totalorder %s344, %s346
      %p353 = scmp.eq.s32.totalorder %s43, 1
      %p354 = por %p352, %p353
      %p355 = scmp.ne.s32.totalorder %s346, %s347
      %p356 = scmp.eq.s32.totalorder %s43, 0
      %p357 = por %p355, %p356
      %p358 = scmp.ne.s32.totalorder %s346, %s347
      %p359 = scmp.eq.s32.totalorder %s44, 1
      %p360 = por %p358, %p359
      %p362 = scmp.ne.s32.totalorder %s347, %s361
      %p363 = scmp.eq.s32.totalorder %s44, 0
      %p364 = por %p362, %p363
      %s366 = sadd.s32 %s365, 1
      %p369 = scmp.eq.s32.totalorder %s38, 1
      %p370 = scmp.ne.s32.totalorder %s365, %s367
      %p371 = scmp.eq.s32.totalorder %s38, 0
      %p372 = por %p370, %p371
      %p373 = scmp.ne.s32.totalorder %s365, %s367
      %p374 = scmp.eq.s32.totalorder %s43, 1
      %p375 = por %p373, %p374
      %p376 = scmp.ne.s32.totalorder %s367, %s368
      %p377 = scmp.eq.s32.totalorder %s43, 0
      %p378 = por %p376, %p377
      %p379 = scmp.ne.s32.totalorder %s367, %s368
      %p380 = scmp.eq.s32.totalorder %s44, 1
      %p381 = por %p379, %p380
      %p383 = scmp.ne.s32.totalorder %s368, %s382
      %p384 = scmp.eq.s32.totalorder %s44, 0
      %p385 = por %p383, %p384
      %s387 = sadd.s32 %s386, 1
      %p390 = scmp.eq.s32.totalorder %s38, 1
      %p391 = scmp.ne.s32.totalorder %s386, %s388
      %p392 = scmp.eq.s32.totalorder %s38, 0
      %p393 = por %p391, %p392
      %p394 = scmp.ne.s32.totalorder %s386, %s388
      %p395 = scmp.eq.s32.totalorder %s43, 1
      %p396 = por %p394, %p395
      %p397 = scmp.ne.s32.totalorder %s388, %s389
      %p398 = scmp.eq.s32.totalorder %s43, 0
      %p399 = por %p397, %p398
      %p400 = scmp.ne.s32.totalorder %s388, %s389
      %p401 = scmp.eq.s32.totalorder %s44, 1
      %p402 = por %p400, %p401
      %p404 = scmp.ne.s32.totalorder %s389, %s403
      %p405 = scmp.eq.s32.totalorder %s44, 0
      %p406 = por %p404, %p405
      %s408 = sadd.s32 %s407, 1
      %p411 = scmp.eq.s32.totalorder %s38, 1
      %p412 = scmp.ne.s32.totalorder %s407, %s409
      %p413 = scmp.eq.s32.totalorder %s38, 0
      %p414 = por %p412, %p413
      %p415 = scmp.ne.s32.totalorder %s407, %s409
      %p416 = scmp.eq.s32.totalorder %s43, 1
      %p417 = por %p415, %p416
      %p418 = scmp.ne.s32.totalorder %s409, %s410
      %p419 = scmp.eq.s32.totalorder %s43, 0
      %p420 = por %p418, %p419
      %p421 = scmp.ne.s32.totalorder %s409, %s410
      %p422 = scmp.eq.s32.totalorder %s44, 1
      %p423 = por %p421, %p422
      %p425 = scmp.ne.s32.totalorder %s410, %s424
      %p426 = scmp.eq.s32.totalorder %s44, 0
      %p427 = por %p425, %p426
      %s429 = sadd.s32 %s428, 1
      %p432 = scmp.eq.s32.totalorder %s38, 1
      %p433 = scmp.ne.s32.totalorder %s428, %s430
      %p434 = scmp.eq.s32.totalorder %s38, 0
      %p435 = por %p433, %p434
      %p436 = scmp.ne.s32.totalorder %s428, %s430
      %p437 = scmp.eq.s32.totalorder %s43, 1
      %p438 = por %p436, %p437
      %p439 = scmp.ne.s32.totalorder %s430, %s431
      %p440 = scmp.eq.s32.totalorder %s43, 0
      %p441 = por %p439, %p440
      %p442 = scmp.ne.s32.totalorder %s430, %s431
      %p443 = scmp.eq.s32.totalorder %s44, 1
      %p444 = por %p442, %p443
      %p446 = scmp.ne.s32.totalorder %s431, %s445
      %p447 = scmp.eq.s32.totalorder %s44, 0
      %p448 = por %p446, %p447
      %s450 = sadd.s32 %s449, 1
      %p453 = scmp.eq.s32.totalorder %s38, 1
      %p454 = scmp.ne.s32.totalorder %s449, %s451
      %p455 = scmp.eq.s32.totalorder %s38, 0
      %p456 = por %p454, %p455
      %p457 = scmp.ne.s32.totalorder %s449, %s451
      %p458 = scmp.eq.s32.totalorder %s43, 1
      %p459 = por %p457, %p458
      %p460 = scmp.ne.s32.totalorder %s451, %s452
      %p461 = scmp.eq.s32.totalorder %s43, 0
      %p462 = por %p460, %p461
      %p463 = scmp.ne.s32.totalorder %s451, %s452
      %p464 = scmp.eq.s32.totalorder %s44, 1
      %p465 = por %p463, %p464
      %p467 = scmp.ne.s32.totalorder %s452, %s466
      %p468 = scmp.eq.s32.totalorder %s44, 0
      %p469 = por %p467, %p468
      %s471 = sadd.s32 %s470, 1
      %p474 = scmp.eq.s32.totalorder %s38, 1
      %p475 = scmp.ne.s32.totalorder %s470, %s472
      %p476 = scmp.eq.s32.totalorder %s38, 0
      %p477 = por %p475, %p476
      %p478 = scmp.ne.s32.totalorder %s470, %s472
      %p479 = scmp.eq.s32.totalorder %s43, 1
      %p480 = por %p478, %p479
      %p481 = scmp.ne.s32.totalorder %s472, %s473
      %p482 = scmp.eq.s32.totalorder %s43, 0
      %p483 = por %p481, %p482
      %p484 = scmp.ne.s32.totalorder %s472, %s473
      %p485 = scmp.eq.s32.totalorder %s44, 1
      %p486 = por %p484, %p485
      %p488 = scmp.ne.s32.totalorder %s473, %s487
      %p489 = scmp.eq.s32.totalorder %s44, 0
      %p490 = por %p488, %p489
      %s492 = sadd.s32 %s491, 1
      %p495 = scmp.eq.s32.totalorder %s38, 1
      %p496 = scmp.ne.s32.totalorder %s491, %s493
      %p497 = scmp.eq.s32.totalorder %s38, 0
      %p498 = por %p496, %p497
      %p499 = scmp.ne.s32.totalorder %s491, %s493
      %p500 = scmp.eq.s32.totalorder %s43, 1
      %p501 = por %p499, %p500
      %p502 = scmp.ne.s32.totalorder %s493, %s494
      %p503 = scmp.eq.s32.totalorder %s43, 0
      %p504 = por %p502, %p503
      %p505 = scmp.ne.s32.totalorder %s493, %s494
      %p506 = scmp.eq.s32.totalorder %s44, 1
      %p507 = por %p505, %p506
      %p509 = scmp.ne.s32.totalorder %s494, %s508
      %p510 = scmp.eq.s32.totalorder %s44, 0
      %p511 = por %p509, %p510
      %s513 = sadd.s32 %s512, 1
      %p516 = scmp.eq.s32.totalorder %s38, 1
      %p517 = scmp.ne.s32.totalorder %s512, %s514
      %p518 = scmp.eq.s32.totalorder %s38, 0
      %p519 = por %p517, %p518
      %p520 = scmp.ne.s32.totalorder %s512, %s514
      %p521 = scmp.eq.s32.totalorder %s43, 1
      %p522 = por %p520, %p521
      %p523 = scmp.ne.s32.totalorder %s514, %s515
      %p524 = scmp.eq.s32.totalorder %s43, 0
      %p525 = por %p523, %p524
      %p526 = scmp.ne.s32.totalorder %s514, %s515
      %p527 = scmp.eq.s32.totalorder %s44, 1
      %p528 = por %p526, %p527
      %p530 = scmp.ne.s32.totalorder %s515, %s529
      %p531 = scmp.eq.s32.totalorder %s44, 0
      %p532 = por %p530, %p531
      %s534 = sadd.s32 %s533, 1
      %p537 = scmp.eq.s32.totalorder %s38, 1
      %p538 = scmp.ne.s32.totalorder %s533, %s535
      %p539 = scmp.eq.s32.totalorder %s38, 0
      %p540 = por %p538, %p539
      %p541 = scmp.ne.s32.totalorder %s533, %s535
      %p542 = scmp.eq.s32.totalorder %s43, 1
      %p543 = por %p541, %p542
      %p544 = scmp.ne.s32.totalorder %s535, %s536
      %p545 = scmp.eq.s32.totalorder %s43, 0
      %p546 = por %p544, %p545
      %p547 = scmp.ne.s32.totalorder %s535, %s536
      %p548 = scmp.eq.s32.totalorder %s44, 1
      %p549 = por %p547, %p548
      %p551 = scmp.ne.s32.totalorder %s536, %s550
      %p552 = scmp.eq.s32.totalorder %s44, 0
      %p553 = por %p551, %p552
      %s555 = sadd.s32 %s554, 1
      %p558 = scmp.eq.s32.totalorder %s38, 1
      %p559 = scmp.ne.s32.totalorder %s554, %s556
      %p560 = scmp.eq.s32.totalorder %s38, 0
      %p561 = por %p559, %p560
      %p562 = scmp.ne.s32.totalorder %s554, %s556
      %p563 = scmp.eq.s32.totalorder %s43, 1
      %p564 = por %p562, %p563
      %p565 = scmp.ne.s32.totalorder %s556, %s557
      %p566 = scmp.eq.s32.totalorder %s43, 0
      %p567 = por %p565, %p566
      %p568 = scmp.ne.s32.totalorder %s556, %s557
      %p569 = scmp.eq.s32.totalorder %s44, 1
      %p570 = por %p568, %p569
      %p572 = scmp.ne.s32.totalorder %s557, %s571
      %p573 = scmp.eq.s32.totalorder %s44, 0
      %p574 = por %p572, %p573
      %s576 = sadd.s32 %s575, 1
      %p579 = scmp.eq.s32.totalorder %s38, 1
      %p580 = scmp.ne.s32.totalorder %s575, %s577
      %p581 = scmp.eq.s32.totalorder %s38, 0
      %p582 = por %p580, %p581
      %p583 = scmp.ne.s32.totalorder %s575, %s577
      %p584 = scmp.eq.s32.totalorder %s43, 1
      %p585 = por %p583, %p584
      %p586 = scmp.ne.s32.totalorder %s577, %s578
      %p587 = scmp.eq.s32.totalorder %s43, 0
      %p588 = por %p586, %p587
      %p589 = scmp.ne.s32.totalorder %s577, %s578
      %p590 = scmp.eq.s32.totalorder %s44, 1
      %p591 = por %p589, %p590
      %p593 = scmp.ne.s32.totalorder %s578, %s592
      %p594 = scmp.eq.s32.totalorder %s44, 0
      %p595 = por %p593, %p594
      %s596 = ssub.s32 %s38, %s45
      %p597 = scmp.eq.s32.totalorder %s596, 0
      %s599 = sadd.s32 %s598, 1
      %s600 = scalar_select %p597, %s598, %s599
      %p603 = pneg %p597
      %p604 = scmp.eq.s32.totalorder %s38, 1
      %p605 = por %p603, %p604
      %p606 = scmp.ne.s32.totalorder %s598, %s601
      %p607 = scmp.eq.s32.totalorder %s38, 0
      %p608 = por %p606, %p607
      %p609 = scmp.ne.s32.totalorder %s598, %s601
      %p610 = scmp.eq.s32.totalorder %s43, 1
      %p611 = por %p609, %p610
      %p612 = scmp.ne.s32.totalorder %s601, %s602
      %p613 = scmp.eq.s32.totalorder %s43, 0
      %p614 = por %p612, %p613
      %p615 = scmp.ne.s32.totalorder %s601, %s602
      %p616 = scmp.eq.s32.totalorder %s44, 1
      %p617 = por %p615, %p616
      %p619 = scmp.ne.s32.totalorder %s602, %s618
      %p620 = scmp.eq.s32.totalorder %s44, 0
      %p621 = por %p619, %p620
      %p622 = scmp.le.s32.totalorder 1, %s38
      %p623 = scmp.lt.s32.totalorder %s38, 3
      %p624 = pnand %p622, %p623
      %p625 = pneg %p624
      // Predicated region
      $region9: #{tpu_custom_call.1} parent=5 // pred_check
        _
      $region10: #{tpu_custom_call.1} parent=5 // pred_check_branch
        %627 = sbr.rel (%p624) target = $region12
      $region11: #{tpu_custom_call.1} parent=5 // pred_region
        %s628 = ssub.s32 %s38, 1
        // Predicated region
        $region13: #{tpu_custom_call.1} parent=11 // pred_check
          %p629 = pneg %p189
        $region14: #{tpu_custom_call.1} parent=11 // pred_check_branch
          %631 = sbr.rel (%p629) target = $region16
        $region15: #{tpu_custom_call.1} parent=11 // pred_region
          %s633 = ssub.s32 256, 256
          %634 = vsyncadd [#allocation3], %s633
          %s635 = sshll.u32 [#allocation2], 4
          %s636 = int_to_ptr.vmem [resolvable:$true] %s635
          %641 = dma.hbm_to_vmem [thread:$0]  %s5, 256, %s636, [#allocation3], 128, 128, 8
        $region16: #{tpu_custom_call.1} parent=11 // pred_fallthru
          _
        // Predicated region
        $region17: #{tpu_custom_call.1} parent=11 // pred_check
          %p642 = pneg %p210
        $region18: #{tpu_custom_call.1} parent=11 // pred_check_branch
          %644 = sbr.rel (%p642) target = $region20
        $region19: #{tpu_custom_call.1} parent=11 // pred_region
          _
        $region20: #{tpu_custom_call.1} parent=11 // pred_fallthru
          _
        // Predicated region
        $region21: #{tpu_custom_call.1} parent=11 // pred_check
          %p645 = pneg %p231
        $region22: #{tpu_custom_call.1} parent=11 // pred_check_branch
          %647 = sbr.rel (%p645) target = $region24
        $region23: #{tpu_custom_call.1} parent=11 // pred_region
          _
        $region24: #{tpu_custom_call.1} parent=11 // pred_fallthru
          _
        // Predicated region
        $region25: #{tpu_custom_call.1} parent=11 // pred_check
          %p648 = pneg %p252
        $region26: #{tpu_custom_call.1} parent=11 // pred_check_branch
          %650 = sbr.rel (%p648) target = $region28
        $region27: #{tpu_custom_call.1} parent=11 // pred_region
          %s652 = ssub.s32 512, 512
          %653 = vsyncadd [#allocation5], %s652
          %s654 = sshll.u32 [#allocation4], 4
          %s655 = int_to_ptr.vmem [resolvable:$true] %s654
          %660 = dma.hbm_to_vmem [thread:$0]  %s8, 512, %s655, [#allocation5], 128, 128, 8
        $region28: #{tpu_custom_call.1} parent=11 // pred_fallthru
          _
        // Predicated region
        $region29: #{tpu_custom_call.1} parent=11 // pred_check
          %p661 = pneg %p273
        $region30: #{tpu_custom_call.1} parent=11 // pred_check_branch
          %663 = sbr.rel (%p661) target = $region32
        $region31: #{tpu_custom_call.1} parent=11 // pred_region
          _
        $region32: #{tpu_custom_call.1} parent=11 // pred_fallthru
          _
        // Predicated region
        $region33: #{tpu_custom_call.1} parent=11 // pred_check
          %p664 = pneg %p294
        $region34: #{tpu_custom_call.1} parent=11 // pred_check_branch
          %666 = sbr.rel (%p664) target = $region36
        $region35: #{tpu_custom_call.1} parent=11 // pred_region
          %s668 = ssub.s32 32, 32
          %669 = vsyncadd [#allocation5], %s668
          %s671 = sshll.u32 [#allocation6], 4
          %s672 = int_to_ptr.vmem [resolvable:$true] %s671
          %674 = dma.hbm_to_vmem [thread:$0]  %s10, 32, %s672, [#allocation5]
        $region36: #{tpu_custom_call.1} parent=11 // pred_fallthru
          _
        // Predicated region
        $region37: #{tpu_custom_call.1} parent=11 // pred_check
          %p675 = pneg %p315
        $region38: #{tpu_custom_call.1} parent=11 // pred_check_branch
          %677 = sbr.rel (%p675) target = $region40
        $region39: #{tpu_custom_call.1} parent=11 // pred_region
          _
        $region40: #{tpu_custom_call.1} parent=11 // pred_fallthru
          _
        // Predicated region
        $region41: #{tpu_custom_call.1} parent=11 // pred_check
          %p678 = pneg %p336
        $region42: #{tpu_custom_call.1} parent=11 // pred_check_branch
          %680 = sbr.rel (%p678) target = $region44
        $region43: #{tpu_custom_call.1} parent=11 // pred_region
          %s682 = ssub.s32 2048, 2048
          %683 = vsyncadd [#allocation8], %s682
          %s684 = sshll.u32 [#allocation7], 4
          %s685 = int_to_ptr.vmem [resolvable:$true] %s684
          %690 = dma.hbm_to_vmem [thread:$0]  %s12, 2048, %s685, [#allocation8], 128, 128, 8
        $region44: #{tpu_custom_call.1} parent=11 // pred_fallthru
          _
        // Predicated region
        $region45: #{tpu_custom_call.1} parent=11 // pred_check
          %p691 = pneg %p357
        $region46: #{tpu_custom_call.1} parent=11 // pred_check_branch
          %693 = sbr.rel (%p691) target = $region48
        $region47: #{tpu_custom_call.1} parent=11 // pred_region
          _
        $region48: #{tpu_custom_call.1} parent=11 // pred_fallthru
          _
        // Predicated region
        $region49: #{tpu_custom_call.1} parent=11 // pred_check
          %p694 = pneg %p378
        $region50: #{tpu_custom_call.1} parent=11 // pred_check_branch
          %696 = sbr.rel (%p694) target = $region52
        $region51: #{tpu_custom_call.1} parent=11 // pred_region
          %s698 = ssub.s32 64, 64
          %699 = vsyncadd [#allocation8], %s698
          %s701 = sshll.u32 [#allocation9], 4
          %s702 = int_to_ptr.vmem [resolvable:$true] %s701
          %704 = dma.hbm_to_vmem [thread:$0]  %s14, 64, %s702, [#allocation8]
        $region52: #{tpu_custom_call.1} parent=11 // pred_fallthru
          _
        // Predicated region
        $region53: #{tpu_custom_call.1} parent=11 // pred_check
          %p705 = pneg %p399
        $region54: #{tpu_custom_call.1} parent=11 // pred_check_branch
          %707 = sbr.rel (%p705) target = $region56
        $region55: #{tpu_custom_call.1} parent=11 // pred_region
          %s709 = ssub.s32 4096, 4096
          %710 = vsyncadd [#allocation11], %s709
          %s711 = sshll.u32 [#allocation10], 4
          %s712 = int_to_ptr.vmem [resolvable:$true] %s711
          %717 = dma.hbm_to_vmem [thread:$0]  %s15, 4096, %s712, [#allocation11], 128, 128, 8
        $region56: #{tpu_custom_call.1} parent=11 // pred_fallthru
          _
        // Predicated region
        $region57: #{tpu_custom_call.1} parent=11 // pred_check
          %p718 = pneg %p420
        $region58: #{tpu_custom_call.1} parent=11 // pred_check_branch
          %720 = sbr.rel (%p718) target = $region60
        $region59: #{tpu_custom_call.1} parent=11 // pred_region
          %s722 = ssub.s32 4096, 4096
          %723 = vsyncadd [#allocation11], %s722
          %s724 = sshll.u32 [#allocation12], 4
          %s725 = int_to_ptr.vmem [resolvable:$true] %s724
          %730 = dma.hbm_to_vmem [thread:$0]  %s16, 4096, %s725, [#allocation11], 128, 128, 8
        $region60: #{tpu_custom_call.1} parent=11 // pred_fallthru
          _
        // Predicated region
        $region61: #{tpu_custom_call.1} parent=11 // pred_check
          %p731 = pneg %p441
        $region62: #{tpu_custom_call.1} parent=11 // pred_check_branch
          %733 = sbr.rel (%p731) target = $region64
        $region63: #{tpu_custom_call.1} parent=11 // pred_region
          _
        $region64: #{tpu_custom_call.1} parent=11 // pred_fallthru
          _
        // Predicated region
        $region65: #{tpu_custom_call.1} parent=11 // pred_check
          %p734 = pneg %p462
        $region66: #{tpu_custom_call.1} parent=11 // pred_check_branch
          %736 = sbr.rel (%p734) target = $region68
        $region67: #{tpu_custom_call.1} parent=11 // pred_region
          %s738 = ssub.s32 128, 128
          %739 = vsyncadd [#allocation14], %s738
          %s741 = sshll.u32 [#allocation13], 4
          %s742 = int_to_ptr.vmem [resolvable:$true] %s741
          %744 = dma.hbm_to_vmem [thread:$0]  %s18, 128, %s742, [#allocation14]
        $region68: #{tpu_custom_call.1} parent=11 // pred_fallthru
          _
        // Predicated region
        $region69: #{tpu_custom_call.1} parent=11 // pred_check
          %p745 = pneg %p483
        $region70: #{tpu_custom_call.1} parent=11 // pred_check_branch
          %747 = sbr.rel (%p745) target = $region72
        $region71: #{tpu_custom_call.1} parent=11 // pred_region
          %s749 = ssub.s32 16384, 16384
          %750 = vsyncadd [#allocation14], %s749
          %s751 = sshll.u32 [#allocation15], 4
          %s752 = int_to_ptr.vmem [resolvable:$true] %s751
          %757 = dma.hbm_to_vmem [thread:$0]  %s19, 16384, %s752, [#allocation14], 256, 256, 16
        $region72: #{tpu_custom_call.1} parent=11 // pred_fallthru
          _
        // Predicated region
        $region73: #{tpu_custom_call.1} parent=11 // pred_check
          %p758 = pneg %p504
        $region74: #{tpu_custom_call.1} parent=11 // pred_check_branch
          %760 = sbr.rel (%p758) target = $region76
        $region75: #{tpu_custom_call.1} parent=11 // pred_region
          %s762 = ssub.s32 8192, 8192
          %763 = vsyncadd [#allocation17], %s762
          %s764 = sshll.u32 [#allocation16], 4
          %s765 = int_to_ptr.vmem [resolvable:$true] %s764
          %770 = dma.hbm_to_vmem [thread:$0]  %s20, 8192, %s765, [#allocation17], 128, 128, 8
        $region76: #{tpu_custom_call.1} parent=11 // pred_fallthru
          _
        // Predicated region
        $region77: #{tpu_custom_call.1} parent=11 // pred_check
          %p771 = pneg %p525
        $region78: #{tpu_custom_call.1} parent=11 // pred_check_branch
          %773 = sbr.rel (%p771) target = $region80
        $region79: #{tpu_custom_call.1} parent=11 // pred_region
          _
        $region80: #{tpu_custom_call.1} parent=11 // pred_fallthru
          _
        // Predicated region
        $region81: #{tpu_custom_call.1} parent=11 // pred_check
          %p774 = pneg %p546
        $region82: #{tpu_custom_call.1} parent=11 // pred_check_branch
          %776 = sbr.rel (%p774) target = $region84
        $region83: #{tpu_custom_call.1} parent=11 // pred_region
          %s778 = ssub.s32 256, 256
          %779 = vsyncadd [#allocation17], %s778
          %s780 = sshll.u32 [#allocation18], 4
          %s781 = int_to_ptr.vmem [resolvable:$true] %s780
          %786 = dma.hbm_to_vmem [thread:$0]  %s22, 256, %s781, [#allocation17], 128, 128, 8
        $region84: #{tpu_custom_call.1} parent=11 // pred_fallthru
          _
        // Predicated region
        $region85: #{tpu_custom_call.1} parent=11 // pred_check
          %p787 = pneg %p567
        $region86: #{tpu_custom_call.1} parent=11 // pred_check_branch
          %789 = sbr.rel (%p787) target = $region88
        $region87: #{tpu_custom_call.1} parent=11 // pred_region
          %s791 = ssub.s32 65536, 65536
          %792 = vsyncadd [#allocation20], %s791
          %s793 = sshll.u32 [#allocation19], 4
          %s794 = int_to_ptr.vmem [resolvable:$true] %s793
          %799 = dma.hbm_to_vmem [thread:$0]  %s23, 65536, %s794, [#allocation20], 512, 512, 32
        $region88: #{tpu_custom_call.1} parent=11 // pred_fallthru
          _
        // Predicated region
        $region89: #{tpu_custom_call.1} parent=11 // pred_check
          %p800 = pneg %p588
        $region90: #{tpu_custom_call.1} parent=11 // pred_check_branch
          %802 = sbr.rel (%p800) target = $region92
        $region91: #{tpu_custom_call.1} parent=11 // pred_region
          %s804 = ssub.s32 512, 512
          %805 = vsyncadd [#allocation20], %s804
          %s806 = sshll.u32 [#allocation21], 4
          %s807 = int_to_ptr.vmem [resolvable:$true] %s806
          %812 = dma.hbm_to_vmem [thread:$0]  %s24, 512, %s807, [#allocation20], 128, 128, 8
        $region92: #{tpu_custom_call.1} parent=11 // pred_fallthru
          _
      $region12: #{tpu_custom_call.1} parent=5 // pred_fallthru
        _
      %p813 = scmp.lt.s32.totalorder %s38, 2
      // Predicated region
      $region93: #{tpu_custom_call.1} parent=5 // pred_check
        %p814 = pneg %p813
      $region94: #{tpu_custom_call.1} parent=5 // pred_check_branch
        %816 = sbr.rel (%p814) target = $region96
      $region95: #{tpu_custom_call.1} parent=5 // pred_region
        // Predicated region
        $region97: #{tpu_custom_call.1} parent=95 // pred_check
          %p817 = pneg %p58
        $region98: #{tpu_custom_call.1} parent=95 // pred_check_branch
          %819 = sbr.rel (%p817) target = $region100
        $region99: #{tpu_custom_call.1} parent=95 // pred_region
          %p820 = scmp.lt.s32.totalorder %s38, 1
          %s821 = scalar_select %p820, %s38, 1
          %s822 = smul.addr %s821, 16
          %s823 = smul.addr %s822, 8
          %s824 = scalar_lea.vmem %s0, %s823
        $region100: #{tpu_custom_call.1} parent=95 // pred_fallthru
          _
        // Predicated region
        $region101: #{tpu_custom_call.1} parent=95 // pred_check
          %p825 = pneg %p84
        $region102: #{tpu_custom_call.1} parent=95 // pred_check_branch
          %827 = sbr.rel (%p825) target = $region104
        $region103: #{tpu_custom_call.1} parent=95 // pred_region
          %p828 = scmp.lt.s32.totalorder %s38, 1
          %s829 = scalar_select %p828, %s38, 1
          %s830 = smul.addr %s829, 16
          %s831 = smul.addr %s830, 8
          %s832 = scalar_lea.vmem %s1, %s831
        $region104: #{tpu_custom_call.1} parent=95 // pred_fallthru
          _
        // Predicated region
        $region105: #{tpu_custom_call.1} parent=95 // pred_check
          %p833 = pneg %p110
        $region106: #{tpu_custom_call.1} parent=95 // pred_check_branch
          %835 = sbr.rel (%p833) target = $region108
        $region107: #{tpu_custom_call.1} parent=95 // pred_region
          %p836 = scmp.lt.s32.totalorder %s38, 1
          %s837 = scalar_select %p836, %s38, 1
          %s838 = smul.addr %s837, 16
          %s839 = smul.addr %s838, 8
          %s840 = scalar_lea.vmem %s2, %s839
        $region108: #{tpu_custom_call.1} parent=95 // pred_fallthru
          _
        // Predicated region
        $region109: #{tpu_custom_call.1} parent=95 // pred_check
          %p841 = pneg %p136
        $region110: #{tpu_custom_call.1} parent=95 // pred_check_branch
          %843 = sbr.rel (%p841) target = $region112
        $region111: #{tpu_custom_call.1} parent=95 // pred_region
          %p844 = scmp.lt.s32.totalorder %s38, 1
          %s845 = scalar_select %p844, %s38, 1
          %s846 = smul.addr %s845, 16
          %s847 = smul.addr %s846, 8
          %s848 = scalar_lea.vmem %s3, %s847
        $region112: #{tpu_custom_call.1} parent=95 // pred_fallthru
          _
        // Predicated region
        $region113: #{tpu_custom_call.1} parent=95 // pred_check
          %p849 = pneg %p162
        $region114: #{tpu_custom_call.1} parent=95 // pred_check_branch
          %851 = sbr.rel (%p849) target = $region116
        $region115: #{tpu_custom_call.1} parent=95 // pred_region
          %p852 = scmp.lt.s32.totalorder %s38, 1
          %s853 = scalar_select %p852, %s38, 1
          %s854 = smul.addr %s853, 16
          %s855 = smul.addr %s854, 8
          %s856 = scalar_lea.vmem %s4, %s855
        $region116: #{tpu_custom_call.1} parent=95 // pred_fallthru
          _
      $region96: #{tpu_custom_call.1} parent=5 // pred_fallthru
        _
      %p857 = scmp.le.s32.totalorder 1, %s38
      %p858 = scmp.lt.s32.totalorder %s38, 3
      %p859 = pnand %p857, %p858
      %p860 = pneg %p859
      // Predicated region
      $region117: #{tpu_custom_call.1} parent=5 // pred_check
        _
      $region118: #{tpu_custom_call.1} parent=5 // pred_check_branch
        %862 = sbr.rel (%p859) target = $region120
      $region119: #{tpu_custom_call.1} parent=5 // pred_region
        %s863 = ssub.s32 %s38, 1
        // Predicated region
        $region121: #{tpu_custom_call.1} parent=119 // pred_check
          %p864 = pneg %p189
        $region122: #{tpu_custom_call.1} parent=119 // pred_check_branch
          %866 = sbr.rel (%p864) target = $region124
        $region123: #{tpu_custom_call.1} parent=119 // pred_region
          %867 = dma.done [#allocation3], 256
        $region124: #{tpu_custom_call.1} parent=119 // pred_fallthru
          _
        // Predicated region
        $region125: #{tpu_custom_call.1} parent=119 // pred_check
          %p868 = pneg %p252
        $region126: #{tpu_custom_call.1} parent=119 // pred_check_branch
          %870 = sbr.rel (%p868) target = $region128
        $region127: #{tpu_custom_call.1} parent=119 // pred_region
          %871 = dma.done [#allocation5], 512
        $region128: #{tpu_custom_call.1} parent=119 // pred_fallthru
          _
        // Predicated region
        $region129: #{tpu_custom_call.1} parent=119 // pred_check
          %p872 = pneg %p294
        $region130: #{tpu_custom_call.1} parent=119 // pred_check_branch
          %874 = sbr.rel (%p872) target = $region132
        $region131: #{tpu_custom_call.1} parent=119 // pred_region
          %875 = dma.done [#allocation5], 32
        $region132: #{tpu_custom_call.1} parent=119 // pred_fallthru
          _
        // Predicated region
        $region133: #{tpu_custom_call.1} parent=119 // pred_check
          %p876 = pneg %p336
        $region134: #{tpu_custom_call.1} parent=119 // pred_check_branch
          %878 = sbr.rel (%p876) target = $region136
        $region135: #{tpu_custom_call.1} parent=119 // pred_region
          %879 = dma.done [#allocation8], 2048
        $region136: #{tpu_custom_call.1} parent=119 // pred_fallthru
          _
        // Predicated region
        $region137: #{tpu_custom_call.1} parent=119 // pred_check
          %p880 = pneg %p378
        $region138: #{tpu_custom_call.1} parent=119 // pred_check_branch
          %882 = sbr.rel (%p880) target = $region140
        $region139: #{tpu_custom_call.1} parent=119 // pred_region
          %883 = dma.done [#allocation8], 64
        $region140: #{tpu_custom_call.1} parent=119 // pred_fallthru
          _
        // Predicated region
        $region141: #{tpu_custom_call.1} parent=119 // pred_check
          %p884 = pneg %p399
        $region142: #{tpu_custom_call.1} parent=119 // pred_check_branch
          %886 = sbr.rel (%p884) target = $region144
        $region143: #{tpu_custom_call.1} parent=119 // pred_region
          %887 = dma.done [#allocation11], 4096
        $region144: #{tpu_custom_call.1} parent=119 // pred_fallthru
          _
        // Predicated region
        $region145: #{tpu_custom_call.1} parent=119 // pred_check
          %p888 = pneg %p420
        $region146: #{tpu_custom_call.1} parent=119 // pred_check_branch
          %890 = sbr.rel (%p888) target = $region148
        $region147: #{tpu_custom_call.1} parent=119 // pred_region
          %891 = dma.done [#allocation11], 4096
        $region148: #{tpu_custom_call.1} parent=119 // pred_fallthru
          _
        // Predicated region
        $region149: #{tpu_custom_call.1} parent=119 // pred_check
          %p892 = pneg %p462
        $region150: #{tpu_custom_call.1} parent=119 // pred_check_branch
          %894 = sbr.rel (%p892) target = $region152
        $region151: #{tpu_custom_call.1} parent=119 // pred_region
          %895 = dma.done [#allocation14], 128
        $region152: #{tpu_custom_call.1} parent=119 // pred_fallthru
          _
        // Predicated region
        $region153: #{tpu_custom_call.1} parent=119 // pred_check
          %p896 = pneg %p483
        $region154: #{tpu_custom_call.1} parent=119 // pred_check_branch
          %898 = sbr.rel (%p896) target = $region156
        $region155: #{tpu_custom_call.1} parent=119 // pred_region
          %899 = dma.done [#allocation14], 16384
        $region156: #{tpu_custom_call.1} parent=119 // pred_fallthru
          _
        // Predicated region
        $region157: #{tpu_custom_call.1} parent=119 // pred_check
          %p900 = pneg %p504
        $region158: #{tpu_custom_call.1} parent=119 // pred_check_branch
          %902 = sbr.rel (%p900) target = $region160
        $region159: #{tpu_custom_call.1} parent=119 // pred_region
          %903 = dma.done [#allocation17], 8192
        $region160: #{tpu_custom_call.1} parent=119 // pred_fallthru
          _
        // Predicated region
        $region161: #{tpu_custom_call.1} parent=119 // pred_check
          %p904 = pneg %p546
        $region162: #{tpu_custom_call.1} parent=119 // pred_check_branch
          %906 = sbr.rel (%p904) target = $region164
        $region163: #{tpu_custom_call.1} parent=119 // pred_region
          %907 = dma.done [#allocation17], 256
        $region164: #{tpu_custom_call.1} parent=119 // pred_fallthru
          _
        // Predicated region
        $region165: #{tpu_custom_call.1} parent=119 // pred_check
          %p908 = pneg %p567
        $region166: #{tpu_custom_call.1} parent=119 // pred_check_branch
          %910 = sbr.rel (%p908) target = $region168
        $region167: #{tpu_custom_call.1} parent=119 // pred_region
          %911 = dma.done [#allocation20], 65536
        $region168: #{tpu_custom_call.1} parent=119 // pred_fallthru
          _
        // Predicated region
        $region169: #{tpu_custom_call.1} parent=119 // pred_check
          %p912 = pneg %p588
        $region170: #{tpu_custom_call.1} parent=119 // pred_check_branch
          %914 = sbr.rel (%p912) target = $region172
        $region171: #{tpu_custom_call.1} parent=119 // pred_region
          %915 = dma.done [#allocation20], 512
        $region172: #{tpu_custom_call.1} parent=119 // pred_fallthru
          _
        %p916 = scmp.lt.s32.totalorder %s43, 1
        %s917 = scalar_select %p916, %s43, 1
        %s918 = smul.addr %s917, 16
        %s919 = smul.addr %s918, 8
        %s920 = scalar_lea.vmem %s0, %s919
        %p921 = pneg %p64
        %p922 = pneg %p61
        %p923 = scmp.lt.s32.totalorder %s43, 1
        %s924 = scalar_select %p923, %s43, 1
        %s925 = smul.addr %s924, 16
        %s926 = smul.addr %s925, 8
        %s927 = scalar_lea.vmem %s1, %s926
        %p928 = pneg %p90
        %p929 = pneg %p87
        %p930 = scmp.lt.s32.totalorder %s43, 1
        %s931 = scalar_select %p930, %s43, 1
        %s932 = smul.addr %s931, 16
        %s933 = smul.addr %s932, 8
        %s934 = scalar_lea.vmem %s2, %s933
        %p935 = pneg %p116
        %p936 = pneg %p113
        %p937 = scmp.lt.s32.totalorder %s43, 1
        %s938 = scalar_select %p937, %s43, 1
        %s939 = smul.addr %s938, 16
        %s940 = smul.addr %s939, 8
        %s941 = scalar_lea.vmem %s3, %s940
        %p942 = pneg %p142
        %p943 = pneg %p139
        %p944 = scmp.lt.s32.totalorder %s43, 1
        %s945 = scalar_select %p944, %s43, 1
        %s946 = smul.addr %s945, 16
        %s947 = smul.addr %s946, 8
        %s948 = scalar_lea.vmem %s4, %s947
        %p949 = pneg %p168
        %p950 = pneg %p165
        %p951 = pneg %p189
        %p952 = pneg %p186
        %p953 = pneg %p210
        %p954 = pneg %p207
        %p955 = pneg %p231
        %p956 = pneg %p228
        %p957 = pneg %p252
        %p958 = pneg %p249
        %p959 = pneg %p273
        %p960 = pneg %p270
        %p961 = pneg %p294
        %p962 = pneg %p291
        %p963 = pneg %p315
        %p964 = pneg %p312
        %p965 = pneg %p336
        %p966 = pneg %p333
        %p967 = pneg %p357
        %p968 = pneg %p354
        %p969 = pneg %p378
        %p970 = pneg %p375
        %p971 = pneg %p399
        %p972 = pneg %p396
        %p973 = pneg %p420
        %p974 = pneg %p417
        %p975 = pneg %p441
        %p976 = pneg %p438
        %p977 = pneg %p462
        %p978 = pneg %p459
        %p979 = pneg %p483
        %p980 = pneg %p480
        %p981 = pneg %p504
        %p982 = pneg %p501
        %p983 = pneg %p525
        %p984 = pneg %p522
        %p985 = pneg %p546
        %p986 = pneg %p543
        %p987 = pneg %p567
        %p988 = pneg %p564
        %p989 = pneg %p588
        %p990 = pneg %p585
        %p991 = pneg %p614
        %p992 = pneg %p611
        %p993 = scmp.lt.s32.totalorder %s43, 1
        %s994 = scalar_select %p993, %s43, 1
        %s995 = smul.addr %s994, 128
        %s996 = smul.addr %s995, 8
        %s997 = scalar_lea.vmem %s25, %s996
        %p998 = scmp.lt.s32.totalorder %s43, 1
        %s999 = scalar_select %p998, %s43, 1
        %s1000 = smul.addr %s999, 16
        %s1001 = smul.addr %s1000, 8
        %s1002 = scalar_lea.vmem %s0, %s1001
        %p1003 = scmp.lt.s32.totalorder %s43, 1
        %s1004 = scalar_select %p1003, %s43, 1
        %s1005 = smul.addr %s1004, 16
        %s1006 = smul.addr %s1005, 8
        %s1007 = scalar_lea.vmem %s1, %s1006
        %p1008 = scmp.lt.s32.totalorder %s43, 1
        %s1009 = scalar_select %p1008, %s43, 1
        %s1010 = smul.addr %s1009, 16
        %s1011 = smul.addr %s1010, 8
        %s1012 = scalar_lea.vmem %s2, %s1011
        %p1013 = scmp.lt.s32.totalorder %s43, 1
        %s1014 = scalar_select %p1013, %s43, 1
        %s1015 = smul.addr %s1014, 16
        %s1016 = smul.addr %s1015, 8
        %s1017 = scalar_lea.vmem %s3, %s1016
        %p1018 = scmp.lt.s32.totalorder %s43, 1
        %s1019 = scalar_select %p1018, %s43, 1
        %s1020 = smul.addr %s1019, 16
        %s1021 = smul.addr %s1020, 8
        %s1022 = scalar_lea.vmem %s4, %s1021
        %p1023 = scmp.lt.s32.totalorder %s43, 1
        %s1024 = scalar_select %p1023, %s43, 1
        %s1025 = smul.addr %s1024, 128
        %s1026 = smul.addr %s1025, 8
        %s1027 = scalar_lea.vmem %s25, %s1026
        %v1028 = vld [vmem:[#allocation2] sm:$0xff]
        %v1029 = vld [vmem:[#allocation2 + $0x8] sm:$0xff]
        %v1030 = vld [vmem:[%s1002] sm:$0xff]
        %v1031 = vld [vmem:[%s1002 + $0x8] sm:$0xff]
        %v1032 = vld [vmem:[%s1002 + $0x10] sm:$0xff]
        %v1033 = vld [vmem:[%s1002 + $0x18] sm:$0xff]
        %v1034 = vld [vmem:[%s1002 + $0x20] sm:$0xff]
        %v1035 = vld [vmem:[%s1002 + $0x28] sm:$0xff]
        %v1036 = vld [vmem:[%s1002 + $0x30] sm:$0xff]
        %v1037 = vld [vmem:[%s1002 + $0x38] sm:$0xff]
        %v1038 = vld [vmem:[%s1002 + $0x40] sm:$0xff]
        %v1039 = vld [vmem:[%s1002 + $0x48] sm:$0xff]
        %v1040 = vld [vmem:[%s1002 + $0x50] sm:$0xff]
        %v1041 = vld [vmem:[%s1002 + $0x58] sm:$0xff]
        %v1042 = vld [vmem:[%s1002 + $0x60] sm:$0xff]
        %v1043 = vld [vmem:[%s1002 + $0x68] sm:$0xff]
        %v1044 = vld [vmem:[%s1002 + $0x70] sm:$0xff]
        %v1045 = vld [vmem:[%s1002 + $0x78] sm:$0xff]
        %v1046 = vld [vmem:[%s6] sm:$0xff]
        %v1047 = vld [vmem:[%s6 + $0x8] sm:$0xff]
        %1049 = vset.pattern.permute.xlu0 0
        %1050 = vperm.xlu0 %1049, %v1046
        %v1051 = vpop.permute.xlu0 %1050
        %1054 = vset.pattern.permute.xlu0 0
        %1055 = vperm.xlu0 %1054, %v1047
        %v1056 = vpop.permute.xlu0 %1055
        %1058 = vmatprep.subr.mxu0 0.0
        %1059 = vmatpush1.msra.mxu0 %v1030
        %1060 = vmatprep.subr.mxu0 0.0
        %1061 = vmatpush1.msra.mxu0 %v1031
        %1062 = vmatprep.subr.mxu0 0.0
        %1063 = vmatpush1.msra.mxu0 %v1032
        %1064 = vmatprep.subr.mxu0 0.0
        %1065 = vmatpush1.msra.mxu0 %v1033
        %1066 = vmatprep.subr.mxu0 0.0
        %1067 = vmatpush1.msra.mxu0 %v1034
        %1068 = vmatprep.subr.mxu0 0.0
        %1069 = vmatpush1.msra.mxu0 %v1035
        %1070 = vmatprep.subr.mxu0 0.0
        %1071 = vmatpush1.msra.mxu0 %v1036
        %1072 = vmatprep.subr.mxu0 0.0
        %1073 = vmatpush1.msra.mxu0 %v1037
        %1074 = vmatprep.subr.mxu0 0.0
        %1075 = vmatpush1.msra.mxu0 %v1038
        %1076 = vmatprep.subr.mxu0 0.0
        %1077 = vmatpush1.msra.mxu0 %v1039
        %1078 = vmatprep.subr.mxu0 0.0
        %1079 = vmatpush1.msra.mxu0 %v1040
        %1080 = vmatprep.subr.mxu0 0.0
        %1081 = vmatpush1.msra.mxu0 %v1041
        %1082 = vmatprep.subr.mxu0 0.0
        %1083 = vmatpush1.msra.mxu0 %v1042
        %1084 = vmatprep.subr.mxu0 0.0
        %1085 = vmatpush1.msra.mxu0 %v1043
        %1086 = vmatprep.subr.mxu0 0.0
        %1087 = vmatpush1.msra.mxu0 %v1044
        %1088 = vmatprep.subr.mxu0 0.0
        %1089 = vmatpush1.msra.mxu0 %v1045
        %1090 = vmatprep.subr.mxu0 0.0
        %1091 = vmatpush1.msra.mxu0 0.0
        %1092 = vmatprep.subr.mxu0 0.0
        %1093 = vmatpush1.msra.mxu0 0.0
        %1094 = vmatprep.subr.mxu0 0.0
        %1095 = vmatpush1.msra.mxu0 0.0
        %1096 = vmatprep.subr.mxu0 0.0
        %1097 = vmatpush1.msra.mxu0 0.0
        %1098 = vmatprep.subr.mxu0 0.0
        %1099 = vmatpush1.msra.mxu0 0.0
        %1100 = vmatprep.subr.mxu0 0.0
        %1101 = vmatpush1.msra.mxu0 0.0
        %1102 = vmatprep.subr.mxu0 0.0
        %1103 = vmatpush1.msra.mxu0 0.0
        %1104 = vmatprep.subr.mxu0 0.0
        %1105 = vmatpush1.msra.mxu0 0.0
        %1106 = vmatprep.subr.mxu0 0.0
        %1107 = vmatpush1.msra.mxu0 0.0
        %1108 = vmatprep.subr.mxu0 0.0
        %1109 = vmatpush1.msra.mxu0 0.0
        %1110 = vmatprep.subr.mxu0 0.0
        %1111 = vmatpush1.msra.mxu0 0.0
        %1112 = vmatprep.subr.mxu0 0.0
        %1113 = vmatpush1.msra.mxu0 0.0
        %1114 = vmatprep.subr.mxu0 0.0
        %1115 = vmatpush1.msra.mxu0 0.0
        %1116 = vmatprep.subr.mxu0 0.0
        %1117 = vmatpush1.msra.mxu0 0.0
        %1118 = vmatprep.subr.mxu0 0.0
        %1119 = vmatpush1.msra.mxu0 0.0
        %1120 = vmatprep.subr.mxu0 0.0
        %1121 = vmatpush1.msra.mxu0 0.0
        %1122 = vmatprep.mubr.f32.mxu0 0.0
        %1123 = vmatmul.mubr.f32.gmra.mrb[0].mxu0 %v1028
        %v1124 = vpop.f32.mrb[0].mxu0
        %v1125 = vadd.f32 %v1051, %v1124
        %v1126 = vpop.f32.mrb[0].mxu0
        %1127 = vmatprep.mubr.f32.mxu0 0.0
        %1128 = vmatmul.mubr.f32.gmra.mrb[0].mxu0 %v1029
        %v1129 = vpop.f32.mrb[0].mxu0
        %v1130 = vadd.f32 %v1056, %v1129
        %v1131 = vpop.f32.mrb[0].mxu0
        %1132 = vdwg.mxu0
        %v1133 = vld [vmem:[%s7] sm:$0xff]
        %v1134 = vld [vmem:[%s7 + $0x8] sm:$0xff]
        %v1135 = vld [vmem:[%s7 + $0x10] sm:$0xff]
        %v1136 = vld [vmem:[%s7 + $0x18] sm:$0xff]
        %vm1137 = vcmask 130048
        %v1139 = vsel %vm1137, %v1133, 0
        %v1142 = vsel %vm1137, %v1134, 0
        %v1145 = vsel %vm1137, %v1135, 0
        %v1148 = vsel %vm1137, %v1136, 0
        %1150 = vmatprep.subr.mxu0 0.0
        %1151 = vmatpush1.msra.mxu0 %v1125
        %1152 = vmatprep.subr.mxu0 0.0
        %1153 = vmatpush1.msra.mxu0 %v1130
        %1154 = vmatprep.subr.mxu0 0.0
        %1155 = vmatpush1.msra.mxu0 0.0
        %1156 = vmatprep.subr.mxu0 0.0
        %1157 = vmatpush1.msra.mxu0 0.0
        %1158 = vmatprep.subr.mxu0 0.0
        %1159 = vmatpush1.msra.mxu0 0.0
        %1160 = vmatprep.subr.mxu0 0.0
        %1161 = vmatpush1.msra.mxu0 0.0
        %1162 = vmatprep.subr.mxu0 0.0
        %1163 = vmatpush1.msra.mxu0 0.0
        %1164 = vmatprep.subr.mxu0 0.0
        %1165 = vmatpush1.msra.mxu0 0.0
        %1166 = vmatprep.subr.mxu0 0.0
        %1167 = vmatpush1.msra.mxu0 0.0
        %1168 = vmatprep.subr.mxu0 0.0
        %1169 = vmatpush1.msra.mxu0 0.0
        %1170 = vmatprep.subr.mxu0 0.0
        %1171 = vmatpush1.msra.mxu0 0.0
        %1172 = vmatprep.subr.mxu0 0.0
        %1173 = vmatpush1.msra.mxu0 0.0
        %1174 = vmatprep.subr.mxu0 0.0
        %1175 = vmatpush1.msra.mxu0 0.0
        %1176 = vmatprep.subr.mxu0 0.0
        %1177 = vmatpush1.msra.mxu0 0.0
        %1178 = vmatprep.subr.mxu0 0.0
        %1179 = vmatpush1.msra.mxu0 0.0
        %1180 = vmatprep.subr.mxu0 0.0
        %1181 = vmatpush1.msra.mxu0 0.0
        %1182 = vmatprep.subr.mxu0 0.0
        %1183 = vmatpush1.msra.mxu0 0.0
        %1184 = vmatprep.subr.mxu0 0.0
        %1185 = vmatpush1.msra.mxu0 0.0
        %1186 = vmatprep.subr.mxu0 0.0
        %1187 = vmatpush1.msra.mxu0 0.0
        %1188 = vmatprep.subr.mxu0 0.0
        %1189 = vmatpush1.msra.mxu0 0.0
        %1190 = vmatprep.subr.mxu0 0.0
        %1191 = vmatpush1.msra.mxu0 0.0
        %1192 = vmatprep.subr.mxu0 0.0
        %1193 = vmatpush1.msra.mxu0 0.0
        %1194 = vmatprep.subr.mxu0 0.0
        %1195 = vmatpush1.msra.mxu0 0.0
        %1196 = vmatprep.subr.mxu0 0.0
        %1197 = vmatpush1.msra.mxu0 0.0
        %1198 = vmatprep.subr.mxu0 0.0
        %1199 = vmatpush1.msra.mxu0 0.0
        %1200 = vmatprep.subr.mxu0 0.0
        %1201 = vmatpush1.msra.mxu0 0.0
        %1202 = vmatprep.subr.mxu0 0.0
        %1203 = vmatpush1.msra.mxu0 0.0
        %1204 = vmatprep.subr.mxu0 0.0
        %1205 = vmatpush1.msra.mxu0 0.0
        %1206 = vmatprep.subr.mxu0 0.0
        %1207 = vmatpush1.msra.mxu0 0.0
        %1208 = vmatprep.subr.mxu0 0.0
        %1209 = vmatpush1.msra.mxu0 0.0
        %1210 = vmatprep.subr.mxu0 0.0
        %1211 = vmatpush1.msra.mxu0 0.0
        %1212 = vmatprep.subr.mxu0 0.0
        %1213 = vmatpush1.msra.mxu0 0.0
        %1214 = vmatprep.mubr.f32.mxu0 0.0
        %1215 = vmatmul.mubr.f32.gmra.mrb[0].mxu0 %v1139
        %v1216 = vpop.f32.mrb[0].mxu0
        %v1217 = vadd.f32 0.0, %v1216
        %v1218 = vpop.f32.mrb[0].mxu0
        %1219 = vmatprep.mubr.f32.mxu0 0.0
        %1220 = vmatmul.mubr.f32.gmra.mrb[0].mxu0 %v1142
        %v1221 = vpop.f32.mrb[0].mxu0
        %v1222 = vadd.f32 0.0, %v1221
        %v1223 = vpop.f32.mrb[0].mxu0
        %1224 = vmatprep.mubr.f32.mxu0 0.0
        %1225 = vmatmul.mubr.f32.gmra.mrb[0].mxu0 %v1145
        %v1226 = vpop.f32.mrb[0].mxu0
        %v1227 = vadd.f32 0.0, %v1226
        %v1228 = vpop.f32.mrb[0].mxu0
        %1229 = vmatprep.mubr.f32.mxu0 0.0
        %1230 = vmatmul.mubr.f32.gmra.mrb[0].mxu0 %v1148
        %v1231 = vpop.f32.mrb[0].mxu0
        %v1232 = vadd.f32 0.0, %v1231
        %v1233 = vpop.f32.mrb[0].mxu0
        %1234 = vdwg.mxu0
        %v1235 = vld [vmem:[#allocation6] sm:$0x3]
        %v1236 = vld [vmem:[#allocation4] sm:$0xff]
        %v1237 = vld [vmem:[#allocation4 + $0x8] sm:$0xff]
        %v1238 = vld [vmem:[#allocation4 + $0x10] sm:$0xff]
        %v1239 = vld [vmem:[#allocation4 + $0x18] sm:$0xff]
        %v1240 = vld [vmem:[%s1007] sm:$0xff]
        %v1241 = vld [vmem:[%s1007 + $0x8] sm:$0xff]
        %v1242 = vld [vmem:[%s1007 + $0x10] sm:$0xff]
        %v1243 = vld [vmem:[%s1007 + $0x18] sm:$0xff]
        %v1244 = vld [vmem:[%s1007 + $0x20] sm:$0xff]
        %v1245 = vld [vmem:[%s1007 + $0x28] sm:$0xff]
        %v1246 = vld [vmem:[%s1007 + $0x30] sm:$0xff]
        %v1247 = vld [vmem:[%s1007 + $0x38] sm:$0xff]
        %v1248 = vld [vmem:[%s1007 + $0x40] sm:$0xff]
        %v1249 = vld [vmem:[%s1007 + $0x48] sm:$0xff]
        %v1250 = vld [vmem:[%s1007 + $0x50] sm:$0xff]
        %v1251 = vld [vmem:[%s1007 + $0x58] sm:$0xff]
        %v1252 = vld [vmem:[%s1007 + $0x60] sm:$0xff]
        %v1253 = vld [vmem:[%s1007 + $0x68] sm:$0xff]
        %v1254 = vld [vmem:[%s1007 + $0x70] sm:$0xff]
        %v1255 = vld [vmem:[%s1007 + $0x78] sm:$0xff]
        %1256 = vmatprep.subr.mxu0 0.0
        %1257 = vmatpush1.msra.mxu0 %v1240
        %1258 = vmatprep.subr.mxu0 0.0
        %1259 = vmatpush1.msra.mxu0 %v1241
        %1260 = vmatprep.subr.mxu0 0.0
        %1261 = vmatpush1.msra.mxu0 %v1242
        %1262 = vmatprep.subr.mxu0 0.0
        %1263 = vmatpush1.msra.mxu0 %v1243
        %1264 = vmatprep.subr.mxu0 0.0
        %1265 = vmatpush1.msra.mxu0 %v1244
        %1266 = vmatprep.subr.mxu0 0.0
        %1267 = vmatpush1.msra.mxu0 %v1245
        %1268 = vmatprep.subr.mxu0 0.0
        %1269 = vmatpush1.msra.mxu0 %v1246
        %1270 = vmatprep.subr.mxu0 0.0
        %1271 = vmatpush1.msra.mxu0 %v1247
        %1272 = vmatprep.subr.mxu0 0.0
        %1273 = vmatpush1.msra.mxu0 %v1248
        %1274 = vmatprep.subr.mxu0 0.0
        %1275 = vmatpush1.msra.mxu0 %v1249
        %1276 = vmatprep.subr.mxu0 0.0
        %1277 = vmatpush1.msra.mxu0 %v1250
        %1278 = vmatprep.subr.mxu0 0.0
        %1279 = vmatpush1.msra.mxu0 %v1251
        %1280 = vmatprep.subr.mxu0 0.0
        %1281 = vmatpush1.msra.mxu0 %v1252
        %1282 = vmatprep.subr.mxu0 0.0
        %1283 = vmatpush1.msra.mxu0 %v1253
        %1284 = vmatprep.subr.mxu0 0.0
        %1285 = vmatpush1.msra.mxu0 %v1254
        %1286 = vmatprep.subr.mxu0 0.0
        %1287 = vmatpush1.msra.mxu0 %v1255
        %1288 = vmatprep.subr.mxu0 0.0
        %1289 = vmatpush1.msra.mxu0 0.0
        %1290 = vmatprep.subr.mxu0 0.0
        %1291 = vmatpush1.msra.mxu0 0.0
        %1292 = vmatprep.subr.mxu0 0.0
        %1293 = vmatpush1.msra.mxu0 0.0
        %1294 = vmatprep.subr.mxu0 0.0
        %1295 = vmatpush1.msra.mxu0 0.0
        %1296 = vmatprep.subr.mxu0 0.0
        %1297 = vmatpush1.msra.mxu0 0.0
        %1298 = vmatprep.subr.mxu0 0.0
        %1299 = vmatpush1.msra.mxu0 0.0
        %1300 = vmatprep.subr.mxu0 0.0
        %1301 = vmatpush1.msra.mxu0 0.0
        %1302 = vmatprep.subr.mxu0 0.0
        %1303 = vmatpush1.msra.mxu0 0.0
        %1304 = vmatprep.subr.mxu0 0.0
        %1305 = vmatpush1.msra.mxu0 0.0
        %1306 = vmatprep.subr.mxu0 0.0
        %1307 = vmatpush1.msra.mxu0 0.0
        %1308 = vmatprep.subr.mxu0 0.0
        %1309 = vmatpush1.msra.mxu0 0.0
        %1310 = vmatprep.subr.mxu0 0.0
        %1311 = vmatpush1.msra.mxu0 0.0
        %1312 = vmatprep.subr.mxu0 0.0
        %1313 = vmatpush1.msra.mxu0 0.0
        %1314 = vmatprep.subr.mxu0 0.0
        %1315 = vmatpush1.msra.mxu0 0.0
        %1316 = vmatprep.subr.mxu0 0.0
        %1317 = vmatpush1.msra.mxu0 0.0
        %1318 = vmatprep.subr.mxu0 0.0
        %1319 = vmatpush1.msra.mxu0 0.0
        %1320 = vmatprep.mubr.f32.mxu0 0.0
        %1321 = vmatmul.mubr.f32.gmra.mrb[0].mxu0 %v1236
        %v1322 = vpop.f32.mrb[0].mxu0
        %v1323 = vadd.f32 0.0, %v1322
        %v1324 = vpop.f32.mrb[0].mxu0
        %1325 = vmatprep.mubr.f32.mxu0 0.0
        %1326 = vmatmul.mubr.f32.gmra.mrb[0].mxu0 %v1237
        %v1327 = vpop.f32.mrb[0].mxu0
        %v1328 = vadd.f32 0.0, %v1327
        %v1329 = vpop.f32.mrb[0].mxu0
        %1330 = vmatprep.mubr.f32.mxu0 0.0
        %1331 = vmatmul.mubr.f32.gmra.mrb[0].mxu0 %v1238
        %v1332 = vpop.f32.mrb[0].mxu0
        %v1333 = vadd.f32 0.0, %v1332
        %v1334 = vpop.f32.mrb[0].mxu0
        %1335 = vmatprep.mubr.f32.mxu0 0.0
        %1336 = vmatmul.mubr.f32.gmra.mrb[0].mxu0 %v1239
        %v1337 = vpop.f32.mrb[0].mxu0
        %v1338 = vadd.f32 0.0, %v1337
        %v1339 = vpop.f32.mrb[0].mxu0
        %1340 = vdwg.mxu0
        %vm1341 = vcmask 15360
        %v1343 = vsel %vm1341, %v1217, 0
        %v1346 = vsel %vm1341, %v1222, 0
        %v1349 = vsel %vm1341, %v1227, 0
        %v1352 = vsel %vm1341, %v1232, 0
        %vm1354 = vcmask 1041408
        %v1356 = vsel %vm1354, %v1235, 0
        %1358 = vmatprep.subr.mxu0 0.0
        %1359 = vmatpush1.msra.mxu0 %v1356
        %1360 = vmatprep.subr.mxu0 0.0
        %1361 = vmatpush1.msra.mxu0 0.0
        %1362 = vmatprep.subr.mxu0 0.0
        %1363 = vmatpush1.msra.mxu0 0.0
        %1364 = vmatprep.subr.mxu0 0.0
        %1365 = vmatpush1.msra.mxu0 0.0
        %1366 = vmatprep.subr.mxu0 0.0
        %1367 = vmatpush1.msra.mxu0 0.0
        %1368 = vmatprep.subr.mxu0 0.0
        %1369 = vmatpush1.msra.mxu0 0.0
        %1370 = vmatprep.subr.mxu0 0.0
        %1371 = vmatpush1.msra.mxu0 0.0
        %1372 = vmatprep.subr.mxu0 0.0
        %1373 = vmatpush1.msra.mxu0 0.0
        %1374 = vmatprep.subr.mxu0 0.0
        %1375 = vmatpush1.msra.mxu0 0.0
        %1376 = vmatprep.subr.mxu0 0.0
        %1377 = vmatpush1.msra.mxu0 0.0
        %1378 = vmatprep.subr.mxu0 0.0
        %1379 = vmatpush1.msra.mxu0 0.0
        %1380 = vmatprep.subr.mxu0 0.0
        %1381 = vmatpush1.msra.mxu0 0.0
        %1382 = vmatprep.subr.mxu0 0.0
        %1383 = vmatpush1.msra.mxu0 0.0
        %1384 = vmatprep.subr.mxu0 0.0
        %1385 = vmatpush1.msra.mxu0 0.0
        %1386 = vmatprep.subr.mxu0 0.0
        %1387 = vmatpush1.msra.mxu0 0.0
        %1388 = vmatprep.subr.mxu0 0.0
        %1389 = vmatpush1.msra.mxu0 0.0
        %1390 = vmatprep.subr.mxu0 0.0
        %1391 = vmatpush1.msra.mxu0 0.0
        %1392 = vmatprep.subr.mxu0 0.0
        %1393 = vmatpush1.msra.mxu0 0.0
        %1394 = vmatprep.subr.mxu0 0.0
        %1395 = vmatpush1.msra.mxu0 0.0
        %1396 = vmatprep.subr.mxu0 0.0
        %1397 = vmatpush1.msra.mxu0 0.0
        %1398 = vmatprep.subr.mxu0 0.0
        %1399 = vmatpush1.msra.mxu0 0.0
        %1400 = vmatprep.subr.mxu0 0.0
        %1401 = vmatpush1.msra.mxu0 0.0
        %1402 = vmatprep.subr.mxu0 0.0
        %1403 = vmatpush1.msra.mxu0 0.0
        %1404 = vmatprep.subr.mxu0 0.0
        %1405 = vmatpush1.msra.mxu0 0.0
        %1406 = vmatprep.subr.mxu0 0.0
        %1407 = vmatpush1.msra.mxu0 0.0
        %1408 = vmatprep.subr.mxu0 0.0
        %1409 = vmatpush1.msra.mxu0 0.0
        %1410 = vmatprep.subr.mxu0 0.0
        %1411 = vmatpush1.msra.mxu0 0.0
        %1412 = vmatprep.subr.mxu0 0.0
        %1413 = vmatpush1.msra.mxu0 0.0
        %1414 = vmatprep.subr.mxu0 0.0
        %1415 = vmatpush1.msra.mxu0 0.0
        %1416 = vmatprep.subr.mxu0 0.0
        %1417 = vmatpush1.msra.mxu0 0.0
        %1418 = vmatprep.subr.mxu0 0.0
        %1419 = vmatpush1.msra.mxu0 0.0
        %1420 = vmatprep.subr.mxu0 0.0
        %1421 = vmatpush1.msra.mxu0 0.0
        %1422 = vmatprep.mubr.f32.mxu0 0.0
        %1423 = vmatmul.mubr.f32.gmra.mrb[0].mxu0 %v1343
        %v1424 = vpop.f32.mrb[0].mxu0
        %v1425 = vadd.f32 %v1323, %v1424
        %v1426 = vpop.f32.mrb[0].mxu0
        %1427 = vmatprep.mubr.f32.mxu0 0.0
        %1428 = vmatmul.mubr.f32.gmra.mrb[0].mxu0 %v1346
        %v1429 = vpop.f32.mrb[0].mxu0
        %v1430 = vadd.f32 %v1328, %v1429
        %v1431 = vpop.f32.mrb[0].mxu0
        %1432 = vmatprep.mubr.f32.mxu0 0.0
        %1433 = vmatmul.mubr.f32.gmra.mrb[0].mxu0 %v1349
        %v1434 = vpop.f32.mrb[0].mxu0
        %v1435 = vadd.f32 %v1333, %v1434
        %v1436 = vpop.f32.mrb[0].mxu0
        %1437 = vmatprep.mubr.f32.mxu0 0.0
        %1438 = vmatmul.mubr.f32.gmra.mrb[0].mxu0 %v1352
        %v1439 = vpop.f32.mrb[0].mxu0
        %v1440 = vadd.f32 %v1338, %v1439
        %v1441 = vpop.f32.mrb[0].mxu0
        %1442 = vdwg.mxu0
        %v1443 = vld [vmem:[%s9] sm:$0xff]
        %v1444 = vld [vmem:[%s9 + $0x8] sm:$0xff]
        %v1445 = vld [vmem:[%s9 + $0x10] sm:$0xff]
        %v1446 = vld [vmem:[%s9 + $0x18] sm:$0xff]
        %1448 = vset.pattern.permute.xlu0 0
        %1449 = vperm.xlu0 %1448, %v1443
        %v1450 = vpop.permute.xlu0 %1449
        %1453 = vset.pattern.permute.xlu0 0
        %1454 = vperm.xlu0 %1453, %v1444
        %v1455 = vpop.permute.xlu0 %1454
        %1458 = vset.pattern.permute.xlu0 0
        %1459 = vperm.xlu0 %1458, %v1445
        %v1460 = vpop.permute.xlu0 %1459
        %1463 = vset.pattern.permute.xlu0 0
        %1464 = vperm.xlu0 %1463, %v1446
        %v1465 = vpop.permute.xlu0 %1464
        %v1467 = vadd.f32 %v1425, %v1450
        %v1468 = vadd.f32 %v1430, %v1455
        %v1469 = vadd.f32 %v1435, %v1460
        %v1470 = vadd.f32 %v1440, %v1465
        %v1471 = vld [vmem:[%s11] sm:$0xff]
        %v1472 = vld [vmem:[%s11 + $0x8] sm:$0xff]
        %v1473 = vld [vmem:[%s11 + $0x10] sm:$0xff]
        %v1474 = vld [vmem:[%s11 + $0x18] sm:$0xff]
        %v1475 = vld [vmem:[%s11 + $0x20] sm:$0xff]
        %v1476 = vld [vmem:[%s11 + $0x28] sm:$0xff]
        %v1477 = vld [vmem:[%s11 + $0x30] sm:$0xff]
        %v1478 = vld [vmem:[%s11 + $0x38] sm:$0xff]
        %v1479 = vld [vmem:[%s11 + $0x40] sm:$0xff]
        %v1480 = vld [vmem:[%s11 + $0x48] sm:$0xff]
        %v1481 = vld [vmem:[%s11 + $0x50] sm:$0xff]
        %v1482 = vld [vmem:[%s11 + $0x58] sm:$0xff]
        %v1483 = vld [vmem:[%s11 + $0x60] sm:$0xff]
        %v1484 = vld [vmem:[%s11 + $0x68] sm:$0xff]
        %v1485 = vld [vmem:[%s11 + $0x70] sm:$0xff]
        %v1486 = vld [vmem:[%s11 + $0x78] sm:$0xff]
        %vm1487 = vcmask 261120
        %v1489 = vsel %vm1487, %v1471, 0
        %v1492 = vsel %vm1487, %v1472, 0
        %v1495 = vsel %vm1487, %v1473, 0
        %v1498 = vsel %vm1487, %v1474, 0
        %v1501 = vsel %vm1487, %v1475, 0
        %v1504 = vsel %vm1487, %v1476, 0
        %v1507 = vsel %vm1487, %v1477, 0
        %v1510 = vsel %vm1487, %v1478, 0
        %v1513 = vsel %vm1487, %v1479, 0
        %v1516 = vsel %vm1487, %v1480, 0
        %v1519 = vsel %vm1487, %v1481, 0
        %v1522 = vsel %vm1487, %v1482, 0
        %v1525 = vsel %vm1487, %v1483, 0
        %v1528 = vsel %vm1487, %v1484, 0
        %v1531 = vsel %vm1487, %v1485, 0
        %v1534 = vsel %vm1487, %v1486, 0
        %1536 = vmatprep.subr.mxu0 0.0
        %1537 = vmatpush1.msra.mxu0 %v1467
        %1538 = vmatprep.subr.mxu0 0.0
        %1539 = vmatpush1.msra.mxu0 %v1468
        %1540 = vmatprep.subr.mxu0 0.0
        %1541 = vmatpush1.msra.mxu0 %v1469
        %1542 = vmatprep.subr.mxu0 0.0
        %1543 = vmatpush1.msra.mxu0 %v1470
        %1544 = vmatprep.subr.mxu0 0.0
        %1545 = vmatpush1.msra.mxu0 0.0
        %1546 = vmatprep.subr.mxu0 0.0
        %1547 = vmatpush1.msra.mxu0 0.0
        %1548 = vmatprep.subr.mxu0 0.0
        %1549 = vmatpush1.msra.mxu0 0.0
        %1550 = vmatprep.subr.mxu0 0.0
        %1551 = vmatpush1.msra.mxu0 0.0
        %1552 = vmatprep.subr.mxu0 0.0
        %1553 = vmatpush1.msra.mxu0 0.0
        %1554 = vmatprep.subr.mxu0 0.0
        %1555 = vmatpush1.msra.mxu0 0.0
        %1556 = vmatprep.subr.mxu0 0.0
        %1557 = vmatpush1.msra.mxu0 0.0
        %1558 = vmatprep.subr.mxu0 0.0
        %1559 = vmatpush1.msra.mxu0 0.0
        %1560 = vmatprep.subr.mxu0 0.0
        %1561 = vmatpush1.msra.mxu0 0.0
        %1562 = vmatprep.subr.mxu0 0.0
        %1563 = vmatpush1.msra.mxu0 0.0
        %1564 = vmatprep.subr.mxu0 0.0
        %1565 = vmatpush1.msra.mxu0 0.0
        %1566 = vmatprep.subr.mxu0 0.0
        %1567 = vmatpush1.msra.mxu0 0.0
        %1568 = vmatprep.subr.mxu0 0.0
        %1569 = vmatpush1.msra.mxu0 0.0
        %1570 = vmatprep.subr.mxu0 0.0
        %1571 = vmatpush1.msra.mxu0 0.0
        %1572 = vmatprep.subr.mxu0 0.0
        %1573 = vmatpush1.msra.mxu0 0.0
        %1574 = vmatprep.subr.mxu0 0.0
        %1575 = vmatpush1.msra.mxu0 0.0
        %1576 = vmatprep.subr.mxu0 0.0
        %1577 = vmatpush1.msra.mxu0 0.0
        %1578 = vmatprep.subr.mxu0 0.0
        %1579 = vmatpush1.msra.mxu0 0.0
        %1580 = vmatprep.subr.mxu0 0.0
        %1581 = vmatpush1.msra.mxu0 0.0
        %1582 = vmatprep.subr.mxu0 0.0
        %1583 = vmatpush1.msra.mxu0 0.0
        %1584 = vmatprep.subr.mxu0 0.0
        %1585 = vmatpush1.msra.mxu0 0.0
        %1586 = vmatprep.subr.mxu0 0.0
        %1587 = vmatpush1.msra.mxu0 0.0
        %1588 = vmatprep.subr.mxu0 0.0
        %1589 = vmatpush1.msra.mxu0 0.0
        %1590 = vmatprep.subr.mxu0 0.0
        %1591 = vmatpush1.msra.mxu0 0.0
        %1592 = vmatprep.subr.mxu0 0.0
        %1593 = vmatpush1.msra.mxu0 0.0
        %1594 = vmatprep.subr.mxu0 0.0
        %1595 = vmatpush1.msra.mxu0 0.0
        %1596 = vmatprep.subr.mxu0 0.0
        %1597 = vmatpush1.msra.mxu0 0.0
        %1598 = vmatprep.subr.mxu0 0.0
        %1599 = vmatpush1.msra.mxu0 0.0
        %1600 = vmatprep.mubr.f32.mxu0 0.0
        %1601 = vmatmul.mubr.f32.gmra.mrb[0].mxu0 %v1489
        %v1602 = vpop.f32.mrb[0].mxu0
        %v1603 = vadd.f32 0.0, %v1602
        %v1604 = vpop.f32.mrb[0].mxu0
        %1605 = vmatprep.mubr.f32.mxu0 0.0
        %1606 = vmatmul.mubr.f32.gmra.mrb[0].mxu0 %v1492
        %v1607 = vpop.f32.mrb[0].mxu0
        %v1608 = vadd.f32 0.0, %v1607
        %v1609 = vpop.f32.mrb[0].mxu0
        %1610 = vmatprep.mubr.f32.mxu0 0.0
        %1611 = vmatmul.mubr.f32.gmra.mrb[0].mxu0 %v1495
        %v1612 = vpop.f32.mrb[0].mxu0
        %v1613 = vadd.f32 0.0, %v1612
        %v1614 = vpop.f32.mrb[0].mxu0
        %1615 = vmatprep.mubr.f32.mxu0 0.0
        %1616 = vmatmul.mubr.f32.gmra.mrb[0].mxu0 %v1498
        %v1617 = vpop.f32.mrb[0].mxu0
        %v1618 = vadd.f32 0.0, %v1617
        %v1619 = vpop.f32.mrb[0].mxu0
        %1620 = vmatprep.mubr.f32.mxu0 0.0
        %1621 = vmatmul.mubr.f32.gmra.mrb[0].mxu0 %v1501
        %v1622 = vpop.f32.mrb[0].mxu0
        %v1623 = vadd.f32 0.0, %v1622
        %v1624 = vpop.f32.mrb[0].mxu0
        %1625 = vmatprep.mubr.f32.mxu0 0.0
        %1626 = vmatmul.mubr.f32.gmra.mrb[0].mxu0 %v1504
        %v1627 = vpop.f32.mrb[0].mxu0
        %v1628 = vadd.f32 0.0, %v1627
        %v1629 = vpop.f32.mrb[0].mxu0
        %1630 = vmatprep.mubr.f32.mxu0 0.0
        %1631 = vmatmul.mubr.f32.gmra.mrb[0].mxu0 %v1507
        %v1632 = vpop.f32.mrb[0].mxu0
        %v1633 = vadd.f32 0.0, %v1632
        %v1634 = vpop.f32.mrb[0].mxu0
        %1635 = vmatprep.mubr.f32.mxu0 0.0
        %1636 = vmatmul.mubr.f32.gmra.mrb[0].mxu0 %v1510
        %v1637 = vpop.f32.mrb[0].mxu0
        %v1638 = vadd.f32 0.0, %v1637
        %v1639 = vpop.f32.mrb[0].mxu0
        %1640 = vmatprep.mubr.f32.mxu0 0.0
        %1641 = vmatmul.mubr.f32.gmra.mrb[0].mxu0 %v1513
        %v1642 = vpop.f32.mrb[0].mxu0
        %v1643 = vadd.f32 0.0, %v1642
        %v1644 = vpop.f32.mrb[0].mxu0
        %1645 = vmatprep.mubr.f32.mxu0 0.0
        %1646 = vmatmul.mubr.f32.gmra.mrb[0].mxu0 %v1516
        %v1647 = vpop.f32.mrb[0].mxu0
        %v1648 = vadd.f32 0.0, %v1647
        %v1649 = vpop.f32.mrb[0].mxu0
        %1650 = vmatprep.mubr.f32.mxu0 0.0
        %1651 = vmatmul.mubr.f32.gmra.mrb[0].mxu0 %v1519
        %v1652 = vpop.f32.mrb[0].mxu0
        %v1653 = vadd.f32 0.0, %v1652
        %v1654 = vpop.f32.mrb[0].mxu0
        %1655 = vmatprep.mubr.f32.mxu0 0.0
        %1656 = vmatmul.mubr.f32.gmra.mrb[0].mxu0 %v1522
        %v1657 = vpop.f32.mrb[0].mxu0
        %v1658 = vadd.f32 0.0, %v1657
        %v1659 = vpop.f32.mrb[0].mxu0
        %1660 = vmatprep.mubr.f32.mxu0 0.0
        %1661 = vmatmul.mubr.f32.gmra.mrb[0].mxu0 %v1525
        %v1662 = vpop.f32.mrb[0].mxu0
        %v1663 = vadd.f32 0.0, %v1662
        %v1664 = vpop.f32.mrb[0].mxu0
        %1665 = vmatprep.mubr.f32.mxu0 0.0
        %1666 = vmatmul.mubr.f32.gmra.mrb[0].mxu0 %v1528
        %v1667 = vpop.f32.mrb[0].mxu0
        %v1668 = vadd.f32 0.0, %v1667
        %v1669 = vpop.f32.mrb[0].mxu0
        %1670 = vmatprep.mubr.f32.mxu0 0.0
        %1671 = vmatmul.mubr.f32.gmra.mrb[0].mxu0 %v1531
        %v1672 = vpop.f32.mrb[0].mxu0
        %v1673 = vadd.f32 0.0, %v1672
        %v1674 = vpop.f32.mrb[0].mxu0
        %1675 = vmatprep.mubr.f32.mxu0 0.0
        %1676 = vmatmul.mubr.f32.gmra.mrb[0].mxu0 %v1534
        %v1677 = vpop.f32.mrb[0].mxu0
        %v1678 = vadd.f32 0.0, %v1677
        %v1679 = vpop.f32.mrb[0].mxu0
        %1680 = vdwg.mxu0
        %v1681 = vld [vmem:[#allocation9] sm:$0xf]
        %v1682 = vld [vmem:[#allocation7] sm:$0xff]
        %v1683 = vld [vmem:[#allocation7 + $0x8] sm:$0xff]
        %v1684 = vld [vmem:[#allocation7 + $0x10] sm:$0xff]
        %v1685 = vld [vmem:[#allocation7 + $0x18] sm:$0xff]
        %v1686 = vld [vmem:[#allocation7 + $0x20] sm:$0xff]
        %v1687 = vld [vmem:[#allocation7 + $0x28] sm:$0xff]
        %v1688 = vld [vmem:[#allocation7 + $0x30] sm:$0xff]
        %v1689 = vld [vmem:[#allocation7 + $0x38] sm:$0xff]
        %v1690 = vld [vmem:[#allocation7 + $0x40] sm:$0xff]
        %v1691 = vld [vmem:[#allocation7 + $0x48] sm:$0xff]
        %v1692 = vld [vmem:[#allocation7 + $0x50] sm:$0xff]
        %v1693 = vld [vmem:[#allocation7 + $0x58] sm:$0xff]
        %v1694 = vld [vmem:[#allocation7 + $0x60] sm:$0xff]
        %v1695 = vld [vmem:[#allocation7 + $0x68] sm:$0xff]
        %v1696 = vld [vmem:[#allocation7 + $0x70] sm:$0xff]
        %v1697 = vld [vmem:[#allocation7 + $0x78] sm:$0xff]
        %v1698 = vld [vmem:[%s1012] sm:$0xff]
        %v1699 = vld [vmem:[%s1012 + $0x8] sm:$0xff]
        %v1700 = vld [vmem:[%s1012 + $0x10] sm:$0xff]
        %v1701 = vld [vmem:[%s1012 + $0x18] sm:$0xff]
        %v1702 = vld [vmem:[%s1012 + $0x20] sm:$0xff]
        %v1703 = vld [vmem:[%s1012 + $0x28] sm:$0xff]
        %v1704 = vld [vmem:[%s1012 + $0x30] sm:$0xff]
        %v1705 = vld [vmem:[%s1012 + $0x38] sm:$0xff]
        %v1706 = vld [vmem:[%s1012 + $0x40] sm:$0xff]
        %v1707 = vld [vmem:[%s1012 + $0x48] sm:$0xff]
        %v1708 = vld [vmem:[%s1012 + $0x50] sm:$0xff]
        %v1709 = vld [vmem:[%s1012 + $0x58] sm:$0xff]
        %v1710 = vld [vmem:[%s1012 + $0x60] sm:$0xff]
        %v1711 = vld [vmem:[%s1012 + $0x68] sm:$0xff]
        %v1712 = vld [vmem:[%s1012 + $0x70] sm:$0xff]
        %v1713 = vld [vmem:[%s1012 + $0x78] sm:$0xff]
        %1714 = vmatprep.subr.mxu0 0.0
        %1715 = vmatpush1.msra.mxu0 %v1698
        %1716 = vmatprep.subr.mxu0 0.0
        %1717 = vmatpush1.msra.mxu0 %v1699
        %1718 = vmatprep.subr.mxu0 0.0
        %1719 = vmatpush1.msra.mxu0 %v1700
        %1720 = vmatprep.subr.mxu0 0.0
        %1721 = vmatpush1.msra.mxu0 %v1701
        %1722 = vmatprep.subr.mxu0 0.0
        %1723 = vmatpush1.msra.mxu0 %v1702
        %1724 = vmatprep.subr.mxu0 0.0
        %1725 = vmatpush1.msra.mxu0 %v1703
        %1726 = vmatprep.subr.mxu0 0.0
        %1727 = vmatpush1.msra.mxu0 %v1704
        %1728 = vmatprep.subr.mxu0 0.0
        %1729 = vmatpush1.msra.mxu0 %v1705
        %1730 = vmatprep.subr.mxu0 0.0
        %1731 = vmatpush1.msra.mxu0 %v1706
        %1732 = vmatprep.subr.mxu0 0.0
        %1733 = vmatpush1.msra.mxu0 %v1707
        %1734 = vmatprep.subr.mxu0 0.0
        %1735 = vmatpush1.msra.mxu0 %v1708
        %1736 = vmatprep.subr.mxu0 0.0
        %1737 = vmatpush1.msra.mxu0 %v1709
        %1738 = vmatprep.subr.mxu0 0.0
        %1739 = vmatpush1.msra.mxu0 %v1710
        %1740 = vmatprep.subr.mxu0 0.0
        %1741 = vmatpush1.msra.mxu0 %v1711
        %1742 = vmatprep.subr.mxu0 0.0
        %1743 = vmatpush1.msra.mxu0 %v1712
        %1744 = vmatprep.subr.mxu0 0.0
        %1745 = vmatpush1.msra.mxu0 %v1713
        %1746 = vmatprep.subr.mxu0 0.0
        %1747 = vmatpush1.msra.mxu0 0.0
        %1748 = vmatprep.subr.mxu0 0.0
        %1749 = vmatpush1.msra.mxu0 0.0
        %1750 = vmatprep.subr.mxu0 0.0
        %1751 = vmatpush1.msra.mxu0 0.0
        %1752 = vmatprep.subr.mxu0 0.0
        %1753 = vmatpush1.msra.mxu0 0.0
        %1754 = vmatprep.subr.mxu0 0.0
        %1755 = vmatpush1.msra.mxu0 0.0
        %1756 = vmatprep.subr.mxu0 0.0
        %1757 = vmatpush1.msra.mxu0 0.0
        %1758 = vmatprep.subr.mxu0 0.0
        %1759 = vmatpush1.msra.mxu0 0.0
        %1760 = vmatprep.subr.mxu0 0.0
        %1761 = vmatpush1.msra.mxu0 0.0
        %1762 = vmatprep.subr.mxu0 0.0
        %1763 = vmatpush1.msra.mxu0 0.0
        %1764 = vmatprep.subr.mxu0 0.0
        %1765 = vmatpush1.msra.mxu0 0.0
        %1766 = vmatprep.subr.mxu0 0.0
        %1767 = vmatpush1.msra.mxu0 0.0
        %1768 = vmatprep.subr.mxu0 0.0
        %1769 = vmatpush1.msra.mxu0 0.0
        %1770 = vmatprep.subr.mxu0 0.0
        %1771 = vmatpush1.msra.mxu0 0.0
        %1772 = vmatprep.subr.mxu0 0.0
        %1773 = vmatpush1.msra.mxu0 0.0
        %1774 = vmatprep.subr.mxu0 0.0
        %1775 = vmatpush1.msra.mxu0 0.0
        %1776 = vmatprep.subr.mxu0 0.0
        %1777 = vmatpush1.msra.mxu0 0.0
        %1778 = vmatprep.mubr.f32.mxu0 0.0
        %1779 = vmatmul.mubr.f32.gmra.mrb[0].mxu0 %v1682
        %v1780 = vpop.f32.mrb[0].mxu0
        %v1781 = vadd.f32 0.0, %v1780
        %v1782 = vpop.f32.mrb[0].mxu0
        %1783 = vmatprep.mubr.f32.mxu0 0.0
        %1784 = vmatmul.mubr.f32.gmra.mrb[0].mxu0 %v1683
        %v1785 = vpop.f32.mrb[0].mxu0
        %v1786 = vadd.f32 0.0, %v1785
        %v1787 = vpop.f32.mrb[0].mxu0
        %1788 = vmatprep.mubr.f32.mxu0 0.0
        %1789 = vmatmul.mubr.f32.gmra.mrb[0].mxu0 %v1684
        %v1790 = vpop.f32.mrb[0].mxu0
        %v1791 = vadd.f32 0.0, %v1790
        %v1792 = vpop.f32.mrb[0].mxu0
        %1793 = vmatprep.mubr.f32.mxu0 0.0
        %1794 = vmatmul.mubr.f32.gmra.mrb[0].mxu0 %v1685
        %v1795 = vpop.f32.mrb[0].mxu0
        %v1796 = vadd.f32 0.0, %v1795
        %v1797 = vpop.f32.mrb[0].mxu0
        %1798 = vmatprep.mubr.f32.mxu0 0.0
        %1799 = vmatmul.mubr.f32.gmra.mrb[0].mxu0 %v1686
        %v1800 = vpop.f32.mrb[0].mxu0
        %v1801 = vadd.f32 0.0, %v1800
        %v1802 = vpop.f32.mrb[0].mxu0
        %1803 = vmatprep.mubr.f32.mxu0 0.0
        %1804 = vmatmul.mubr.f32.gmra.mrb[0].mxu0 %v1687
        %v1805 = vpop.f32.mrb[0].mxu0
        %v1806 = vadd.f32 0.0, %v1805
        %v1807 = vpop.f32.mrb[0].mxu0
        %1808 = vmatprep.mubr.f32.mxu0 0.0
        %1809 = vmatmul.mubr.f32.gmra.mrb[0].mxu0 %v1688
        %v1810 = vpop.f32.mrb[0].mxu0
        %v1811 = vadd.f32 0.0, %v1810
        %v1812 = vpop.f32.mrb[0].mxu0
        %1813 = vmatprep.mubr.f32.mxu0 0.0
        %1814 = vmatmul.mubr.f32.gmra.mrb[0].mxu0 %v1689
        %v1815 = vpop.f32.mrb[0].mxu0
        %v1816 = vadd.f32 0.0, %v1815
        %v1817 = vpop.f32.mrb[0].mxu0
        %1818 = vmatprep.mubr.f32.mxu0 0.0
        %1819 = vmatmul.mubr.f32.gmra.mrb[0].mxu0 %v1690
        %v1820 = vpop.f32.mrb[0].mxu0
        %v1821 = vadd.f32 0.0, %v1820
        %v1822 = vpop.f32.mrb[0].mxu0
        %1823 = vmatprep.mubr.f32.mxu0 0.0
        %1824 = vmatmul.mubr.f32.gmra.mrb[0].mxu0 %v1691
        %v1825 = vpop.f32.mrb[0].mxu0
        %v1826 = vadd.f32 0.0, %v1825
        %v1827 = vpop.f32.mrb[0].mxu0
        %1828 = vmatprep.mubr.f32.mxu0 0.0
        %1829 = vmatmul.mubr.f32.gmra.mrb[0].mxu0 %v1692
        %v1830 = vpop.f32.mrb[0].mxu0
        %v1831 = vadd.f32 0.0, %v1830
        %v1832 = vpop.f32.mrb[0].mxu0
        %1833 = vmatprep.mubr.f32.mxu0 0.0
        %1834 = vmatmul.mubr.f32.gmra.mrb[0].mxu0 %v1693
        %v1835 = vpop.f32.mrb[0].mxu0
        %v1836 = vadd.f32 0.0, %v1835
        %v1837 = vpop.f32.mrb[0].mxu0
        %1838 = vmatprep.mubr.f32.mxu0 0.0
        %1839 = vmatmul.mubr.f32.gmra.mrb[0].mxu0 %v1694
        %v1840 = vpop.f32.mrb[0].mxu0
        %v1841 = vadd.f32 0.0, %v1840
        %v1842 = vpop.f32.mrb[0].mxu0
        %1843 = vmatprep.mubr.f32.mxu0 0.0
        %1844 = vmatmul.mubr.f32.gmra.mrb[0].mxu0 %v1695
        %v1845 = vpop.f32.mrb[0].mxu0
        %v1846 = vadd.f32 0.0, %v1845
        %v1847 = vpop.f32.mrb[0].mxu0
        %1848 = vmatprep.mubr.f32.mxu0 0.0
        %1849 = vmatmul.mubr.f32.gmra.mrb[0].mxu0 %v1696
        %v1850 = vpop.f32.mrb[0].mxu0
        %v1851 = vadd.f32 0.0, %v1850
        %v1852 = vpop.f32.mrb[0].mxu0
        %1853 = vmatprep.mubr.f32.mxu0 0.0
        %1854 = vmatmul.mubr.f32.gmra.mrb[0].mxu0 %v1697
        %v1855 = vpop.f32.mrb[0].mxu0
        %v1856 = vadd.f32 0.0, %v1855
        %v1857 = vpop.f32.mrb[0].mxu0
        %1858 = vdwg.mxu0
        %vm1859 = vcmask 31744
        %v1861 = vsel %vm1859, %v1603, 0
        %v1864 = vsel %vm1859, %v1608, 0
        %v1867 = vsel %vm1859, %v1613, 0
        %v1870 = vsel %vm1859, %v1618, 0
        %v1873 = vsel %vm1859, %v1623, 0
        %v1876 = vsel %vm1859, %v1628, 0
        %v1879 = vsel %vm1859, %v1633, 0
        %v1882 = vsel %vm1859, %v1638, 0
        %v1885 = vsel %vm1859, %v1643, 0
        %v1888 = vsel %vm1859, %v1648, 0
        %v1891 = vsel %vm1859, %v1653, 0
        %v1894 = vsel %vm1859, %v1658, 0
        %v1897 = vsel %vm1859, %v1663, 0
        %v1900 = vsel %vm1859, %v1668, 0
        %v1903 = vsel %vm1859, %v1673, 0
        %v1906 = vsel %vm1859, %v1678, 0
        %vm1908 = vcmask 1043456
        %v1910 = vsel %vm1908, %v1681, 0
        %1912 = vmatprep.subr.mxu0 0.0
        %1913 = vmatpush1.msra.mxu0 %v1910
        %1914 = vmatprep.subr.mxu0 0.0
        %1915 = vmatpush1.msra.mxu0 0.0
        %1916 = vmatprep.subr.mxu0 0.0
        %1917 = vmatpush1.msra.mxu0 0.0
        %1918 = vmatprep.subr.mxu0 0.0
        %1919 = vmatpush1.msra.mxu0 0.0
        %1920 = vmatprep.subr.mxu0 0.0
        %1921 = vmatpush1.msra.mxu0 0.0
        %1922 = vmatprep.subr.mxu0 0.0
        %1923 = vmatpush1.msra.mxu0 0.0
        %1924 = vmatprep.subr.mxu0 0.0
        %1925 = vmatpush1.msra.mxu0 0.0
        %1926 = vmatprep.subr.mxu0 0.0
        %1927 = vmatpush1.msra.mxu0 0.0
        %1928 = vmatprep.subr.mxu0 0.0
        %1929 = vmatpush1.msra.mxu0 0.0
        %1930 = vmatprep.subr.mxu0 0.0
        %1931 = vmatpush1.msra.mxu0 0.0
        %1932 = vmatprep.subr.mxu0 0.0
        %1933 = vmatpush1.msra.mxu0 0.0
        %1934 = vmatprep.subr.mxu0 0.0
        %1935 = vmatpush1.msra.mxu0 0.0
        %1936 = vmatprep.subr.mxu0 0.0
        %1937 = vmatpush1.msra.mxu0 0.0
        %1938 = vmatprep.subr.mxu0 0.0
        %1939 = vmatpush1.msra.mxu0 0.0
        %1940 = vmatprep.subr.mxu0 0.0
        %1941 = vmatpush1.msra.mxu0 0.0
        %1942 = vmatprep.subr.mxu0 0.0
        %1943 = vmatpush1.msra.mxu0 0.0
        %1944 = vmatprep.subr.mxu0 0.0
        %1945 = vmatpush1.msra.mxu0 0.0
        %1946 = vmatprep.subr.mxu0 0.0
        %1947 = vmatpush1.msra.mxu0 0.0
        %1948 = vmatprep.subr.mxu0 0.0
        %1949 = vmatpush1.msra.mxu0 0.0
        %1950 = vmatprep.subr.mxu0 0.0
        %1951 = vmatpush1.msra.mxu0 0.0
        %1952 = vmatprep.subr.mxu0 0.0
        %1953 = vmatpush1.msra.mxu0 0.0
        %1954 = vmatprep.subr.mxu0 0.0
        %1955 = vmatpush1.msra.mxu0 0.0
        %1956 = vmatprep.subr.mxu0 0.0
        %1957 = vmatpush1.msra.mxu0 0.0
        %1958 = vmatprep.subr.mxu0 0.0
        %1959 = vmatpush1.msra.mxu0 0.0
        %1960 = vmatprep.subr.mxu0 0.0
        %1961 = vmatpush1.msra.mxu0 0.0
        %1962 = vmatprep.subr.mxu0 0.0
        %1963 = vmatpush1.msra.mxu0 0.0
        %1964 = vmatprep.subr.mxu0 0.0
        %1965 = vmatpush1.msra.mxu0 0.0
        %1966 = vmatprep.subr.mxu0 0.0
        %1967 = vmatpush1.msra.mxu0 0.0
        %1968 = vmatprep.subr.mxu0 0.0
        %1969 = vmatpush1.msra.mxu0 0.0
        %1970 = vmatprep.subr.mxu0 0.0
        %1971 = vmatpush1.msra.mxu0 0.0
        %1972 = vmatprep.subr.mxu0 0.0
        %1973 = vmatpush1.msra.mxu0 0.0
        %1974 = vmatprep.subr.mxu0 0.0
        %1975 = vmatpush1.msra.mxu0 0.0
        %1976 = vmatprep.mubr.f32.mxu0 0.0
        %1977 = vmatmul.mubr.f32.gmra.mrb[0].mxu0 %v1861
        %v1978 = vpop.f32.mrb[0].mxu0
        %v1979 = vadd.f32 %v1781, %v1978
        %v1980 = vpop.f32.mrb[0].mxu0
        %1981 = vmatprep.mubr.f32.mxu0 0.0
        %1982 = vmatmul.mubr.f32.gmra.mrb[0].mxu0 %v1864
        %v1983 = vpop.f32.mrb[0].mxu0
        %v1984 = vadd.f32 %v1786, %v1983
        %v1985 = vpop.f32.mrb[0].mxu0
        %1986 = vmatprep.mubr.f32.mxu0 0.0
        %1987 = vmatmul.mubr.f32.gmra.mrb[0].mxu0 %v1867
        %v1988 = vpop.f32.mrb[0].mxu0
        %v1989 = vadd.f32 %v1791, %v1988
        %v1990 = vpop.f32.mrb[0].mxu0
        %1991 = vmatprep.mubr.f32.mxu0 0.0
        %1992 = vmatmul.mubr.f32.gmra.mrb[0].mxu0 %v1870
        %v1993 = vpop.f32.mrb[0].mxu0
        %v1994 = vadd.f32 %v1796, %v1993
        %v1995 = vpop.f32.mrb[0].mxu0
        %1996 = vmatprep.mubr.f32.mxu0 0.0
        %1997 = vmatmul.mubr.f32.gmra.mrb[0].mxu0 %v1873
        %v1998 = vpop.f32.mrb[0].mxu0
        %v1999 = vadd.f32 %v1801, %v1998
        %v2000 = vpop.f32.mrb[0].mxu0
        %2001 = vmatprep.mubr.f32.mxu0 0.0
        %2002 = vmatmul.mubr.f32.gmra.mrb[0].mxu0 %v1876
        %v2003 = vpop.f32.mrb[0].mxu0
        %v2004 = vadd.f32 %v1806, %v2003
        %v2005 = vpop.f32.mrb[0].mxu0
        %2006 = vmatprep.mubr.f32.mxu0 0.0
        %2007 = vmatmul.mubr.f32.gmra.mrb[0].mxu0 %v1879
        %v2008 = vpop.f32.mrb[0].mxu0
        %v2009 = vadd.f32 %v1811, %v2008
        %v2010 = vpop.f32.mrb[0].mxu0
        %2011 = vmatprep.mubr.f32.mxu0 0.0
        %2012 = vmatmul.mubr.f32.gmra.mrb[0].mxu0 %v1882
        %v2013 = vpop.f32.mrb[0].mxu0
        %v2014 = vadd.f32 %v1816, %v2013
        %v2015 = vpop.f32.mrb[0].mxu0
        %2016 = vmatprep.mubr.f32.mxu0 0.0
        %2017 = vmatmul.mubr.f32.gmra.mrb[0].mxu0 %v1885
        %v2018 = vpop.f32.mrb[0].mxu0
        %v2019 = vadd.f32 %v1821, %v2018
        %v2020 = vpop.f32.mrb[0].mxu0
        %2021 = vmatprep.mubr.f32.mxu0 0.0
        %2022 = vmatmul.mubr.f32.gmra.mrb[0].mxu0 %v1888
        %v2023 = vpop.f32.mrb[0].mxu0
        %v2024 = vadd.f32 %v1826, %v2023
        %v2025 = vpop.f32.mrb[0].mxu0
        %2026 = vmatprep.mubr.f32.mxu0 0.0
        %2027 = vmatmul.mubr.f32.gmra.mrb[0].mxu0 %v1891
        %v2028 = vpop.f32.mrb[0].mxu0
        %v2029 = vadd.f32 %v1831, %v2028
        %v2030 = vpop.f32.mrb[0].mxu0
        %2031 = vmatprep.mubr.f32.mxu0 0.0
        %2032 = vmatmul.mubr.f32.gmra.mrb[0].mxu0 %v1894
        %v2033 = vpop.f32.mrb[0].mxu0
        %v2034 = vadd.f32 %v1836, %v2033
        %v2035 = vpop.f32.mrb[0].mxu0
        %2036 = vmatprep.mubr.f32.mxu0 0.0
        %2037 = vmatmul.mubr.f32.gmra.mrb[0].mxu0 %v1897
        %v2038 = vpop.f32.mrb[0].mxu0
        %v2039 = vadd.f32 %v1841, %v2038
        %v2040 = vpop.f32.mrb[0].mxu0
        %2041 = vmatprep.mubr.f32.mxu0 0.0
        %2042 = vmatmul.mubr.f32.gmra.mrb[0].mxu0 %v1900
        %v2043 = vpop.f32.mrb[0].mxu0
        %v2044 = vadd.f32 %v1846, %v2043
        %v2045 = vpop.f32.mrb[0].mxu0
        %2046 = vmatprep.mubr.f32.mxu0 0.0
        %2047 = vmatmul.mubr.f32.gmra.mrb[0].mxu0 %v1903
        %v2048 = vpop.f32.mrb[0].mxu0
        %v2049 = vadd.f32 %v1851, %v2048
        %v2050 = vpop.f32.mrb[0].mxu0
        %2051 = vmatprep.mubr.f32.mxu0 0.0
        %2052 = vmatmul.mubr.f32.gmra.mrb[0].mxu0 %v1906
        %v2053 = vpop.f32.mrb[0].mxu0
        %v2054 = vadd.f32 %v1856, %v2053
        %v2055 = vpop.f32.mrb[0].mxu0
        %2056 = vdwg.mxu0
        %v2057 = vld [vmem:[%s13] sm:$0xff]
        %v2058 = vld [vmem:[%s13 + $0x8] sm:$0xff]
        %v2059 = vld [vmem:[%s13 + $0x10] sm:$0xff]
        %v2060 = vld [vmem:[%s13 + $0x18] sm:$0xff]
        %v2061 = vld [vmem:[%s13 + $0x20] sm:$0xff]
        %v2062 = vld [vmem:[%s13 + $0x28] sm:$0xff]
        %v2063 = vld [vmem:[%s13 + $0x30] sm:$0xff]
        %v2064 = vld [vmem:[%s13 + $0x38] sm:$0xff]
        %v2065 = vld [vmem:[%s13 + $0x40] sm:$0xff]
        %v2066 = vld [vmem:[%s13 + $0x48] sm:$0xff]
        %v2067 = vld [vmem:[%s13 + $0x50] sm:$0xff]
        %v2068 = vld [vmem:[%s13 + $0x58] sm:$0xff]
        %v2069 = vld [vmem:[%s13 + $0x60] sm:$0xff]
        %v2070 = vld [vmem:[%s13 + $0x68] sm:$0xff]
        %v2071 = vld [vmem:[%s13 + $0x70] sm:$0xff]
        %v2072 = vld [vmem:[%s13 + $0x78] sm:$0xff]
        %2074 = vset.pattern.permute.xlu0 0
        %2075 = vperm.xlu0 %2074, %v2057
        %v2076 = vpop.permute.xlu0 %2075
        %2079 = vset.pattern.permute.xlu0 0
        %2080 = vperm.xlu0 %2079, %v2058
        %v2081 = vpop.permute.xlu0 %2080
        %2084 = vset.pattern.permute.xlu0 0
        %2085 = vperm.xlu0 %2084, %v2059
        %v2086 = vpop.permute.xlu0 %2085
        %2089 = vset.pattern.permute.xlu0 0
        %2090 = vperm.xlu0 %2089, %v2060
        %v2091 = vpop.permute.xlu0 %2090
        %2094 = vset.pattern.permute.xlu0 0
        %2095 = vperm.xlu0 %2094, %v2061
        %v2096 = vpop.permute.xlu0 %2095
        %2099 = vset.pattern.permute.xlu0 0
        %2100 = vperm.xlu0 %2099, %v2062
        %v2101 = vpop.permute.xlu0 %2100
        %2104 = vset.pattern.permute.xlu0 0
        %2105 = vperm.xlu0 %2104, %v2063
        %v2106 = vpop.permute.xlu0 %2105
        %2109 = vset.pattern.permute.xlu0 0
        %2110 = vperm.xlu0 %2109, %v2064
        %v2111 = vpop.permute.xlu0 %2110
        %2114 = vset.pattern.permute.xlu0 0
        %2115 = vperm.xlu0 %2114, %v2065
        %v2116 = vpop.permute.xlu0 %2115
        %2119 = vset.pattern.permute.xlu0 0
        %2120 = vperm.xlu0 %2119, %v2066
        %v2121 = vpop.permute.xlu0 %2120
        %2124 = vset.pattern.permute.xlu0 0
        %2125 = vperm.xlu0 %2124, %v2067
        %v2126 = vpop.permute.xlu0 %2125
        %2129 = vset.pattern.permute.xlu0 0
        %2130 = vperm.xlu0 %2129, %v2068
        %v2131 = vpop.permute.xlu0 %2130
        %2134 = vset.pattern.permute.xlu0 0
        %2135 = vperm.xlu0 %2134, %v2069
        %v2136 = vpop.permute.xlu0 %2135
        %2139 = vset.pattern.permute.xlu0 0
        %2140 = vperm.xlu0 %2139, %v2070
        %v2141 = vpop.permute.xlu0 %2140
        %2144 = vset.pattern.permute.xlu0 0
        %2145 = vperm.xlu0 %2144, %v2071
        %v2146 = vpop.permute.xlu0 %2145
        %2149 = vset.pattern.permute.xlu0 0
        %2150 = vperm.xlu0 %2149, %v2072
        %v2151 = vpop.permute.xlu0 %2150
        %v2153 = vadd.f32 %v1979, %v2076
        %v2154 = vadd.f32 %v1984, %v2081
        %v2155 = vadd.f32 %v1989, %v2086
        %v2156 = vadd.f32 %v1994, %v2091
        %v2157 = vadd.f32 %v1999, %v2096
        %v2158 = vadd.f32 %v2004, %v2101
        %v2159 = vadd.f32 %v2009, %v2106
        %v2160 = vadd.f32 %v2014, %v2111
        %v2161 = vadd.f32 %v2019, %v2116
        %v2162 = vadd.f32 %v2024, %v2121
        %v2163 = vadd.f32 %v2029, %v2126
        %v2164 = vadd.f32 %v2034, %v2131
        %v2165 = vadd.f32 %v2039, %v2136
        %v2166 = vadd.f32 %v2044, %v2141
        %v2167 = vadd.f32 %v2049, %v2146
        %v2168 = vadd.f32 %v2054, %v2151
        %v2169 = vld [vmem:[#allocation10] sm:$0xff]
        %v2170 = vld [vmem:[#allocation10 + $0x8] sm:$0xff]
        %v2171 = vld [vmem:[#allocation10 + $0x10] sm:$0xff]
        %v2172 = vld [vmem:[#allocation10 + $0x18] sm:$0xff]
        %v2173 = vld [vmem:[#allocation10 + $0x20] sm:$0xff]
        %v2174 = vld [vmem:[#allocation10 + $0x28] sm:$0xff]
        %v2175 = vld [vmem:[#allocation10 + $0x30] sm:$0xff]
        %v2176 = vld [vmem:[#allocation10 + $0x38] sm:$0xff]
        %v2177 = vld [vmem:[#allocation10 + $0x40] sm:$0xff]
        %v2178 = vld [vmem:[#allocation10 + $0x48] sm:$0xff]
        %v2179 = vld [vmem:[#allocation10 + $0x50] sm:$0xff]
        %v2180 = vld [vmem:[#allocation10 + $0x58] sm:$0xff]
        %v2181 = vld [vmem:[#allocation10 + $0x60] sm:$0xff]
        %v2182 = vld [vmem:[#allocation10 + $0x68] sm:$0xff]
        %v2183 = vld [vmem:[#allocation10 + $0x70] sm:$0xff]
        %v2184 = vld [vmem:[#allocation10 + $0x78] sm:$0xff]
        %v2185 = vld [vmem:[#allocation10 + $0x80] sm:$0xff]
        %v2186 = vld [vmem:[#allocation10 + $0x88] sm:$0xff]
        %v2187 = vld [vmem:[#allocation10 + $0x90] sm:$0xff]
        %v2188 = vld [vmem:[#allocation10 + $0x98] sm:$0xff]
        %v2189 = vld [vmem:[#allocation10 + $0xa0] sm:$0xff]
        %v2190 = vld [vmem:[#allocation10 + $0xa8] sm:$0xff]
        %v2191 = vld [vmem:[#allocation10 + $0xb0] sm:$0xff]
        %v2192 = vld [vmem:[#allocation10 + $0xb8] sm:$0xff]
        %v2193 = vld [vmem:[#allocation10 + $0xc0] sm:$0xff]
        %v2194 = vld [vmem:[#allocation10 + $0xc8] sm:$0xff]
        %v2195 = vld [vmem:[#allocation10 + $0xd0] sm:$0xff]
        %v2196 = vld [vmem:[#allocation10 + $0xd8] sm:$0xff]
        %v2197 = vld [vmem:[#allocation10 + $0xe0] sm:$0xff]
        %v2198 = vld [vmem:[#allocation10 + $0xe8] sm:$0xff]
        %v2199 = vld [vmem:[#allocation10 + $0xf0] sm:$0xff]
        %v2200 = vld [vmem:[#allocation10 + $0xf8] sm:$0xff]
        %2201 = vmatprep.subr.mxu0 0.0
        %2202 = vmatpush1.msra.mxu0 %v2153
        %2203 = vmatprep.subr.mxu0 0.0
        %2204 = vmatpush1.msra.mxu0 %v2154
        %2205 = vmatprep.subr.mxu0 0.0
        %2206 = vmatpush1.msra.mxu0 %v2155
        %2207 = vmatprep.subr.mxu0 0.0
        %2208 = vmatpush1.msra.mxu0 %v2156
        %2209 = vmatprep.subr.mxu0 0.0
        %2210 = vmatpush1.msra.mxu0 %v2157
        %2211 = vmatprep.subr.mxu0 0.0
        %2212 = vmatpush1.msra.mxu0 %v2158
        %2213 = vmatprep.subr.mxu0 0.0
        %2214 = vmatpush1.msra.mxu0 %v2159
        %2215 = vmatprep.subr.mxu0 0.0
        %2216 = vmatpush1.msra.mxu0 %v2160
        %2217 = vmatprep.subr.mxu0 0.0
        %2218 = vmatpush1.msra.mxu0 %v2161
        %2219 = vmatprep.subr.mxu0 0.0
        %2220 = vmatpush1.msra.mxu0 %v2162
        %2221 = vmatprep.subr.mxu0 0.0
        %2222 = vmatpush1.msra.mxu0 %v2163
        %2223 = vmatprep.subr.mxu0 0.0
        %2224 = vmatpush1.msra.mxu0 %v2164
        %2225 = vmatprep.subr.mxu0 0.0
        %2226 = vmatpush1.msra.mxu0 %v2165
        %2227 = vmatprep.subr.mxu0 0.0
        %2228 = vmatpush1.msra.mxu0 %v2166
        %2229 = vmatprep.subr.mxu0 0.0
        %2230 = vmatpush1.msra.mxu0 %v2167
        %2231 = vmatprep.subr.mxu0 0.0
        %2232 = vmatpush1.msra.mxu0 %v2168
        %2233 = vmatprep.subr.mxu0 0.0
        %2234 = vmatpush1.msra.mxu0 0.0
        %2235 = vmatprep.subr.mxu0 0.0
        %2236 = vmatpush1.msra.mxu0 0.0
        %2237 = vmatprep.subr.mxu0 0.0
        %2238 = vmatpush1.msra.mxu0 0.0
        %2239 = vmatprep.subr.mxu0 0.0
        %2240 = vmatpush1.msra.mxu0 0.0
        %2241 = vmatprep.subr.mxu0 0.0
        %2242 = vmatpush1.msra.mxu0 0.0
        %2243 = vmatprep.subr.mxu0 0.0
        %2244 = vmatpush1.msra.mxu0 0.0
        %2245 = vmatprep.subr.mxu0 0.0
        %2246 = vmatpush1.msra.mxu0 0.0
        %2247 = vmatprep.subr.mxu0 0.0
        %2248 = vmatpush1.msra.mxu0 0.0
        %2249 = vmatprep.subr.mxu0 0.0
        %2250 = vmatpush1.msra.mxu0 0.0
        %2251 = vmatprep.subr.mxu0 0.0
        %2252 = vmatpush1.msra.mxu0 0.0
        %2253 = vmatprep.subr.mxu0 0.0
        %2254 = vmatpush1.msra.mxu0 0.0
        %2255 = vmatprep.subr.mxu0 0.0
        %2256 = vmatpush1.msra.mxu0 0.0
        %2257 = vmatprep.subr.mxu0 0.0
        %2258 = vmatpush1.msra.mxu0 0.0
        %2259 = vmatprep.subr.mxu0 0.0
        %2260 = vmatpush1.msra.mxu0 0.0
        %2261 = vmatprep.subr.mxu0 0.0
        %2262 = vmatpush1.msra.mxu0 0.0
        %2263 = vmatprep.subr.mxu0 0.0
        %2264 = vmatpush1.msra.mxu0 0.0
        %2265 = vmatprep.mubr.f32.mxu0 0.0
        %2266 = vmatmul.mubr.f32.gmra.mrb[0].mxu0 %v2169
        %v2267 = vpop.f32.mrb[0].mxu0
        %v2268 = vadd.f32 0.0, %v2267
        %v2269 = vpop.f32.mrb[0].mxu0
        %2270 = vmatprep.mubr.f32.mxu0 0.0
        %2271 = vmatmul.mubr.f32.gmra.mrb[0].mxu0 %v2170
        %v2272 = vpop.f32.mrb[0].mxu0
        %v2273 = vadd.f32 0.0, %v2272
        %v2274 = vpop.f32.mrb[0].mxu0
        %2275 = vmatprep.mubr.f32.mxu0 0.0
        %2276 = vmatmul.mubr.f32.gmra.mrb[0].mxu0 %v2171
        %v2277 = vpop.f32.mrb[0].mxu0
        %v2278 = vadd.f32 0.0, %v2277
        %v2279 = vpop.f32.mrb[0].mxu0
        %2280 = vmatprep.mubr.f32.mxu0 0.0
        %2281 = vmatmul.mubr.f32.gmra.mrb[0].mxu0 %v2172
        %v2282 = vpop.f32.mrb[0].mxu0
        %v2283 = vadd.f32 0.0, %v2282
        %v2284 = vpop.f32.mrb[0].mxu0
        %2285 = vmatprep.mubr.f32.mxu0 0.0
        %2286 = vmatmul.mubr.f32.gmra.mrb[0].mxu0 %v2173
        %v2287 = vpop.f32.mrb[0].mxu0
        %v2288 = vadd.f32 0.0, %v2287
        %v2289 = vpop.f32.mrb[0].mxu0
        %2290 = vmatprep.mubr.f32.mxu0 0.0
        %2291 = vmatmul.mubr.f32.gmra.mrb[0].mxu0 %v2174
        %v2292 = vpop.f32.mrb[0].mxu0
        %v2293 = vadd.f32 0.0, %v2292
        %v2294 = vpop.f32.mrb[0].mxu0
        %2295 = vmatprep.mubr.f32.mxu0 0.0
        %2296 = vmatmul.mubr.f32.gmra.mrb[0].mxu0 %v2175
        %v2297 = vpop.f32.mrb[0].mxu0
        %v2298 = vadd.f32 0.0, %v2297
        %v2299 = vpop.f32.mrb[0].mxu0
        %2300 = vmatprep.mubr.f32.mxu0 0.0
        %2301 = vmatmul.mubr.f32.gmra.mrb[0].mxu0 %v2176
        %v2302 = vpop.f32.mrb[0].mxu0
        %v2303 = vadd.f32 0.0, %v2302
        %v2304 = vpop.f32.mrb[0].mxu0
        %2305 = vmatprep.mubr.f32.mxu0 0.0
        %2306 = vmatmul.mubr.f32.gmra.mrb[0].mxu0 %v2177
        %v2307 = vpop.f32.mrb[0].mxu0
        %v2308 = vadd.f32 0.0, %v2307
        %v2309 = vpop.f32.mrb[0].mxu0
        %2310 = vmatprep.mubr.f32.mxu0 0.0
        %2311 = vmatmul.mubr.f32.gmra.mrb[0].mxu0 %v2178
        %v2312 = vpop.f32.mrb[0].mxu0
        %v2313 = vadd.f32 0.0, %v2312
        %v2314 = vpop.f32.mrb[0].mxu0
        %2315 = vmatprep.mubr.f32.mxu0 0.0
        %2316 = vmatmul.mubr.f32.gmra.mrb[0].mxu0 %v2179
        %v2317 = vpop.f32.mrb[0].mxu0
        %v2318 = vadd.f32 0.0, %v2317
        %v2319 = vpop.f32.mrb[0].mxu0
        %2320 = vmatprep.mubr.f32.mxu0 0.0
        %2321 = vmatmul.mubr.f32.gmra.mrb[0].mxu0 %v2180
        %v2322 = vpop.f32.mrb[0].mxu0
        %v2323 = vadd.f32 0.0, %v2322
        %v2324 = vpop.f32.mrb[0].mxu0
        %2325 = vmatprep.mubr.f32.mxu0 0.0
        %2326 = vmatmul.mubr.f32.gmra.mrb[0].mxu0 %v2181
        %v2327 = vpop.f32.mrb[0].mxu0
        %v2328 = vadd.f32 0.0, %v2327
        %v2329 = vpop.f32.mrb[0].mxu0
        %2330 = vmatprep.mubr.f32.mxu0 0.0
        %2331 = vmatmul.mubr.f32.gmra.mrb[0].mxu0 %v2182
        %v2332 = vpop.f32.mrb[0].mxu0
        %v2333 = vadd.f32 0.0, %v2332
        %v2334 = vpop.f32.mrb[0].mxu0
        %2335 = vmatprep.mubr.f32.mxu0 0.0
        %2336 = vmatmul.mubr.f32.gmra.mrb[0].mxu0 %v2183
        %v2337 = vpop.f32.mrb[0].mxu0
        %v2338 = vadd.f32 0.0, %v2337
        %v2339 = vpop.f32.mrb[0].mxu0
        %2340 = vmatprep.mubr.f32.mxu0 0.0
        %2341 = vmatmul.mubr.f32.gmra.mrb[0].mxu0 %v2184
        %v2342 = vpop.f32.mrb[0].mxu0
        %v2343 = vadd.f32 0.0, %v2342
        %v2344 = vpop.f32.mrb[0].mxu0
        %2345 = vmatprep.mubr.f32.mxu0 0.0
        %2346 = vmatmul.mubr.f32.gmra.mrb[0].mxu0 %v2185
        %v2347 = vpop.f32.mrb[0].mxu0
        %v2348 = vadd.f32 0.0, %v2347
        %v2349 = vpop.f32.mrb[0].mxu0
        %2350 = vmatprep.mubr.f32.mxu0 0.0
        %2351 = vmatmul.mubr.f32.gmra.mrb[0].mxu0 %v2186
        %v2352 = vpop.f32.mrb[0].mxu0
        %v2353 = vadd.f32 0.0, %v2352
        %v2354 = vpop.f32.mrb[0].mxu0
        %2355 = vmatprep.mubr.f32.mxu0 0.0
        %2356 = vmatmul.mubr.f32.gmra.mrb[0].mxu0 %v2187
        %v2357 = vpop.f32.mrb[0].mxu0
        %v2358 = vadd.f32 0.0, %v2357
        %v2359 = vpop.f32.mrb[0].mxu0
        %2360 = vmatprep.mubr.f32.mxu0 0.0
        %2361 = vmatmul.mubr.f32.gmra.mrb[0].mxu0 %v2188
        %v2362 = vpop.f32.mrb[0].mxu0
        %v2363 = vadd.f32 0.0, %v2362
        %v2364 = vpop.f32.mrb[0].mxu0
        %2365 = vmatprep.mubr.f32.mxu0 0.0
        %2366 = vmatmul.mubr.f32.gmra.mrb[0].mxu0 %v2189
        %v2367 = vpop.f32.mrb[0].mxu0
        %v2368 = vadd.f32 0.0, %v2367
        %v2369 = vpop.f32.mrb[0].mxu0
        %2370 = vmatprep.mubr.f32.mxu0 0.0
        %2371 = vmatmul.mubr.f32.gmra.mrb[0].mxu0 %v2190
        %v2372 = vpop.f32.mrb[0].mxu0
        %v2373 = vadd.f32 0.0, %v2372
        %v2374 = vpop.f32.mrb[0].mxu0
        %2375 = vmatprep.mubr.f32.mxu0 0.0
        %2376 = vmatmul.mubr.f32.gmra.mrb[0].mxu0 %v2191
        %v2377 = vpop.f32.mrb[0].mxu0
        %v2378 = vadd.f32 0.0, %v2377
        %v2379 = vpop.f32.mrb[0].mxu0
        %2380 = vmatprep.mubr.f32.mxu0 0.0
        %2381 = vmatmul.mubr.f32.gmra.mrb[0].mxu0 %v2192
        %v2382 = vpop.f32.mrb[0].mxu0
        %v2383 = vadd.f32 0.0, %v2382
        %v2384 = vpop.f32.mrb[0].mxu0
        %2385 = vmatprep.mubr.f32.mxu0 0.0
        %2386 = vmatmul.mubr.f32.gmra.mrb[0].mxu0 %v2193
        %v2387 = vpop.f32.mrb[0].mxu0
        %v2388 = vadd.f32 0.0, %v2387
        %v2389 = vpop.f32.mrb[0].mxu0
        %2390 = vmatprep.mubr.f32.mxu0 0.0
        %2391 = vmatmul.mubr.f32.gmra.mrb[0].mxu0 %v2194
        %v2392 = vpop.f32.mrb[0].mxu0
        %v2393 = vadd.f32 0.0, %v2392
        %v2394 = vpop.f32.mrb[0].mxu0
        %2395 = vmatprep.mubr.f32.mxu0 0.0
        %2396 = vmatmul.mubr.f32.gmra.mrb[0].mxu0 %v2195
        %v2397 = vpop.f32.mrb[0].mxu0
        %v2398 = vadd.f32 0.0, %v2397
        %v2399 = vpop.f32.mrb[0].mxu0
        %2400 = vmatprep.mubr.f32.mxu0 0.0
        %2401 = vmatmul.mubr.f32.gmra.mrb[0].mxu0 %v2196
        %v2402 = vpop.f32.mrb[0].mxu0
        %v2403 = vadd.f32 0.0, %v2402
        %v2404 = vpop.f32.mrb[0].mxu0
        %2405 = vmatprep.mubr.f32.mxu0 0.0
        %2406 = vmatmul.mubr.f32.gmra.mrb[0].mxu0 %v2197
        %v2407 = vpop.f32.mrb[0].mxu0
        %v2408 = vadd.f32 0.0, %v2407
        %v2409 = vpop.f32.mrb[0].mxu0
        %2410 = vmatprep.mubr.f32.mxu0 0.0
        %2411 = vmatmul.mubr.f32.gmra.mrb[0].mxu0 %v2198
        %v2412 = vpop.f32.mrb[0].mxu0
        %v2413 = vadd.f32 0.0, %v2412
        %v2414 = vpop.f32.mrb[0].mxu0
        %2415 = vmatprep.mubr.f32.mxu0 0.0
        %2416 = vmatmul.mubr.f32.gmra.mrb[0].mxu0 %v2199
        %v2417 = vpop.f32.mrb[0].mxu0
        %v2418 = vadd.f32 0.0, %v2417
        %v2419 = vpop.f32.mrb[0].mxu0
        %2420 = vmatprep.mubr.f32.mxu0 0.0
        %2421 = vmatmul.mubr.f32.gmra.mrb[0].mxu0 %v2200
        %v2422 = vpop.f32.mrb[0].mxu0
        %v2423 = vadd.f32 0.0, %v2422
        %v2424 = vpop.f32.mrb[0].mxu0
        %2425 = vdwg.mxu0
        %v2426 = vld [vmem:[#allocation13] sm:$0xff]
        %v2427 = vld [vmem:[#allocation12] sm:$0xff]
        %v2428 = vld [vmem:[#allocation12 + $0x8] sm:$0xff]
        %v2429 = vld [vmem:[#allocation12 + $0x10] sm:$0xff]
        %v2430 = vld [vmem:[#allocation12 + $0x18] sm:$0xff]
        %v2431 = vld [vmem:[#allocation12 + $0x20] sm:$0xff]
        %v2432 = vld [vmem:[#allocation12 + $0x28] sm:$0xff]
        %v2433 = vld [vmem:[#allocation12 + $0x30] sm:$0xff]
        %v2434 = vld [vmem:[#allocation12 + $0x38] sm:$0xff]
        %v2435 = vld [vmem:[#allocation12 + $0x40] sm:$0xff]
        %v2436 = vld [vmem:[#allocation12 + $0x48] sm:$0xff]
        %v2437 = vld [vmem:[#allocation12 + $0x50] sm:$0xff]
        %v2438 = vld [vmem:[#allocation12 + $0x58] sm:$0xff]
        %v2439 = vld [vmem:[#allocation12 + $0x60] sm:$0xff]
        %v2440 = vld [vmem:[#allocation12 + $0x68] sm:$0xff]
        %v2441 = vld [vmem:[#allocation12 + $0x70] sm:$0xff]
        %v2442 = vld [vmem:[#allocation12 + $0x78] sm:$0xff]
        %v2443 = vld [vmem:[#allocation12 + $0x80] sm:$0xff]
        %v2444 = vld [vmem:[#allocation12 + $0x88] sm:$0xff]
        %v2445 = vld [vmem:[#allocation12 + $0x90] sm:$0xff]
        %v2446 = vld [vmem:[#allocation12 + $0x98] sm:$0xff]
        %v2447 = vld [vmem:[#allocation12 + $0xa0] sm:$0xff]
        %v2448 = vld [vmem:[#allocation12 + $0xa8] sm:$0xff]
        %v2449 = vld [vmem:[#allocation12 + $0xb0] sm:$0xff]
        %v2450 = vld [vmem:[#allocation12 + $0xb8] sm:$0xff]
        %v2451 = vld [vmem:[#allocation12 + $0xc0] sm:$0xff]
        %v2452 = vld [vmem:[#allocation12 + $0xc8] sm:$0xff]
        %v2453 = vld [vmem:[#allocation12 + $0xd0] sm:$0xff]
        %v2454 = vld [vmem:[#allocation12 + $0xd8] sm:$0xff]
        %v2455 = vld [vmem:[#allocation12 + $0xe0] sm:$0xff]
        %v2456 = vld [vmem:[#allocation12 + $0xe8] sm:$0xff]
        %v2457 = vld [vmem:[#allocation12 + $0xf0] sm:$0xff]
        %v2458 = vld [vmem:[#allocation12 + $0xf8] sm:$0xff]
        %v2459 = vld [vmem:[%s1017] sm:$0xff]
        %v2460 = vld [vmem:[%s1017 + $0x8] sm:$0xff]
        %v2461 = vld [vmem:[%s1017 + $0x10] sm:$0xff]
        %v2462 = vld [vmem:[%s1017 + $0x18] sm:$0xff]
        %v2463 = vld [vmem:[%s1017 + $0x20] sm:$0xff]
        %v2464 = vld [vmem:[%s1017 + $0x28] sm:$0xff]
        %v2465 = vld [vmem:[%s1017 + $0x30] sm:$0xff]
        %v2466 = vld [vmem:[%s1017 + $0x38] sm:$0xff]
        %v2467 = vld [vmem:[%s1017 + $0x40] sm:$0xff]
        %v2468 = vld [vmem:[%s1017 + $0x48] sm:$0xff]
        %v2469 = vld [vmem:[%s1017 + $0x50] sm:$0xff]
        %v2470 = vld [vmem:[%s1017 + $0x58] sm:$0xff]
        %v2471 = vld [vmem:[%s1017 + $0x60] sm:$0xff]
        %v2472 = vld [vmem:[%s1017 + $0x68] sm:$0xff]
        %v2473 = vld [vmem:[%s1017 + $0x70] sm:$0xff]
        %v2474 = vld [vmem:[%s1017 + $0x78] sm:$0xff]
        %2475 = vmatprep.subr.mxu0 0.0
        %2476 = vmatpush1.msra.mxu0 %v2459
        %2477 = vmatprep.subr.mxu0 0.0
        %2478 = vmatpush1.msra.mxu0 %v2460
        %2479 = vmatprep.subr.mxu0 0.0
        %2480 = vmatpush1.msra.mxu0 %v2461
        %2481 = vmatprep.subr.mxu0 0.0
        %2482 = vmatpush1.msra.mxu0 %v2462
        %2483 = vmatprep.subr.mxu0 0.0
        %2484 = vmatpush1.msra.mxu0 %v2463
        %2485 = vmatprep.subr.mxu0 0.0
        %2486 = vmatpush1.msra.mxu0 %v2464
        %2487 = vmatprep.subr.mxu0 0.0
        %2488 = vmatpush1.msra.mxu0 %v2465
        %2489 = vmatprep.subr.mxu0 0.0
        %2490 = vmatpush1.msra.mxu0 %v2466
        %2491 = vmatprep.subr.mxu0 0.0
        %2492 = vmatpush1.msra.mxu0 %v2467
        %2493 = vmatprep.subr.mxu0 0.0
        %2494 = vmatpush1.msra.mxu0 %v2468
        %2495 = vmatprep.subr.mxu0 0.0
        %2496 = vmatpush1.msra.mxu0 %v2469
        %2497 = vmatprep.subr.mxu0 0.0
        %2498 = vmatpush1.msra.mxu0 %v2470
        %2499 = vmatprep.subr.mxu0 0.0
        %2500 = vmatpush1.msra.mxu0 %v2471
        %2501 = vmatprep.subr.mxu0 0.0
        %2502 = vmatpush1.msra.mxu0 %v2472
        %2503 = vmatprep.subr.mxu0 0.0
        %2504 = vmatpush1.msra.mxu0 %v2473
        %2505 = vmatprep.subr.mxu0 0.0
        %2506 = vmatpush1.msra.mxu0 %v2474
        %2507 = vmatprep.subr.mxu0 0.0
        %2508 = vmatpush1.msra.mxu0 0.0
        %2509 = vmatprep.subr.mxu0 0.0
        %2510 = vmatpush1.msra.mxu0 0.0
        %2511 = vmatprep.subr.mxu0 0.0
        %2512 = vmatpush1.msra.mxu0 0.0
        %2513 = vmatprep.subr.mxu0 0.0
        %2514 = vmatpush1.msra.mxu0 0.0
        %2515 = vmatprep.subr.mxu0 0.0
        %2516 = vmatpush1.msra.mxu0 0.0
        %2517 = vmatprep.subr.mxu0 0.0
        %2518 = vmatpush1.msra.mxu0 0.0
        %2519 = vmatprep.subr.mxu0 0.0
        %2520 = vmatpush1.msra.mxu0 0.0
        %2521 = vmatprep.subr.mxu0 0.0
        %2522 = vmatpush1.msra.mxu0 0.0
        %2523 = vmatprep.subr.mxu0 0.0
        %2524 = vmatpush1.msra.mxu0 0.0
        %2525 = vmatprep.subr.mxu0 0.0
        %2526 = vmatpush1.msra.mxu0 0.0
        %2527 = vmatprep.subr.mxu0 0.0
        %2528 = vmatpush1.msra.mxu0 0.0
        %2529 = vmatprep.subr.mxu0 0.0
        %2530 = vmatpush1.msra.mxu0 0.0
        %2531 = vmatprep.subr.mxu0 0.0
        %2532 = vmatpush1.msra.mxu0 0.0
        %2533 = vmatprep.subr.mxu0 0.0
        %2534 = vmatpush1.msra.mxu0 0.0
        %2535 = vmatprep.subr.mxu0 0.0
        %2536 = vmatpush1.msra.mxu0 0.0
        %2537 = vmatprep.subr.mxu0 0.0
        %2538 = vmatpush1.msra.mxu0 0.0
        %2539 = vmatprep.mubr.f32.mxu0 0.0
        %2540 = vmatmul.mubr.f32.gmra.mrb[0].mxu0 %v2427
        %v2541 = vpop.f32.mrb[0].mxu0
        %v2542 = vadd.f32 0.0, %v2541
        %v2543 = vpop.f32.mrb[0].mxu0
        %2544 = vmatprep.mubr.f32.mxu0 0.0
        %2545 = vmatmul.mubr.f32.gmra.mrb[0].mxu0 %v2428
        %v2546 = vpop.f32.mrb[0].mxu0
        %v2547 = vadd.f32 0.0, %v2546
        %v2548 = vpop.f32.mrb[0].mxu0
        %2549 = vmatprep.mubr.f32.mxu0 0.0
        %2550 = vmatmul.mubr.f32.gmra.mrb[0].mxu0 %v2429
        %v2551 = vpop.f32.mrb[0].mxu0
        %v2552 = vadd.f32 0.0, %v2551
        %v2553 = vpop.f32.mrb[0].mxu0
        %2554 = vmatprep.mubr.f32.mxu0 0.0
        %2555 = vmatmul.mubr.f32.gmra.mrb[0].mxu0 %v2430
        %v2556 = vpop.f32.mrb[0].mxu0
        %v2557 = vadd.f32 0.0, %v2556
        %v2558 = vpop.f32.mrb[0].mxu0
        %2559 = vmatprep.mubr.f32.mxu0 0.0
        %2560 = vmatmul.mubr.f32.gmra.mrb[0].mxu0 %v2431
        %v2561 = vpop.f32.mrb[0].mxu0
        %v2562 = vadd.f32 0.0, %v2561
        %v2563 = vpop.f32.mrb[0].mxu0
        %2564 = vmatprep.mubr.f32.mxu0 0.0
        %2565 = vmatmul.mubr.f32.gmra.mrb[0].mxu0 %v2432
        %v2566 = vpop.f32.mrb[0].mxu0
        %v2567 = vadd.f32 0.0, %v2566
        %v2568 = vpop.f32.mrb[0].mxu0
        %2569 = vmatprep.mubr.f32.mxu0 0.0
        %2570 = vmatmul.mubr.f32.gmra.mrb[0].mxu0 %v2433
        %v2571 = vpop.f32.mrb[0].mxu0
        %v2572 = vadd.f32 0.0, %v2571
        %v2573 = vpop.f32.mrb[0].mxu0
        %2574 = vmatprep.mubr.f32.mxu0 0.0
        %2575 = vmatmul.mubr.f32.gmra.mrb[0].mxu0 %v2434
        %v2576 = vpop.f32.mrb[0].mxu0
        %v2577 = vadd.f32 0.0, %v2576
        %v2578 = vpop.f32.mrb[0].mxu0
        %2579 = vmatprep.mubr.f32.mxu0 0.0
        %2580 = vmatmul.mubr.f32.gmra.mrb[0].mxu0 %v2435
        %v2581 = vpop.f32.mrb[0].mxu0
        %v2582 = vadd.f32 0.0, %v2581
        %v2583 = vpop.f32.mrb[0].mxu0
        %2584 = vmatprep.mubr.f32.mxu0 0.0
        %2585 = vmatmul.mubr.f32.gmra.mrb[0].mxu0 %v2436
        %v2586 = vpop.f32.mrb[0].mxu0
        %v2587 = vadd.f32 0.0, %v2586
        %v2588 = vpop.f32.mrb[0].mxu0
        %2589 = vmatprep.mubr.f32.mxu0 0.0
        %2590 = vmatmul.mubr.f32.gmra.mrb[0].mxu0 %v2437
        %v2591 = vpop.f32.mrb[0].mxu0
        %v2592 = vadd.f32 0.0, %v2591
        %v2593 = vpop.f32.mrb[0].mxu0
        %2594 = vmatprep.mubr.f32.mxu0 0.0
        %2595 = vmatmul.mubr.f32.gmra.mrb[0].mxu0 %v2438
        %v2596 = vpop.f32.mrb[0].mxu0
        %v2597 = vadd.f32 0.0, %v2596
        %v2598 = vpop.f32.mrb[0].mxu0
        %2599 = vmatprep.mubr.f32.mxu0 0.0
        %2600 = vmatmul.mubr.f32.gmra.mrb[0].mxu0 %v2439
        %v2601 = vpop.f32.mrb[0].mxu0
        %v2602 = vadd.f32 0.0, %v2601
        %v2603 = vpop.f32.mrb[0].mxu0
        %2604 = vmatprep.mubr.f32.mxu0 0.0
        %2605 = vmatmul.mubr.f32.gmra.mrb[0].mxu0 %v2440
        %v2606 = vpop.f32.mrb[0].mxu0
        %v2607 = vadd.f32 0.0, %v2606
        %v2608 = vpop.f32.mrb[0].mxu0
        %2609 = vmatprep.mubr.f32.mxu0 0.0
        %2610 = vmatmul.mubr.f32.gmra.mrb[0].mxu0 %v2441
        %v2611 = vpop.f32.mrb[0].mxu0
        %v2612 = vadd.f32 0.0, %v2611
        %v2613 = vpop.f32.mrb[0].mxu0
        %2614 = vmatprep.mubr.f32.mxu0 0.0
        %2615 = vmatmul.mubr.f32.gmra.mrb[0].mxu0 %v2442
        %v2616 = vpop.f32.mrb[0].mxu0
        %v2617 = vadd.f32 0.0, %v2616
        %v2618 = vpop.f32.mrb[0].mxu0
        %2619 = vmatprep.mubr.f32.mxu0 0.0
        %2620 = vmatmul.mubr.f32.gmra.mrb[0].mxu0 %v2443
        %v2621 = vpop.f32.mrb[0].mxu0
        %v2622 = vadd.f32 0.0, %v2621
        %v2623 = vpop.f32.mrb[0].mxu0
        %2624 = vmatprep.mubr.f32.mxu0 0.0
        %2625 = vmatmul.mubr.f32.gmra.mrb[0].mxu0 %v2444
        %v2626 = vpop.f32.mrb[0].mxu0
        %v2627 = vadd.f32 0.0, %v2626
        %v2628 = vpop.f32.mrb[0].mxu0
        %2629 = vmatprep.mubr.f32.mxu0 0.0
        %2630 = vmatmul.mubr.f32.gmra.mrb[0].mxu0 %v2445
        %v2631 = vpop.f32.mrb[0].mxu0
        %v2632 = vadd.f32 0.0, %v2631
        %v2633 = vpop.f32.mrb[0].mxu0
        %2634 = vmatprep.mubr.f32.mxu0 0.0
        %2635 = vmatmul.mubr.f32.gmra.mrb[0].mxu0 %v2446
        %v2636 = vpop.f32.mrb[0].mxu0
        %v2637 = vadd.f32 0.0, %v2636
        %v2638 = vpop.f32.mrb[0].mxu0
        %2639 = vmatprep.mubr.f32.mxu0 0.0
        %2640 = vmatmul.mubr.f32.gmra.mrb[0].mxu0 %v2447
        %v2641 = vpop.f32.mrb[0].mxu0
        %v2642 = vadd.f32 0.0, %v2641
        %v2643 = vpop.f32.mrb[0].mxu0
        %2644 = vmatprep.mubr.f32.mxu0 0.0
        %2645 = vmatmul.mubr.f32.gmra.mrb[0].mxu0 %v2448
        %v2646 = vpop.f32.mrb[0].mxu0
        %v2647 = vadd.f32 0.0, %v2646
        %v2648 = vpop.f32.mrb[0].mxu0
        %2649 = vmatprep.mubr.f32.mxu0 0.0
        %2650 = vmatmul.mubr.f32.gmra.mrb[0].mxu0 %v2449
        %v2651 = vpop.f32.mrb[0].mxu0
        %v2652 = vadd.f32 0.0, %v2651
        %v2653 = vpop.f32.mrb[0].mxu0
        %2654 = vmatprep.mubr.f32.mxu0 0.0
        %2655 = vmatmul.mubr.f32.gmra.mrb[0].mxu0 %v2450
        %v2656 = vpop.f32.mrb[0].mxu0
        %v2657 = vadd.f32 0.0, %v2656
        %v2658 = vpop.f32.mrb[0].mxu0
        %2659 = vmatprep.mubr.f32.mxu0 0.0
        %2660 = vmatmul.mubr.f32.gmra.mrb[0].mxu0 %v2451
        %v2661 = vpop.f32.mrb[0].mxu0
        %v2662 = vadd.f32 0.0, %v2661
        %v2663 = vpop.f32.mrb[0].mxu0
        %2664 = vmatprep.mubr.f32.mxu0 0.0
        %2665 = vmatmul.mubr.f32.gmra.mrb[0].mxu0 %v2452
        %v2666 = vpop.f32.mrb[0].mxu0
        %v2667 = vadd.f32 0.0, %v2666
        %v2668 = vpop.f32.mrb[0].mxu0
        %2669 = vmatprep.mubr.f32.mxu0 0.0
        %2670 = vmatmul.mubr.f32.gmra.mrb[0].mxu0 %v2453
        %v2671 = vpop.f32.mrb[0].mxu0
        %v2672 = vadd.f32 0.0, %v2671
        %v2673 = vpop.f32.mrb[0].mxu0
        %2674 = vmatprep.mubr.f32.mxu0 0.0
        %2675 = vmatmul.mubr.f32.gmra.mrb[0].mxu0 %v2454
        %v2676 = vpop.f32.mrb[0].mxu0
        %v2677 = vadd.f32 0.0, %v2676
        %v2678 = vpop.f32.mrb[0].mxu0
        %2679 = vmatprep.mubr.f32.mxu0 0.0
        %2680 = vmatmul.mubr.f32.gmra.mrb[0].mxu0 %v2455
        %v2681 = vpop.f32.mrb[0].mxu0
        %v2682 = vadd.f32 0.0, %v2681
        %v2683 = vpop.f32.mrb[0].mxu0
        %2684 = vmatprep.mubr.f32.mxu0 0.0
        %2685 = vmatmul.mubr.f32.gmra.mrb[0].mxu0 %v2456
        %v2686 = vpop.f32.mrb[0].mxu0
        %v2687 = vadd.f32 0.0, %v2686
        %v2688 = vpop.f32.mrb[0].mxu0
        %2689 = vmatprep.mubr.f32.mxu0 0.0
        %2690 = vmatmul.mubr.f32.gmra.mrb[0].mxu0 %v2457
        %v2691 = vpop.f32.mrb[0].mxu0
        %v2692 = vadd.f32 0.0, %v2691
        %v2693 = vpop.f32.mrb[0].mxu0
        %2694 = vmatprep.mubr.f32.mxu0 0.0
        %2695 = vmatmul.mubr.f32.gmra.mrb[0].mxu0 %v2458
        %v2696 = vpop.f32.mrb[0].mxu0
        %v2697 = vadd.f32 0.0, %v2696
        %v2698 = vpop.f32.mrb[0].mxu0
        %2699 = vdwg.mxu0
        %vm2700 = vcmask 64512
        %v2702 = vsel %vm2700, %v2268, 0
        %v2705 = vsel %vm2700, %v2273, 0
        %v2708 = vsel %vm2700, %v2278, 0
        %v2711 = vsel %vm2700, %v2283, 0
        %v2714 = vsel %vm2700, %v2288, 0
        %v2717 = vsel %vm2700, %v2293, 0
        %v2720 = vsel %vm2700, %v2298, 0
        %v2723 = vsel %vm2700, %v2303, 0
        %v2726 = vsel %vm2700, %v2308, 0
        %v2729 = vsel %vm2700, %v2313, 0
        %v2732 = vsel %vm2700, %v2318, 0
        %v2735 = vsel %vm2700, %v2323, 0
        %v2738 = vsel %vm2700, %v2328, 0
        %v2741 = vsel %vm2700, %v2333, 0
        %v2744 = vsel %vm2700, %v2338, 0
        %v2747 = vsel %vm2700, %v2343, 0
        %v2750 = vsel %vm2700, %v2348, 0
        %v2753 = vsel %vm2700, %v2353, 0
        %v2756 = vsel %vm2700, %v2358, 0
        %v2759 = vsel %vm2700, %v2363, 0
        %v2762 = vsel %vm2700, %v2368, 0
        %v2765 = vsel %vm2700, %v2373, 0
        %v2768 = vsel %vm2700, %v2378, 0
        %v2771 = vsel %vm2700, %v2383, 0
        %v2774 = vsel %vm2700, %v2388, 0
        %v2777 = vsel %vm2700, %v2393, 0
        %v2780 = vsel %vm2700, %v2398, 0
        %v2783 = vsel %vm2700, %v2403, 0
        %v2786 = vsel %vm2700, %v2408, 0
        %v2789 = vsel %vm2700, %v2413, 0
        %v2792 = vsel %vm2700, %v2418, 0
        %v2795 = vsel %vm2700, %v2423, 0
        %2797 = vmatprep.subr.mxu0 0.0
        %2798 = vmatpush1.msra.mxu0 %v2426
        %2799 = vmatprep.subr.mxu0 0.0
        %2800 = vmatpush1.msra.mxu0 0.0
        %2801 = vmatprep.subr.mxu0 0.0
        %2802 = vmatpush1.msra.mxu0 0.0
        %2803 = vmatprep.subr.mxu0 0.0
        %2804 = vmatpush1.msra.mxu0 0.0
        %2805 = vmatprep.subr.mxu0 0.0
        %2806 = vmatpush1.msra.mxu0 0.0
        %2807 = vmatprep.subr.mxu0 0.0
        %2808 = vmatpush1.msra.mxu0 0.0
        %2809 = vmatprep.subr.mxu0 0.0
        %2810 = vmatpush1.msra.mxu0 0.0
        %2811 = vmatprep.subr.mxu0 0.0
        %2812 = vmatpush1.msra.mxu0 0.0
        %2813 = vmatprep.subr.mxu0 0.0
        %2814 = vmatpush1.msra.mxu0 0.0
        %2815 = vmatprep.subr.mxu0 0.0
        %2816 = vmatpush1.msra.mxu0 0.0
        %2817 = vmatprep.subr.mxu0 0.0
        %2818 = vmatpush1.msra.mxu0 0.0
        %2819 = vmatprep.subr.mxu0 0.0
        %2820 = vmatpush1.msra.mxu0 0.0
        %2821 = vmatprep.subr.mxu0 0.0
        %2822 = vmatpush1.msra.mxu0 0.0
        %2823 = vmatprep.subr.mxu0 0.0
        %2824 = vmatpush1.msra.mxu0 0.0
        %2825 = vmatprep.subr.mxu0 0.0
        %2826 = vmatpush1.msra.mxu0 0.0
        %2827 = vmatprep.subr.mxu0 0.0
        %2828 = vmatpush1.msra.mxu0 0.0
        %2829 = vmatprep.subr.mxu0 0.0
        %2830 = vmatpush1.msra.mxu0 0.0
        %2831 = vmatprep.subr.mxu0 0.0
        %2832 = vmatpush1.msra.mxu0 0.0
        %2833 = vmatprep.subr.mxu0 0.0
        %2834 = vmatpush1.msra.mxu0 0.0
        %2835 = vmatprep.subr.mxu0 0.0
        %2836 = vmatpush1.msra.mxu0 0.0
        %2837 = vmatprep.subr.mxu0 0.0
        %2838 = vmatpush1.msra.mxu0 0.0
        %2839 = vmatprep.subr.mxu0 0.0
        %2840 = vmatpush1.msra.mxu0 0.0
        %2841 = vmatprep.subr.mxu0 0.0
        %2842 = vmatpush1.msra.mxu0 0.0
        %2843 = vmatprep.subr.mxu0 0.0
        %2844 = vmatpush1.msra.mxu0 0.0
        %2845 = vmatprep.subr.mxu0 0.0
        %2846 = vmatpush1.msra.mxu0 0.0
        %2847 = vmatprep.subr.mxu0 0.0
        %2848 = vmatpush1.msra.mxu0 0.0
        %2849 = vmatprep.subr.mxu0 0.0
        %2850 = vmatpush1.msra.mxu0 0.0
        %2851 = vmatprep.subr.mxu0 0.0
        %2852 = vmatpush1.msra.mxu0 0.0
        %2853 = vmatprep.subr.mxu0 0.0
        %2854 = vmatpush1.msra.mxu0 0.0
        %2855 = vmatprep.subr.mxu0 0.0
        %2856 = vmatpush1.msra.mxu0 0.0
        %2857 = vmatprep.subr.mxu0 0.0
        %2858 = vmatpush1.msra.mxu0 0.0
        %2859 = vmatprep.subr.mxu0 0.0
        %2860 = vmatpush1.msra.mxu0 0.0
        %2861 = vmatprep.mubr.f32.mxu0 0.0
        %2862 = vmatmul.mubr.f32.gmra.mrb[0].mxu0 %v2702
        %v2863 = vpop.f32.mrb[0].mxu0
        %v2864 = vadd.f32 %v2542, %v2863
        %v2865 = vpop.f32.mrb[0].mxu0
        %2866 = vmatprep.mubr.f32.mxu0 0.0
        %2867 = vmatmul.mubr.f32.gmra.mrb[0].mxu0 %v2705
        %v2868 = vpop.f32.mrb[0].mxu0
        %v2869 = vadd.f32 %v2547, %v2868
        %v2870 = vpop.f32.mrb[0].mxu0
        %2871 = vmatprep.mubr.f32.mxu0 0.0
        %2872 = vmatmul.mubr.f32.gmra.mrb[0].mxu0 %v2708
        %v2873 = vpop.f32.mrb[0].mxu0
        %v2874 = vadd.f32 %v2552, %v2873
        %v2875 = vpop.f32.mrb[0].mxu0
        %2876 = vmatprep.mubr.f32.mxu0 0.0
        %2877 = vmatmul.mubr.f32.gmra.mrb[0].mxu0 %v2711
        %v2878 = vpop.f32.mrb[0].mxu0
        %v2879 = vadd.f32 %v2557, %v2878
        %v2880 = vpop.f32.mrb[0].mxu0
        %2881 = vmatprep.mubr.f32.mxu0 0.0
        %2882 = vmatmul.mubr.f32.gmra.mrb[0].mxu0 %v2714
        %v2883 = vpop.f32.mrb[0].mxu0
        %v2884 = vadd.f32 %v2562, %v2883
        %v2885 = vpop.f32.mrb[0].mxu0
        %2886 = vmatprep.mubr.f32.mxu0 0.0
        %2887 = vmatmul.mubr.f32.gmra.mrb[0].mxu0 %v2717
        %v2888 = vpop.f32.mrb[0].mxu0
        %v2889 = vadd.f32 %v2567, %v2888
        %v2890 = vpop.f32.mrb[0].mxu0
        %2891 = vmatprep.mubr.f32.mxu0 0.0
        %2892 = vmatmul.mubr.f32.gmra.mrb[0].mxu0 %v2720
        %v2893 = vpop.f32.mrb[0].mxu0
        %v2894 = vadd.f32 %v2572, %v2893
        %v2895 = vpop.f32.mrb[0].mxu0
        %2896 = vmatprep.mubr.f32.mxu0 0.0
        %2897 = vmatmul.mubr.f32.gmra.mrb[0].mxu0 %v2723
        %v2898 = vpop.f32.mrb[0].mxu0
        %v2899 = vadd.f32 %v2577, %v2898
        %v2900 = vpop.f32.mrb[0].mxu0
        %2901 = vmatprep.mubr.f32.mxu0 0.0
        %2902 = vmatmul.mubr.f32.gmra.mrb[0].mxu0 %v2726
        %v2903 = vpop.f32.mrb[0].mxu0
        %v2904 = vadd.f32 %v2582, %v2903
        %v2905 = vpop.f32.mrb[0].mxu0
        %2906 = vmatprep.mubr.f32.mxu0 0.0
        %2907 = vmatmul.mubr.f32.gmra.mrb[0].mxu0 %v2729
        %v2908 = vpop.f32.mrb[0].mxu0
        %v2909 = vadd.f32 %v2587, %v2908
        %v2910 = vpop.f32.mrb[0].mxu0
        %2911 = vmatprep.mubr.f32.mxu0 0.0
        %2912 = vmatmul.mubr.f32.gmra.mrb[0].mxu0 %v2732
        %v2913 = vpop.f32.mrb[0].mxu0
        %v2914 = vadd.f32 %v2592, %v2913
        %v2915 = vpop.f32.mrb[0].mxu0
        %2916 = vmatprep.mubr.f32.mxu0 0.0
        %2917 = vmatmul.mubr.f32.gmra.mrb[0].mxu0 %v2735
        %v2918 = vpop.f32.mrb[0].mxu0
        %v2919 = vadd.f32 %v2597, %v2918
        %v2920 = vpop.f32.mrb[0].mxu0
        %2921 = vmatprep.mubr.f32.mxu0 0.0
        %2922 = vmatmul.mubr.f32.gmra.mrb[0].mxu0 %v2738
        %v2923 = vpop.f32.mrb[0].mxu0
        %v2924 = vadd.f32 %v2602, %v2923
        %v2925 = vpop.f32.mrb[0].mxu0
        %2926 = vmatprep.mubr.f32.mxu0 0.0
        %2927 = vmatmul.mubr.f32.gmra.mrb[0].mxu0 %v2741
        %v2928 = vpop.f32.mrb[0].mxu0
        %v2929 = vadd.f32 %v2607, %v2928
        %v2930 = vpop.f32.mrb[0].mxu0
        %2931 = vmatprep.mubr.f32.mxu0 0.0
        %2932 = vmatmul.mubr.f32.gmra.mrb[0].mxu0 %v2744
        %v2933 = vpop.f32.mrb[0].mxu0
        %v2934 = vadd.f32 %v2612, %v2933
        %v2935 = vpop.f32.mrb[0].mxu0
        %2936 = vmatprep.mubr.f32.mxu0 0.0
        %2937 = vmatmul.mubr.f32.gmra.mrb[0].mxu0 %v2747
        %v2938 = vpop.f32.mrb[0].mxu0
        %v2939 = vadd.f32 %v2617, %v2938
        %v2940 = vpop.f32.mrb[0].mxu0
        %2941 = vmatprep.mubr.f32.mxu0 0.0
        %2942 = vmatmul.mubr.f32.gmra.mrb[0].mxu0 %v2750
        %v2943 = vpop.f32.mrb[0].mxu0
        %v2944 = vadd.f32 %v2622, %v2943
        %v2945 = vpop.f32.mrb[0].mxu0
        %2946 = vmatprep.mubr.f32.mxu0 0.0
        %2947 = vmatmul.mubr.f32.gmra.mrb[0].mxu0 %v2753
        %v2948 = vpop.f32.mrb[0].mxu0
        %v2949 = vadd.f32 %v2627, %v2948
        %v2950 = vpop.f32.mrb[0].mxu0
        %2951 = vmatprep.mubr.f32.mxu0 0.0
        %2952 = vmatmul.mubr.f32.gmra.mrb[0].mxu0 %v2756
        %v2953 = vpop.f32.mrb[0].mxu0
        %v2954 = vadd.f32 %v2632, %v2953
        %v2955 = vpop.f32.mrb[0].mxu0
        %2956 = vmatprep.mubr.f32.mxu0 0.0
        %2957 = vmatmul.mubr.f32.gmra.mrb[0].mxu0 %v2759
        %v2958 = vpop.f32.mrb[0].mxu0
        %v2959 = vadd.f32 %v2637, %v2958
        %v2960 = vpop.f32.mrb[0].mxu0
        %2961 = vmatprep.mubr.f32.mxu0 0.0
        %2962 = vmatmul.mubr.f32.gmra.mrb[0].mxu0 %v2762
        %v2963 = vpop.f32.mrb[0].mxu0
        %v2964 = vadd.f32 %v2642, %v2963
        %v2965 = vpop.f32.mrb[0].mxu0
        %2966 = vmatprep.mubr.f32.mxu0 0.0
        %2967 = vmatmul.mubr.f32.gmra.mrb[0].mxu0 %v2765
        %v2968 = vpop.f32.mrb[0].mxu0
        %v2969 = vadd.f32 %v2647, %v2968
        %v2970 = vpop.f32.mrb[0].mxu0
        %2971 = vmatprep.mubr.f32.mxu0 0.0
        %2972 = vmatmul.mubr.f32.gmra.mrb[0].mxu0 %v2768
        %v2973 = vpop.f32.mrb[0].mxu0
        %v2974 = vadd.f32 %v2652, %v2973
        %v2975 = vpop.f32.mrb[0].mxu0
        %2976 = vmatprep.mubr.f32.mxu0 0.0
        %2977 = vmatmul.mubr.f32.gmra.mrb[0].mxu0 %v2771
        %v2978 = vpop.f32.mrb[0].mxu0
        %v2979 = vadd.f32 %v2657, %v2978
        %v2980 = vpop.f32.mrb[0].mxu0
        %2981 = vmatprep.mubr.f32.mxu0 0.0
        %2982 = vmatmul.mubr.f32.gmra.mrb[0].mxu0 %v2774
        %v2983 = vpop.f32.mrb[0].mxu0
        %v2984 = vadd.f32 %v2662, %v2983
        %v2985 = vpop.f32.mrb[0].mxu0
        %2986 = vmatprep.mubr.f32.mxu0 0.0
        %2987 = vmatmul.mubr.f32.gmra.mrb[0].mxu0 %v2777
        %v2988 = vpop.f32.mrb[0].mxu0
        %v2989 = vadd.f32 %v2667, %v2988
        %v2990 = vpop.f32.mrb[0].mxu0
        %2991 = vmatprep.mubr.f32.mxu0 0.0
        %2992 = vmatmul.mubr.f32.gmra.mrb[0].mxu0 %v2780
        %v2993 = vpop.f32.mrb[0].mxu0
        %v2994 = vadd.f32 %v2672, %v2993
        %v2995 = vpop.f32.mrb[0].mxu0
        %2996 = vmatprep.mubr.f32.mxu0 0.0
        %2997 = vmatmul.mubr.f32.gmra.mrb[0].mxu0 %v2783
        %v2998 = vpop.f32.mrb[0].mxu0
        %v2999 = vadd.f32 %v2677, %v2998
        %v3000 = vpop.f32.mrb[0].mxu0
        %3001 = vmatprep.mubr.f32.mxu0 0.0
        %3002 = vmatmul.mubr.f32.gmra.mrb[0].mxu0 %v2786
        %v3003 = vpop.f32.mrb[0].mxu0
        %v3004 = vadd.f32 %v2682, %v3003
        %v3005 = vpop.f32.mrb[0].mxu0
        %3006 = vmatprep.mubr.f32.mxu0 0.0
        %3007 = vmatmul.mubr.f32.gmra.mrb[0].mxu0 %v2789
        %v3008 = vpop.f32.mrb[0].mxu0
        %v3009 = vadd.f32 %v2687, %v3008
        %v3010 = vpop.f32.mrb[0].mxu0
        %3011 = vmatprep.mubr.f32.mxu0 0.0
        %3012 = vmatmul.mubr.f32.gmra.mrb[0].mxu0 %v2792
        %v3013 = vpop.f32.mrb[0].mxu0
        %v3014 = vadd.f32 %v2692, %v3013
        %v3015 = vpop.f32.mrb[0].mxu0
        %3016 = vmatprep.mubr.f32.mxu0 0.0
        %3017 = vmatmul.mubr.f32.gmra.mrb[0].mxu0 %v2795
        %v3018 = vpop.f32.mrb[0].mxu0
        %v3019 = vadd.f32 %v2697, %v3018
        %v3020 = vpop.f32.mrb[0].mxu0
        %3021 = vdwg.mxu0
        %v3022 = vld [vmem:[%s17] sm:$0xff]
        %v3023 = vld [vmem:[%s17 + $0x8] sm:$0xff]
        %v3024 = vld [vmem:[%s17 + $0x10] sm:$0xff]
        %v3025 = vld [vmem:[%s17 + $0x18] sm:$0xff]
        %v3026 = vld [vmem:[%s17 + $0x20] sm:$0xff]
        %v3027 = vld [vmem:[%s17 + $0x28] sm:$0xff]
        %v3028 = vld [vmem:[%s17 + $0x30] sm:$0xff]
        %v3029 = vld [vmem:[%s17 + $0x38] sm:$0xff]
        %v3030 = vld [vmem:[%s17 + $0x40] sm:$0xff]
        %v3031 = vld [vmem:[%s17 + $0x48] sm:$0xff]
        %v3032 = vld [vmem:[%s17 + $0x50] sm:$0xff]
        %v3033 = vld [vmem:[%s17 + $0x58] sm:$0xff]
        %v3034 = vld [vmem:[%s17 + $0x60] sm:$0xff]
        %v3035 = vld [vmem:[%s17 + $0x68] sm:$0xff]
        %v3036 = vld [vmem:[%s17 + $0x70] sm:$0xff]
        %v3037 = vld [vmem:[%s17 + $0x78] sm:$0xff]
        %v3038 = vld [vmem:[%s17 + $0x80] sm:$0xff]
        %v3039 = vld [vmem:[%s17 + $0x88] sm:$0xff]
        %v3040 = vld [vmem:[%s17 + $0x90] sm:$0xff]
        %v3041 = vld [vmem:[%s17 + $0x98] sm:$0xff]
        %v3042 = vld [vmem:[%s17 + $0xa0] sm:$0xff]
        %v3043 = vld [vmem:[%s17 + $0xa8] sm:$0xff]
        %v3044 = vld [vmem:[%s17 + $0xb0] sm:$0xff]
        %v3045 = vld [vmem:[%s17 + $0xb8] sm:$0xff]
        %v3046 = vld [vmem:[%s17 + $0xc0] sm:$0xff]
        %v3047 = vld [vmem:[%s17 + $0xc8] sm:$0xff]
        %v3048 = vld [vmem:[%s17 + $0xd0] sm:$0xff]
        %v3049 = vld [vmem:[%s17 + $0xd8] sm:$0xff]
        %v3050 = vld [vmem:[%s17 + $0xe0] sm:$0xff]
        %v3051 = vld [vmem:[%s17 + $0xe8] sm:$0xff]
        %v3052 = vld [vmem:[%s17 + $0xf0] sm:$0xff]
        %v3053 = vld [vmem:[%s17 + $0xf8] sm:$0xff]
        %3055 = vset.pattern.permute.xlu0 0
        %3056 = vperm.xlu0 %3055, %v3022
        %v3057 = vpop.permute.xlu0 %3056
        %3060 = vset.pattern.permute.xlu0 0
        %3061 = vperm.xlu0 %3060, %v3023
        %v3062 = vpop.permute.xlu0 %3061
        %3065 = vset.pattern.permute.xlu0 0
        %3066 = vperm.xlu0 %3065, %v3024
        %v3067 = vpop.permute.xlu0 %3066
        %3070 = vset.pattern.permute.xlu0 0
        %3071 = vperm.xlu0 %3070, %v3025
        %v3072 = vpop.permute.xlu0 %3071
        %3075 = vset.pattern.permute.xlu0 0
        %3076 = vperm.xlu0 %3075, %v3026
        %v3077 = vpop.permute.xlu0 %3076
        %3080 = vset.pattern.permute.xlu0 0
        %3081 = vperm.xlu0 %3080, %v3027
        %v3082 = vpop.permute.xlu0 %3081
        %3085 = vset.pattern.permute.xlu0 0
        %3086 = vperm.xlu0 %3085, %v3028
        %v3087 = vpop.permute.xlu0 %3086
        %3090 = vset.pattern.permute.xlu0 0
        %3091 = vperm.xlu0 %3090, %v3029
        %v3092 = vpop.permute.xlu0 %3091
        %3095 = vset.pattern.permute.xlu0 0
        %3096 = vperm.xlu0 %3095, %v3030
        %v3097 = vpop.permute.xlu0 %3096
        %3100 = vset.pattern.permute.xlu0 0
        %3101 = vperm.xlu0 %3100, %v3031
        %v3102 = vpop.permute.xlu0 %3101
        %3105 = vset.pattern.permute.xlu0 0
        %3106 = vperm.xlu0 %3105, %v3032
        %v3107 = vpop.permute.xlu0 %3106
        %3110 = vset.pattern.permute.xlu0 0
        %3111 = vperm.xlu0 %3110, %v3033
        %v3112 = vpop.permute.xlu0 %3111
        %3115 = vset.pattern.permute.xlu0 0
        %3116 = vperm.xlu0 %3115, %v3034
        %v3117 = vpop.permute.xlu0 %3116
        %3120 = vset.pattern.permute.xlu0 0
        %3121 = vperm.xlu0 %3120, %v3035
        %v3122 = vpop.permute.xlu0 %3121
        %3125 = vset.pattern.permute.xlu0 0
        %3126 = vperm.xlu0 %3125, %v3036
        %v3127 = vpop.permute.xlu0 %3126
        %3130 = vset.pattern.permute.xlu0 0
        %3131 = vperm.xlu0 %3130, %v3037
        %v3132 = vpop.permute.xlu0 %3131
        %3135 = vset.pattern.permute.xlu0 0
        %3136 = vperm.xlu0 %3135, %v3038
        %v3137 = vpop.permute.xlu0 %3136
        %3140 = vset.pattern.permute.xlu0 0
        %3141 = vperm.xlu0 %3140, %v3039
        %v3142 = vpop.permute.xlu0 %3141
        %3145 = vset.pattern.permute.xlu0 0
        %3146 = vperm.xlu0 %3145, %v3040
        %v3147 = vpop.permute.xlu0 %3146
        %3150 = vset.pattern.permute.xlu0 0
        %3151 = vperm.xlu0 %3150, %v3041
        %v3152 = vpop.permute.xlu0 %3151
        %3155 = vset.pattern.permute.xlu0 0
        %3156 = vperm.xlu0 %3155, %v3042
        %v3157 = vpop.permute.xlu0 %3156
        %3160 = vset.pattern.permute.xlu0 0
        %3161 = vperm.xlu0 %3160, %v3043
        %v3162 = vpop.permute.xlu0 %3161
        %3165 = vset.pattern.permute.xlu0 0
        %3166 = vperm.xlu0 %3165, %v3044
        %v3167 = vpop.permute.xlu0 %3166
        %3170 = vset.pattern.permute.xlu0 0
        %3171 = vperm.xlu0 %3170, %v3045
        %v3172 = vpop.permute.xlu0 %3171
        %3175 = vset.pattern.permute.xlu0 0
        %3176 = vperm.xlu0 %3175, %v3046
        %v3177 = vpop.permute.xlu0 %3176
        %3180 = vset.pattern.permute.xlu0 0
        %3181 = vperm.xlu0 %3180, %v3047
        %v3182 = vpop.permute.xlu0 %3181
        %3185 = vset.pattern.permute.xlu0 0
        %3186 = vperm.xlu0 %3185, %v3048
        %v3187 = vpop.permute.xlu0 %3186
        %3190 = vset.pattern.permute.xlu0 0
        %3191 = vperm.xlu0 %3190, %v3049
        %v3192 = vpop.permute.xlu0 %3191
        %3195 = vset.pattern.permute.xlu0 0
        %3196 = vperm.xlu0 %3195, %v3050
        %v3197 = vpop.permute.xlu0 %3196
        %3200 = vset.pattern.permute.xlu0 0
        %3201 = vperm.xlu0 %3200, %v3051
        %v3202 = vpop.permute.xlu0 %3201
        %3205 = vset.pattern.permute.xlu0 0
        %3206 = vperm.xlu0 %3205, %v3052
        %v3207 = vpop.permute.xlu0 %3206
        %3210 = vset.pattern.permute.xlu0 0
        %3211 = vperm.xlu0 %3210, %v3053
        %v3212 = vpop.permute.xlu0 %3211
        %v3214 = vadd.f32 %v2864, %v3057
        %v3215 = vadd.f32 %v2869, %v3062
        %v3216 = vadd.f32 %v2874, %v3067
        %v3217 = vadd.f32 %v2879, %v3072
        %v3218 = vadd.f32 %v2884, %v3077
        %v3219 = vadd.f32 %v2889, %v3082
        %v3220 = vadd.f32 %v2894, %v3087
        %v3221 = vadd.f32 %v2899, %v3092
        %v3222 = vadd.f32 %v2904, %v3097
        %v3223 = vadd.f32 %v2909, %v3102
        %v3224 = vadd.f32 %v2914, %v3107
        %v3225 = vadd.f32 %v2919, %v3112
        %v3226 = vadd.f32 %v2924, %v3117
        %v3227 = vadd.f32 %v2929, %v3122
        %v3228 = vadd.f32 %v2934, %v3127
        %v3229 = vadd.f32 %v2939, %v3132
        %v3230 = vadd.f32 %v2944, %v3137
        %v3231 = vadd.f32 %v2949, %v3142
        %v3232 = vadd.f32 %v2954, %v3147
        %v3233 = vadd.f32 %v2959, %v3152
        %v3234 = vadd.f32 %v2964, %v3157
        %v3235 = vadd.f32 %v2969, %v3162
        %v3236 = vadd.f32 %v2974, %v3167
        %v3237 = vadd.f32 %v2979, %v3172
        %v3238 = vadd.f32 %v2984, %v3177
        %v3239 = vadd.f32 %v2989, %v3182
        %v3240 = vadd.f32 %v2994, %v3187
        %v3241 = vadd.f32 %v2999, %v3192
        %v3242 = vadd.f32 %v3004, %v3197
        %v3243 = vadd.f32 %v3009, %v3202
        %v3244 = vadd.f32 %v3014, %v3207
        %v3245 = vadd.f32 %v3019, %v3212
        %v3246 = vld [vmem:[#allocation15] sm:$0xff]
        %v3247 = vld [vmem:[#allocation15 + $0x8] sm:$0xff]
        %v3248 = vld [vmem:[#allocation15 + $0x10] sm:$0xff]
        %v3249 = vld [vmem:[#allocation15 + $0x18] sm:$0xff]
        %v3250 = vld [vmem:[#allocation15 + $0x20] sm:$0xff]
        %v3251 = vld [vmem:[#allocation15 + $0x28] sm:$0xff]
        %v3252 = vld [vmem:[#allocation15 + $0x30] sm:$0xff]
        %v3253 = vld [vmem:[#allocation15 + $0x38] sm:$0xff]
        %v3254 = vld [vmem:[#allocation15 + $0x40] sm:$0xff]
        %v3255 = vld [vmem:[#allocation15 + $0x48] sm:$0xff]
        %v3256 = vld [vmem:[#allocation15 + $0x50] sm:$0xff]
        %v3257 = vld [vmem:[#allocation15 + $0x58] sm:$0xff]
        %v3258 = vld [vmem:[#allocation15 + $0x60] sm:$0xff]
        %v3259 = vld [vmem:[#allocation15 + $0x68] sm:$0xff]
        %v3260 = vld [vmem:[#allocation15 + $0x70] sm:$0xff]
        %v3261 = vld [vmem:[#allocation15 + $0x78] sm:$0xff]
        %v3262 = vld [vmem:[#allocation15 + $0x80] sm:$0xff]
        %v3263 = vld [vmem:[#allocation15 + $0x88] sm:$0xff]
        %v3264 = vld [vmem:[#allocation15 + $0x90] sm:$0xff]
        %v3265 = vld [vmem:[#allocation15 + $0x98] sm:$0xff]
        %v3266 = vld [vmem:[#allocation15 + $0xa0] sm:$0xff]
        %v3267 = vld [vmem:[#allocation15 + $0xa8] sm:$0xff]
        %v3268 = vld [vmem:[#allocation15 + $0xb0] sm:$0xff]
        %v3269 = vld [vmem:[#allocation15 + $0xb8] sm:$0xff]
        %v3270 = vld [vmem:[#allocation15 + $0xc0] sm:$0xff]
        %v3271 = vld [vmem:[#allocation15 + $0xc8] sm:$0xff]
        %v3272 = vld [vmem:[#allocation15 + $0xd0] sm:$0xff]
        %v3273 = vld [vmem:[#allocation15 + $0xd8] sm:$0xff]
        %v3274 = vld [vmem:[#allocation15 + $0xe0] sm:$0xff]
        %v3275 = vld [vmem:[#allocation15 + $0xe8] sm:$0xff]
        %v3276 = vld [vmem:[#allocation15 + $0xf0] sm:$0xff]
        %v3277 = vld [vmem:[#allocation15 + $0xf8] sm:$0xff]
        %v3278 = vld [vmem:[#allocation15 + $0x100] sm:$0xff]
        %v3279 = vld [vmem:[#allocation15 + $0x108] sm:$0xff]
        %v3280 = vld [vmem:[#allocation15 + $0x110] sm:$0xff]
        %v3281 = vld [vmem:[#allocation15 + $0x118] sm:$0xff]
        %v3282 = vld [vmem:[#allocation15 + $0x120] sm:$0xff]
        %v3283 = vld [vmem:[#allocation15 + $0x128] sm:$0xff]
        %v3284 = vld [vmem:[#allocation15 + $0x130] sm:$0xff]
        %v3285 = vld [vmem:[#allocation15 + $0x138] sm:$0xff]
        %v3286 = vld [vmem:[#allocation15 + $0x140] sm:$0xff]
        %v3287 = vld [vmem:[#allocation15 + $0x148] sm:$0xff]
        %v3288 = vld [vmem:[#allocation15 + $0x150] sm:$0xff]
        %v3289 = vld [vmem:[#allocation15 + $0x158] sm:$0xff]
        %v3290 = vld [vmem:[#allocation15 + $0x160] sm:$0xff]
        %v3291 = vld [vmem:[#allocation15 + $0x168] sm:$0xff]
        %v3292 = vld [vmem:[#allocation15 + $0x170] sm:$0xff]
        %v3293 = vld [vmem:[#allocation15 + $0x178] sm:$0xff]
        %v3294 = vld [vmem:[#allocation15 + $0x180] sm:$0xff]
        %v3295 = vld [vmem:[#allocation15 + $0x188] sm:$0xff]
        %v3296 = vld [vmem:[#allocation15 + $0x190] sm:$0xff]
        %v3297 = vld [vmem:[#allocation15 + $0x198] sm:$0xff]
        %v3298 = vld [vmem:[#allocation15 + $0x1a0] sm:$0xff]
        %v3299 = vld [vmem:[#allocation15 + $0x1a8] sm:$0xff]
        %v3300 = vld [vmem:[#allocation15 + $0x1b0] sm:$0xff]
        %v3301 = vld [vmem:[#allocation15 + $0x1b8] sm:$0xff]
        %v3302 = vld [vmem:[#allocation15 + $0x1c0] sm:$0xff]
        %v3303 = vld [vmem:[#allocation15 + $0x1c8] sm:$0xff]
        %v3304 = vld [vmem:[#allocation15 + $0x1d0] sm:$0xff]
        %v3305 = vld [vmem:[#allocation15 + $0x1d8] sm:$0xff]
        %v3306 = vld [vmem:[#allocation15 + $0x1e0] sm:$0xff]
        %v3307 = vld [vmem:[#allocation15 + $0x1e8] sm:$0xff]
        %v3308 = vld [vmem:[#allocation15 + $0x1f0] sm:$0xff]
        %v3309 = vld [vmem:[#allocation15 + $0x1f8] sm:$0xff]
        %v3310 = vld [vmem:[#allocation15 + $0x200] sm:$0xff]
        %v3311 = vld [vmem:[#allocation15 + $0x208] sm:$0xff]
        %v3312 = vld [vmem:[#allocation15 + $0x210] sm:$0xff]
        %v3313 = vld [vmem:[#allocation15 + $0x218] sm:$0xff]
        %v3314 = vld [vmem:[#allocation15 + $0x220] sm:$0xff]
        %v3315 = vld [vmem:[#allocation15 + $0x228] sm:$0xff]
        %v3316 = vld [vmem:[#allocation15 + $0x230] sm:$0xff]
        %v3317 = vld [vmem:[#allocation15 + $0x238] sm:$0xff]
        %v3318 = vld [vmem:[#allocation15 + $0x240] sm:$0xff]
        %v3319 = vld [vmem:[#allocation15 + $0x248] sm:$0xff]
        %v3320 = vld [vmem:[#allocation15 + $0x250] sm:$0xff]
        %v3321 = vld [vmem:[#allocation15 + $0x258] sm:$0xff]
        %v3322 = vld [vmem:[#allocation15 + $0x260] sm:$0xff]
        %v3323 = vld [vmem:[#allocation15 + $0x268] sm:$0xff]
        %v3324 = vld [vmem:[#allocation15 + $0x270] sm:$0xff]
        %v3325 = vld [vmem:[#allocation15 + $0x278] sm:$0xff]
        %v3326 = vld [vmem:[#allocation15 + $0x280] sm:$0xff]
        %v3327 = vld [vmem:[#allocation15 + $0x288] sm:$0xff]
        %v3328 = vld [vmem:[#allocation15 + $0x290] sm:$0xff]
        %v3329 = vld [vmem:[#allocation15 + $0x298] sm:$0xff]
        %v3330 = vld [vmem:[#allocation15 + $0x2a0] sm:$0xff]
        %v3331 = vld [vmem:[#allocation15 + $0x2a8] sm:$0xff]
        %v3332 = vld [vmem:[#allocation15 + $0x2b0] sm:$0xff]
        %v3333 = vld [vmem:[#allocation15 + $0x2b8] sm:$0xff]
        %v3334 = vld [vmem:[#allocation15 + $0x2c0] sm:$0xff]
        %v3335 = vld [vmem:[#allocation15 + $0x2c8] sm:$0xff]
        %v3336 = vld [vmem:[#allocation15 + $0x2d0] sm:$0xff]
        %v3337 = vld [vmem:[#allocation15 + $0x2d8] sm:$0xff]
        %v3338 = vld [vmem:[#allocation15 + $0x2e0] sm:$0xff]
        %v3339 = vld [vmem:[#allocation15 + $0x2e8] sm:$0xff]
        %v3340 = vld [vmem:[#allocation15 + $0x2f0] sm:$0xff]
        %v3341 = vld [vmem:[#allocation15 + $0x2f8] sm:$0xff]
        %v3342 = vld [vmem:[#allocation15 + $0x300] sm:$0xff]
        %v3343 = vld [vmem:[#allocation15 + $0x308] sm:$0xff]
        %v3344 = vld [vmem:[#allocation15 + $0x310] sm:$0xff]
        %v3345 = vld [vmem:[#allocation15 + $0x318] sm:$0xff]
        %v3346 = vld [vmem:[#allocation15 + $0x320] sm:$0xff]
        %v3347 = vld [vmem:[#allocation15 + $0x328] sm:$0xff]
        %v3348 = vld [vmem:[#allocation15 + $0x330] sm:$0xff]
        %v3349 = vld [vmem:[#allocation15 + $0x338] sm:$0xff]
        %v3350 = vld [vmem:[#allocation15 + $0x340] sm:$0xff]
        %v3351 = vld [vmem:[#allocation15 + $0x348] sm:$0xff]
        %v3352 = vld [vmem:[#allocation15 + $0x350] sm:$0xff]
        %v3353 = vld [vmem:[#allocation15 + $0x358] sm:$0xff]
        %v3354 = vld [vmem:[#allocation15 + $0x360] sm:$0xff]
        %v3355 = vld [vmem:[#allocation15 + $0x368] sm:$0xff]
        %v3356 = vld [vmem:[#allocation15 + $0x370] sm:$0xff]
        %v3357 = vld [vmem:[#allocation15 + $0x378] sm:$0xff]
        %v3358 = vld [vmem:[#allocation15 + $0x380] sm:$0xff]
        %v3359 = vld [vmem:[#allocation15 + $0x388] sm:$0xff]
        %v3360 = vld [vmem:[#allocation15 + $0x390] sm:$0xff]
        %v3361 = vld [vmem:[#allocation15 + $0x398] sm:$0xff]
        %v3362 = vld [vmem:[#allocation15 + $0x3a0] sm:$0xff]
        %v3363 = vld [vmem:[#allocation15 + $0x3a8] sm:$0xff]
        %v3364 = vld [vmem:[#allocation15 + $0x3b0] sm:$0xff]
        %v3365 = vld [vmem:[#allocation15 + $0x3b8] sm:$0xff]
        %v3366 = vld [vmem:[#allocation15 + $0x3c0] sm:$0xff]
        %v3367 = vld [vmem:[#allocation15 + $0x3c8] sm:$0xff]
        %v3368 = vld [vmem:[#allocation15 + $0x3d0] sm:$0xff]
        %v3369 = vld [vmem:[#allocation15 + $0x3d8] sm:$0xff]
        %v3370 = vld [vmem:[#allocation15 + $0x3e0] sm:$0xff]
        %v3371 = vld [vmem:[#allocation15 + $0x3e8] sm:$0xff]
        %v3372 = vld [vmem:[#allocation15 + $0x3f0] sm:$0xff]
        %v3373 = vld [vmem:[#allocation15 + $0x3f8] sm:$0xff]
        %3374 = vmatprep.subr.mxu0 0.0
        %3375 = vmatpush1.msra.mxu0 %v3214
        %3376 = vmatprep.subr.mxu0 0.0
        %3377 = vmatpush1.msra.mxu0 %v3215
        %3378 = vmatprep.subr.mxu0 0.0
        %3379 = vmatpush1.msra.mxu0 %v3216
        %3380 = vmatprep.subr.mxu0 0.0
        %3381 = vmatpush1.msra.mxu0 %v3217
        %3382 = vmatprep.subr.mxu0 0.0
        %3383 = vmatpush1.msra.mxu0 %v3218
        %3384 = vmatprep.subr.mxu0 0.0
        %3385 = vmatpush1.msra.mxu0 %v3219
        %3386 = vmatprep.subr.mxu0 0.0
        %3387 = vmatpush1.msra.mxu0 %v3220
        %3388 = vmatprep.subr.mxu0 0.0
        %3389 = vmatpush1.msra.mxu0 %v3221
        %3390 = vmatprep.subr.mxu0 0.0
        %3391 = vmatpush1.msra.mxu0 %v3222
        %3392 = vmatprep.subr.mxu0 0.0
        %3393 = vmatpush1.msra.mxu0 %v3223
        %3394 = vmatprep.subr.mxu0 0.0
        %3395 = vmatpush1.msra.mxu0 %v3224
        %3396 = vmatprep.subr.mxu0 0.0
        %3397 = vmatpush1.msra.mxu0 %v3225
        %3398 = vmatprep.subr.mxu0 0.0
        %3399 = vmatpush1.msra.mxu0 %v3226
        %3400 = vmatprep.subr.mxu0 0.0
        %3401 = vmatpush1.msra.mxu0 %v3227
        %3402 = vmatprep.subr.mxu0 0.0
        %3403 = vmatpush1.msra.mxu0 %v3228
        %3404 = vmatprep.subr.mxu0 0.0
        %3405 = vmatpush1.msra.mxu0 %v3229
        %3406 = vmatprep.subr.mxu0 0.0
        %3407 = vmatpush1.msra.mxu0 %v3230
        %3408 = vmatprep.subr.mxu0 0.0
        %3409 = vmatpush1.msra.mxu0 %v3231
        %3410 = vmatprep.subr.mxu0 0.0
        %3411 = vmatpush1.msra.mxu0 %v3232
        %3412 = vmatprep.subr.mxu0 0.0
        %3413 = vmatpush1.msra.mxu0 %v3233
        %3414 = vmatprep.subr.mxu0 0.0
        %3415 = vmatpush1.msra.mxu0 %v3234
        %3416 = vmatprep.subr.mxu0 0.0
        %3417 = vmatpush1.msra.mxu0 %v3235
        %3418 = vmatprep.subr.mxu0 0.0
        %3419 = vmatpush1.msra.mxu0 %v3236
        %3420 = vmatprep.subr.mxu0 0.0
        %3421 = vmatpush1.msra.mxu0 %v3237
        %3422 = vmatprep.subr.mxu0 0.0
        %3423 = vmatpush1.msra.mxu0 %v3238
        %3424 = vmatprep.subr.mxu0 0.0
        %3425 = vmatpush1.msra.mxu0 %v3239
        %3426 = vmatprep.subr.mxu0 0.0
        %3427 = vmatpush1.msra.mxu0 %v3240
        %3428 = vmatprep.subr.mxu0 0.0
        %3429 = vmatpush1.msra.mxu0 %v3241
        %3430 = vmatprep.subr.mxu0 0.0
        %3431 = vmatpush1.msra.mxu0 %v3242
        %3432 = vmatprep.subr.mxu0 0.0
        %3433 = vmatpush1.msra.mxu0 %v3243
        %3434 = vmatprep.subr.mxu0 0.0
        %3435 = vmatpush1.msra.mxu0 %v3244
        %3436 = vmatprep.subr.mxu0 0.0
        %3437 = vmatpush1.msra.mxu0 %v3245
        %3438 = vmatprep.mubr.f32.mxu0 %v3247
        %3439 = vmatmul.mubr.f32.gmra.mrb[0].mxu0 %v3246
        %v3440 = vpop.f32.mrb[0].mxu0
        %v3441 = vadd.f32 0.0, %v3440
        %v3442 = vpop.f32.mrb[0].mxu0
        %3443 = vmatprep.mubr.f32.mxu0 %v3249
        %3444 = vmatmul.mubr.f32.gmra.mrb[0].mxu0 %v3248
        %v3445 = vpop.f32.mrb[0].mxu0
        %v3446 = vadd.f32 0.0, %v3445
        %v3447 = vpop.f32.mrb[0].mxu0
        %3448 = vmatprep.mubr.f32.mxu0 %v3251
        %3449 = vmatmul.mubr.f32.gmra.mrb[0].mxu0 %v3250
        %v3450 = vpop.f32.mrb[0].mxu0
        %v3451 = vadd.f32 0.0, %v3450
        %v3452 = vpop.f32.mrb[0].mxu0
        %3453 = vmatprep.mubr.f32.mxu0 %v3253
        %3454 = vmatmul.mubr.f32.gmra.mrb[0].mxu0 %v3252
        %v3455 = vpop.f32.mrb[0].mxu0
        %v3456 = vadd.f32 0.0, %v3455
        %v3457 = vpop.f32.mrb[0].mxu0
        %3458 = vmatprep.mubr.f32.mxu0 %v3255
        %3459 = vmatmul.mubr.f32.gmra.mrb[0].mxu0 %v3254
        %v3460 = vpop.f32.mrb[0].mxu0
        %v3461 = vadd.f32 0.0, %v3460
        %v3462 = vpop.f32.mrb[0].mxu0
        %3463 = vmatprep.mubr.f32.mxu0 %v3257
        %3464 = vmatmul.mubr.f32.gmra.mrb[0].mxu0 %v3256
        %v3465 = vpop.f32.mrb[0].mxu0
        %v3466 = vadd.f32 0.0, %v3465
        %v3467 = vpop.f32.mrb[0].mxu0
        %3468 = vmatprep.mubr.f32.mxu0 %v3259
        %3469 = vmatmul.mubr.f32.gmra.mrb[0].mxu0 %v3258
        %v3470 = vpop.f32.mrb[0].mxu0
        %v3471 = vadd.f32 0.0, %v3470
        %v3472 = vpop.f32.mrb[0].mxu0
        %3473 = vmatprep.mubr.f32.mxu0 %v3261
        %3474 = vmatmul.mubr.f32.gmra.mrb[0].mxu0 %v3260
        %v3475 = vpop.f32.mrb[0].mxu0
        %v3476 = vadd.f32 0.0, %v3475
        %v3477 = vpop.f32.mrb[0].mxu0
        %3478 = vmatprep.mubr.f32.mxu0 %v3263
        %3479 = vmatmul.mubr.f32.gmra.mrb[0].mxu0 %v3262
        %v3480 = vpop.f32.mrb[0].mxu0
        %v3481 = vadd.f32 0.0, %v3480
        %v3482 = vpop.f32.mrb[0].mxu0
        %3483 = vmatprep.mubr.f32.mxu0 %v3265
        %3484 = vmatmul.mubr.f32.gmra.mrb[0].mxu0 %v3264
        %v3485 = vpop.f32.mrb[0].mxu0
        %v3486 = vadd.f32 0.0, %v3485
        %v3487 = vpop.f32.mrb[0].mxu0
        %3488 = vmatprep.mubr.f32.mxu0 %v3267
        %3489 = vmatmul.mubr.f32.gmra.mrb[0].mxu0 %v3266
        %v3490 = vpop.f32.mrb[0].mxu0
        %v3491 = vadd.f32 0.0, %v3490
        %v3492 = vpop.f32.mrb[0].mxu0
        %3493 = vmatprep.mubr.f32.mxu0 %v3269
        %3494 = vmatmul.mubr.f32.gmra.mrb[0].mxu0 %v3268
        %v3495 = vpop.f32.mrb[0].mxu0
        %v3496 = vadd.f32 0.0, %v3495
        %v3497 = vpop.f32.mrb[0].mxu0
        %3498 = vmatprep.mubr.f32.mxu0 %v3271
        %3499 = vmatmul.mubr.f32.gmra.mrb[0].mxu0 %v3270
        %v3500 = vpop.f32.mrb[0].mxu0
        %v3501 = vadd.f32 0.0, %v3500
        %v3502 = vpop.f32.mrb[0].mxu0
        %3503 = vmatprep.mubr.f32.mxu0 %v3273
        %3504 = vmatmul.mubr.f32.gmra.mrb[0].mxu0 %v3272
        %v3505 = vpop.f32.mrb[0].mxu0
        %v3506 = vadd.f32 0.0, %v3505
        %v3507 = vpop.f32.mrb[0].mxu0
        %3508 = vmatprep.mubr.f32.mxu0 %v3275
        %3509 = vmatmul.mubr.f32.gmra.mrb[0].mxu0 %v3274
        %v3510 = vpop.f32.mrb[0].mxu0
        %v3511 = vadd.f32 0.0, %v3510
        %v3512 = vpop.f32.mrb[0].mxu0
        %3513 = vmatprep.mubr.f32.mxu0 %v3277
        %3514 = vmatmul.mubr.f32.gmra.mrb[0].mxu0 %v3276
        %v3515 = vpop.f32.mrb[0].mxu0
        %v3516 = vadd.f32 0.0, %v3515
        %v3517 = vpop.f32.mrb[0].mxu0
        %3518 = vmatprep.mubr.f32.mxu0 %v3279
        %3519 = vmatmul.mubr.f32.gmra.mrb[0].mxu0 %v3278
        %v3520 = vpop.f32.mrb[0].mxu0
        %v3521 = vadd.f32 0.0, %v3520
        %v3522 = vpop.f32.mrb[0].mxu0
        %3523 = vmatprep.mubr.f32.mxu0 %v3281
        %3524 = vmatmul.mubr.f32.gmra.mrb[0].mxu0 %v3280
        %v3525 = vpop.f32.mrb[0].mxu0
        %v3526 = vadd.f32 0.0, %v3525
        %v3527 = vpop.f32.mrb[0].mxu0
        %3528 = vmatprep.mubr.f32.mxu0 %v3283
        %3529 = vmatmul.mubr.f32.gmra.mrb[0].mxu0 %v3282
        %v3530 = vpop.f32.mrb[0].mxu0
        %v3531 = vadd.f32 0.0, %v3530
        %v3532 = vpop.f32.mrb[0].mxu0
        %3533 = vmatprep.mubr.f32.mxu0 %v3285
        %3534 = vmatmul.mubr.f32.gmra.mrb[0].mxu0 %v3284
        %v3535 = vpop.f32.mrb[0].mxu0
        %v3536 = vadd.f32 0.0, %v3535
        %v3537 = vpop.f32.mrb[0].mxu0
        %3538 = vmatprep.mubr.f32.mxu0 %v3287
        %3539 = vmatmul.mubr.f32.gmra.mrb[0].mxu0 %v3286
        %v3540 = vpop.f32.mrb[0].mxu0
        %v3541 = vadd.f32 0.0, %v3540
        %v3542 = vpop.f32.mrb[0].mxu0
        %3543 = vmatprep.mubr.f32.mxu0 %v3289
        %3544 = vmatmul.mubr.f32.gmra.mrb[0].mxu0 %v3288
        %v3545 = vpop.f32.mrb[0].mxu0
        %v3546 = vadd.f32 0.0, %v3545
        %v3547 = vpop.f32.mrb[0].mxu0
        %3548 = vmatprep.mubr.f32.mxu0 %v3291
        %3549 = vmatmul.mubr.f32.gmra.mrb[0].mxu0 %v3290
        %v3550 = vpop.f32.mrb[0].mxu0
        %v3551 = vadd.f32 0.0, %v3550
        %v3552 = vpop.f32.mrb[0].mxu0
        %3553 = vmatprep.mubr.f32.mxu0 %v3293
        %3554 = vmatmul.mubr.f32.gmra.mrb[0].mxu0 %v3292
        %v3555 = vpop.f32.mrb[0].mxu0
        %v3556 = vadd.f32 0.0, %v3555
        %v3557 = vpop.f32.mrb[0].mxu0
        %3558 = vmatprep.mubr.f32.mxu0 %v3295
        %3559 = vmatmul.mubr.f32.gmra.mrb[0].mxu0 %v3294
        %v3560 = vpop.f32.mrb[0].mxu0
        %v3561 = vadd.f32 0.0, %v3560
        %v3562 = vpop.f32.mrb[0].mxu0
        %3563 = vmatprep.mubr.f32.mxu0 %v3297
        %3564 = vmatmul.mubr.f32.gmra.mrb[0].mxu0 %v3296
        %v3565 = vpop.f32.mrb[0].mxu0
        %v3566 = vadd.f32 0.0, %v3565
        %v3567 = vpop.f32.mrb[0].mxu0
        %3568 = vmatprep.mubr.f32.mxu0 %v3299
        %3569 = vmatmul.mubr.f32.gmra.mrb[0].mxu0 %v3298
        %v3570 = vpop.f32.mrb[0].mxu0
        %v3571 = vadd.f32 0.0, %v3570
        %v3572 = vpop.f32.mrb[0].mxu0
        %3573 = vmatprep.mubr.f32.mxu0 %v3301
        %3574 = vmatmul.mubr.f32.gmra.mrb[0].mxu0 %v3300
        %v3575 = vpop.f32.mrb[0].mxu0
        %v3576 = vadd.f32 0.0, %v3575
        %v3577 = vpop.f32.mrb[0].mxu0
        %3578 = vmatprep.mubr.f32.mxu0 %v3303
        %3579 = vmatmul.mubr.f32.gmra.mrb[0].mxu0 %v3302
        %v3580 = vpop.f32.mrb[0].mxu0
        %v3581 = vadd.f32 0.0, %v3580
        %v3582 = vpop.f32.mrb[0].mxu0
        %3583 = vmatprep.mubr.f32.mxu0 %v3305
        %3584 = vmatmul.mubr.f32.gmra.mrb[0].mxu0 %v3304
        %v3585 = vpop.f32.mrb[0].mxu0
        %v3586 = vadd.f32 0.0, %v3585
        %v3587 = vpop.f32.mrb[0].mxu0
        %3588 = vmatprep.mubr.f32.mxu0 %v3307
        %3589 = vmatmul.mubr.f32.gmra.mrb[0].mxu0 %v3306
        %v3590 = vpop.f32.mrb[0].mxu0
        %v3591 = vadd.f32 0.0, %v3590
        %v3592 = vpop.f32.mrb[0].mxu0
        %3593 = vmatprep.mubr.f32.mxu0 %v3309
        %3594 = vmatmul.mubr.f32.gmra.mrb[0].mxu0 %v3308
        %v3595 = vpop.f32.mrb[0].mxu0
        %v3596 = vadd.f32 0.0, %v3595
        %v3597 = vpop.f32.mrb[0].mxu0
        %3598 = vmatprep.mubr.f32.mxu0 %v3311
        %3599 = vmatmul.mubr.f32.gmra.mrb[0].mxu0 %v3310
        %v3600 = vpop.f32.mrb[0].mxu0
        %v3601 = vadd.f32 0.0, %v3600
        %v3602 = vpop.f32.mrb[0].mxu0
        %3603 = vmatprep.mubr.f32.mxu0 %v3313
        %3604 = vmatmul.mubr.f32.gmra.mrb[0].mxu0 %v3312
        %v3605 = vpop.f32.mrb[0].mxu0
        %v3606 = vadd.f32 0.0, %v3605
        %v3607 = vpop.f32.mrb[0].mxu0
        %3608 = vmatprep.mubr.f32.mxu0 %v3315
        %3609 = vmatmul.mubr.f32.gmra.mrb[0].mxu0 %v3314
        %v3610 = vpop.f32.mrb[0].mxu0
        %v3611 = vadd.f32 0.0, %v3610
        %v3612 = vpop.f32.mrb[0].mxu0
        %3613 = vmatprep.mubr.f32.mxu0 %v3317
        %3614 = vmatmul.mubr.f32.gmra.mrb[0].mxu0 %v3316
        %v3615 = vpop.f32.mrb[0].mxu0
        %v3616 = vadd.f32 0.0, %v3615
        %v3617 = vpop.f32.mrb[0].mxu0
        %3618 = vmatprep.mubr.f32.mxu0 %v3319
        %3619 = vmatmul.mubr.f32.gmra.mrb[0].mxu0 %v3318
        %v3620 = vpop.f32.mrb[0].mxu0
        %v3621 = vadd.f32 0.0, %v3620
        %v3622 = vpop.f32.mrb[0].mxu0
        %3623 = vmatprep.mubr.f32.mxu0 %v3321
        %3624 = vmatmul.mubr.f32.gmra.mrb[0].mxu0 %v3320
        %v3625 = vpop.f32.mrb[0].mxu0
        %v3626 = vadd.f32 0.0, %v3625
        %v3627 = vpop.f32.mrb[0].mxu0
        %3628 = vmatprep.mubr.f32.mxu0 %v3323
        %3629 = vmatmul.mubr.f32.gmra.mrb[0].mxu0 %v3322
        %v3630 = vpop.f32.mrb[0].mxu0
        %v3631 = vadd.f32 0.0, %v3630
        %v3632 = vpop.f32.mrb[0].mxu0
        %3633 = vmatprep.mubr.f32.mxu0 %v3325
        %3634 = vmatmul.mubr.f32.gmra.mrb[0].mxu0 %v3324
        %v3635 = vpop.f32.mrb[0].mxu0
        %v3636 = vadd.f32 0.0, %v3635
        %v3637 = vpop.f32.mrb[0].mxu0
        %3638 = vmatprep.mubr.f32.mxu0 %v3327
        %3639 = vmatmul.mubr.f32.gmra.mrb[0].mxu0 %v3326
        %v3640 = vpop.f32.mrb[0].mxu0
        %v3641 = vadd.f32 0.0, %v3640
        %v3642 = vpop.f32.mrb[0].mxu0
        %3643 = vmatprep.mubr.f32.mxu0 %v3329
        %3644 = vmatmul.mubr.f32.gmra.mrb[0].mxu0 %v3328
        %v3645 = vpop.f32.mrb[0].mxu0
        %v3646 = vadd.f32 0.0, %v3645
        %v3647 = vpop.f32.mrb[0].mxu0
        %3648 = vmatprep.mubr.f32.mxu0 %v3331
        %3649 = vmatmul.mubr.f32.gmra.mrb[0].mxu0 %v3330
        %v3650 = vpop.f32.mrb[0].mxu0
        %v3651 = vadd.f32 0.0, %v3650
        %v3652 = vpop.f32.mrb[0].mxu0
        %3653 = vmatprep.mubr.f32.mxu0 %v3333
        %3654 = vmatmul.mubr.f32.gmra.mrb[0].mxu0 %v3332
        %v3655 = vpop.f32.mrb[0].mxu0
        %v3656 = vadd.f32 0.0, %v3655
        %v3657 = vpop.f32.mrb[0].mxu0
        %3658 = vmatprep.mubr.f32.mxu0 %v3335
        %3659 = vmatmul.mubr.f32.gmra.mrb[0].mxu0 %v3334
        %v3660 = vpop.f32.mrb[0].mxu0
        %v3661 = vadd.f32 0.0, %v3660
        %v3662 = vpop.f32.mrb[0].mxu0
        %3663 = vmatprep.mubr.f32.mxu0 %v3337
        %3664 = vmatmul.mubr.f32.gmra.mrb[0].mxu0 %v3336
        %v3665 = vpop.f32.mrb[0].mxu0
        %v3666 = vadd.f32 0.0, %v3665
        %v3667 = vpop.f32.mrb[0].mxu0
        %3668 = vmatprep.mubr.f32.mxu0 %v3339
        %3669 = vmatmul.mubr.f32.gmra.mrb[0].mxu0 %v3338
        %v3670 = vpop.f32.mrb[0].mxu0
        %v3671 = vadd.f32 0.0, %v3670
        %v3672 = vpop.f32.mrb[0].mxu0
        %3673 = vmatprep.mubr.f32.mxu0 %v3341
        %3674 = vmatmul.mubr.f32.gmra.mrb[0].mxu0 %v3340
        %v3675 = vpop.f32.mrb[0].mxu0
        %v3676 = vadd.f32 0.0, %v3675
        %v3677 = vpop.f32.mrb[0].mxu0
        %3678 = vmatprep.mubr.f32.mxu0 %v3343
        %3679 = vmatmul.mubr.f32.gmra.mrb[0].mxu0 %v3342
        %v3680 = vpop.f32.mrb[0].mxu0
        %v3681 = vadd.f32 0.0, %v3680
        %v3682 = vpop.f32.mrb[0].mxu0
        %3683 = vmatprep.mubr.f32.mxu0 %v3345
        %3684 = vmatmul.mubr.f32.gmra.mrb[0].mxu0 %v3344
        %v3685 = vpop.f32.mrb[0].mxu0
        %v3686 = vadd.f32 0.0, %v3685
        %v3687 = vpop.f32.mrb[0].mxu0
        %3688 = vmatprep.mubr.f32.mxu0 %v3347
        %3689 = vmatmul.mubr.f32.gmra.mrb[0].mxu0 %v3346
        %v3690 = vpop.f32.mrb[0].mxu0
        %v3691 = vadd.f32 0.0, %v3690
        %v3692 = vpop.f32.mrb[0].mxu0
        %3693 = vmatprep.mubr.f32.mxu0 %v3349
        %3694 = vmatmul.mubr.f32.gmra.mrb[0].mxu0 %v3348
        %v3695 = vpop.f32.mrb[0].mxu0
        %v3696 = vadd.f32 0.0, %v3695
        %v3697 = vpop.f32.mrb[0].mxu0
        %3698 = vmatprep.mubr.f32.mxu0 %v3351
        %3699 = vmatmul.mubr.f32.gmra.mrb[0].mxu0 %v3350
        %v3700 = vpop.f32.mrb[0].mxu0
        %v3701 = vadd.f32 0.0, %v3700
        %v3702 = vpop.f32.mrb[0].mxu0
        %3703 = vmatprep.mubr.f32.mxu0 %v3353
        %3704 = vmatmul.mubr.f32.gmra.mrb[0].mxu0 %v3352
        %v3705 = vpop.f32.mrb[0].mxu0
        %v3706 = vadd.f32 0.0, %v3705
        %v3707 = vpop.f32.mrb[0].mxu0
        %3708 = vmatprep.mubr.f32.mxu0 %v3355
        %3709 = vmatmul.mubr.f32.gmra.mrb[0].mxu0 %v3354
        %v3710 = vpop.f32.mrb[0].mxu0
        %v3711 = vadd.f32 0.0, %v3710
        %v3712 = vpop.f32.mrb[0].mxu0
        %3713 = vmatprep.mubr.f32.mxu0 %v3357
        %3714 = vmatmul.mubr.f32.gmra.mrb[0].mxu0 %v3356
        %v3715 = vpop.f32.mrb[0].mxu0
        %v3716 = vadd.f32 0.0, %v3715
        %v3717 = vpop.f32.mrb[0].mxu0
        %3718 = vmatprep.mubr.f32.mxu0 %v3359
        %3719 = vmatmul.mubr.f32.gmra.mrb[0].mxu0 %v3358
        %v3720 = vpop.f32.mrb[0].mxu0
        %v3721 = vadd.f32 0.0, %v3720
        %v3722 = vpop.f32.mrb[0].mxu0
        %3723 = vmatprep.mubr.f32.mxu0 %v3361
        %3724 = vmatmul.mubr.f32.gmra.mrb[0].mxu0 %v3360
        %v3725 = vpop.f32.mrb[0].mxu0
        %v3726 = vadd.f32 0.0, %v3725
        %v3727 = vpop.f32.mrb[0].mxu0
        %3728 = vmatprep.mubr.f32.mxu0 %v3363
        %3729 = vmatmul.mubr.f32.gmra.mrb[0].mxu0 %v3362
        %v3730 = vpop.f32.mrb[0].mxu0
        %v3731 = vadd.f32 0.0, %v3730
        %v3732 = vpop.f32.mrb[0].mxu0
        %3733 = vmatprep.mubr.f32.mxu0 %v3365
        %3734 = vmatmul.mubr.f32.gmra.mrb[0].mxu0 %v3364
        %v3735 = vpop.f32.mrb[0].mxu0
        %v3736 = vadd.f32 0.0, %v3735
        %v3737 = vpop.f32.mrb[0].mxu0
        %3738 = vmatprep.mubr.f32.mxu0 %v3367
        %3739 = vmatmul.mubr.f32.gmra.mrb[0].mxu0 %v3366
        %v3740 = vpop.f32.mrb[0].mxu0
        %v3741 = vadd.f32 0.0, %v3740
        %v3742 = vpop.f32.mrb[0].mxu0
        %3743 = vmatprep.mubr.f32.mxu0 %v3369
        %3744 = vmatmul.mubr.f32.gmra.mrb[0].mxu0 %v3368
        %v3745 = vpop.f32.mrb[0].mxu0
        %v3746 = vadd.f32 0.0, %v3745
        %v3747 = vpop.f32.mrb[0].mxu0
        %3748 = vmatprep.mubr.f32.mxu0 %v3371
        %3749 = vmatmul.mubr.f32.gmra.mrb[0].mxu0 %v3370
        %v3750 = vpop.f32.mrb[0].mxu0
        %v3751 = vadd.f32 0.0, %v3750
        %v3752 = vpop.f32.mrb[0].mxu0
        %3753 = vmatprep.mubr.f32.mxu0 %v3373
        %3754 = vmatmul.mubr.f32.gmra.mrb[0].mxu0 %v3372
        %v3755 = vpop.f32.mrb[0].mxu0
        %v3756 = vadd.f32 0.0, %v3755
        %v3757 = vpop.f32.mrb[0].mxu0
        %3758 = vdwg.mxu0
        %v3759 = vld [vmem:[#allocation18] sm:$0xff]
        %v3760 = vld [vmem:[#allocation18 + $0x8] sm:$0xff]
        %v3761 = vld [vmem:[#allocation16] sm:$0xff]
        %v3762 = vld [vmem:[#allocation16 + $0x8] sm:$0xff]
        %v3763 = vld [vmem:[#allocation16 + $0x10] sm:$0xff]
        %v3764 = vld [vmem:[#allocation16 + $0x18] sm:$0xff]
        %v3765 = vld [vmem:[#allocation16 + $0x20] sm:$0xff]
        %v3766 = vld [vmem:[#allocation16 + $0x28] sm:$0xff]
        %v3767 = vld [vmem:[#allocation16 + $0x30] sm:$0xff]
        %v3768 = vld [vmem:[#allocation16 + $0x38] sm:$0xff]
        %v3769 = vld [vmem:[#allocation16 + $0x40] sm:$0xff]
        %v3770 = vld [vmem:[#allocation16 + $0x48] sm:$0xff]
        %v3771 = vld [vmem:[#allocation16 + $0x50] sm:$0xff]
        %v3772 = vld [vmem:[#allocation16 + $0x58] sm:$0xff]
        %v3773 = vld [vmem:[#allocation16 + $0x60] sm:$0xff]
        %v3774 = vld [vmem:[#allocation16 + $0x68] sm:$0xff]
        %v3775 = vld [vmem:[#allocation16 + $0x70] sm:$0xff]
        %v3776 = vld [vmem:[#allocation16 + $0x78] sm:$0xff]
        %v3777 = vld [vmem:[#allocation16 + $0x80] sm:$0xff]
        %v3778 = vld [vmem:[#allocation16 + $0x88] sm:$0xff]
        %v3779 = vld [vmem:[#allocation16 + $0x90] sm:$0xff]
        %v3780 = vld [vmem:[#allocation16 + $0x98] sm:$0xff]
        %v3781 = vld [vmem:[#allocation16 + $0xa0] sm:$0xff]
        %v3782 = vld [vmem:[#allocation16 + $0xa8] sm:$0xff]
        %v3783 = vld [vmem:[#allocation16 + $0xb0] sm:$0xff]
        %v3784 = vld [vmem:[#allocation16 + $0xb8] sm:$0xff]
        %v3785 = vld [vmem:[#allocation16 + $0xc0] sm:$0xff]
        %v3786 = vld [vmem:[#allocation16 + $0xc8] sm:$0xff]
        %v3787 = vld [vmem:[#allocation16 + $0xd0] sm:$0xff]
        %v3788 = vld [vmem:[#allocation16 + $0xd8] sm:$0xff]
        %v3789 = vld [vmem:[#allocation16 + $0xe0] sm:$0xff]
        %v3790 = vld [vmem:[#allocation16 + $0xe8] sm:$0xff]
        %v3791 = vld [vmem:[#allocation16 + $0xf0] sm:$0xff]
        %v3792 = vld [vmem:[#allocation16 + $0xf8] sm:$0xff]
        %v3793 = vld [vmem:[#allocation16 + $0x100] sm:$0xff]
        %v3794 = vld [vmem:[#allocation16 + $0x108] sm:$0xff]
        %v3795 = vld [vmem:[#allocation16 + $0x110] sm:$0xff]
        %v3796 = vld [vmem:[#allocation16 + $0x118] sm:$0xff]
        %v3797 = vld [vmem:[#allocation16 + $0x120] sm:$0xff]
        %v3798 = vld [vmem:[#allocation16 + $0x128] sm:$0xff]
        %v3799 = vld [vmem:[#allocation16 + $0x130] sm:$0xff]
        %v3800 = vld [vmem:[#allocation16 + $0x138] sm:$0xff]
        %v3801 = vld [vmem:[#allocation16 + $0x140] sm:$0xff]
        %v3802 = vld [vmem:[#allocation16 + $0x148] sm:$0xff]
        %v3803 = vld [vmem:[#allocation16 + $0x150] sm:$0xff]
        %v3804 = vld [vmem:[#allocation16 + $0x158] sm:$0xff]
        %v3805 = vld [vmem:[#allocation16 + $0x160] sm:$0xff]
        %v3806 = vld [vmem:[#allocation16 + $0x168] sm:$0xff]
        %v3807 = vld [vmem:[#allocation16 + $0x170] sm:$0xff]
        %v3808 = vld [vmem:[#allocation16 + $0x178] sm:$0xff]
        %v3809 = vld [vmem:[#allocation16 + $0x180] sm:$0xff]
        %v3810 = vld [vmem:[#allocation16 + $0x188] sm:$0xff]
        %v3811 = vld [vmem:[#allocation16 + $0x190] sm:$0xff]
        %v3812 = vld [vmem:[#allocation16 + $0x198] sm:$0xff]
        %v3813 = vld [vmem:[#allocation16 + $0x1a0] sm:$0xff]
        %v3814 = vld [vmem:[#allocation16 + $0x1a8] sm:$0xff]
        %v3815 = vld [vmem:[#allocation16 + $0x1b0] sm:$0xff]
        %v3816 = vld [vmem:[#allocation16 + $0x1b8] sm:$0xff]
        %v3817 = vld [vmem:[#allocation16 + $0x1c0] sm:$0xff]
        %v3818 = vld [vmem:[#allocation16 + $0x1c8] sm:$0xff]
        %v3819 = vld [vmem:[#allocation16 + $0x1d0] sm:$0xff]
        %v3820 = vld [vmem:[#allocation16 + $0x1d8] sm:$0xff]
        %v3821 = vld [vmem:[#allocation16 + $0x1e0] sm:$0xff]
        %v3822 = vld [vmem:[#allocation16 + $0x1e8] sm:$0xff]
        %v3823 = vld [vmem:[#allocation16 + $0x1f0] sm:$0xff]
        %v3824 = vld [vmem:[#allocation16 + $0x1f8] sm:$0xff]
        %v3825 = vld [vmem:[%s1022] sm:$0xff]
        %v3826 = vld [vmem:[%s1022 + $0x8] sm:$0xff]
        %v3827 = vld [vmem:[%s1022 + $0x10] sm:$0xff]
        %v3828 = vld [vmem:[%s1022 + $0x18] sm:$0xff]
        %v3829 = vld [vmem:[%s1022 + $0x20] sm:$0xff]
        %v3830 = vld [vmem:[%s1022 + $0x28] sm:$0xff]
        %v3831 = vld [vmem:[%s1022 + $0x30] sm:$0xff]
        %v3832 = vld [vmem:[%s1022 + $0x38] sm:$0xff]
        %v3833 = vld [vmem:[%s1022 + $0x40] sm:$0xff]
        %v3834 = vld [vmem:[%s1022 + $0x48] sm:$0xff]
        %v3835 = vld [vmem:[%s1022 + $0x50] sm:$0xff]
        %v3836 = vld [vmem:[%s1022 + $0x58] sm:$0xff]
        %v3837 = vld [vmem:[%s1022 + $0x60] sm:$0xff]
        %v3838 = vld [vmem:[%s1022 + $0x68] sm:$0xff]
        %v3839 = vld [vmem:[%s1022 + $0x70] sm:$0xff]
        %v3840 = vld [vmem:[%s1022 + $0x78] sm:$0xff]
        %3841 = vmatprep.subr.mxu0 0.0
        %3842 = vmatpush1.msra.mxu0 %v3825
        %3843 = vmatprep.subr.mxu0 0.0
        %3844 = vmatpush1.msra.mxu0 %v3826
        %3845 = vmatprep.subr.mxu0 0.0
        %3846 = vmatpush1.msra.mxu0 %v3827
        %3847 = vmatprep.subr.mxu0 0.0
        %3848 = vmatpush1.msra.mxu0 %v3828
        %3849 = vmatprep.subr.mxu0 0.0
        %3850 = vmatpush1.msra.mxu0 %v3829
        %3851 = vmatprep.subr.mxu0 0.0
        %3852 = vmatpush1.msra.mxu0 %v3830
        %3853 = vmatprep.subr.mxu0 0.0
        %3854 = vmatpush1.msra.mxu0 %v3831
        %3855 = vmatprep.subr.mxu0 0.0
        %3856 = vmatpush1.msra.mxu0 %v3832
        %3857 = vmatprep.subr.mxu0 0.0
        %3858 = vmatpush1.msra.mxu0 %v3833
        %3859 = vmatprep.subr.mxu0 0.0
        %3860 = vmatpush1.msra.mxu0 %v3834
        %3861 = vmatprep.subr.mxu0 0.0
        %3862 = vmatpush1.msra.mxu0 %v3835
        %3863 = vmatprep.subr.mxu0 0.0
        %3864 = vmatpush1.msra.mxu0 %v3836
        %3865 = vmatprep.subr.mxu0 0.0
        %3866 = vmatpush1.msra.mxu0 %v3837
        %3867 = vmatprep.subr.mxu0 0.0
        %3868 = vmatpush1.msra.mxu0 %v3838
        %3869 = vmatprep.subr.mxu0 0.0
        %3870 = vmatpush1.msra.mxu0 %v3839
        %3871 = vmatprep.subr.mxu0 0.0
        %3872 = vmatpush1.msra.mxu0 %v3840
        %3873 = vmatprep.subr.mxu0 0.0
        %3874 = vmatpush1.msra.mxu0 0.0
        %3875 = vmatprep.subr.mxu0 0.0
        %3876 = vmatpush1.msra.mxu0 0.0
        %3877 = vmatprep.subr.mxu0 0.0
        %3878 = vmatpush1.msra.mxu0 0.0
        %3879 = vmatprep.subr.mxu0 0.0
        %3880 = vmatpush1.msra.mxu0 0.0
        %3881 = vmatprep.subr.mxu0 0.0
        %3882 = vmatpush1.msra.mxu0 0.0
        %3883 = vmatprep.subr.mxu0 0.0
        %3884 = vmatpush1.msra.mxu0 0.0
        %3885 = vmatprep.subr.mxu0 0.0
        %3886 = vmatpush1.msra.mxu0 0.0
        %3887 = vmatprep.subr.mxu0 0.0
        %3888 = vmatpush1.msra.mxu0 0.0
        %3889 = vmatprep.subr.mxu0 0.0
        %3890 = vmatpush1.msra.mxu0 0.0
        %3891 = vmatprep.subr.mxu0 0.0
        %3892 = vmatpush1.msra.mxu0 0.0
        %3893 = vmatprep.subr.mxu0 0.0
        %3894 = vmatpush1.msra.mxu0 0.0
        %3895 = vmatprep.subr.mxu0 0.0
        %3896 = vmatpush1.msra.mxu0 0.0
        %3897 = vmatprep.subr.mxu0 0.0
        %3898 = vmatpush1.msra.mxu0 0.0
        %3899 = vmatprep.subr.mxu0 0.0
        %3900 = vmatpush1.msra.mxu0 0.0
        %3901 = vmatprep.subr.mxu0 0.0
        %3902 = vmatpush1.msra.mxu0 0.0
        %3903 = vmatprep.subr.mxu0 0.0
        %3904 = vmatpush1.msra.mxu0 0.0
        %3905 = vmatprep.mubr.f32.mxu0 0.0
        %3906 = vmatmul.mubr.f32.gmra.mrb[0].mxu0 %v3761
        %v3907 = vpop.f32.mrb[0].mxu0
        %v3908 = vadd.f32 0.0, %v3907
        %v3909 = vpop.f32.mrb[0].mxu0
        %3910 = vmatprep.mubr.f32.mxu0 0.0
        %3911 = vmatmul.mubr.f32.gmra.mrb[0].mxu0 %v3762
        %v3912 = vpop.f32.mrb[0].mxu0
        %v3913 = vadd.f32 0.0, %v3912
        %v3914 = vpop.f32.mrb[0].mxu0
        %3915 = vmatprep.mubr.f32.mxu0 0.0
        %3916 = vmatmul.mubr.f32.gmra.mrb[0].mxu0 %v3763
        %v3917 = vpop.f32.mrb[0].mxu0
        %v3918 = vadd.f32 0.0, %v3917
        %v3919 = vpop.f32.mrb[0].mxu0
        %3920 = vmatprep.mubr.f32.mxu0 0.0
        %3921 = vmatmul.mubr.f32.gmra.mrb[0].mxu0 %v3764
        %v3922 = vpop.f32.mrb[0].mxu0
        %v3923 = vadd.f32 0.0, %v3922
        %v3924 = vpop.f32.mrb[0].mxu0
        %3925 = vmatprep.mubr.f32.mxu0 0.0
        %3926 = vmatmul.mubr.f32.gmra.mrb[0].mxu0 %v3765
        %v3927 = vpop.f32.mrb[0].mxu0
        %v3928 = vadd.f32 0.0, %v3927
        %v3929 = vpop.f32.mrb[0].mxu0
        %3930 = vmatprep.mubr.f32.mxu0 0.0
        %3931 = vmatmul.mubr.f32.gmra.mrb[0].mxu0 %v3766
        %v3932 = vpop.f32.mrb[0].mxu0
        %v3933 = vadd.f32 0.0, %v3932
        %v3934 = vpop.f32.mrb[0].mxu0
        %3935 = vmatprep.mubr.f32.mxu0 0.0
        %3936 = vmatmul.mubr.f32.gmra.mrb[0].mxu0 %v3767
        %v3937 = vpop.f32.mrb[0].mxu0
        %v3938 = vadd.f32 0.0, %v3937
        %v3939 = vpop.f32.mrb[0].mxu0
        %3940 = vmatprep.mubr.f32.mxu0 0.0
        %3941 = vmatmul.mubr.f32.gmra.mrb[0].mxu0 %v3768
        %v3942 = vpop.f32.mrb[0].mxu0
        %v3943 = vadd.f32 0.0, %v3942
        %v3944 = vpop.f32.mrb[0].mxu0
        %3945 = vmatprep.mubr.f32.mxu0 0.0
        %3946 = vmatmul.mubr.f32.gmra.mrb[0].mxu0 %v3769
        %v3947 = vpop.f32.mrb[0].mxu0
        %v3948 = vadd.f32 0.0, %v3947
        %v3949 = vpop.f32.mrb[0].mxu0
        %3950 = vmatprep.mubr.f32.mxu0 0.0
        %3951 = vmatmul.mubr.f32.gmra.mrb[0].mxu0 %v3770
        %v3952 = vpop.f32.mrb[0].mxu0
        %v3953 = vadd.f32 0.0, %v3952
        %v3954 = vpop.f32.mrb[0].mxu0
        %3955 = vmatprep.mubr.f32.mxu0 0.0
        %3956 = vmatmul.mubr.f32.gmra.mrb[0].mxu0 %v3771
        %v3957 = vpop.f32.mrb[0].mxu0
        %v3958 = vadd.f32 0.0, %v3957
        %v3959 = vpop.f32.mrb[0].mxu0
        %3960 = vmatprep.mubr.f32.mxu0 0.0
        %3961 = vmatmul.mubr.f32.gmra.mrb[0].mxu0 %v3772
        %v3962 = vpop.f32.mrb[0].mxu0
        %v3963 = vadd.f32 0.0, %v3962
        %v3964 = vpop.f32.mrb[0].mxu0
        %3965 = vmatprep.mubr.f32.mxu0 0.0
        %3966 = vmatmul.mubr.f32.gmra.mrb[0].mxu0 %v3773
        %v3967 = vpop.f32.mrb[0].mxu0
        %v3968 = vadd.f32 0.0, %v3967
        %v3969 = vpop.f32.mrb[0].mxu0
        %3970 = vmatprep.mubr.f32.mxu0 0.0
        %3971 = vmatmul.mubr.f32.gmra.mrb[0].mxu0 %v3774
        %v3972 = vpop.f32.mrb[0].mxu0
        %v3973 = vadd.f32 0.0, %v3972
        %v3974 = vpop.f32.mrb[0].mxu0
        %3975 = vmatprep.mubr.f32.mxu0 0.0
        %3976 = vmatmul.mubr.f32.gmra.mrb[0].mxu0 %v3775
        %v3977 = vpop.f32.mrb[0].mxu0
        %v3978 = vadd.f32 0.0, %v3977
        %v3979 = vpop.f32.mrb[0].mxu0
        %3980 = vmatprep.mubr.f32.mxu0 0.0
        %3981 = vmatmul.mubr.f32.gmra.mrb[0].mxu0 %v3776
        %v3982 = vpop.f32.mrb[0].mxu0
        %v3983 = vadd.f32 0.0, %v3982
        %v3984 = vpop.f32.mrb[0].mxu0
        %3985 = vmatprep.mubr.f32.mxu0 0.0
        %3986 = vmatmul.mubr.f32.gmra.mrb[0].mxu0 %v3777
        %v3987 = vpop.f32.mrb[0].mxu0
        %v3988 = vadd.f32 0.0, %v3987
        %v3989 = vpop.f32.mrb[0].mxu0
        %3990 = vmatprep.mubr.f32.mxu0 0.0
        %3991 = vmatmul.mubr.f32.gmra.mrb[0].mxu0 %v3778
        %v3992 = vpop.f32.mrb[0].mxu0
        %v3993 = vadd.f32 0.0, %v3992
        %v3994 = vpop.f32.mrb[0].mxu0
        %3995 = vmatprep.mubr.f32.mxu0 0.0
        %3996 = vmatmul.mubr.f32.gmra.mrb[0].mxu0 %v3779
        %v3997 = vpop.f32.mrb[0].mxu0
        %v3998 = vadd.f32 0.0, %v3997
        %v3999 = vpop.f32.mrb[0].mxu0
        %4000 = vmatprep.mubr.f32.mxu0 0.0
        %4001 = vmatmul.mubr.f32.gmra.mrb[0].mxu0 %v3780
        %v4002 = vpop.f32.mrb[0].mxu0
        %v4003 = vadd.f32 0.0, %v4002
        %v4004 = vpop.f32.mrb[0].mxu0
        %4005 = vmatprep.mubr.f32.mxu0 0.0
        %4006 = vmatmul.mubr.f32.gmra.mrb[0].mxu0 %v3781
        %v4007 = vpop.f32.mrb[0].mxu0
        %v4008 = vadd.f32 0.0, %v4007
        %v4009 = vpop.f32.mrb[0].mxu0
        %4010 = vmatprep.mubr.f32.mxu0 0.0
        %4011 = vmatmul.mubr.f32.gmra.mrb[0].mxu0 %v3782
        %v4012 = vpop.f32.mrb[0].mxu0
        %v4013 = vadd.f32 0.0, %v4012
        %v4014 = vpop.f32.mrb[0].mxu0
        %4015 = vmatprep.mubr.f32.mxu0 0.0
        %4016 = vmatmul.mubr.f32.gmra.mrb[0].mxu0 %v3783
        %v4017 = vpop.f32.mrb[0].mxu0
        %v4018 = vadd.f32 0.0, %v4017
        %v4019 = vpop.f32.mrb[0].mxu0
        %4020 = vmatprep.mubr.f32.mxu0 0.0
        %4021 = vmatmul.mubr.f32.gmra.mrb[0].mxu0 %v3784
        %v4022 = vpop.f32.mrb[0].mxu0
        %v4023 = vadd.f32 0.0, %v4022
        %v4024 = vpop.f32.mrb[0].mxu0
        %4025 = vmatprep.mubr.f32.mxu0 0.0
        %4026 = vmatmul.mubr.f32.gmra.mrb[0].mxu0 %v3785
        %v4027 = vpop.f32.mrb[0].mxu0
        %v4028 = vadd.f32 0.0, %v4027
        %v4029 = vpop.f32.mrb[0].mxu0
        %4030 = vmatprep.mubr.f32.mxu0 0.0
        %4031 = vmatmul.mubr.f32.gmra.mrb[0].mxu0 %v3786
        %v4032 = vpop.f32.mrb[0].mxu0
        %v4033 = vadd.f32 0.0, %v4032
        %v4034 = vpop.f32.mrb[0].mxu0
        %4035 = vmatprep.mubr.f32.mxu0 0.0
        %4036 = vmatmul.mubr.f32.gmra.mrb[0].mxu0 %v3787
        %v4037 = vpop.f32.mrb[0].mxu0
        %v4038 = vadd.f32 0.0, %v4037
        %v4039 = vpop.f32.mrb[0].mxu0
        %4040 = vmatprep.mubr.f32.mxu0 0.0
        %4041 = vmatmul.mubr.f32.gmra.mrb[0].mxu0 %v3788
        %v4042 = vpop.f32.mrb[0].mxu0
        %v4043 = vadd.f32 0.0, %v4042
        %v4044 = vpop.f32.mrb[0].mxu0
        %4045 = vmatprep.mubr.f32.mxu0 0.0
        %4046 = vmatmul.mubr.f32.gmra.mrb[0].mxu0 %v3789
        %v4047 = vpop.f32.mrb[0].mxu0
        %v4048 = vadd.f32 0.0, %v4047
        %v4049 = vpop.f32.mrb[0].mxu0
        %4050 = vmatprep.mubr.f32.mxu0 0.0
        %4051 = vmatmul.mubr.f32.gmra.mrb[0].mxu0 %v3790
        %v4052 = vpop.f32.mrb[0].mxu0
        %v4053 = vadd.f32 0.0, %v4052
        %v4054 = vpop.f32.mrb[0].mxu0
        %4055 = vmatprep.mubr.f32.mxu0 0.0
        %4056 = vmatmul.mubr.f32.gmra.mrb[0].mxu0 %v3791
        %v4057 = vpop.f32.mrb[0].mxu0
        %v4058 = vadd.f32 0.0, %v4057
        %v4059 = vpop.f32.mrb[0].mxu0
        %4060 = vmatprep.mubr.f32.mxu0 0.0
        %4061 = vmatmul.mubr.f32.gmra.mrb[0].mxu0 %v3792
        %v4062 = vpop.f32.mrb[0].mxu0
        %v4063 = vadd.f32 0.0, %v4062
        %v4064 = vpop.f32.mrb[0].mxu0
        %4065 = vmatprep.mubr.f32.mxu0 0.0
        %4066 = vmatmul.mubr.f32.gmra.mrb[0].mxu0 %v3793
        %v4067 = vpop.f32.mrb[0].mxu0
        %v4068 = vadd.f32 0.0, %v4067
        %v4069 = vpop.f32.mrb[0].mxu0
        %4070 = vmatprep.mubr.f32.mxu0 0.0
        %4071 = vmatmul.mubr.f32.gmra.mrb[0].mxu0 %v3794
        %v4072 = vpop.f32.mrb[0].mxu0
        %v4073 = vadd.f32 0.0, %v4072
        %v4074 = vpop.f32.mrb[0].mxu0
        %4075 = vmatprep.mubr.f32.mxu0 0.0
        %4076 = vmatmul.mubr.f32.gmra.mrb[0].mxu0 %v3795
        %v4077 = vpop.f32.mrb[0].mxu0
        %v4078 = vadd.f32 0.0, %v4077
        %v4079 = vpop.f32.mrb[0].mxu0
        %4080 = vmatprep.mubr.f32.mxu0 0.0
        %4081 = vmatmul.mubr.f32.gmra.mrb[0].mxu0 %v3796
        %v4082 = vpop.f32.mrb[0].mxu0
        %v4083 = vadd.f32 0.0, %v4082
        %v4084 = vpop.f32.mrb[0].mxu0
        %4085 = vmatprep.mubr.f32.mxu0 0.0
        %4086 = vmatmul.mubr.f32.gmra.mrb[0].mxu0 %v3797
        %v4087 = vpop.f32.mrb[0].mxu0
        %v4088 = vadd.f32 0.0, %v4087
        %v4089 = vpop.f32.mrb[0].mxu0
        %4090 = vmatprep.mubr.f32.mxu0 0.0
        %4091 = vmatmul.mubr.f32.gmra.mrb[0].mxu0 %v3798
        %v4092 = vpop.f32.mrb[0].mxu0
        %v4093 = vadd.f32 0.0, %v4092
        %v4094 = vpop.f32.mrb[0].mxu0
        %4095 = vmatprep.mubr.f32.mxu0 0.0
        %4096 = vmatmul.mubr.f32.gmra.mrb[0].mxu0 %v3799
        %v4097 = vpop.f32.mrb[0].mxu0
        %v4098 = vadd.f32 0.0, %v4097
        %v4099 = vpop.f32.mrb[0].mxu0
        %4100 = vmatprep.mubr.f32.mxu0 0.0
        %4101 = vmatmul.mubr.f32.gmra.mrb[0].mxu0 %v3800
        %v4102 = vpop.f32.mrb[0].mxu0
        %v4103 = vadd.f32 0.0, %v4102
        %v4104 = vpop.f32.mrb[0].mxu0
        %4105 = vmatprep.mubr.f32.mxu0 0.0
        %4106 = vmatmul.mubr.f32.gmra.mrb[0].mxu0 %v3801
        %v4107 = vpop.f32.mrb[0].mxu0
        %v4108 = vadd.f32 0.0, %v4107
        %v4109 = vpop.f32.mrb[0].mxu0
        %4110 = vmatprep.mubr.f32.mxu0 0.0
        %4111 = vmatmul.mubr.f32.gmra.mrb[0].mxu0 %v3802
        %v4112 = vpop.f32.mrb[0].mxu0
        %v4113 = vadd.f32 0.0, %v4112
        %v4114 = vpop.f32.mrb[0].mxu0
        %4115 = vmatprep.mubr.f32.mxu0 0.0
        %4116 = vmatmul.mubr.f32.gmra.mrb[0].mxu0 %v3803
        %v4117 = vpop.f32.mrb[0].mxu0
        %v4118 = vadd.f32 0.0, %v4117
        %v4119 = vpop.f32.mrb[0].mxu0
        %4120 = vmatprep.mubr.f32.mxu0 0.0
        %4121 = vmatmul.mubr.f32.gmra.mrb[0].mxu0 %v3804
        %v4122 = vpop.f32.mrb[0].mxu0
        %v4123 = vadd.f32 0.0, %v4122
        %v4124 = vpop.f32.mrb[0].mxu0
        %4125 = vmatprep.mubr.f32.mxu0 0.0
        %4126 = vmatmul.mubr.f32.gmra.mrb[0].mxu0 %v3805
        %v4127 = vpop.f32.mrb[0].mxu0
        %v4128 = vadd.f32 0.0, %v4127
        %v4129 = vpop.f32.mrb[0].mxu0
        %4130 = vmatprep.mubr.f32.mxu0 0.0
        %4131 = vmatmul.mubr.f32.gmra.mrb[0].mxu0 %v3806
        %v4132 = vpop.f32.mrb[0].mxu0
        %v4133 = vadd.f32 0.0, %v4132
        %v4134 = vpop.f32.mrb[0].mxu0
        %4135 = vmatprep.mubr.f32.mxu0 0.0
        %4136 = vmatmul.mubr.f32.gmra.mrb[0].mxu0 %v3807
        %v4137 = vpop.f32.mrb[0].mxu0
        %v4138 = vadd.f32 0.0, %v4137
        %v4139 = vpop.f32.mrb[0].mxu0
        %4140 = vmatprep.mubr.f32.mxu0 0.0
        %4141 = vmatmul.mubr.f32.gmra.mrb[0].mxu0 %v3808
        %v4142 = vpop.f32.mrb[0].mxu0
        %v4143 = vadd.f32 0.0, %v4142
        %v4144 = vpop.f32.mrb[0].mxu0
        %4145 = vmatprep.mubr.f32.mxu0 0.0
        %4146 = vmatmul.mubr.f32.gmra.mrb[0].mxu0 %v3809
        %v4147 = vpop.f32.mrb[0].mxu0
        %v4148 = vadd.f32 0.0, %v4147
        %v4149 = vpop.f32.mrb[0].mxu0
        %4150 = vmatprep.mubr.f32.mxu0 0.0
        %4151 = vmatmul.mubr.f32.gmra.mrb[0].mxu0 %v3810
        %v4152 = vpop.f32.mrb[0].mxu0
        %v4153 = vadd.f32 0.0, %v4152
        %v4154 = vpop.f32.mrb[0].mxu0
        %4155 = vmatprep.mubr.f32.mxu0 0.0
        %4156 = vmatmul.mubr.f32.gmra.mrb[0].mxu0 %v3811
        %v4157 = vpop.f32.mrb[0].mxu0
        %v4158 = vadd.f32 0.0, %v4157
        %v4159 = vpop.f32.mrb[0].mxu0
        %4160 = vmatprep.mubr.f32.mxu0 0.0
        %4161 = vmatmul.mubr.f32.gmra.mrb[0].mxu0 %v3812
        %v4162 = vpop.f32.mrb[0].mxu0
        %v4163 = vadd.f32 0.0, %v4162
        %v4164 = vpop.f32.mrb[0].mxu0
        %4165 = vmatprep.mubr.f32.mxu0 0.0
        %4166 = vmatmul.mubr.f32.gmra.mrb[0].mxu0 %v3813
        %v4167 = vpop.f32.mrb[0].mxu0
        %v4168 = vadd.f32 0.0, %v4167
        %v4169 = vpop.f32.mrb[0].mxu0
        %4170 = vmatprep.mubr.f32.mxu0 0.0
        %4171 = vmatmul.mubr.f32.gmra.mrb[0].mxu0 %v3814
        %v4172 = vpop.f32.mrb[0].mxu0
        %v4173 = vadd.f32 0.0, %v4172
        %v4174 = vpop.f32.mrb[0].mxu0
        %4175 = vmatprep.mubr.f32.mxu0 0.0
        %4176 = vmatmul.mubr.f32.gmra.mrb[0].mxu0 %v3815
        %v4177 = vpop.f32.mrb[0].mxu0
        %v4178 = vadd.f32 0.0, %v4177
        %v4179 = vpop.f32.mrb[0].mxu0
        %4180 = vmatprep.mubr.f32.mxu0 0.0
        %4181 = vmatmul.mubr.f32.gmra.mrb[0].mxu0 %v3816
        %v4182 = vpop.f32.mrb[0].mxu0
        %v4183 = vadd.f32 0.0, %v4182
        %v4184 = vpop.f32.mrb[0].mxu0
        %4185 = vmatprep.mubr.f32.mxu0 0.0
        %4186 = vmatmul.mubr.f32.gmra.mrb[0].mxu0 %v3817
        %v4187 = vpop.f32.mrb[0].mxu0
        %v4188 = vadd.f32 0.0, %v4187
        %v4189 = vpop.f32.mrb[0].mxu0
        %4190 = vmatprep.mubr.f32.mxu0 0.0
        %4191 = vmatmul.mubr.f32.gmra.mrb[0].mxu0 %v3818
        %v4192 = vpop.f32.mrb[0].mxu0
        %v4193 = vadd.f32 0.0, %v4192
        %v4194 = vpop.f32.mrb[0].mxu0
        %4195 = vmatprep.mubr.f32.mxu0 0.0
        %4196 = vmatmul.mubr.f32.gmra.mrb[0].mxu0 %v3819
        %v4197 = vpop.f32.mrb[0].mxu0
        %v4198 = vadd.f32 0.0, %v4197
        %v4199 = vpop.f32.mrb[0].mxu0
        %4200 = vmatprep.mubr.f32.mxu0 0.0
        %4201 = vmatmul.mubr.f32.gmra.mrb[0].mxu0 %v3820
        %v4202 = vpop.f32.mrb[0].mxu0
        %v4203 = vadd.f32 0.0, %v4202
        %v4204 = vpop.f32.mrb[0].mxu0
        %4205 = vmatprep.mubr.f32.mxu0 0.0
        %4206 = vmatmul.mubr.f32.gmra.mrb[0].mxu0 %v3821
        %v4207 = vpop.f32.mrb[0].mxu0
        %v4208 = vadd.f32 0.0, %v4207
        %v4209 = vpop.f32.mrb[0].mxu0
        %4210 = vmatprep.mubr.f32.mxu0 0.0
        %4211 = vmatmul.mubr.f32.gmra.mrb[0].mxu0 %v3822
        %v4212 = vpop.f32.mrb[0].mxu0
        %v4213 = vadd.f32 0.0, %v4212
        %v4214 = vpop.f32.mrb[0].mxu0
        %4215 = vmatprep.mubr.f32.mxu0 0.0
        %4216 = vmatmul.mubr.f32.gmra.mrb[0].mxu0 %v3823
        %v4217 = vpop.f32.mrb[0].mxu0
        %v4218 = vadd.f32 0.0, %v4217
        %v4219 = vpop.f32.mrb[0].mxu0
        %4220 = vmatprep.mubr.f32.mxu0 0.0
        %4221 = vmatmul.mubr.f32.gmra.mrb[0].mxu0 %v3824
        %v4222 = vpop.f32.mrb[0].mxu0
        %v4223 = vadd.f32 0.0, %v4222
        %v4224 = vpop.f32.mrb[0].mxu0
        %4225 = vdwg.mxu0
        %v4227 = vsel %vm1137, %v3441, 0
        %v4230 = vsel %vm1137, %v3446, 0
        %v4233 = vsel %vm1137, %v3451, 0
        %v4236 = vsel %vm1137, %v3456, 0
        %v4239 = vsel %vm1137, %v3461, 0
        %v4242 = vsel %vm1137, %v3466, 0
        %v4245 = vsel %vm1137, %v3471, 0
        %v4248 = vsel %vm1137, %v3476, 0
        %v4251 = vsel %vm1137, %v3481, 0
        %v4254 = vsel %vm1137, %v3486, 0
        %v4257 = vsel %vm1137, %v3491, 0
        %v4260 = vsel %vm1137, %v3496, 0
        %v4263 = vsel %vm1137, %v3501, 0
        %v4266 = vsel %vm1137, %v3506, 0
        %v4269 = vsel %vm1137, %v3511, 0
        %v4272 = vsel %vm1137, %v3516, 0
        %v4275 = vsel %vm1137, %v3521, 0
        %v4278 = vsel %vm1137, %v3526, 0
        %v4281 = vsel %vm1137, %v3531, 0
        %v4284 = vsel %vm1137, %v3536, 0
        %v4287 = vsel %vm1137, %v3541, 0
        %v4290 = vsel %vm1137, %v3546, 0
        %v4293 = vsel %vm1137, %v3551, 0
        %v4296 = vsel %vm1137, %v3556, 0
        %v4299 = vsel %vm1137, %v3561, 0
        %v4302 = vsel %vm1137, %v3566, 0
        %v4305 = vsel %vm1137, %v3571, 0
        %v4308 = vsel %vm1137, %v3576, 0
        %v4311 = vsel %vm1137, %v3581, 0
        %v4314 = vsel %vm1137, %v3586, 0
        %v4317 = vsel %vm1137, %v3591, 0
        %v4320 = vsel %vm1137, %v3596, 0
        %v4323 = vsel %vm1137, %v3601, 0
        %v4326 = vsel %vm1137, %v3606, 0
        %v4329 = vsel %vm1137, %v3611, 0
        %v4332 = vsel %vm1137, %v3616, 0
        %v4335 = vsel %vm1137, %v3621, 0
        %v4338 = vsel %vm1137, %v3626, 0
        %v4341 = vsel %vm1137, %v3631, 0
        %v4344 = vsel %vm1137, %v3636, 0
        %v4347 = vsel %vm1137, %v3641, 0
        %v4350 = vsel %vm1137, %v3646, 0
        %v4353 = vsel %vm1137, %v3651, 0
        %v4356 = vsel %vm1137, %v3656, 0
        %v4359 = vsel %vm1137, %v3661, 0
        %v4362 = vsel %vm1137, %v3666, 0
        %v4365 = vsel %vm1137, %v3671, 0
        %v4368 = vsel %vm1137, %v3676, 0
        %v4371 = vsel %vm1137, %v3681, 0
        %v4374 = vsel %vm1137, %v3686, 0
        %v4377 = vsel %vm1137, %v3691, 0
        %v4380 = vsel %vm1137, %v3696, 0
        %v4383 = vsel %vm1137, %v3701, 0
        %v4386 = vsel %vm1137, %v3706, 0
        %v4389 = vsel %vm1137, %v3711, 0
        %v4392 = vsel %vm1137, %v3716, 0
        %v4395 = vsel %vm1137, %v3721, 0
        %v4398 = vsel %vm1137, %v3726, 0
        %v4401 = vsel %vm1137, %v3731, 0
        %v4404 = vsel %vm1137, %v3736, 0
        %v4407 = vsel %vm1137, %v3741, 0
        %v4410 = vsel %vm1137, %v3746, 0
        %v4413 = vsel %vm1137, %v3751, 0
        %v4416 = vsel %vm1137, %v3756, 0
        %4418 = vmatprep.subr.mxu0 0.0
        %4419 = vmatpush1.msra.mxu0 %v3759
        %4420 = vmatprep.subr.mxu0 0.0
        %4421 = vmatpush1.msra.mxu0 %v3760
        %4422 = vmatprep.subr.mxu0 0.0
        %4423 = vmatpush1.msra.mxu0 0.0
        %4424 = vmatprep.subr.mxu0 0.0
        %4425 = vmatpush1.msra.mxu0 0.0
        %4426 = vmatprep.subr.mxu0 0.0
        %4427 = vmatpush1.msra.mxu0 0.0
        %4428 = vmatprep.subr.mxu0 0.0
        %4429 = vmatpush1.msra.mxu0 0.0
        %4430 = vmatprep.subr.mxu0 0.0
        %4431 = vmatpush1.msra.mxu0 0.0
        %4432 = vmatprep.subr.mxu0 0.0
        %4433 = vmatpush1.msra.mxu0 0.0
        %4434 = vmatprep.subr.mxu0 0.0
        %4435 = vmatpush1.msra.mxu0 0.0
        %4436 = vmatprep.subr.mxu0 0.0
        %4437 = vmatpush1.msra.mxu0 0.0
        %4438 = vmatprep.subr.mxu0 0.0
        %4439 = vmatpush1.msra.mxu0 0.0
        %4440 = vmatprep.subr.mxu0 0.0
        %4441 = vmatpush1.msra.mxu0 0.0
        %4442 = vmatprep.subr.mxu0 0.0
        %4443 = vmatpush1.msra.mxu0 0.0
        %4444 = vmatprep.subr.mxu0 0.0
        %4445 = vmatpush1.msra.mxu0 0.0
        %4446 = vmatprep.subr.mxu0 0.0
        %4447 = vmatpush1.msra.mxu0 0.0
        %4448 = vmatprep.subr.mxu0 0.0
        %4449 = vmatpush1.msra.mxu0 0.0
        %4450 = vmatprep.subr.mxu0 0.0
        %4451 = vmatpush1.msra.mxu0 0.0
        %4452 = vmatprep.subr.mxu0 0.0
        %4453 = vmatpush1.msra.mxu0 0.0
        %4454 = vmatprep.subr.mxu0 0.0
        %4455 = vmatpush1.msra.mxu0 0.0
        %4456 = vmatprep.subr.mxu0 0.0
        %4457 = vmatpush1.msra.mxu0 0.0
        %4458 = vmatprep.subr.mxu0 0.0
        %4459 = vmatpush1.msra.mxu0 0.0
        %4460 = vmatprep.subr.mxu0 0.0
        %4461 = vmatpush1.msra.mxu0 0.0
        %4462 = vmatprep.subr.mxu0 0.0
        %4463 = vmatpush1.msra.mxu0 0.0
        %4464 = vmatprep.subr.mxu0 0.0
        %4465 = vmatpush1.msra.mxu0 0.0
        %4466 = vmatprep.subr.mxu0 0.0
        %4467 = vmatpush1.msra.mxu0 0.0
        %4468 = vmatprep.subr.mxu0 0.0
        %4469 = vmatpush1.msra.mxu0 0.0
        %4470 = vmatprep.subr.mxu0 0.0
        %4471 = vmatpush1.msra.mxu0 0.0
        %4472 = vmatprep.subr.mxu0 0.0
        %4473 = vmatpush1.msra.mxu0 0.0
        %4474 = vmatprep.subr.mxu0 0.0
        %4475 = vmatpush1.msra.mxu0 0.0
        %4476 = vmatprep.subr.mxu0 0.0
        %4477 = vmatpush1.msra.mxu0 0.0
        %4478 = vmatprep.subr.mxu0 0.0
        %4479 = vmatpush1.msra.mxu0 0.0
        %4480 = vmatprep.subr.mxu0 0.0
        %4481 = vmatpush1.msra.mxu0 0.0
        %4482 = vmatprep.mubr.f32.mxu0 0.0
        %4483 = vmatmul.mubr.f32.gmra.mrb[0].mxu0 %v4227
        %v4484 = vpop.f32.mrb[0].mxu0
        %v4485 = vadd.f32 %v3908, %v4484
        %v4486 = vpop.f32.mrb[0].mxu0
        %4487 = vmatprep.mubr.f32.mxu0 0.0
        %4488 = vmatmul.mubr.f32.gmra.mrb[0].mxu0 %v4230
        %v4489 = vpop.f32.mrb[0].mxu0
        %v4490 = vadd.f32 %v3913, %v4489
        %v4491 = vpop.f32.mrb[0].mxu0
        %4492 = vmatprep.mubr.f32.mxu0 0.0
        %4493 = vmatmul.mubr.f32.gmra.mrb[0].mxu0 %v4233
        %v4494 = vpop.f32.mrb[0].mxu0
        %v4495 = vadd.f32 %v3918, %v4494
        %v4496 = vpop.f32.mrb[0].mxu0
        %4497 = vmatprep.mubr.f32.mxu0 0.0
        %4498 = vmatmul.mubr.f32.gmra.mrb[0].mxu0 %v4236
        %v4499 = vpop.f32.mrb[0].mxu0
        %v4500 = vadd.f32 %v3923, %v4499
        %v4501 = vpop.f32.mrb[0].mxu0
        %4502 = vmatprep.mubr.f32.mxu0 0.0
        %4503 = vmatmul.mubr.f32.gmra.mrb[0].mxu0 %v4239
        %v4504 = vpop.f32.mrb[0].mxu0
        %v4505 = vadd.f32 %v3928, %v4504
        %v4506 = vpop.f32.mrb[0].mxu0
        %4507 = vmatprep.mubr.f32.mxu0 0.0
        %4508 = vmatmul.mubr.f32.gmra.mrb[0].mxu0 %v4242
        %v4509 = vpop.f32.mrb[0].mxu0
        %v4510 = vadd.f32 %v3933, %v4509
        %v4511 = vpop.f32.mrb[0].mxu0
        %4512 = vmatprep.mubr.f32.mxu0 0.0
        %4513 = vmatmul.mubr.f32.gmra.mrb[0].mxu0 %v4245
        %v4514 = vpop.f32.mrb[0].mxu0
        %v4515 = vadd.f32 %v3938, %v4514
        %v4516 = vpop.f32.mrb[0].mxu0
        %4517 = vmatprep.mubr.f32.mxu0 0.0
        %4518 = vmatmul.mubr.f32.gmra.mrb[0].mxu0 %v4248
        %v4519 = vpop.f32.mrb[0].mxu0
        %v4520 = vadd.f32 %v3943, %v4519
        %v4521 = vpop.f32.mrb[0].mxu0
        %4522 = vmatprep.mubr.f32.mxu0 0.0
        %4523 = vmatmul.mubr.f32.gmra.mrb[0].mxu0 %v4251
        %v4524 = vpop.f32.mrb[0].mxu0
        %v4525 = vadd.f32 %v3948, %v4524
        %v4526 = vpop.f32.mrb[0].mxu0
        %4527 = vmatprep.mubr.f32.mxu0 0.0
        %4528 = vmatmul.mubr.f32.gmra.mrb[0].mxu0 %v4254
        %v4529 = vpop.f32.mrb[0].mxu0
        %v4530 = vadd.f32 %v3953, %v4529
        %v4531 = vpop.f32.mrb[0].mxu0
        %4532 = vmatprep.mubr.f32.mxu0 0.0
        %4533 = vmatmul.mubr.f32.gmra.mrb[0].mxu0 %v4257
        %v4534 = vpop.f32.mrb[0].mxu0
        %v4535 = vadd.f32 %v3958, %v4534
        %v4536 = vpop.f32.mrb[0].mxu0
        %4537 = vmatprep.mubr.f32.mxu0 0.0
        %4538 = vmatmul.mubr.f32.gmra.mrb[0].mxu0 %v4260
        %v4539 = vpop.f32.mrb[0].mxu0
        %v4540 = vadd.f32 %v3963, %v4539
        %v4541 = vpop.f32.mrb[0].mxu0
        %4542 = vmatprep.mubr.f32.mxu0 0.0
        %4543 = vmatmul.mubr.f32.gmra.mrb[0].mxu0 %v4263
        %v4544 = vpop.f32.mrb[0].mxu0
        %v4545 = vadd.f32 %v3968, %v4544
        %v4546 = vpop.f32.mrb[0].mxu0
        %4547 = vmatprep.mubr.f32.mxu0 0.0
        %4548 = vmatmul.mubr.f32.gmra.mrb[0].mxu0 %v4266
        %v4549 = vpop.f32.mrb[0].mxu0
        %v4550 = vadd.f32 %v3973, %v4549
        %v4551 = vpop.f32.mrb[0].mxu0
        %4552 = vmatprep.mubr.f32.mxu0 0.0
        %4553 = vmatmul.mubr.f32.gmra.mrb[0].mxu0 %v4269
        %v4554 = vpop.f32.mrb[0].mxu0
        %v4555 = vadd.f32 %v3978, %v4554
        %v4556 = vpop.f32.mrb[0].mxu0
        %4557 = vmatprep.mubr.f32.mxu0 0.0
        %4558 = vmatmul.mubr.f32.gmra.mrb[0].mxu0 %v4272
        %v4559 = vpop.f32.mrb[0].mxu0
        %v4560 = vadd.f32 %v3983, %v4559
        %v4561 = vpop.f32.mrb[0].mxu0
        %4562 = vmatprep.mubr.f32.mxu0 0.0
        %4563 = vmatmul.mubr.f32.gmra.mrb[0].mxu0 %v4275
        %v4564 = vpop.f32.mrb[0].mxu0
        %v4565 = vadd.f32 %v3988, %v4564
        %v4566 = vpop.f32.mrb[0].mxu0
        %4567 = vmatprep.mubr.f32.mxu0 0.0
        %4568 = vmatmul.mubr.f32.gmra.mrb[0].mxu0 %v4278
        %v4569 = vpop.f32.mrb[0].mxu0
        %v4570 = vadd.f32 %v3993, %v4569
        %v4571 = vpop.f32.mrb[0].mxu0
        %4572 = vmatprep.mubr.f32.mxu0 0.0
        %4573 = vmatmul.mubr.f32.gmra.mrb[0].mxu0 %v4281
        %v4574 = vpop.f32.mrb[0].mxu0
        %v4575 = vadd.f32 %v3998, %v4574
        %v4576 = vpop.f32.mrb[0].mxu0
        %4577 = vmatprep.mubr.f32.mxu0 0.0
        %4578 = vmatmul.mubr.f32.gmra.mrb[0].mxu0 %v4284
        %v4579 = vpop.f32.mrb[0].mxu0
        %v4580 = vadd.f32 %v4003, %v4579
        %v4581 = vpop.f32.mrb[0].mxu0
        %4582 = vmatprep.mubr.f32.mxu0 0.0
        %4583 = vmatmul.mubr.f32.gmra.mrb[0].mxu0 %v4287
        %v4584 = vpop.f32.mrb[0].mxu0
        %v4585 = vadd.f32 %v4008, %v4584
        %v4586 = vpop.f32.mrb[0].mxu0
        %4587 = vmatprep.mubr.f32.mxu0 0.0
        %4588 = vmatmul.mubr.f32.gmra.mrb[0].mxu0 %v4290
        %v4589 = vpop.f32.mrb[0].mxu0
        %v4590 = vadd.f32 %v4013, %v4589
        %v4591 = vpop.f32.mrb[0].mxu0
        %4592 = vmatprep.mubr.f32.mxu0 0.0
        %4593 = vmatmul.mubr.f32.gmra.mrb[0].mxu0 %v4293
        %v4594 = vpop.f32.mrb[0].mxu0
        %v4595 = vadd.f32 %v4018, %v4594
        %v4596 = vpop.f32.mrb[0].mxu0
        %4597 = vmatprep.mubr.f32.mxu0 0.0
        %4598 = vmatmul.mubr.f32.gmra.mrb[0].mxu0 %v4296
        %v4599 = vpop.f32.mrb[0].mxu0
        %v4600 = vadd.f32 %v4023, %v4599
        %v4601 = vpop.f32.mrb[0].mxu0
        %4602 = vmatprep.mubr.f32.mxu0 0.0
        %4603 = vmatmul.mubr.f32.gmra.mrb[0].mxu0 %v4299
        %v4604 = vpop.f32.mrb[0].mxu0
        %v4605 = vadd.f32 %v4028, %v4604
        %v4606 = vpop.f32.mrb[0].mxu0
        %4607 = vmatprep.mubr.f32.mxu0 0.0
        %4608 = vmatmul.mubr.f32.gmra.mrb[0].mxu0 %v4302
        %v4609 = vpop.f32.mrb[0].mxu0
        %v4610 = vadd.f32 %v4033, %v4609
        %v4611 = vpop.f32.mrb[0].mxu0
        %4612 = vmatprep.mubr.f32.mxu0 0.0
        %4613 = vmatmul.mubr.f32.gmra.mrb[0].mxu0 %v4305
        %v4614 = vpop.f32.mrb[0].mxu0
        %v4615 = vadd.f32 %v4038, %v4614
        %v4616 = vpop.f32.mrb[0].mxu0
        %4617 = vmatprep.mubr.f32.mxu0 0.0
        %4618 = vmatmul.mubr.f32.gmra.mrb[0].mxu0 %v4308
        %v4619 = vpop.f32.mrb[0].mxu0
        %v4620 = vadd.f32 %v4043, %v4619
        %v4621 = vpop.f32.mrb[0].mxu0
        %4622 = vmatprep.mubr.f32.mxu0 0.0
        %4623 = vmatmul.mubr.f32.gmra.mrb[0].mxu0 %v4311
        %v4624 = vpop.f32.mrb[0].mxu0
        %v4625 = vadd.f32 %v4048, %v4624
        %v4626 = vpop.f32.mrb[0].mxu0
        %4627 = vmatprep.mubr.f32.mxu0 0.0
        %4628 = vmatmul.mubr.f32.gmra.mrb[0].mxu0 %v4314
        %v4629 = vpop.f32.mrb[0].mxu0
        %v4630 = vadd.f32 %v4053, %v4629
        %v4631 = vpop.f32.mrb[0].mxu0
        %4632 = vmatprep.mubr.f32.mxu0 0.0
        %4633 = vmatmul.mubr.f32.gmra.mrb[0].mxu0 %v4317
        %v4634 = vpop.f32.mrb[0].mxu0
        %v4635 = vadd.f32 %v4058, %v4634
        %v4636 = vpop.f32.mrb[0].mxu0
        %4637 = vmatprep.mubr.f32.mxu0 0.0
        %4638 = vmatmul.mubr.f32.gmra.mrb[0].mxu0 %v4320
        %v4639 = vpop.f32.mrb[0].mxu0
        %v4640 = vadd.f32 %v4063, %v4639
        %v4641 = vpop.f32.mrb[0].mxu0
        %4642 = vmatprep.mubr.f32.mxu0 0.0
        %4643 = vmatmul.mubr.f32.gmra.mrb[0].mxu0 %v4323
        %v4644 = vpop.f32.mrb[0].mxu0
        %v4645 = vadd.f32 %v4068, %v4644
        %v4646 = vpop.f32.mrb[0].mxu0
        %4647 = vmatprep.mubr.f32.mxu0 0.0
        %4648 = vmatmul.mubr.f32.gmra.mrb[0].mxu0 %v4326
        %v4649 = vpop.f32.mrb[0].mxu0
        %v4650 = vadd.f32 %v4073, %v4649
        %v4651 = vpop.f32.mrb[0].mxu0
        %4652 = vmatprep.mubr.f32.mxu0 0.0
        %4653 = vmatmul.mubr.f32.gmra.mrb[0].mxu0 %v4329
        %v4654 = vpop.f32.mrb[0].mxu0
        %v4655 = vadd.f32 %v4078, %v4654
        %v4656 = vpop.f32.mrb[0].mxu0
        %4657 = vmatprep.mubr.f32.mxu0 0.0
        %4658 = vmatmul.mubr.f32.gmra.mrb[0].mxu0 %v4332
        %v4659 = vpop.f32.mrb[0].mxu0
        %v4660 = vadd.f32 %v4083, %v4659
        %v4661 = vpop.f32.mrb[0].mxu0
        %4662 = vmatprep.mubr.f32.mxu0 0.0
        %4663 = vmatmul.mubr.f32.gmra.mrb[0].mxu0 %v4335
        %v4664 = vpop.f32.mrb[0].mxu0
        %v4665 = vadd.f32 %v4088, %v4664
        %v4666 = vpop.f32.mrb[0].mxu0
        %4667 = vmatprep.mubr.f32.mxu0 0.0
        %4668 = vmatmul.mubr.f32.gmra.mrb[0].mxu0 %v4338
        %v4669 = vpop.f32.mrb[0].mxu0
        %v4670 = vadd.f32 %v4093, %v4669
        %v4671 = vpop.f32.mrb[0].mxu0
        %4672 = vmatprep.mubr.f32.mxu0 0.0
        %4673 = vmatmul.mubr.f32.gmra.mrb[0].mxu0 %v4341
        %v4674 = vpop.f32.mrb[0].mxu0
        %v4675 = vadd.f32 %v4098, %v4674
        %v4676 = vpop.f32.mrb[0].mxu0
        %4677 = vmatprep.mubr.f32.mxu0 0.0
        %4678 = vmatmul.mubr.f32.gmra.mrb[0].mxu0 %v4344
        %v4679 = vpop.f32.mrb[0].mxu0
        %v4680 = vadd.f32 %v4103, %v4679
        %v4681 = vpop.f32.mrb[0].mxu0
        %4682 = vmatprep.mubr.f32.mxu0 0.0
        %4683 = vmatmul.mubr.f32.gmra.mrb[0].mxu0 %v4347
        %v4684 = vpop.f32.mrb[0].mxu0
        %v4685 = vadd.f32 %v4108, %v4684
        %v4686 = vpop.f32.mrb[0].mxu0
        %4687 = vmatprep.mubr.f32.mxu0 0.0
        %4688 = vmatmul.mubr.f32.gmra.mrb[0].mxu0 %v4350
        %v4689 = vpop.f32.mrb[0].mxu0
        %v4690 = vadd.f32 %v4113, %v4689
        %v4691 = vpop.f32.mrb[0].mxu0
        %4692 = vmatprep.mubr.f32.mxu0 0.0
        %4693 = vmatmul.mubr.f32.gmra.mrb[0].mxu0 %v4353
        %v4694 = vpop.f32.mrb[0].mxu0
        %v4695 = vadd.f32 %v4118, %v4694
        %v4696 = vpop.f32.mrb[0].mxu0
        %4697 = vmatprep.mubr.f32.mxu0 0.0
        %4698 = vmatmul.mubr.f32.gmra.mrb[0].mxu0 %v4356
        %v4699 = vpop.f32.mrb[0].mxu0
        %v4700 = vadd.f32 %v4123, %v4699
        %v4701 = vpop.f32.mrb[0].mxu0
        %4702 = vmatprep.mubr.f32.mxu0 0.0
        %4703 = vmatmul.mubr.f32.gmra.mrb[0].mxu0 %v4359
        %v4704 = vpop.f32.mrb[0].mxu0
        %v4705 = vadd.f32 %v4128, %v4704
        %v4706 = vpop.f32.mrb[0].mxu0
        %4707 = vmatprep.mubr.f32.mxu0 0.0
        %4708 = vmatmul.mubr.f32.gmra.mrb[0].mxu0 %v4362
        %v4709 = vpop.f32.mrb[0].mxu0
        %v4710 = vadd.f32 %v4133, %v4709
        %v4711 = vpop.f32.mrb[0].mxu0
        %4712 = vmatprep.mubr.f32.mxu0 0.0
        %4713 = vmatmul.mubr.f32.gmra.mrb[0].mxu0 %v4365
        %v4714 = vpop.f32.mrb[0].mxu0
        %v4715 = vadd.f32 %v4138, %v4714
        %v4716 = vpop.f32.mrb[0].mxu0
        %4717 = vmatprep.mubr.f32.mxu0 0.0
        %4718 = vmatmul.mubr.f32.gmra.mrb[0].mxu0 %v4368
        %v4719 = vpop.f32.mrb[0].mxu0
        %v4720 = vadd.f32 %v4143, %v4719
        %v4721 = vpop.f32.mrb[0].mxu0
        %4722 = vmatprep.mubr.f32.mxu0 0.0
        %4723 = vmatmul.mubr.f32.gmra.mrb[0].mxu0 %v4371
        %v4724 = vpop.f32.mrb[0].mxu0
        %v4725 = vadd.f32 %v4148, %v4724
        %v4726 = vpop.f32.mrb[0].mxu0
        %4727 = vmatprep.mubr.f32.mxu0 0.0
        %4728 = vmatmul.mubr.f32.gmra.mrb[0].mxu0 %v4374
        %v4729 = vpop.f32.mrb[0].mxu0
        %v4730 = vadd.f32 %v4153, %v4729
        %v4731 = vpop.f32.mrb[0].mxu0
        %4732 = vmatprep.mubr.f32.mxu0 0.0
        %4733 = vmatmul.mubr.f32.gmra.mrb[0].mxu0 %v4377
        %v4734 = vpop.f32.mrb[0].mxu0
        %v4735 = vadd.f32 %v4158, %v4734
        %v4736 = vpop.f32.mrb[0].mxu0
        %4737 = vmatprep.mubr.f32.mxu0 0.0
        %4738 = vmatmul.mubr.f32.gmra.mrb[0].mxu0 %v4380
        %v4739 = vpop.f32.mrb[0].mxu0
        %v4740 = vadd.f32 %v4163, %v4739
        %v4741 = vpop.f32.mrb[0].mxu0
        %4742 = vmatprep.mubr.f32.mxu0 0.0
        %4743 = vmatmul.mubr.f32.gmra.mrb[0].mxu0 %v4383
        %v4744 = vpop.f32.mrb[0].mxu0
        %v4745 = vadd.f32 %v4168, %v4744
        %v4746 = vpop.f32.mrb[0].mxu0
        %4747 = vmatprep.mubr.f32.mxu0 0.0
        %4748 = vmatmul.mubr.f32.gmra.mrb[0].mxu0 %v4386
        %v4749 = vpop.f32.mrb[0].mxu0
        %v4750 = vadd.f32 %v4173, %v4749
        %v4751 = vpop.f32.mrb[0].mxu0
        %4752 = vmatprep.mubr.f32.mxu0 0.0
        %4753 = vmatmul.mubr.f32.gmra.mrb[0].mxu0 %v4389
        %v4754 = vpop.f32.mrb[0].mxu0
        %v4755 = vadd.f32 %v4178, %v4754
        %v4756 = vpop.f32.mrb[0].mxu0
        %4757 = vmatprep.mubr.f32.mxu0 0.0
        %4758 = vmatmul.mubr.f32.gmra.mrb[0].mxu0 %v4392
        %v4759 = vpop.f32.mrb[0].mxu0
        %v4760 = vadd.f32 %v4183, %v4759
        %v4761 = vpop.f32.mrb[0].mxu0
        %4762 = vmatprep.mubr.f32.mxu0 0.0
        %4763 = vmatmul.mubr.f32.gmra.mrb[0].mxu0 %v4395
        %v4764 = vpop.f32.mrb[0].mxu0
        %v4765 = vadd.f32 %v4188, %v4764
        %v4766 = vpop.f32.mrb[0].mxu0
        %4767 = vmatprep.mubr.f32.mxu0 0.0
        %4768 = vmatmul.mubr.f32.gmra.mrb[0].mxu0 %v4398
        %v4769 = vpop.f32.mrb[0].mxu0
        %v4770 = vadd.f32 %v4193, %v4769
        %v4771 = vpop.f32.mrb[0].mxu0
        %4772 = vmatprep.mubr.f32.mxu0 0.0
        %4773 = vmatmul.mubr.f32.gmra.mrb[0].mxu0 %v4401
        %v4774 = vpop.f32.mrb[0].mxu0
        %v4775 = vadd.f32 %v4198, %v4774
        %v4776 = vpop.f32.mrb[0].mxu0
        %4777 = vmatprep.mubr.f32.mxu0 0.0
        %4778 = vmatmul.mubr.f32.gmra.mrb[0].mxu0 %v4404
        %v4779 = vpop.f32.mrb[0].mxu0
        %v4780 = vadd.f32 %v4203, %v4779
        %v4781 = vpop.f32.mrb[0].mxu0
        %4782 = vmatprep.mubr.f32.mxu0 0.0
        %4783 = vmatmul.mubr.f32.gmra.mrb[0].mxu0 %v4407
        %v4784 = vpop.f32.mrb[0].mxu0
        %v4785 = vadd.f32 %v4208, %v4784
        %v4786 = vpop.f32.mrb[0].mxu0
        %4787 = vmatprep.mubr.f32.mxu0 0.0
        %4788 = vmatmul.mubr.f32.gmra.mrb[0].mxu0 %v4410
        %v4789 = vpop.f32.mrb[0].mxu0
        %v4790 = vadd.f32 %v4213, %v4789
        %v4791 = vpop.f32.mrb[0].mxu0
        %4792 = vmatprep.mubr.f32.mxu0 0.0
        %4793 = vmatmul.mubr.f32.gmra.mrb[0].mxu0 %v4413
        %v4794 = vpop.f32.mrb[0].mxu0
        %v4795 = vadd.f32 %v4218, %v4794
        %v4796 = vpop.f32.mrb[0].mxu0
        %4797 = vmatprep.mubr.f32.mxu0 0.0
        %4798 = vmatmul.mubr.f32.gmra.mrb[0].mxu0 %v4416
        %v4799 = vpop.f32.mrb[0].mxu0
        %v4800 = vadd.f32 %v4223, %v4799
        %v4801 = vpop.f32.mrb[0].mxu0
        %4802 = vdwg.mxu0
        %v4803 = vld [vmem:[%s21] sm:$0xff]
        %v4804 = vld [vmem:[%s21 + $0x8] sm:$0xff]
        %v4805 = vld [vmem:[%s21 + $0x10] sm:$0xff]
        %v4806 = vld [vmem:[%s21 + $0x18] sm:$0xff]
        %v4807 = vld [vmem:[%s21 + $0x20] sm:$0xff]
        %v4808 = vld [vmem:[%s21 + $0x28] sm:$0xff]
        %v4809 = vld [vmem:[%s21 + $0x30] sm:$0xff]
        %v4810 = vld [vmem:[%s21 + $0x38] sm:$0xff]
        %v4811 = vld [vmem:[%s21 + $0x40] sm:$0xff]
        %v4812 = vld [vmem:[%s21 + $0x48] sm:$0xff]
        %v4813 = vld [vmem:[%s21 + $0x50] sm:$0xff]
        %v4814 = vld [vmem:[%s21 + $0x58] sm:$0xff]
        %v4815 = vld [vmem:[%s21 + $0x60] sm:$0xff]
        %v4816 = vld [vmem:[%s21 + $0x68] sm:$0xff]
        %v4817 = vld [vmem:[%s21 + $0x70] sm:$0xff]
        %v4818 = vld [vmem:[%s21 + $0x78] sm:$0xff]
        %v4819 = vld [vmem:[%s21 + $0x80] sm:$0xff]
        %v4820 = vld [vmem:[%s21 + $0x88] sm:$0xff]
        %v4821 = vld [vmem:[%s21 + $0x90] sm:$0xff]
        %v4822 = vld [vmem:[%s21 + $0x98] sm:$0xff]
        %v4823 = vld [vmem:[%s21 + $0xa0] sm:$0xff]
        %v4824 = vld [vmem:[%s21 + $0xa8] sm:$0xff]
        %v4825 = vld [vmem:[%s21 + $0xb0] sm:$0xff]
        %v4826 = vld [vmem:[%s21 + $0xb8] sm:$0xff]
        %v4827 = vld [vmem:[%s21 + $0xc0] sm:$0xff]
        %v4828 = vld [vmem:[%s21 + $0xc8] sm:$0xff]
        %v4829 = vld [vmem:[%s21 + $0xd0] sm:$0xff]
        %v4830 = vld [vmem:[%s21 + $0xd8] sm:$0xff]
        %v4831 = vld [vmem:[%s21 + $0xe0] sm:$0xff]
        %v4832 = vld [vmem:[%s21 + $0xe8] sm:$0xff]
        %v4833 = vld [vmem:[%s21 + $0xf0] sm:$0xff]
        %v4834 = vld [vmem:[%s21 + $0xf8] sm:$0xff]
        %v4835 = vld [vmem:[%s21 + $0x100] sm:$0xff]
        %v4836 = vld [vmem:[%s21 + $0x108] sm:$0xff]
        %v4837 = vld [vmem:[%s21 + $0x110] sm:$0xff]
        %v4838 = vld [vmem:[%s21 + $0x118] sm:$0xff]
        %v4839 = vld [vmem:[%s21 + $0x120] sm:$0xff]
        %v4840 = vld [vmem:[%s21 + $0x128] sm:$0xff]
        %v4841 = vld [vmem:[%s21 + $0x130] sm:$0xff]
        %v4842 = vld [vmem:[%s21 + $0x138] sm:$0xff]
        %v4843 = vld [vmem:[%s21 + $0x140] sm:$0xff]
        %v4844 = vld [vmem:[%s21 + $0x148] sm:$0xff]
        %v4845 = vld [vmem:[%s21 + $0x150] sm:$0xff]
        %v4846 = vld [vmem:[%s21 + $0x158] sm:$0xff]
        %v4847 = vld [vmem:[%s21 + $0x160] sm:$0xff]
        %v4848 = vld [vmem:[%s21 + $0x168] sm:$0xff]
        %v4849 = vld [vmem:[%s21 + $0x170] sm:$0xff]
        %v4850 = vld [vmem:[%s21 + $0x178] sm:$0xff]
        %v4851 = vld [vmem:[%s21 + $0x180] sm:$0xff]
        %v4852 = vld [vmem:[%s21 + $0x188] sm:$0xff]
        %v4853 = vld [vmem:[%s21 + $0x190] sm:$0xff]
        %v4854 = vld [vmem:[%s21 + $0x198] sm:$0xff]
        %v4855 = vld [vmem:[%s21 + $0x1a0] sm:$0xff]
        %v4856 = vld [vmem:[%s21 + $0x1a8] sm:$0xff]
        %v4857 = vld [vmem:[%s21 + $0x1b0] sm:$0xff]
        %v4858 = vld [vmem:[%s21 + $0x1b8] sm:$0xff]
        %v4859 = vld [vmem:[%s21 + $0x1c0] sm:$0xff]
        %v4860 = vld [vmem:[%s21 + $0x1c8] sm:$0xff]
        %v4861 = vld [vmem:[%s21 + $0x1d0] sm:$0xff]
        %v4862 = vld [vmem:[%s21 + $0x1d8] sm:$0xff]
        %v4863 = vld [vmem:[%s21 + $0x1e0] sm:$0xff]
        %v4864 = vld [vmem:[%s21 + $0x1e8] sm:$0xff]
        %v4865 = vld [vmem:[%s21 + $0x1f0] sm:$0xff]
        %v4866 = vld [vmem:[%s21 + $0x1f8] sm:$0xff]
        %4868 = vset.pattern.permute.xlu0 0
        %4869 = vperm.xlu0 %4868, %v4803
        %v4870 = vpop.permute.xlu0 %4869
        %4873 = vset.pattern.permute.xlu0 0
        %4874 = vperm.xlu0 %4873, %v4804
        %v4875 = vpop.permute.xlu0 %4874
        %4878 = vset.pattern.permute.xlu0 0
        %4879 = vperm.xlu0 %4878, %v4805
        %v4880 = vpop.permute.xlu0 %4879
        %4883 = vset.pattern.permute.xlu0 0
        %4884 = vperm.xlu0 %4883, %v4806
        %v4885 = vpop.permute.xlu0 %4884
        %4888 = vset.pattern.permute.xlu0 0
        %4889 = vperm.xlu0 %4888, %v4807
        %v4890 = vpop.permute.xlu0 %4889
        %4893 = vset.pattern.permute.xlu0 0
        %4894 = vperm.xlu0 %4893, %v4808
        %v4895 = vpop.permute.xlu0 %4894
        %4898 = vset.pattern.permute.xlu0 0
        %4899 = vperm.xlu0 %4898, %v4809
        %v4900 = vpop.permute.xlu0 %4899
        %4903 = vset.pattern.permute.xlu0 0
        %4904 = vperm.xlu0 %4903, %v4810
        %v4905 = vpop.permute.xlu0 %4904
        %4908 = vset.pattern.permute.xlu0 0
        %4909 = vperm.xlu0 %4908, %v4811
        %v4910 = vpop.permute.xlu0 %4909
        %4913 = vset.pattern.permute.xlu0 0
        %4914 = vperm.xlu0 %4913, %v4812
        %v4915 = vpop.permute.xlu0 %4914
        %4918 = vset.pattern.permute.xlu0 0
        %4919 = vperm.xlu0 %4918, %v4813
        %v4920 = vpop.permute.xlu0 %4919
        %4923 = vset.pattern.permute.xlu0 0
        %4924 = vperm.xlu0 %4923, %v4814
        %v4925 = vpop.permute.xlu0 %4924
        %4928 = vset.pattern.permute.xlu0 0
        %4929 = vperm.xlu0 %4928, %v4815
        %v4930 = vpop.permute.xlu0 %4929
        %4933 = vset.pattern.permute.xlu0 0
        %4934 = vperm.xlu0 %4933, %v4816
        %v4935 = vpop.permute.xlu0 %4934
        %4938 = vset.pattern.permute.xlu0 0
        %4939 = vperm.xlu0 %4938, %v4817
        %v4940 = vpop.permute.xlu0 %4939
        %4943 = vset.pattern.permute.xlu0 0
        %4944 = vperm.xlu0 %4943, %v4818
        %v4945 = vpop.permute.xlu0 %4944
        %4948 = vset.pattern.permute.xlu0 0
        %4949 = vperm.xlu0 %4948, %v4819
        %v4950 = vpop.permute.xlu0 %4949
        %4953 = vset.pattern.permute.xlu0 0
        %4954 = vperm.xlu0 %4953, %v4820
        %v4955 = vpop.permute.xlu0 %4954
        %4958 = vset.pattern.permute.xlu0 0
        %4959 = vperm.xlu0 %4958, %v4821
        %v4960 = vpop.permute.xlu0 %4959
        %4963 = vset.pattern.permute.xlu0 0
        %4964 = vperm.xlu0 %4963, %v4822
        %v4965 = vpop.permute.xlu0 %4964
        %4968 = vset.pattern.permute.xlu0 0
        %4969 = vperm.xlu0 %4968, %v4823
        %v4970 = vpop.permute.xlu0 %4969
        %4973 = vset.pattern.permute.xlu0 0
        %4974 = vperm.xlu0 %4973, %v4824
        %v4975 = vpop.permute.xlu0 %4974
        %4978 = vset.pattern.permute.xlu0 0
        %4979 = vperm.xlu0 %4978, %v4825
        %v4980 = vpop.permute.xlu0 %4979
        %4983 = vset.pattern.permute.xlu0 0
        %4984 = vperm.xlu0 %4983, %v4826
        %v4985 = vpop.permute.xlu0 %4984
        %4988 = vset.pattern.permute.xlu0 0
        %4989 = vperm.xlu0 %4988, %v4827
        %v4990 = vpop.permute.xlu0 %4989
        %4993 = vset.pattern.permute.xlu0 0
        %4994 = vperm.xlu0 %4993, %v4828
        %v4995 = vpop.permute.xlu0 %4994
        %4998 = vset.pattern.permute.xlu0 0
        %4999 = vperm.xlu0 %4998, %v4829
        %v5000 = vpop.permute.xlu0 %4999
        %5003 = vset.pattern.permute.xlu0 0
        %5004 = vperm.xlu0 %5003, %v4830
        %v5005 = vpop.permute.xlu0 %5004
        %5008 = vset.pattern.permute.xlu0 0
        %5009 = vperm.xlu0 %5008, %v4831
        %v5010 = vpop.permute.xlu0 %5009
        %5013 = vset.pattern.permute.xlu0 0
        %5014 = vperm.xlu0 %5013, %v4832
        %v5015 = vpop.permute.xlu0 %5014
        %5018 = vset.pattern.permute.xlu0 0
        %5019 = vperm.xlu0 %5018, %v4833
        %v5020 = vpop.permute.xlu0 %5019
        %5023 = vset.pattern.permute.xlu0 0
        %5024 = vperm.xlu0 %5023, %v4834
        %v5025 = vpop.permute.xlu0 %5024
        %5028 = vset.pattern.permute.xlu0 0
        %5029 = vperm.xlu0 %5028, %v4835
        %v5030 = vpop.permute.xlu0 %5029
        %5033 = vset.pattern.permute.xlu0 0
        %5034 = vperm.xlu0 %5033, %v4836
        %v5035 = vpop.permute.xlu0 %5034
        %5038 = vset.pattern.permute.xlu0 0
        %5039 = vperm.xlu0 %5038, %v4837
        %v5040 = vpop.permute.xlu0 %5039
        %5043 = vset.pattern.permute.xlu0 0
        %5044 = vperm.xlu0 %5043, %v4838
        %v5045 = vpop.permute.xlu0 %5044
        %5048 = vset.pattern.permute.xlu0 0
        %5049 = vperm.xlu0 %5048, %v4839
        %v5050 = vpop.permute.xlu0 %5049
        %5053 = vset.pattern.permute.xlu0 0
        %5054 = vperm.xlu0 %5053, %v4840
        %v5055 = vpop.permute.xlu0 %5054
        %5058 = vset.pattern.permute.xlu0 0
        %5059 = vperm.xlu0 %5058, %v4841
        %v5060 = vpop.permute.xlu0 %5059
        %5063 = vset.pattern.permute.xlu0 0
        %5064 = vperm.xlu0 %5063, %v4842
        %v5065 = vpop.permute.xlu0 %5064
        %5068 = vset.pattern.permute.xlu0 0
        %5069 = vperm.xlu0 %5068, %v4843
        %v5070 = vpop.permute.xlu0 %5069
        %5073 = vset.pattern.permute.xlu0 0
        %5074 = vperm.xlu0 %5073, %v4844
        %v5075 = vpop.permute.xlu0 %5074
        %5078 = vset.pattern.permute.xlu0 0
        %5079 = vperm.xlu0 %5078, %v4845
        %v5080 = vpop.permute.xlu0 %5079
        %5083 = vset.pattern.permute.xlu0 0
        %5084 = vperm.xlu0 %5083, %v4846
        %v5085 = vpop.permute.xlu0 %5084
        %5088 = vset.pattern.permute.xlu0 0
        %5089 = vperm.xlu0 %5088, %v4847
        %v5090 = vpop.permute.xlu0 %5089
        %5093 = vset.pattern.permute.xlu0 0
        %5094 = vperm.xlu0 %5093, %v4848
        %v5095 = vpop.permute.xlu0 %5094
        %5098 = vset.pattern.permute.xlu0 0
        %5099 = vperm.xlu0 %5098, %v4849
        %v5100 = vpop.permute.xlu0 %5099
        %5103 = vset.pattern.permute.xlu0 0
        %5104 = vperm.xlu0 %5103, %v4850
        %v5105 = vpop.permute.xlu0 %5104
        %5108 = vset.pattern.permute.xlu0 0
        %5109 = vperm.xlu0 %5108, %v4851
        %v5110 = vpop.permute.xlu0 %5109
        %5113 = vset.pattern.permute.xlu0 0
        %5114 = vperm.xlu0 %5113, %v4852
        %v5115 = vpop.permute.xlu0 %5114
        %5118 = vset.pattern.permute.xlu0 0
        %5119 = vperm.xlu0 %5118, %v4853
        %v5120 = vpop.permute.xlu0 %5119
        %5123 = vset.pattern.permute.xlu0 0
        %5124 = vperm.xlu0 %5123, %v4854
        %v5125 = vpop.permute.xlu0 %5124
        %5128 = vset.pattern.permute.xlu0 0
        %5129 = vperm.xlu0 %5128, %v4855
        %v5130 = vpop.permute.xlu0 %5129
        %5133 = vset.pattern.permute.xlu0 0
        %5134 = vperm.xlu0 %5133, %v4856
        %v5135 = vpop.permute.xlu0 %5134
        %5138 = vset.pattern.permute.xlu0 0
        %5139 = vperm.xlu0 %5138, %v4857
        %v5140 = vpop.permute.xlu0 %5139
        %5143 = vset.pattern.permute.xlu0 0
        %5144 = vperm.xlu0 %5143, %v4858
        %v5145 = vpop.permute.xlu0 %5144
        %5148 = vset.pattern.permute.xlu0 0
        %5149 = vperm.xlu0 %5148, %v4859
        %v5150 = vpop.permute.xlu0 %5149
        %5153 = vset.pattern.permute.xlu0 0
        %5154 = vperm.xlu0 %5153, %v4860
        %v5155 = vpop.permute.xlu0 %5154
        %5158 = vset.pattern.permute.xlu0 0
        %5159 = vperm.xlu0 %5158, %v4861
        %v5160 = vpop.permute.xlu0 %5159
        %5163 = vset.pattern.permute.xlu0 0
        %5164 = vperm.xlu0 %5163, %v4862
        %v5165 = vpop.permute.xlu0 %5164
        %5168 = vset.pattern.permute.xlu0 0
        %5169 = vperm.xlu0 %5168, %v4863
        %v5170 = vpop.permute.xlu0 %5169
        %5173 = vset.pattern.permute.xlu0 0
        %5174 = vperm.xlu0 %5173, %v4864
        %v5175 = vpop.permute.xlu0 %5174
        %5178 = vset.pattern.permute.xlu0 0
        %5179 = vperm.xlu0 %5178, %v4865
        %v5180 = vpop.permute.xlu0 %5179
        %5183 = vset.pattern.permute.xlu0 0
        %5184 = vperm.xlu0 %5183, %v4866
        %v5185 = vpop.permute.xlu0 %5184
        %v5187 = vadd.f32 %v4485, %v4870
        %v5188 = vadd.f32 %v4490, %v4875
        %v5189 = vadd.f32 %v4495, %v4880
        %v5190 = vadd.f32 %v4500, %v4885
        %v5191 = vadd.f32 %v4505, %v4890
        %v5192 = vadd.f32 %v4510, %v4895
        %v5193 = vadd.f32 %v4515, %v4900
        %v5194 = vadd.f32 %v4520, %v4905
        %v5195 = vadd.f32 %v4525, %v4910
        %v5196 = vadd.f32 %v4530, %v4915
        %v5197 = vadd.f32 %v4535, %v4920
        %v5198 = vadd.f32 %v4540, %v4925
        %v5199 = vadd.f32 %v4545, %v4930
        %v5200 = vadd.f32 %v4550, %v4935
        %v5201 = vadd.f32 %v4555, %v4940
        %v5202 = vadd.f32 %v4560, %v4945
        %v5203 = vadd.f32 %v4565, %v4950
        %v5204 = vadd.f32 %v4570, %v4955
        %v5205 = vadd.f32 %v4575, %v4960
        %v5206 = vadd.f32 %v4580, %v4965
        %v5207 = vadd.f32 %v4585, %v4970
        %v5208 = vadd.f32 %v4590, %v4975
        %v5209 = vadd.f32 %v4595, %v4980
        %v5210 = vadd.f32 %v4600, %v4985
        %v5211 = vadd.f32 %v4605, %v4990
        %v5212 = vadd.f32 %v4610, %v4995
        %v5213 = vadd.f32 %v4615, %v5000
        %v5214 = vadd.f32 %v4620, %v5005
        %v5215 = vadd.f32 %v4625, %v5010
        %v5216 = vadd.f32 %v4630, %v5015
        %v5217 = vadd.f32 %v4635, %v5020
        %v5218 = vadd.f32 %v4640, %v5025
        %v5219 = vadd.f32 %v4645, %v5030
        %v5220 = vadd.f32 %v4650, %v5035
        %v5221 = vadd.f32 %v4655, %v5040
        %v5222 = vadd.f32 %v4660, %v5045
        %v5223 = vadd.f32 %v4665, %v5050
        %v5224 = vadd.f32 %v4670, %v5055
        %v5225 = vadd.f32 %v4675, %v5060
        %v5226 = vadd.f32 %v4680, %v5065
        %v5227 = vadd.f32 %v4685, %v5070
        %v5228 = vadd.f32 %v4690, %v5075
        %v5229 = vadd.f32 %v4695, %v5080
        %v5230 = vadd.f32 %v4700, %v5085
        %v5231 = vadd.f32 %v4705, %v5090
        %v5232 = vadd.f32 %v4710, %v5095
        %v5233 = vadd.f32 %v4715, %v5100
        %v5234 = vadd.f32 %v4720, %v5105
        %v5235 = vadd.f32 %v4725, %v5110
        %v5236 = vadd.f32 %v4730, %v5115
        %v5237 = vadd.f32 %v4735, %v5120
        %v5238 = vadd.f32 %v4740, %v5125
        %v5239 = vadd.f32 %v4745, %v5130
        %v5240 = vadd.f32 %v4750, %v5135
        %v5241 = vadd.f32 %v4755, %v5140
        %v5242 = vadd.f32 %v4760, %v5145
        %v5243 = vadd.f32 %v4765, %v5150
        %v5244 = vadd.f32 %v4770, %v5155
        %v5245 = vadd.f32 %v4775, %v5160
        %v5246 = vadd.f32 %v4780, %v5165
        %v5247 = vadd.f32 %v4785, %v5170
        %v5248 = vadd.f32 %v4790, %v5175
        %v5249 = vadd.f32 %v4795, %v5180
        %v5250 = vadd.f32 %v4800, %v5185
        %v5251 = vld [vmem:[#allocation19] sm:$0xff]
        %v5252 = vld [vmem:[#allocation19 + $0x8] sm:$0xff]
        %v5253 = vld [vmem:[#allocation19 + $0x10] sm:$0xff]
        %v5254 = vld [vmem:[#allocation19 + $0x18] sm:$0xff]
        %v5255 = vld [vmem:[#allocation19 + $0x20] sm:$0xff]
        %v5256 = vld [vmem:[#allocation19 + $0x28] sm:$0xff]
        %v5257 = vld [vmem:[#allocation19 + $0x30] sm:$0xff]
        %v5258 = vld [vmem:[#allocation19 + $0x38] sm:$0xff]
        %v5259 = vld [vmem:[#allocation19 + $0x40] sm:$0xff]
        %v5260 = vld [vmem:[#allocation19 + $0x48] sm:$0xff]
        %v5261 = vld [vmem:[#allocation19 + $0x50] sm:$0xff]
        %v5262 = vld [vmem:[#allocation19 + $0x58] sm:$0xff]
        %v5263 = vld [vmem:[#allocation19 + $0x60] sm:$0xff]
        %v5264 = vld [vmem:[#allocation19 + $0x68] sm:$0xff]
        %v5265 = vld [vmem:[#allocation19 + $0x70] sm:$0xff]
        %v5266 = vld [vmem:[#allocation19 + $0x78] sm:$0xff]
        %v5267 = vld [vmem:[#allocation19 + $0x80] sm:$0xff]
        %v5268 = vld [vmem:[#allocation19 + $0x88] sm:$0xff]
        %v5269 = vld [vmem:[#allocation19 + $0x90] sm:$0xff]
        %v5270 = vld [vmem:[#allocation19 + $0x98] sm:$0xff]
        %v5271 = vld [vmem:[#allocation19 + $0xa0] sm:$0xff]
        %v5272 = vld [vmem:[#allocation19 + $0xa8] sm:$0xff]
        %v5273 = vld [vmem:[#allocation19 + $0xb0] sm:$0xff]
        %v5274 = vld [vmem:[#allocation19 + $0xb8] sm:$0xff]
        %v5275 = vld [vmem:[#allocation19 + $0xc0] sm:$0xff]
        %v5276 = vld [vmem:[#allocation19 + $0xc8] sm:$0xff]
        %v5277 = vld [vmem:[#allocation19 + $0xd0] sm:$0xff]
        %v5278 = vld [vmem:[#allocation19 + $0xd8] sm:$0xff]
        %v5279 = vld [vmem:[#allocation19 + $0xe0] sm:$0xff]
        %v5280 = vld [vmem:[#allocation19 + $0xe8] sm:$0xff]
        %v5281 = vld [vmem:[#allocation19 + $0xf0] sm:$0xff]
        %v5282 = vld [vmem:[#allocation19 + $0xf8] sm:$0xff]
        %v5283 = vld [vmem:[#allocation19 + $0x100] sm:$0xff]
        %v5284 = vld [vmem:[#allocation19 + $0x108] sm:$0xff]
        %v5285 = vld [vmem:[#allocation19 + $0x110] sm:$0xff]
        %v5286 = vld [vmem:[#allocation19 + $0x118] sm:$0xff]
        %v5287 = vld [vmem:[#allocation19 + $0x120] sm:$0xff]
        %v5288 = vld [vmem:[#allocation19 + $0x128] sm:$0xff]
        %v5289 = vld [vmem:[#allocation19 + $0x130] sm:$0xff]
        %v5290 = vld [vmem:[#allocation19 + $0x138] sm:$0xff]
        %v5291 = vld [vmem:[#allocation19 + $0x140] sm:$0xff]
        %v5292 = vld [vmem:[#allocation19 + $0x148] sm:$0xff]
        %v5293 = vld [vmem:[#allocation19 + $0x150] sm:$0xff]
        %v5294 = vld [vmem:[#allocation19 + $0x158] sm:$0xff]
        %v5295 = vld [vmem:[#allocation19 + $0x160] sm:$0xff]
        %v5296 = vld [vmem:[#allocation19 + $0x168] sm:$0xff]
        %v5297 = vld [vmem:[#allocation19 + $0x170] sm:$0xff]
        %v5298 = vld [vmem:[#allocation19 + $0x178] sm:$0xff]
        %v5299 = vld [vmem:[#allocation19 + $0x180] sm:$0xff]
        %v5300 = vld [vmem:[#allocation19 + $0x188] sm:$0xff]
        %v5301 = vld [vmem:[#allocation19 + $0x190] sm:$0xff]
        %v5302 = vld [vmem:[#allocation19 + $0x198] sm:$0xff]
        %v5303 = vld [vmem:[#allocation19 + $0x1a0] sm:$0xff]
        %v5304 = vld [vmem:[#allocation19 + $0x1a8] sm:$0xff]
        %v5305 = vld [vmem:[#allocation19 + $0x1b0] sm:$0xff]
        %v5306 = vld [vmem:[#allocation19 + $0x1b8] sm:$0xff]
        %v5307 = vld [vmem:[#allocation19 + $0x1c0] sm:$0xff]
        %v5308 = vld [vmem:[#allocation19 + $0x1c8] sm:$0xff]
        %v5309 = vld [vmem:[#allocation19 + $0x1d0] sm:$0xff]
        %v5310 = vld [vmem:[#allocation19 + $0x1d8] sm:$0xff]
        %v5311 = vld [vmem:[#allocation19 + $0x1e0] sm:$0xff]
        %v5312 = vld [vmem:[#allocation19 + $0x1e8] sm:$0xff]
        %v5313 = vld [vmem:[#allocation19 + $0x1f0] sm:$0xff]
        %v5314 = vld [vmem:[#allocation19 + $0x1f8] sm:$0xff]
        %v5315 = vld [vmem:[#allocation19 + $0x200] sm:$0xff]
        %v5316 = vld [vmem:[#allocation19 + $0x208] sm:$0xff]
        %v5317 = vld [vmem:[#allocation19 + $0x210] sm:$0xff]
        %v5318 = vld [vmem:[#allocation19 + $0x218] sm:$0xff]
        %v5319 = vld [vmem:[#allocation19 + $0x220] sm:$0xff]
        %v5320 = vld [vmem:[#allocation19 + $0x228] sm:$0xff]
        %v5321 = vld [vmem:[#allocation19 + $0x230] sm:$0xff]
        %v5322 = vld [vmem:[#allocation19 + $0x238] sm:$0xff]
        %v5323 = vld [vmem:[#allocation19 + $0x240] sm:$0xff]
        %v5324 = vld [vmem:[#allocation19 + $0x248] sm:$0xff]
        %v5325 = vld [vmem:[#allocation19 + $0x250] sm:$0xff]
        %v5326 = vld [vmem:[#allocation19 + $0x258] sm:$0xff]
        %v5327 = vld [vmem:[#allocation19 + $0x260] sm:$0xff]
        %v5328 = vld [vmem:[#allocation19 + $0x268] sm:$0xff]
        %v5329 = vld [vmem:[#allocation19 + $0x270] sm:$0xff]
        %v5330 = vld [vmem:[#allocation19 + $0x278] sm:$0xff]
        %v5331 = vld [vmem:[#allocation19 + $0x280] sm:$0xff]
        %v5332 = vld [vmem:[#allocation19 + $0x288] sm:$0xff]
        %v5333 = vld [vmem:[#allocation19 + $0x290] sm:$0xff]
        %v5334 = vld [vmem:[#allocation19 + $0x298] sm:$0xff]
        %v5335 = vld [vmem:[#allocation19 + $0x2a0] sm:$0xff]
        %v5336 = vld [vmem:[#allocation19 + $0x2a8] sm:$0xff]
        %v5337 = vld [vmem:[#allocation19 + $0x2b0] sm:$0xff]
        %v5338 = vld [vmem:[#allocation19 + $0x2b8] sm:$0xff]
        %v5339 = vld [vmem:[#allocation19 + $0x2c0] sm:$0xff]
        %v5340 = vld [vmem:[#allocation19 + $0x2c8] sm:$0xff]
        %v5341 = vld [vmem:[#allocation19 + $0x2d0] sm:$0xff]
        %v5342 = vld [vmem:[#allocation19 + $0x2d8] sm:$0xff]
        %v5343 = vld [vmem:[#allocation19 + $0x2e0] sm:$0xff]
        %v5344 = vld [vmem:[#allocation19 + $0x2e8] sm:$0xff]
        %v5345 = vld [vmem:[#allocation19 + $0x2f0] sm:$0xff]
        %v5346 = vld [vmem:[#allocation19 + $0x2f8] sm:$0xff]
        %v5347 = vld [vmem:[#allocation19 + $0x300] sm:$0xff]
        %v5348 = vld [vmem:[#allocation19 + $0x308] sm:$0xff]
        %v5349 = vld [vmem:[#allocation19 + $0x310] sm:$0xff]
        %v5350 = vld [vmem:[#allocation19 + $0x318] sm:$0xff]
        %v5351 = vld [vmem:[#allocation19 + $0x320] sm:$0xff]
        %v5352 = vld [vmem:[#allocation19 + $0x328] sm:$0xff]
        %v5353 = vld [vmem:[#allocation19 + $0x330] sm:$0xff]
        %v5354 = vld [vmem:[#allocation19 + $0x338] sm:$0xff]
        %v5355 = vld [vmem:[#allocation19 + $0x340] sm:$0xff]
        %v5356 = vld [vmem:[#allocation19 + $0x348] sm:$0xff]
        %v5357 = vld [vmem:[#allocation19 + $0x350] sm:$0xff]
        %v5358 = vld [vmem:[#allocation19 + $0x358] sm:$0xff]
        %v5359 = vld [vmem:[#allocation19 + $0x360] sm:$0xff]
        %v5360 = vld [vmem:[#allocation19 + $0x368] sm:$0xff]
        %v5361 = vld [vmem:[#allocation19 + $0x370] sm:$0xff]
        %v5362 = vld [vmem:[#allocation19 + $0x378] sm:$0xff]
        %v5363 = vld [vmem:[#allocation19 + $0x380] sm:$0xff]
        %v5364 = vld [vmem:[#allocation19 + $0x388] sm:$0xff]
        %v5365 = vld [vmem:[#allocation19 + $0x390] sm:$0xff]
        %v5366 = vld [vmem:[#allocation19 + $0x398] sm:$0xff]
        %v5367 = vld [vmem:[#allocation19 + $0x3a0] sm:$0xff]
        %v5368 = vld [vmem:[#allocation19 + $0x3a8] sm:$0xff]
        %v5369 = vld [vmem:[#allocation19 + $0x3b0] sm:$0xff]
        %v5370 = vld [vmem:[#allocation19 + $0x3b8] sm:$0xff]
        %v5371 = vld [vmem:[#allocation19 + $0x3c0] sm:$0xff]
        %v5372 = vld [vmem:[#allocation19 + $0x3c8] sm:$0xff]
        %v5373 = vld [vmem:[#allocation19 + $0x3d0] sm:$0xff]
        %v5374 = vld [vmem:[#allocation19 + $0x3d8] sm:$0xff]
        %v5375 = vld [vmem:[#allocation19 + $0x3e0] sm:$0xff]
        %v5376 = vld [vmem:[#allocation19 + $0x3e8] sm:$0xff]
        %v5377 = vld [vmem:[#allocation19 + $0x3f0] sm:$0xff]
        %v5378 = vld [vmem:[#allocation19 + $0x3f8] sm:$0xff]
        %v5379 = vld [vmem:[#allocation19 + $0x400] sm:$0xff]
        %v5380 = vld [vmem:[#allocation19 + $0x408] sm:$0xff]
        %v5381 = vld [vmem:[#allocation19 + $0x410] sm:$0xff]
        %v5382 = vld [vmem:[#allocation19 + $0x418] sm:$0xff]
        %v5383 = vld [vmem:[#allocation19 + $0x420] sm:$0xff]
        %v5384 = vld [vmem:[#allocation19 + $0x428] sm:$0xff]
        %v5385 = vld [vmem:[#allocation19 + $0x430] sm:$0xff]
        %v5386 = vld [vmem:[#allocation19 + $0x438] sm:$0xff]
        %v5387 = vld [vmem:[#allocation19 + $0x440] sm:$0xff]
        %v5388 = vld [vmem:[#allocation19 + $0x448] sm:$0xff]
        %v5389 = vld [vmem:[#allocation19 + $0x450] sm:$0xff]
        %v5390 = vld [vmem:[#allocation19 + $0x458] sm:$0xff]
        %v5391 = vld [vmem:[#allocation19 + $0x460] sm:$0xff]
        %v5392 = vld [vmem:[#allocation19 + $0x468] sm:$0xff]
        %v5393 = vld [vmem:[#allocation19 + $0x470] sm:$0xff]
        %v5394 = vld [vmem:[#allocation19 + $0x478] sm:$0xff]
        %v5395 = vld [vmem:[#allocation19 + $0x480] sm:$0xff]
        %v5396 = vld [vmem:[#allocation19 + $0x488] sm:$0xff]
        %v5397 = vld [vmem:[#allocation19 + $0x490] sm:$0xff]
        %v5398 = vld [vmem:[#allocation19 + $0x498] sm:$0xff]
        %v5399 = vld [vmem:[#allocation19 + $0x4a0] sm:$0xff]
        %v5400 = vld [vmem:[#allocation19 + $0x4a8] sm:$0xff]
        %v5401 = vld [vmem:[#allocation19 + $0x4b0] sm:$0xff]
        %v5402 = vld [vmem:[#allocation19 + $0x4b8] sm:$0xff]
        %v5403 = vld [vmem:[#allocation19 + $0x4c0] sm:$0xff]
        %v5404 = vld [vmem:[#allocation19 + $0x4c8] sm:$0xff]
        %v5405 = vld [vmem:[#allocation19 + $0x4d0] sm:$0xff]
        %v5406 = vld [vmem:[#allocation19 + $0x4d8] sm:$0xff]
        %v5407 = vld [vmem:[#allocation19 + $0x4e0] sm:$0xff]
        %v5408 = vld [vmem:[#allocation19 + $0x4e8] sm:$0xff]
        %v5409 = vld [vmem:[#allocation19 + $0x4f0] sm:$0xff]
        %v5410 = vld [vmem:[#allocation19 + $0x4f8] sm:$0xff]
        %v5411 = vld [vmem:[#allocation19 + $0x500] sm:$0xff]
        %v5412 = vld [vmem:[#allocation19 + $0x508] sm:$0xff]
        %v5413 = vld [vmem:[#allocation19 + $0x510] sm:$0xff]
        %v5414 = vld [vmem:[#allocation19 + $0x518] sm:$0xff]
        %v5415 = vld [vmem:[#allocation19 + $0x520] sm:$0xff]
        %v5416 = vld [vmem:[#allocation19 + $0x528] sm:$0xff]
        %v5417 = vld [vmem:[#allocation19 + $0x530] sm:$0xff]
        %v5418 = vld [vmem:[#allocation19 + $0x538] sm:$0xff]
        %v5419 = vld [vmem:[#allocation19 + $0x540] sm:$0xff]
        %v5420 = vld [vmem:[#allocation19 + $0x548] sm:$0xff]
        %v5421 = vld [vmem:[#allocation19 + $0x550] sm:$0xff]
        %v5422 = vld [vmem:[#allocation19 + $0x558] sm:$0xff]
        %v5423 = vld [vmem:[#allocation19 + $0x560] sm:$0xff]
        %v5424 = vld [vmem:[#allocation19 + $0x568] sm:$0xff]
        %v5425 = vld [vmem:[#allocation19 + $0x570] sm:$0xff]
        %v5426 = vld [vmem:[#allocation19 + $0x578] sm:$0xff]
        %v5427 = vld [vmem:[#allocation19 + $0x580] sm:$0xff]
        %v5428 = vld [vmem:[#allocation19 + $0x588] sm:$0xff]
        %v5429 = vld [vmem:[#allocation19 + $0x590] sm:$0xff]
        %v5430 = vld [vmem:[#allocation19 + $0x598] sm:$0xff]
        %v5431 = vld [vmem:[#allocation19 + $0x5a0] sm:$0xff]
        %v5432 = vld [vmem:[#allocation19 + $0x5a8] sm:$0xff]
        %v5433 = vld [vmem:[#allocation19 + $0x5b0] sm:$0xff]
        %v5434 = vld [vmem:[#allocation19 + $0x5b8] sm:$0xff]
        %v5435 = vld [vmem:[#allocation19 + $0x5c0] sm:$0xff]
        %v5436 = vld [vmem:[#allocation19 + $0x5c8] sm:$0xff]
        %v5437 = vld [vmem:[#allocation19 + $0x5d0] sm:$0xff]
        %v5438 = vld [vmem:[#allocation19 + $0x5d8] sm:$0xff]
        %v5439 = vld [vmem:[#allocation19 + $0x5e0] sm:$0xff]
        %v5440 = vld [vmem:[#allocation19 + $0x5e8] sm:$0xff]
        %v5441 = vld [vmem:[#allocation19 + $0x5f0] sm:$0xff]
        %v5442 = vld [vmem:[#allocation19 + $0x5f8] sm:$0xff]
        %v5443 = vld [vmem:[#allocation19 + $0x600] sm:$0xff]
        %v5444 = vld [vmem:[#allocation19 + $0x608] sm:$0xff]
        %v5445 = vld [vmem:[#allocation19 + $0x610] sm:$0xff]
        %v5446 = vld [vmem:[#allocation19 + $0x618] sm:$0xff]
        %v5447 = vld [vmem:[#allocation19 + $0x620] sm:$0xff]
        %v5448 = vld [vmem:[#allocation19 + $0x628] sm:$0xff]
        %v5449 = vld [vmem:[#allocation19 + $0x630] sm:$0xff]
        %v5450 = vld [vmem:[#allocation19 + $0x638] sm:$0xff]
        %v5451 = vld [vmem:[#allocation19 + $0x640] sm:$0xff]
        %v5452 = vld [vmem:[#allocation19 + $0x648] sm:$0xff]
        %v5453 = vld [vmem:[#allocation19 + $0x650] sm:$0xff]
        %v5454 = vld [vmem:[#allocation19 + $0x658] sm:$0xff]
        %v5455 = vld [vmem:[#allocation19 + $0x660] sm:$0xff]
        %v5456 = vld [vmem:[#allocation19 + $0x668] sm:$0xff]
        %v5457 = vld [vmem:[#allocation19 + $0x670] sm:$0xff]
        %v5458 = vld [vmem:[#allocation19 + $0x678] sm:$0xff]
        %v5459 = vld [vmem:[#allocation19 + $0x680] sm:$0xff]
        %v5460 = vld [vmem:[#allocation19 + $0x688] sm:$0xff]
        %v5461 = vld [vmem:[#allocation19 + $0x690] sm:$0xff]
        %v5462 = vld [vmem:[#allocation19 + $0x698] sm:$0xff]
        %v5463 = vld [vmem:[#allocation19 + $0x6a0] sm:$0xff]
        %v5464 = vld [vmem:[#allocation19 + $0x6a8] sm:$0xff]
        %v5465 = vld [vmem:[#allocation19 + $0x6b0] sm:$0xff]
        %v5466 = vld [vmem:[#allocation19 + $0x6b8] sm:$0xff]
        %v5467 = vld [vmem:[#allocation19 + $0x6c0] sm:$0xff]
        %v5468 = vld [vmem:[#allocation19 + $0x6c8] sm:$0xff]
        %v5469 = vld [vmem:[#allocation19 + $0x6d0] sm:$0xff]
        %v5470 = vld [vmem:[#allocation19 + $0x6d8] sm:$0xff]
        %v5471 = vld [vmem:[#allocation19 + $0x6e0] sm:$0xff]
        %v5472 = vld [vmem:[#allocation19 + $0x6e8] sm:$0xff]
        %v5473 = vld [vmem:[#allocation19 + $0x6f0] sm:$0xff]
        %v5474 = vld [vmem:[#allocation19 + $0x6f8] sm:$0xff]
        %v5475 = vld [vmem:[#allocation19 + $0x700] sm:$0xff]
        %v5476 = vld [vmem:[#allocation19 + $0x708] sm:$0xff]
        %v5477 = vld [vmem:[#allocation19 + $0x710] sm:$0xff]
        %v5478 = vld [vmem:[#allocation19 + $0x718] sm:$0xff]
        %v5479 = vld [vmem:[#allocation19 + $0x720] sm:$0xff]
        %v5480 = vld [vmem:[#allocation19 + $0x728] sm:$0xff]
        %v5481 = vld [vmem:[#allocation19 + $0x730] sm:$0xff]
        %v5482 = vld [vmem:[#allocation19 + $0x738] sm:$0xff]
        %v5483 = vld [vmem:[#allocation19 + $0x740] sm:$0xff]
        %v5484 = vld [vmem:[#allocation19 + $0x748] sm:$0xff]
        %v5485 = vld [vmem:[#allocation19 + $0x750] sm:$0xff]
        %v5486 = vld [vmem:[#allocation19 + $0x758] sm:$0xff]
        %v5487 = vld [vmem:[#allocation19 + $0x760] sm:$0xff]
        %v5488 = vld [vmem:[#allocation19 + $0x768] sm:$0xff]
        %v5489 = vld [vmem:[#allocation19 + $0x770] sm:$0xff]
        %v5490 = vld [vmem:[#allocation19 + $0x778] sm:$0xff]
        %v5491 = vld [vmem:[#allocation19 + $0x780] sm:$0xff]
        %v5492 = vld [vmem:[#allocation19 + $0x788] sm:$0xff]
        %v5493 = vld [vmem:[#allocation19 + $0x790] sm:$0xff]
        %v5494 = vld [vmem:[#allocation19 + $0x798] sm:$0xff]
        %v5495 = vld [vmem:[#allocation19 + $0x7a0] sm:$0xff]
        %v5496 = vld [vmem:[#allocation19 + $0x7a8] sm:$0xff]
        %v5497 = vld [vmem:[#allocation19 + $0x7b0] sm:$0xff]
        %v5498 = vld [vmem:[#allocation19 + $0x7b8] sm:$0xff]
        %v5499 = vld [vmem:[#allocation19 + $0x7c0] sm:$0xff]
        %v5500 = vld [vmem:[#allocation19 + $0x7c8] sm:$0xff]
        %v5501 = vld [vmem:[#allocation19 + $0x7d0] sm:$0xff]
        %v5502 = vld [vmem:[#allocation19 + $0x7d8] sm:$0xff]
        %v5503 = vld [vmem:[#allocation19 + $0x7e0] sm:$0xff]
        %v5504 = vld [vmem:[#allocation19 + $0x7e8] sm:$0xff]
        %v5505 = vld [vmem:[#allocation19 + $0x7f0] sm:$0xff]
        %v5506 = vld [vmem:[#allocation19 + $0x7f8] sm:$0xff]
        %v5507 = vld [vmem:[#allocation19 + $0x800] sm:$0xff]
        %v5508 = vld [vmem:[#allocation19 + $0x808] sm:$0xff]
        %v5509 = vld [vmem:[#allocation19 + $0x810] sm:$0xff]
        %v5510 = vld [vmem:[#allocation19 + $0x818] sm:$0xff]
        %v5511 = vld [vmem:[#allocation19 + $0x820] sm:$0xff]
        %v5512 = vld [vmem:[#allocation19 + $0x828] sm:$0xff]
        %v5513 = vld [vmem:[#allocation19 + $0x830] sm:$0xff]
        %v5514 = vld [vmem:[#allocation19 + $0x838] sm:$0xff]
        %v5515 = vld [vmem:[#allocation19 + $0x840] sm:$0xff]
        %v5516 = vld [vmem:[#allocation19 + $0x848] sm:$0xff]
        %v5517 = vld [vmem:[#allocation19 + $0x850] sm:$0xff]
        %v5518 = vld [vmem:[#allocation19 + $0x858] sm:$0xff]
        %v5519 = vld [vmem:[#allocation19 + $0x860] sm:$0xff]
        %v5520 = vld [vmem:[#allocation19 + $0x868] sm:$0xff]
        %v5521 = vld [vmem:[#allocation19 + $0x870] sm:$0xff]
        %v5522 = vld [vmem:[#allocation19 + $0x878] sm:$0xff]
        %v5523 = vld [vmem:[#allocation19 + $0x880] sm:$0xff]
        %v5524 = vld [vmem:[#allocation19 + $0x888] sm:$0xff]
        %v5525 = vld [vmem:[#allocation19 + $0x890] sm:$0xff]
        %v5526 = vld [vmem:[#allocation19 + $0x898] sm:$0xff]
        %v5527 = vld [vmem:[#allocation19 + $0x8a0] sm:$0xff]
        %v5528 = vld [vmem:[#allocation19 + $0x8a8] sm:$0xff]
        %v5529 = vld [vmem:[#allocation19 + $0x8b0] sm:$0xff]
        %v5530 = vld [vmem:[#allocation19 + $0x8b8] sm:$0xff]
        %v5531 = vld [vmem:[#allocation19 + $0x8c0] sm:$0xff]
        %v5532 = vld [vmem:[#allocation19 + $0x8c8] sm:$0xff]
        %v5533 = vld [vmem:[#allocation19 + $0x8d0] sm:$0xff]
        %v5534 = vld [vmem:[#allocation19 + $0x8d8] sm:$0xff]
        %v5535 = vld [vmem:[#allocation19 + $0x8e0] sm:$0xff]
        %v5536 = vld [vmem:[#allocation19 + $0x8e8] sm:$0xff]
        %v5537 = vld [vmem:[#allocation19 + $0x8f0] sm:$0xff]
        %v5538 = vld [vmem:[#allocation19 + $0x8f8] sm:$0xff]
        %v5539 = vld [vmem:[#allocation19 + $0x900] sm:$0xff]
        %v5540 = vld [vmem:[#allocation19 + $0x908] sm:$0xff]
        %v5541 = vld [vmem:[#allocation19 + $0x910] sm:$0xff]
        %v5542 = vld [vmem:[#allocation19 + $0x918] sm:$0xff]
        %v5543 = vld [vmem:[#allocation19 + $0x920] sm:$0xff]
        %v5544 = vld [vmem:[#allocation19 + $0x928] sm:$0xff]
        %v5545 = vld [vmem:[#allocation19 + $0x930] sm:$0xff]
        %v5546 = vld [vmem:[#allocation19 + $0x938] sm:$0xff]
        %v5547 = vld [vmem:[#allocation19 + $0x940] sm:$0xff]
        %v5548 = vld [vmem:[#allocation19 + $0x948] sm:$0xff]
        %v5549 = vld [vmem:[#allocation19 + $0x950] sm:$0xff]
        %v5550 = vld [vmem:[#allocation19 + $0x958] sm:$0xff]
        %v5551 = vld [vmem:[#allocation19 + $0x960] sm:$0xff]
        %v5552 = vld [vmem:[#allocation19 + $0x968] sm:$0xff]
        %v5553 = vld [vmem:[#allocation19 + $0x970] sm:$0xff]
        %v5554 = vld [vmem:[#allocation19 + $0x978] sm:$0xff]
        %v5555 = vld [vmem:[#allocation19 + $0x980] sm:$0xff]
        %v5556 = vld [vmem:[#allocation19 + $0x988] sm:$0xff]
        %v5557 = vld [vmem:[#allocation19 + $0x990] sm:$0xff]
        %v5558 = vld [vmem:[#allocation19 + $0x998] sm:$0xff]
        %v5559 = vld [vmem:[#allocation19 + $0x9a0] sm:$0xff]
        %v5560 = vld [vmem:[#allocation19 + $0x9a8] sm:$0xff]
        %v5561 = vld [vmem:[#allocation19 + $0x9b0] sm:$0xff]
        %v5562 = vld [vmem:[#allocation19 + $0x9b8] sm:$0xff]
        %v5563 = vld [vmem:[#allocation19 + $0x9c0] sm:$0xff]
        %v5564 = vld [vmem:[#allocation19 + $0x9c8] sm:$0xff]
        %v5565 = vld [vmem:[#allocation19 + $0x9d0] sm:$0xff]
        %v5566 = vld [vmem:[#allocation19 + $0x9d8] sm:$0xff]
        %v5567 = vld [vmem:[#allocation19 + $0x9e0] sm:$0xff]
        %v5568 = vld [vmem:[#allocation19 + $0x9e8] sm:$0xff]
        %v5569 = vld [vmem:[#allocation19 + $0x9f0] sm:$0xff]
        %v5570 = vld [vmem:[#allocation19 + $0x9f8] sm:$0xff]
        %v5571 = vld [vmem:[#allocation19 + $0xa00] sm:$0xff]
        %v5572 = vld [vmem:[#allocation19 + $0xa08] sm:$0xff]
        %v5573 = vld [vmem:[#allocation19 + $0xa10] sm:$0xff]
        %v5574 = vld [vmem:[#allocation19 + $0xa18] sm:$0xff]
        %v5575 = vld [vmem:[#allocation19 + $0xa20] sm:$0xff]
        %v5576 = vld [vmem:[#allocation19 + $0xa28] sm:$0xff]
        %v5577 = vld [vmem:[#allocation19 + $0xa30] sm:$0xff]
        %v5578 = vld [vmem:[#allocation19 + $0xa38] sm:$0xff]
        %v5579 = vld [vmem:[#allocation19 + $0xa40] sm:$0xff]
        %v5580 = vld [vmem:[#allocation19 + $0xa48] sm:$0xff]
        %v5581 = vld [vmem:[#allocation19 + $0xa50] sm:$0xff]
        %v5582 = vld [vmem:[#allocation19 + $0xa58] sm:$0xff]
        %v5583 = vld [vmem:[#allocation19 + $0xa60] sm:$0xff]
        %v5584 = vld [vmem:[#allocation19 + $0xa68] sm:$0xff]
        %v5585 = vld [vmem:[#allocation19 + $0xa70] sm:$0xff]
        %v5586 = vld [vmem:[#allocation19 + $0xa78] sm:$0xff]
        %v5587 = vld [vmem:[#allocation19 + $0xa80] sm:$0xff]
        %v5588 = vld [vmem:[#allocation19 + $0xa88] sm:$0xff]
        %v5589 = vld [vmem:[#allocation19 + $0xa90] sm:$0xff]
        %v5590 = vld [vmem:[#allocation19 + $0xa98] sm:$0xff]
        %v5591 = vld [vmem:[#allocation19 + $0xaa0] sm:$0xff]
        %v5592 = vld [vmem:[#allocation19 + $0xaa8] sm:$0xff]
        %v5593 = vld [vmem:[#allocation19 + $0xab0] sm:$0xff]
        %v5594 = vld [vmem:[#allocation19 + $0xab8] sm:$0xff]
        %v5595 = vld [vmem:[#allocation19 + $0xac0] sm:$0xff]
        %v5596 = vld [vmem:[#allocation19 + $0xac8] sm:$0xff]
        %v5597 = vld [vmem:[#allocation19 + $0xad0] sm:$0xff]
        %v5598 = vld [vmem:[#allocation19 + $0xad8] sm:$0xff]
        %v5599 = vld [vmem:[#allocation19 + $0xae0] sm:$0xff]
        %v5600 = vld [vmem:[#allocation19 + $0xae8] sm:$0xff]
        %v5601 = vld [vmem:[#allocation19 + $0xaf0] sm:$0xff]
        %v5602 = vld [vmem:[#allocation19 + $0xaf8] sm:$0xff]
        %v5603 = vld [vmem:[#allocation19 + $0xb00] sm:$0xff]
        %v5604 = vld [vmem:[#allocation19 + $0xb08] sm:$0xff]
        %v5605 = vld [vmem:[#allocation19 + $0xb10] sm:$0xff]
        %v5606 = vld [vmem:[#allocation19 + $0xb18] sm:$0xff]
        %v5607 = vld [vmem:[#allocation19 + $0xb20] sm:$0xff]
        %v5608 = vld [vmem:[#allocation19 + $0xb28] sm:$0xff]
        %v5609 = vld [vmem:[#allocation19 + $0xb30] sm:$0xff]
        %v5610 = vld [vmem:[#allocation19 + $0xb38] sm:$0xff]
        %v5611 = vld [vmem:[#allocation19 + $0xb40] sm:$0xff]
        %v5612 = vld [vmem:[#allocation19 + $0xb48] sm:$0xff]
        %v5613 = vld [vmem:[#allocation19 + $0xb50] sm:$0xff]
        %v5614 = vld [vmem:[#allocation19 + $0xb58] sm:$0xff]
        %v5615 = vld [vmem:[#allocation19 + $0xb60] sm:$0xff]
        %v5616 = vld [vmem:[#allocation19 + $0xb68] sm:$0xff]
        %v5617 = vld [vmem:[#allocation19 + $0xb70] sm:$0xff]
        %v5618 = vld [vmem:[#allocation19 + $0xb78] sm:$0xff]
        %v5619 = vld [vmem:[#allocation19 + $0xb80] sm:$0xff]
        %v5620 = vld [vmem:[#allocation19 + $0xb88] sm:$0xff]
        %v5621 = vld [vmem:[#allocation19 + $0xb90] sm:$0xff]
        %v5622 = vld [vmem:[#allocation19 + $0xb98] sm:$0xff]
        %v5623 = vld [vmem:[#allocation19 + $0xba0] sm:$0xff]
        %v5624 = vld [vmem:[#allocation19 + $0xba8] sm:$0xff]
        %v5625 = vld [vmem:[#allocation19 + $0xbb0] sm:$0xff]
        %v5626 = vld [vmem:[#allocation19 + $0xbb8] sm:$0xff]
        %v5627 = vld [vmem:[#allocation19 + $0xbc0] sm:$0xff]
        %v5628 = vld [vmem:[#allocation19 + $0xbc8] sm:$0xff]
        %v5629 = vld [vmem:[#allocation19 + $0xbd0] sm:$0xff]
        %v5630 = vld [vmem:[#allocation19 + $0xbd8] sm:$0xff]
        %v5631 = vld [vmem:[#allocation19 + $0xbe0] sm:$0xff]
        %v5632 = vld [vmem:[#allocation19 + $0xbe8] sm:$0xff]
        %v5633 = vld [vmem:[#allocation19 + $0xbf0] sm:$0xff]
        %v5634 = vld [vmem:[#allocation19 + $0xbf8] sm:$0xff]
        %v5635 = vld [vmem:[#allocation19 + $0xc00] sm:$0xff]
        %v5636 = vld [vmem:[#allocation19 + $0xc08] sm:$0xff]
        %v5637 = vld [vmem:[#allocation19 + $0xc10] sm:$0xff]
        %v5638 = vld [vmem:[#allocation19 + $0xc18] sm:$0xff]
        %v5639 = vld [vmem:[#allocation19 + $0xc20] sm:$0xff]
        %v5640 = vld [vmem:[#allocation19 + $0xc28] sm:$0xff]
        %v5641 = vld [vmem:[#allocation19 + $0xc30] sm:$0xff]
        %v5642 = vld [vmem:[#allocation19 + $0xc38] sm:$0xff]
        %v5643 = vld [vmem:[#allocation19 + $0xc40] sm:$0xff]
        %v5644 = vld [vmem:[#allocation19 + $0xc48] sm:$0xff]
        %v5645 = vld [vmem:[#allocation19 + $0xc50] sm:$0xff]
        %v5646 = vld [vmem:[#allocation19 + $0xc58] sm:$0xff]
        %v5647 = vld [vmem:[#allocation19 + $0xc60] sm:$0xff]
        %v5648 = vld [vmem:[#allocation19 + $0xc68] sm:$0xff]
        %v5649 = vld [vmem:[#allocation19 + $0xc70] sm:$0xff]
        %v5650 = vld [vmem:[#allocation19 + $0xc78] sm:$0xff]
        %v5651 = vld [vmem:[#allocation19 + $0xc80] sm:$0xff]
        %v5652 = vld [vmem:[#allocation19 + $0xc88] sm:$0xff]
        %v5653 = vld [vmem:[#allocation19 + $0xc90] sm:$0xff]
        %v5654 = vld [vmem:[#allocation19 + $0xc98] sm:$0xff]
        %v5655 = vld [vmem:[#allocation19 + $0xca0] sm:$0xff]
        %v5656 = vld [vmem:[#allocation19 + $0xca8] sm:$0xff]
        %v5657 = vld [vmem:[#allocation19 + $0xcb0] sm:$0xff]
        %v5658 = vld [vmem:[#allocation19 + $0xcb8] sm:$0xff]
        %v5659 = vld [vmem:[#allocation19 + $0xcc0] sm:$0xff]
        %v5660 = vld [vmem:[#allocation19 + $0xcc8] sm:$0xff]
        %v5661 = vld [vmem:[#allocation19 + $0xcd0] sm:$0xff]
        %v5662 = vld [vmem:[#allocation19 + $0xcd8] sm:$0xff]
        %v5663 = vld [vmem:[#allocation19 + $0xce0] sm:$0xff]
        %v5664 = vld [vmem:[#allocation19 + $0xce8] sm:$0xff]
        %v5665 = vld [vmem:[#allocation19 + $0xcf0] sm:$0xff]
        %v5666 = vld [vmem:[#allocation19 + $0xcf8] sm:$0xff]
        %v5667 = vld [vmem:[#allocation19 + $0xd00] sm:$0xff]
        %v5668 = vld [vmem:[#allocation19 + $0xd08] sm:$0xff]
        %v5669 = vld [vmem:[#allocation19 + $0xd10] sm:$0xff]
        %v5670 = vld [vmem:[#allocation19 + $0xd18] sm:$0xff]
        %v5671 = vld [vmem:[#allocation19 + $0xd20] sm:$0xff]
        %v5672 = vld [vmem:[#allocation19 + $0xd28] sm:$0xff]
        %v5673 = vld [vmem:[#allocation19 + $0xd30] sm:$0xff]
        %v5674 = vld [vmem:[#allocation19 + $0xd38] sm:$0xff]
        %v5675 = vld [vmem:[#allocation19 + $0xd40] sm:$0xff]
        %v5676 = vld [vmem:[#allocation19 + $0xd48] sm:$0xff]
        %v5677 = vld [vmem:[#allocation19 + $0xd50] sm:$0xff]
        %v5678 = vld [vmem:[#allocation19 + $0xd58] sm:$0xff]
        %v5679 = vld [vmem:[#allocation19 + $0xd60] sm:$0xff]
        %v5680 = vld [vmem:[#allocation19 + $0xd68] sm:$0xff]
        %v5681 = vld [vmem:[#allocation19 + $0xd70] sm:$0xff]
        %v5682 = vld [vmem:[#allocation19 + $0xd78] sm:$0xff]
        %v5683 = vld [vmem:[#allocation19 + $0xd80] sm:$0xff]
        %v5684 = vld [vmem:[#allocation19 + $0xd88] sm:$0xff]
        %v5685 = vld [vmem:[#allocation19 + $0xd90] sm:$0xff]
        %v5686 = vld [vmem:[#allocation19 + $0xd98] sm:$0xff]
        %v5687 = vld [vmem:[#allocation19 + $0xda0] sm:$0xff]
        %v5688 = vld [vmem:[#allocation19 + $0xda8] sm:$0xff]
        %v5689 = vld [vmem:[#allocation19 + $0xdb0] sm:$0xff]
        %v5690 = vld [vmem:[#allocation19 + $0xdb8] sm:$0xff]
        %v5691 = vld [vmem:[#allocation19 + $0xdc0] sm:$0xff]
        %v5692 = vld [vmem:[#allocation19 + $0xdc8] sm:$0xff]
        %v5693 = vld [vmem:[#allocation19 + $0xdd0] sm:$0xff]
        %v5694 = vld [vmem:[#allocation19 + $0xdd8] sm:$0xff]
        %v5695 = vld [vmem:[#allocation19 + $0xde0] sm:$0xff]
        %v5696 = vld [vmem:[#allocation19 + $0xde8] sm:$0xff]
        %v5697 = vld [vmem:[#allocation19 + $0xdf0] sm:$0xff]
        %v5698 = vld [vmem:[#allocation19 + $0xdf8] sm:$0xff]
        %v5699 = vld [vmem:[#allocation19 + $0xe00] sm:$0xff]
        %v5700 = vld [vmem:[#allocation19 + $0xe08] sm:$0xff]
        %v5701 = vld [vmem:[#allocation19 + $0xe10] sm:$0xff]
        %v5702 = vld [vmem:[#allocation19 + $0xe18] sm:$0xff]
        %v5703 = vld [vmem:[#allocation19 + $0xe20] sm:$0xff]
        %v5704 = vld [vmem:[#allocation19 + $0xe28] sm:$0xff]
        %v5705 = vld [vmem:[#allocation19 + $0xe30] sm:$0xff]
        %v5706 = vld [vmem:[#allocation19 + $0xe38] sm:$0xff]
        %v5707 = vld [vmem:[#allocation19 + $0xe40] sm:$0xff]
        %v5708 = vld [vmem:[#allocation19 + $0xe48] sm:$0xff]
        %v5709 = vld [vmem:[#allocation19 + $0xe50] sm:$0xff]
        %v5710 = vld [vmem:[#allocation19 + $0xe58] sm:$0xff]
        %v5711 = vld [vmem:[#allocation19 + $0xe60] sm:$0xff]
        %v5712 = vld [vmem:[#allocation19 + $0xe68] sm:$0xff]
        %v5713 = vld [vmem:[#allocation19 + $0xe70] sm:$0xff]
        %v5714 = vld [vmem:[#allocation19 + $0xe78] sm:$0xff]
        %v5715 = vld [vmem:[#allocation19 + $0xe80] sm:$0xff]
        %v5716 = vld [vmem:[#allocation19 + $0xe88] sm:$0xff]
        %v5717 = vld [vmem:[#allocation19 + $0xe90] sm:$0xff]
        %v5718 = vld [vmem:[#allocation19 + $0xe98] sm:$0xff]
        %v5719 = vld [vmem:[#allocation19 + $0xea0] sm:$0xff]
        %v5720 = vld [vmem:[#allocation19 + $0xea8] sm:$0xff]
        %v5721 = vld [vmem:[#allocation19 + $0xeb0] sm:$0xff]
        %v5722 = vld [vmem:[#allocation19 + $0xeb8] sm:$0xff]
        %v5723 = vld [vmem:[#allocation19 + $0xec0] sm:$0xff]
        %v5724 = vld [vmem:[#allocation19 + $0xec8] sm:$0xff]
        %v5725 = vld [vmem:[#allocation19 + $0xed0] sm:$0xff]
        %v5726 = vld [vmem:[#allocation19 + $0xed8] sm:$0xff]
        %v5727 = vld [vmem:[#allocation19 + $0xee0] sm:$0xff]
        %v5728 = vld [vmem:[#allocation19 + $0xee8] sm:$0xff]
        %v5729 = vld [vmem:[#allocation19 + $0xef0] sm:$0xff]
        %v5730 = vld [vmem:[#allocation19 + $0xef8] sm:$0xff]
        %v5731 = vld [vmem:[#allocation19 + $0xf00] sm:$0xff]
        %v5732 = vld [vmem:[#allocation19 + $0xf08] sm:$0xff]
        %v5733 = vld [vmem:[#allocation19 + $0xf10] sm:$0xff]
        %v5734 = vld [vmem:[#allocation19 + $0xf18] sm:$0xff]
        %v5735 = vld [vmem:[#allocation19 + $0xf20] sm:$0xff]
        %v5736 = vld [vmem:[#allocation19 + $0xf28] sm:$0xff]
        %v5737 = vld [vmem:[#allocation19 + $0xf30] sm:$0xff]
        %v5738 = vld [vmem:[#allocation19 + $0xf38] sm:$0xff]
        %v5739 = vld [vmem:[#allocation19 + $0xf40] sm:$0xff]
        %v5740 = vld [vmem:[#allocation19 + $0xf48] sm:$0xff]
        %v5741 = vld [vmem:[#allocation19 + $0xf50] sm:$0xff]
        %v5742 = vld [vmem:[#allocation19 + $0xf58] sm:$0xff]
        %v5743 = vld [vmem:[#allocation19 + $0xf60] sm:$0xff]
        %v5744 = vld [vmem:[#allocation19 + $0xf68] sm:$0xff]
        %v5745 = vld [vmem:[#allocation19 + $0xf70] sm:$0xff]
        %v5746 = vld [vmem:[#allocation19 + $0xf78] sm:$0xff]
        %v5747 = vld [vmem:[#allocation19 + $0xf80] sm:$0xff]
        %v5748 = vld [vmem:[#allocation19 + $0xf88] sm:$0xff]
        %v5749 = vld [vmem:[#allocation19 + $0xf90] sm:$0xff]
        %v5750 = vld [vmem:[#allocation19 + $0xf98] sm:$0xff]
        %v5751 = vld [vmem:[#allocation19 + $0xfa0] sm:$0xff]
        %v5752 = vld [vmem:[#allocation19 + $0xfa8] sm:$0xff]
        %v5753 = vld [vmem:[#allocation19 + $0xfb0] sm:$0xff]
        %v5754 = vld [vmem:[#allocation19 + $0xfb8] sm:$0xff]
        %v5755 = vld [vmem:[#allocation19 + $0xfc0] sm:$0xff]
        %v5756 = vld [vmem:[#allocation19 + $0xfc8] sm:$0xff]
        %v5757 = vld [vmem:[#allocation19 + $0xfd0] sm:$0xff]
        %v5758 = vld [vmem:[#allocation19 + $0xfd8] sm:$0xff]
        %v5759 = vld [vmem:[#allocation19 + $0xfe0] sm:$0xff]
        %v5760 = vld [vmem:[#allocation19 + $0xfe8] sm:$0xff]
        %v5761 = vld [vmem:[#allocation19 + $0xff0] sm:$0xff]
        %v5762 = vld [vmem:[#allocation19 + $0xff8] sm:$0xff]
        %5763 = vmatprep.subr.mxu0 0.0
        %5764 = vmatpush1.msra.mxu0 %v5187
        %5765 = vmatprep.subr.mxu0 0.0
        %5766 = vmatpush1.msra.mxu0 %v5188
        %5767 = vmatprep.subr.mxu0 0.0
        %5768 = vmatpush1.msra.mxu0 %v5189
        %5769 = vmatprep.subr.mxu0 0.0
        %5770 = vmatpush1.msra.mxu0 %v5190
        %5771 = vmatprep.subr.mxu0 0.0
        %5772 = vmatpush1.msra.mxu0 %v5191
        %5773 = vmatprep.subr.mxu0 0.0
        %5774 = vmatpush1.msra.mxu0 %v5192
        %5775 = vmatprep.subr.mxu0 0.0
        %5776 = vmatpush1.msra.mxu0 %v5193
        %5777 = vmatprep.subr.mxu0 0.0
        %5778 = vmatpush1.msra.mxu0 %v5194
        %5779 = vmatprep.subr.mxu0 0.0
        %5780 = vmatpush1.msra.mxu0 %v5195
        %5781 = vmatprep.subr.mxu0 0.0
        %5782 = vmatpush1.msra.mxu0 %v5196
        %5783 = vmatprep.subr.mxu0 0.0
        %5784 = vmatpush1.msra.mxu0 %v5197
        %5785 = vmatprep.subr.mxu0 0.0
        %5786 = vmatpush1.msra.mxu0 %v5198
        %5787 = vmatprep.subr.mxu0 0.0
        %5788 = vmatpush1.msra.mxu0 %v5199
        %5789 = vmatprep.subr.mxu0 0.0
        %5790 = vmatpush1.msra.mxu0 %v5200
        %5791 = vmatprep.subr.mxu0 0.0
        %5792 = vmatpush1.msra.mxu0 %v5201
        %5793 = vmatprep.subr.mxu0 0.0
        %5794 = vmatpush1.msra.mxu0 %v5202
        %5795 = vmatprep.subr.mxu0 0.0
        %5796 = vmatpush1.msra.mxu0 %v5203
        %5797 = vmatprep.subr.mxu0 0.0
        %5798 = vmatpush1.msra.mxu0 %v5204
        %5799 = vmatprep.subr.mxu0 0.0
        %5800 = vmatpush1.msra.mxu0 %v5205
        %5801 = vmatprep.subr.mxu0 0.0
        %5802 = vmatpush1.msra.mxu0 %v5206
        %5803 = vmatprep.subr.mxu0 0.0
        %5804 = vmatpush1.msra.mxu0 %v5207
        %5805 = vmatprep.subr.mxu0 0.0
        %5806 = vmatpush1.msra.mxu0 %v5208
        %5807 = vmatprep.subr.mxu0 0.0
        %5808 = vmatpush1.msra.mxu0 %v5209
        %5809 = vmatprep.subr.mxu0 0.0
        %5810 = vmatpush1.msra.mxu0 %v5210
        %5811 = vmatprep.subr.mxu0 0.0
        %5812 = vmatpush1.msra.mxu0 %v5211
        %5813 = vmatprep.subr.mxu0 0.0
        %5814 = vmatpush1.msra.mxu0 %v5212
        %5815 = vmatprep.subr.mxu0 0.0
        %5816 = vmatpush1.msra.mxu0 %v5213
        %5817 = vmatprep.subr.mxu0 0.0
        %5818 = vmatpush1.msra.mxu0 %v5214
        %5819 = vmatprep.subr.mxu0 0.0
        %5820 = vmatpush1.msra.mxu0 %v5215
        %5821 = vmatprep.subr.mxu0 0.0
        %5822 = vmatpush1.msra.mxu0 %v5216
        %5823 = vmatprep.subr.mxu0 0.0
        %5824 = vmatpush1.msra.mxu0 %v5217
        %5825 = vmatprep.subr.mxu0 0.0
        %5826 = vmatpush1.msra.mxu0 %v5218
        %5827 = vmatprep.mubr.f32.mxu0 %v5252
        %5828 = vmatmul.mubr.f32.gmra.mrb[0].mxu0 %v5251
        %v5829 = vpop.f32.mrb[0].mxu0
        %v5830 = vadd.f32 0.0, %v5829
        %v5831 = vpop.f32.mrb[0].mxu0
        %5832 = vmatprep.mubr.f32.mxu0 %v5256
        %5833 = vmatmul.mubr.f32.gmra.mrb[0].mxu0 %v5255
        %v5834 = vpop.f32.mrb[0].mxu0
        %v5835 = vadd.f32 0.0, %v5834
        %v5836 = vpop.f32.mrb[0].mxu0
        %5837 = vmatprep.mubr.f32.mxu0 %v5260
        %5838 = vmatmul.mubr.f32.gmra.mrb[0].mxu0 %v5259
        %v5839 = vpop.f32.mrb[0].mxu0
        %v5840 = vadd.f32 0.0, %v5839
        %v5841 = vpop.f32.mrb[0].mxu0
        %5842 = vmatprep.mubr.f32.mxu0 %v5264
        %5843 = vmatmul.mubr.f32.gmra.mrb[0].mxu0 %v5263
        %v5844 = vpop.f32.mrb[0].mxu0
        %v5845 = vadd.f32 0.0, %v5844
        %v5846 = vpop.f32.mrb[0].mxu0
        %5847 = vmatprep.mubr.f32.mxu0 %v5268
        %5848 = vmatmul.mubr.f32.gmra.mrb[0].mxu0 %v5267
        %v5849 = vpop.f32.mrb[0].mxu0
        %v5850 = vadd.f32 0.0, %v5849
        %v5851 = vpop.f32.mrb[0].mxu0
        %5852 = vmatprep.mubr.f32.mxu0 %v5272
        %5853 = vmatmul.mubr.f32.gmra.mrb[0].mxu0 %v5271
        %v5854 = vpop.f32.mrb[0].mxu0
        %v5855 = vadd.f32 0.0, %v5854
        %v5856 = vpop.f32.mrb[0].mxu0
        %5857 = vmatprep.mubr.f32.mxu0 %v5276
        %5858 = vmatmul.mubr.f32.gmra.mrb[0].mxu0 %v5275
        %v5859 = vpop.f32.mrb[0].mxu0
        %v5860 = vadd.f32 0.0, %v5859
        %v5861 = vpop.f32.mrb[0].mxu0
        %5862 = vmatprep.mubr.f32.mxu0 %v5280
        %5863 = vmatmul.mubr.f32.gmra.mrb[0].mxu0 %v5279
        %v5864 = vpop.f32.mrb[0].mxu0
        %v5865 = vadd.f32 0.0, %v5864
        %v5866 = vpop.f32.mrb[0].mxu0
        %5867 = vmatprep.mubr.f32.mxu0 %v5284
        %5868 = vmatmul.mubr.f32.gmra.mrb[0].mxu0 %v5283
        %v5869 = vpop.f32.mrb[0].mxu0
        %v5870 = vadd.f32 0.0, %v5869
        %v5871 = vpop.f32.mrb[0].mxu0
        %5872 = vmatprep.mubr.f32.mxu0 %v5288
        %5873 = vmatmul.mubr.f32.gmra.mrb[0].mxu0 %v5287
        %v5874 = vpop.f32.mrb[0].mxu0
        %v5875 = vadd.f32 0.0, %v5874
        %v5876 = vpop.f32.mrb[0].mxu0
        %5877 = vmatprep.mubr.f32.mxu0 %v5292
        %5878 = vmatmul.mubr.f32.gmra.mrb[0].mxu0 %v5291
        %v5879 = vpop.f32.mrb[0].mxu0
        %v5880 = vadd.f32 0.0, %v5879
        %v5881 = vpop.f32.mrb[0].mxu0
        %5882 = vmatprep.mubr.f32.mxu0 %v5296
        %5883 = vmatmul.mubr.f32.gmra.mrb[0].mxu0 %v5295
        %v5884 = vpop.f32.mrb[0].mxu0
        %v5885 = vadd.f32 0.0, %v5884
        %v5886 = vpop.f32.mrb[0].mxu0
        %5887 = vmatprep.mubr.f32.mxu0 %v5300
        %5888 = vmatmul.mubr.f32.gmra.mrb[0].mxu0 %v5299
        %v5889 = vpop.f32.mrb[0].mxu0
        %v5890 = vadd.f32 0.0, %v5889
        %v5891 = vpop.f32.mrb[0].mxu0
        %5892 = vmatprep.mubr.f32.mxu0 %v5304
        %5893 = vmatmul.mubr.f32.gmra.mrb[0].mxu0 %v5303
        %v5894 = vpop.f32.mrb[0].mxu0
        %v5895 = vadd.f32 0.0, %v5894
        %v5896 = vpop.f32.mrb[0].mxu0
        %5897 = vmatprep.mubr.f32.mxu0 %v5308
        %5898 = vmatmul.mubr.f32.gmra.mrb[0].mxu0 %v5307
        %v5899 = vpop.f32.mrb[0].mxu0
        %v5900 = vadd.f32 0.0, %v5899
        %v5901 = vpop.f32.mrb[0].mxu0
        %5902 = vmatprep.mubr.f32.mxu0 %v5312
        %5903 = vmatmul.mubr.f32.gmra.mrb[0].mxu0 %v5311
        %v5904 = vpop.f32.mrb[0].mxu0
        %v5905 = vadd.f32 0.0, %v5904
        %v5906 = vpop.f32.mrb[0].mxu0
        %5907 = vmatprep.mubr.f32.mxu0 %v5316
        %5908 = vmatmul.mubr.f32.gmra.mrb[0].mxu0 %v5315
        %v5909 = vpop.f32.mrb[0].mxu0
        %v5910 = vadd.f32 0.0, %v5909
        %v5911 = vpop.f32.mrb[0].mxu0
        %5912 = vmatprep.mubr.f32.mxu0 %v5320
        %5913 = vmatmul.mubr.f32.gmra.mrb[0].mxu0 %v5319
        %v5914 = vpop.f32.mrb[0].mxu0
        %v5915 = vadd.f32 0.0, %v5914
        %v5916 = vpop.f32.mrb[0].mxu0
        %5917 = vmatprep.mubr.f32.mxu0 %v5324
        %5918 = vmatmul.mubr.f32.gmra.mrb[0].mxu0 %v5323
        %v5919 = vpop.f32.mrb[0].mxu0
        %v5920 = vadd.f32 0.0, %v5919
        %v5921 = vpop.f32.mrb[0].mxu0
        %5922 = vmatprep.mubr.f32.mxu0 %v5328
        %5923 = vmatmul.mubr.f32.gmra.mrb[0].mxu0 %v5327
        %v5924 = vpop.f32.mrb[0].mxu0
        %v5925 = vadd.f32 0.0, %v5924
        %v5926 = vpop.f32.mrb[0].mxu0
        %5927 = vmatprep.mubr.f32.mxu0 %v5332
        %5928 = vmatmul.mubr.f32.gmra.mrb[0].mxu0 %v5331
        %v5929 = vpop.f32.mrb[0].mxu0
        %v5930 = vadd.f32 0.0, %v5929
        %v5931 = vpop.f32.mrb[0].mxu0
        %5932 = vmatprep.mubr.f32.mxu0 %v5336
        %5933 = vmatmul.mubr.f32.gmra.mrb[0].mxu0 %v5335
        %v5934 = vpop.f32.mrb[0].mxu0
        %v5935 = vadd.f32 0.0, %v5934
        %v5936 = vpop.f32.mrb[0].mxu0
        %5937 = vmatprep.mubr.f32.mxu0 %v5340
        %5938 = vmatmul.mubr.f32.gmra.mrb[0].mxu0 %v5339
        %v5939 = vpop.f32.mrb[0].mxu0
        %v5940 = vadd.f32 0.0, %v5939
        %v5941 = vpop.f32.mrb[0].mxu0
        %5942 = vmatprep.mubr.f32.mxu0 %v5344
        %5943 = vmatmul.mubr.f32.gmra.mrb[0].mxu0 %v5343
        %v5944 = vpop.f32.mrb[0].mxu0
        %v5945 = vadd.f32 0.0, %v5944
        %v5946 = vpop.f32.mrb[0].mxu0
        %5947 = vmatprep.mubr.f32.mxu0 %v5348
        %5948 = vmatmul.mubr.f32.gmra.mrb[0].mxu0 %v5347
        %v5949 = vpop.f32.mrb[0].mxu0
        %v5950 = vadd.f32 0.0, %v5949
        %v5951 = vpop.f32.mrb[0].mxu0
        %5952 = vmatprep.mubr.f32.mxu0 %v5352
        %5953 = vmatmul.mubr.f32.gmra.mrb[0].mxu0 %v5351
        %v5954 = vpop.f32.mrb[0].mxu0
        %v5955 = vadd.f32 0.0, %v5954
        %v5956 = vpop.f32.mrb[0].mxu0
        %5957 = vmatprep.mubr.f32.mxu0 %v5356
        %5958 = vmatmul.mubr.f32.gmra.mrb[0].mxu0 %v5355
        %v5959 = vpop.f32.mrb[0].mxu0
        %v5960 = vadd.f32 0.0, %v5959
        %v5961 = vpop.f32.mrb[0].mxu0
        %5962 = vmatprep.mubr.f32.mxu0 %v5360
        %5963 = vmatmul.mubr.f32.gmra.mrb[0].mxu0 %v5359
        %v5964 = vpop.f32.mrb[0].mxu0
        %v5965 = vadd.f32 0.0, %v5964
        %v5966 = vpop.f32.mrb[0].mxu0
        %5967 = vmatprep.mubr.f32.mxu0 %v5364
        %5968 = vmatmul.mubr.f32.gmra.mrb[0].mxu0 %v5363
        %v5969 = vpop.f32.mrb[0].mxu0
        %v5970 = vadd.f32 0.0, %v5969
        %v5971 = vpop.f32.mrb[0].mxu0
        %5972 = vmatprep.mubr.f32.mxu0 %v5368
        %5973 = vmatmul.mubr.f32.gmra.mrb[0].mxu0 %v5367
        %v5974 = vpop.f32.mrb[0].mxu0
        %v5975 = vadd.f32 0.0, %v5974
        %v5976 = vpop.f32.mrb[0].mxu0
        %5977 = vmatprep.mubr.f32.mxu0 %v5372
        %5978 = vmatmul.mubr.f32.gmra.mrb[0].mxu0 %v5371
        %v5979 = vpop.f32.mrb[0].mxu0
        %v5980 = vadd.f32 0.0, %v5979
        %v5981 = vpop.f32.mrb[0].mxu0
        %5982 = vmatprep.mubr.f32.mxu0 %v5376
        %5983 = vmatmul.mubr.f32.gmra.mrb[0].mxu0 %v5375
        %v5984 = vpop.f32.mrb[0].mxu0
        %v5985 = vadd.f32 0.0, %v5984
        %v5986 = vpop.f32.mrb[0].mxu0
        %5987 = vmatprep.mubr.f32.mxu0 %v5380
        %5988 = vmatmul.mubr.f32.gmra.mrb[0].mxu0 %v5379
        %v5989 = vpop.f32.mrb[0].mxu0
        %v5990 = vadd.f32 0.0, %v5989
        %v5991 = vpop.f32.mrb[0].mxu0
        %5992 = vmatprep.mubr.f32.mxu0 %v5384
        %5993 = vmatmul.mubr.f32.gmra.mrb[0].mxu0 %v5383
        %v5994 = vpop.f32.mrb[0].mxu0
        %v5995 = vadd.f32 0.0, %v5994
        %v5996 = vpop.f32.mrb[0].mxu0
        %5997 = vmatprep.mubr.f32.mxu0 %v5388
        %5998 = vmatmul.mubr.f32.gmra.mrb[0].mxu0 %v5387
        %v5999 = vpop.f32.mrb[0].mxu0
        %v6000 = vadd.f32 0.0, %v5999
        %v6001 = vpop.f32.mrb[0].mxu0
        %6002 = vmatprep.mubr.f32.mxu0 %v5392
        %6003 = vmatmul.mubr.f32.gmra.mrb[0].mxu0 %v5391
        %v6004 = vpop.f32.mrb[0].mxu0
        %v6005 = vadd.f32 0.0, %v6004
        %v6006 = vpop.f32.mrb[0].mxu0
        %6007 = vmatprep.mubr.f32.mxu0 %v5396
        %6008 = vmatmul.mubr.f32.gmra.mrb[0].mxu0 %v5395
        %v6009 = vpop.f32.mrb[0].mxu0
        %v6010 = vadd.f32 0.0, %v6009
        %v6011 = vpop.f32.mrb[0].mxu0
        %6012 = vmatprep.mubr.f32.mxu0 %v5400
        %6013 = vmatmul.mubr.f32.gmra.mrb[0].mxu0 %v5399
        %v6014 = vpop.f32.mrb[0].mxu0
        %v6015 = vadd.f32 0.0, %v6014
        %v6016 = vpop.f32.mrb[0].mxu0
        %6017 = vmatprep.mubr.f32.mxu0 %v5404
        %6018 = vmatmul.mubr.f32.gmra.mrb[0].mxu0 %v5403
        %v6019 = vpop.f32.mrb[0].mxu0
        %v6020 = vadd.f32 0.0, %v6019
        %v6021 = vpop.f32.mrb[0].mxu0
        %6022 = vmatprep.mubr.f32.mxu0 %v5408
        %6023 = vmatmul.mubr.f32.gmra.mrb[0].mxu0 %v5407
        %v6024 = vpop.f32.mrb[0].mxu0
        %v6025 = vadd.f32 0.0, %v6024
        %v6026 = vpop.f32.mrb[0].mxu0
        %6027 = vmatprep.mubr.f32.mxu0 %v5412
        %6028 = vmatmul.mubr.f32.gmra.mrb[0].mxu0 %v5411
        %v6029 = vpop.f32.mrb[0].mxu0
        %v6030 = vadd.f32 0.0, %v6029
        %v6031 = vpop.f32.mrb[0].mxu0
        %6032 = vmatprep.mubr.f32.mxu0 %v5416
        %6033 = vmatmul.mubr.f32.gmra.mrb[0].mxu0 %v5415
        %v6034 = vpop.f32.mrb[0].mxu0
        %v6035 = vadd.f32 0.0, %v6034
        %v6036 = vpop.f32.mrb[0].mxu0
        %6037 = vmatprep.mubr.f32.mxu0 %v5420
        %6038 = vmatmul.mubr.f32.gmra.mrb[0].mxu0 %v5419
        %v6039 = vpop.f32.mrb[0].mxu0
        %v6040 = vadd.f32 0.0, %v6039
        %v6041 = vpop.f32.mrb[0].mxu0
        %6042 = vmatprep.mubr.f32.mxu0 %v5424
        %6043 = vmatmul.mubr.f32.gmra.mrb[0].mxu0 %v5423
        %v6044 = vpop.f32.mrb[0].mxu0
        %v6045 = vadd.f32 0.0, %v6044
        %v6046 = vpop.f32.mrb[0].mxu0
        %6047 = vmatprep.mubr.f32.mxu0 %v5428
        %6048 = vmatmul.mubr.f32.gmra.mrb[0].mxu0 %v5427
        %v6049 = vpop.f32.mrb[0].mxu0
        %v6050 = vadd.f32 0.0, %v6049
        %v6051 = vpop.f32.mrb[0].mxu0
        %6052 = vmatprep.mubr.f32.mxu0 %v5432
        %6053 = vmatmul.mubr.f32.gmra.mrb[0].mxu0 %v5431
        %v6054 = vpop.f32.mrb[0].mxu0
        %v6055 = vadd.f32 0.0, %v6054
        %v6056 = vpop.f32.mrb[0].mxu0
        %6057 = vmatprep.mubr.f32.mxu0 %v5436
        %6058 = vmatmul.mubr.f32.gmra.mrb[0].mxu0 %v5435
        %v6059 = vpop.f32.mrb[0].mxu0
        %v6060 = vadd.f32 0.0, %v6059
        %v6061 = vpop.f32.mrb[0].mxu0
        %6062 = vmatprep.mubr.f32.mxu0 %v5440
        %6063 = vmatmul.mubr.f32.gmra.mrb[0].mxu0 %v5439
        %v6064 = vpop.f32.mrb[0].mxu0
        %v6065 = vadd.f32 0.0, %v6064
        %v6066 = vpop.f32.mrb[0].mxu0
        %6067 = vmatprep.mubr.f32.mxu0 %v5444
        %6068 = vmatmul.mubr.f32.gmra.mrb[0].mxu0 %v5443
        %v6069 = vpop.f32.mrb[0].mxu0
        %v6070 = vadd.f32 0.0, %v6069
        %v6071 = vpop.f32.mrb[0].mxu0
        %6072 = vmatprep.mubr.f32.mxu0 %v5448
        %6073 = vmatmul.mubr.f32.gmra.mrb[0].mxu0 %v5447
        %v6074 = vpop.f32.mrb[0].mxu0
        %v6075 = vadd.f32 0.0, %v6074
        %v6076 = vpop.f32.mrb[0].mxu0
        %6077 = vmatprep.mubr.f32.mxu0 %v5452
        %6078 = vmatmul.mubr.f32.gmra.mrb[0].mxu0 %v5451
        %v6079 = vpop.f32.mrb[0].mxu0
        %v6080 = vadd.f32 0.0, %v6079
        %v6081 = vpop.f32.mrb[0].mxu0
        %6082 = vmatprep.mubr.f32.mxu0 %v5456
        %6083 = vmatmul.mubr.f32.gmra.mrb[0].mxu0 %v5455
        %v6084 = vpop.f32.mrb[0].mxu0
        %v6085 = vadd.f32 0.0, %v6084
        %v6086 = vpop.f32.mrb[0].mxu0
        %6087 = vmatprep.mubr.f32.mxu0 %v5460
        %6088 = vmatmul.mubr.f32.gmra.mrb[0].mxu0 %v5459
        %v6089 = vpop.f32.mrb[0].mxu0
        %v6090 = vadd.f32 0.0, %v6089
        %v6091 = vpop.f32.mrb[0].mxu0
        %6092 = vmatprep.mubr.f32.mxu0 %v5464
        %6093 = vmatmul.mubr.f32.gmra.mrb[0].mxu0 %v5463
        %v6094 = vpop.f32.mrb[0].mxu0
        %v6095 = vadd.f32 0.0, %v6094
        %v6096 = vpop.f32.mrb[0].mxu0
        %6097 = vmatprep.mubr.f32.mxu0 %v5468
        %6098 = vmatmul.mubr.f32.gmra.mrb[0].mxu0 %v5467
        %v6099 = vpop.f32.mrb[0].mxu0
        %v6100 = vadd.f32 0.0, %v6099
        %v6101 = vpop.f32.mrb[0].mxu0
        %6102 = vmatprep.mubr.f32.mxu0 %v5472
        %6103 = vmatmul.mubr.f32.gmra.mrb[0].mxu0 %v5471
        %v6104 = vpop.f32.mrb[0].mxu0
        %v6105 = vadd.f32 0.0, %v6104
        %v6106 = vpop.f32.mrb[0].mxu0
        %6107 = vmatprep.mubr.f32.mxu0 %v5476
        %6108 = vmatmul.mubr.f32.gmra.mrb[0].mxu0 %v5475
        %v6109 = vpop.f32.mrb[0].mxu0
        %v6110 = vadd.f32 0.0, %v6109
        %v6111 = vpop.f32.mrb[0].mxu0
        %6112 = vmatprep.mubr.f32.mxu0 %v5480
        %6113 = vmatmul.mubr.f32.gmra.mrb[0].mxu0 %v5479
        %v6114 = vpop.f32.mrb[0].mxu0
        %v6115 = vadd.f32 0.0, %v6114
        %v6116 = vpop.f32.mrb[0].mxu0
        %6117 = vmatprep.mubr.f32.mxu0 %v5484
        %6118 = vmatmul.mubr.f32.gmra.mrb[0].mxu0 %v5483
        %v6119 = vpop.f32.mrb[0].mxu0
        %v6120 = vadd.f32 0.0, %v6119
        %v6121 = vpop.f32.mrb[0].mxu0
        %6122 = vmatprep.mubr.f32.mxu0 %v5488
        %6123 = vmatmul.mubr.f32.gmra.mrb[0].mxu0 %v5487
        %v6124 = vpop.f32.mrb[0].mxu0
        %v6125 = vadd.f32 0.0, %v6124
        %v6126 = vpop.f32.mrb[0].mxu0
        %6127 = vmatprep.mubr.f32.mxu0 %v5492
        %6128 = vmatmul.mubr.f32.gmra.mrb[0].mxu0 %v5491
        %v6129 = vpop.f32.mrb[0].mxu0
        %v6130 = vadd.f32 0.0, %v6129
        %v6131 = vpop.f32.mrb[0].mxu0
        %6132 = vmatprep.mubr.f32.mxu0 %v5496
        %6133 = vmatmul.mubr.f32.gmra.mrb[0].mxu0 %v5495
        %v6134 = vpop.f32.mrb[0].mxu0
        %v6135 = vadd.f32 0.0, %v6134
        %v6136 = vpop.f32.mrb[0].mxu0
        %6137 = vmatprep.mubr.f32.mxu0 %v5500
        %6138 = vmatmul.mubr.f32.gmra.mrb[0].mxu0 %v5499
        %v6139 = vpop.f32.mrb[0].mxu0
        %v6140 = vadd.f32 0.0, %v6139
        %v6141 = vpop.f32.mrb[0].mxu0
        %6142 = vmatprep.mubr.f32.mxu0 %v5504
        %6143 = vmatmul.mubr.f32.gmra.mrb[0].mxu0 %v5503
        %v6144 = vpop.f32.mrb[0].mxu0
        %v6145 = vadd.f32 0.0, %v6144
        %v6146 = vpop.f32.mrb[0].mxu0
        %6147 = vmatprep.mubr.f32.mxu0 %v5508
        %6148 = vmatmul.mubr.f32.gmra.mrb[0].mxu0 %v5507
        %v6149 = vpop.f32.mrb[0].mxu0
        %v6150 = vadd.f32 0.0, %v6149
        %v6151 = vpop.f32.mrb[0].mxu0
        %6152 = vmatprep.mubr.f32.mxu0 %v5512
        %6153 = vmatmul.mubr.f32.gmra.mrb[0].mxu0 %v5511
        %v6154 = vpop.f32.mrb[0].mxu0
        %v6155 = vadd.f32 0.0, %v6154
        %v6156 = vpop.f32.mrb[0].mxu0
        %6157 = vmatprep.mubr.f32.mxu0 %v5516
        %6158 = vmatmul.mubr.f32.gmra.mrb[0].mxu0 %v5515
        %v6159 = vpop.f32.mrb[0].mxu0
        %v6160 = vadd.f32 0.0, %v6159
        %v6161 = vpop.f32.mrb[0].mxu0
        %6162 = vmatprep.mubr.f32.mxu0 %v5520
        %6163 = vmatmul.mubr.f32.gmra.mrb[0].mxu0 %v5519
        %v6164 = vpop.f32.mrb[0].mxu0
        %v6165 = vadd.f32 0.0, %v6164
        %v6166 = vpop.f32.mrb[0].mxu0
        %6167 = vmatprep.mubr.f32.mxu0 %v5524
        %6168 = vmatmul.mubr.f32.gmra.mrb[0].mxu0 %v5523
        %v6169 = vpop.f32.mrb[0].mxu0
        %v6170 = vadd.f32 0.0, %v6169
        %v6171 = vpop.f32.mrb[0].mxu0
        %6172 = vmatprep.mubr.f32.mxu0 %v5528
        %6173 = vmatmul.mubr.f32.gmra.mrb[0].mxu0 %v5527
        %v6174 = vpop.f32.mrb[0].mxu0
        %v6175 = vadd.f32 0.0, %v6174
        %v6176 = vpop.f32.mrb[0].mxu0
        %6177 = vmatprep.mubr.f32.mxu0 %v5532
        %6178 = vmatmul.mubr.f32.gmra.mrb[0].mxu0 %v5531
        %v6179 = vpop.f32.mrb[0].mxu0
        %v6180 = vadd.f32 0.0, %v6179
        %v6181 = vpop.f32.mrb[0].mxu0
        %6182 = vmatprep.mubr.f32.mxu0 %v5536
        %6183 = vmatmul.mubr.f32.gmra.mrb[0].mxu0 %v5535
        %v6184 = vpop.f32.mrb[0].mxu0
        %v6185 = vadd.f32 0.0, %v6184
        %v6186 = vpop.f32.mrb[0].mxu0
        %6187 = vmatprep.mubr.f32.mxu0 %v5540
        %6188 = vmatmul.mubr.f32.gmra.mrb[0].mxu0 %v5539
        %v6189 = vpop.f32.mrb[0].mxu0
        %v6190 = vadd.f32 0.0, %v6189
        %v6191 = vpop.f32.mrb[0].mxu0
        %6192 = vmatprep.mubr.f32.mxu0 %v5544
        %6193 = vmatmul.mubr.f32.gmra.mrb[0].mxu0 %v5543
        %v6194 = vpop.f32.mrb[0].mxu0
        %v6195 = vadd.f32 0.0, %v6194
        %v6196 = vpop.f32.mrb[0].mxu0
        %6197 = vmatprep.mubr.f32.mxu0 %v5548
        %6198 = vmatmul.mubr.f32.gmra.mrb[0].mxu0 %v5547
        %v6199 = vpop.f32.mrb[0].mxu0
        %v6200 = vadd.f32 0.0, %v6199
        %v6201 = vpop.f32.mrb[0].mxu0
        %6202 = vmatprep.mubr.f32.mxu0 %v5552
        %6203 = vmatmul.mubr.f32.gmra.mrb[0].mxu0 %v5551
        %v6204 = vpop.f32.mrb[0].mxu0
        %v6205 = vadd.f32 0.0, %v6204
        %v6206 = vpop.f32.mrb[0].mxu0
        %6207 = vmatprep.mubr.f32.mxu0 %v5556
        %6208 = vmatmul.mubr.f32.gmra.mrb[0].mxu0 %v5555
        %v6209 = vpop.f32.mrb[0].mxu0
        %v6210 = vadd.f32 0.0, %v6209
        %v6211 = vpop.f32.mrb[0].mxu0
        %6212 = vmatprep.mubr.f32.mxu0 %v5560
        %6213 = vmatmul.mubr.f32.gmra.mrb[0].mxu0 %v5559
        %v6214 = vpop.f32.mrb[0].mxu0
        %v6215 = vadd.f32 0.0, %v6214
        %v6216 = vpop.f32.mrb[0].mxu0
        %6217 = vmatprep.mubr.f32.mxu0 %v5564
        %6218 = vmatmul.mubr.f32.gmra.mrb[0].mxu0 %v5563
        %v6219 = vpop.f32.mrb[0].mxu0
        %v6220 = vadd.f32 0.0, %v6219
        %v6221 = vpop.f32.mrb[0].mxu0
        %6222 = vmatprep.mubr.f32.mxu0 %v5568
        %6223 = vmatmul.mubr.f32.gmra.mrb[0].mxu0 %v5567
        %v6224 = vpop.f32.mrb[0].mxu0
        %v6225 = vadd.f32 0.0, %v6224
        %v6226 = vpop.f32.mrb[0].mxu0
        %6227 = vmatprep.mubr.f32.mxu0 %v5572
        %6228 = vmatmul.mubr.f32.gmra.mrb[0].mxu0 %v5571
        %v6229 = vpop.f32.mrb[0].mxu0
        %v6230 = vadd.f32 0.0, %v6229
        %v6231 = vpop.f32.mrb[0].mxu0
        %6232 = vmatprep.mubr.f32.mxu0 %v5576
        %6233 = vmatmul.mubr.f32.gmra.mrb[0].mxu0 %v5575
        %v6234 = vpop.f32.mrb[0].mxu0
        %v6235 = vadd.f32 0.0, %v6234
        %v6236 = vpop.f32.mrb[0].mxu0
        %6237 = vmatprep.mubr.f32.mxu0 %v5580
        %6238 = vmatmul.mubr.f32.gmra.mrb[0].mxu0 %v5579
        %v6239 = vpop.f32.mrb[0].mxu0
        %v6240 = vadd.f32 0.0, %v6239
        %v6241 = vpop.f32.mrb[0].mxu0
        %6242 = vmatprep.mubr.f32.mxu0 %v5584
        %6243 = vmatmul.mubr.f32.gmra.mrb[0].mxu0 %v5583
        %v6244 = vpop.f32.mrb[0].mxu0
        %v6245 = vadd.f32 0.0, %v6244
        %v6246 = vpop.f32.mrb[0].mxu0
        %6247 = vmatprep.mubr.f32.mxu0 %v5588
        %6248 = vmatmul.mubr.f32.gmra.mrb[0].mxu0 %v5587
        %v6249 = vpop.f32.mrb[0].mxu0
        %v6250 = vadd.f32 0.0, %v6249
        %v6251 = vpop.f32.mrb[0].mxu0
        %6252 = vmatprep.mubr.f32.mxu0 %v5592
        %6253 = vmatmul.mubr.f32.gmra.mrb[0].mxu0 %v5591
        %v6254 = vpop.f32.mrb[0].mxu0
        %v6255 = vadd.f32 0.0, %v6254
        %v6256 = vpop.f32.mrb[0].mxu0
        %6257 = vmatprep.mubr.f32.mxu0 %v5596
        %6258 = vmatmul.mubr.f32.gmra.mrb[0].mxu0 %v5595
        %v6259 = vpop.f32.mrb[0].mxu0
        %v6260 = vadd.f32 0.0, %v6259
        %v6261 = vpop.f32.mrb[0].mxu0
        %6262 = vmatprep.mubr.f32.mxu0 %v5600
        %6263 = vmatmul.mubr.f32.gmra.mrb[0].mxu0 %v5599
        %v6264 = vpop.f32.mrb[0].mxu0
        %v6265 = vadd.f32 0.0, %v6264
        %v6266 = vpop.f32.mrb[0].mxu0
        %6267 = vmatprep.mubr.f32.mxu0 %v5604
        %6268 = vmatmul.mubr.f32.gmra.mrb[0].mxu0 %v5603
        %v6269 = vpop.f32.mrb[0].mxu0
        %v6270 = vadd.f32 0.0, %v6269
        %v6271 = vpop.f32.mrb[0].mxu0
        %6272 = vmatprep.mubr.f32.mxu0 %v5608
        %6273 = vmatmul.mubr.f32.gmra.mrb[0].mxu0 %v5607
        %v6274 = vpop.f32.mrb[0].mxu0
        %v6275 = vadd.f32 0.0, %v6274
        %v6276 = vpop.f32.mrb[0].mxu0
        %6277 = vmatprep.mubr.f32.mxu0 %v5612
        %6278 = vmatmul.mubr.f32.gmra.mrb[0].mxu0 %v5611
        %v6279 = vpop.f32.mrb[0].mxu0
        %v6280 = vadd.f32 0.0, %v6279
        %v6281 = vpop.f32.mrb[0].mxu0
        %6282 = vmatprep.mubr.f32.mxu0 %v5616
        %6283 = vmatmul.mubr.f32.gmra.mrb[0].mxu0 %v5615
        %v6284 = vpop.f32.mrb[0].mxu0
        %v6285 = vadd.f32 0.0, %v6284
        %v6286 = vpop.f32.mrb[0].mxu0
        %6287 = vmatprep.mubr.f32.mxu0 %v5620
        %6288 = vmatmul.mubr.f32.gmra.mrb[0].mxu0 %v5619
        %v6289 = vpop.f32.mrb[0].mxu0
        %v6290 = vadd.f32 0.0, %v6289
        %v6291 = vpop.f32.mrb[0].mxu0
        %6292 = vmatprep.mubr.f32.mxu0 %v5624
        %6293 = vmatmul.mubr.f32.gmra.mrb[0].mxu0 %v5623
        %v6294 = vpop.f32.mrb[0].mxu0
        %v6295 = vadd.f32 0.0, %v6294
        %v6296 = vpop.f32.mrb[0].mxu0
        %6297 = vmatprep.mubr.f32.mxu0 %v5628
        %6298 = vmatmul.mubr.f32.gmra.mrb[0].mxu0 %v5627
        %v6299 = vpop.f32.mrb[0].mxu0
        %v6300 = vadd.f32 0.0, %v6299
        %v6301 = vpop.f32.mrb[0].mxu0
        %6302 = vmatprep.mubr.f32.mxu0 %v5632
        %6303 = vmatmul.mubr.f32.gmra.mrb[0].mxu0 %v5631
        %v6304 = vpop.f32.mrb[0].mxu0
        %v6305 = vadd.f32 0.0, %v6304
        %v6306 = vpop.f32.mrb[0].mxu0
        %6307 = vmatprep.mubr.f32.mxu0 %v5636
        %6308 = vmatmul.mubr.f32.gmra.mrb[0].mxu0 %v5635
        %v6309 = vpop.f32.mrb[0].mxu0
        %v6310 = vadd.f32 0.0, %v6309
        %v6311 = vpop.f32.mrb[0].mxu0
        %6312 = vmatprep.mubr.f32.mxu0 %v5640
        %6313 = vmatmul.mubr.f32.gmra.mrb[0].mxu0 %v5639
        %v6314 = vpop.f32.mrb[0].mxu0
        %v6315 = vadd.f32 0.0, %v6314
        %v6316 = vpop.f32.mrb[0].mxu0
        %6317 = vmatprep.mubr.f32.mxu0 %v5644
        %6318 = vmatmul.mubr.f32.gmra.mrb[0].mxu0 %v5643
        %v6319 = vpop.f32.mrb[0].mxu0
        %v6320 = vadd.f32 0.0, %v6319
        %v6321 = vpop.f32.mrb[0].mxu0
        %6322 = vmatprep.mubr.f32.mxu0 %v5648
        %6323 = vmatmul.mubr.f32.gmra.mrb[0].mxu0 %v5647
        %v6324 = vpop.f32.mrb[0].mxu0
        %v6325 = vadd.f32 0.0, %v6324
        %v6326 = vpop.f32.mrb[0].mxu0
        %6327 = vmatprep.mubr.f32.mxu0 %v5652
        %6328 = vmatmul.mubr.f32.gmra.mrb[0].mxu0 %v5651
        %v6329 = vpop.f32.mrb[0].mxu0
        %v6330 = vadd.f32 0.0, %v6329
        %v6331 = vpop.f32.mrb[0].mxu0
        %6332 = vmatprep.mubr.f32.mxu0 %v5656
        %6333 = vmatmul.mubr.f32.gmra.mrb[0].mxu0 %v5655
        %v6334 = vpop.f32.mrb[0].mxu0
        %v6335 = vadd.f32 0.0, %v6334
        %v6336 = vpop.f32.mrb[0].mxu0
        %6337 = vmatprep.mubr.f32.mxu0 %v5660
        %6338 = vmatmul.mubr.f32.gmra.mrb[0].mxu0 %v5659
        %v6339 = vpop.f32.mrb[0].mxu0
        %v6340 = vadd.f32 0.0, %v6339
        %v6341 = vpop.f32.mrb[0].mxu0
        %6342 = vmatprep.mubr.f32.mxu0 %v5664
        %6343 = vmatmul.mubr.f32.gmra.mrb[0].mxu0 %v5663
        %v6344 = vpop.f32.mrb[0].mxu0
        %v6345 = vadd.f32 0.0, %v6344
        %v6346 = vpop.f32.mrb[0].mxu0
        %6347 = vmatprep.mubr.f32.mxu0 %v5668
        %6348 = vmatmul.mubr.f32.gmra.mrb[0].mxu0 %v5667
        %v6349 = vpop.f32.mrb[0].mxu0
        %v6350 = vadd.f32 0.0, %v6349
        %v6351 = vpop.f32.mrb[0].mxu0
        %6352 = vmatprep.mubr.f32.mxu0 %v5672
        %6353 = vmatmul.mubr.f32.gmra.mrb[0].mxu0 %v5671
        %v6354 = vpop.f32.mrb[0].mxu0
        %v6355 = vadd.f32 0.0, %v6354
        %v6356 = vpop.f32.mrb[0].mxu0
        %6357 = vmatprep.mubr.f32.mxu0 %v5676
        %6358 = vmatmul.mubr.f32.gmra.mrb[0].mxu0 %v5675
        %v6359 = vpop.f32.mrb[0].mxu0
        %v6360 = vadd.f32 0.0, %v6359
        %v6361 = vpop.f32.mrb[0].mxu0
        %6362 = vmatprep.mubr.f32.mxu0 %v5680
        %6363 = vmatmul.mubr.f32.gmra.mrb[0].mxu0 %v5679
        %v6364 = vpop.f32.mrb[0].mxu0
        %v6365 = vadd.f32 0.0, %v6364
        %v6366 = vpop.f32.mrb[0].mxu0
        %6367 = vmatprep.mubr.f32.mxu0 %v5684
        %6368 = vmatmul.mubr.f32.gmra.mrb[0].mxu0 %v5683
        %v6369 = vpop.f32.mrb[0].mxu0
        %v6370 = vadd.f32 0.0, %v6369
        %v6371 = vpop.f32.mrb[0].mxu0
        %6372 = vmatprep.mubr.f32.mxu0 %v5688
        %6373 = vmatmul.mubr.f32.gmra.mrb[0].mxu0 %v5687
        %v6374 = vpop.f32.mrb[0].mxu0
        %v6375 = vadd.f32 0.0, %v6374
        %v6376 = vpop.f32.mrb[0].mxu0
        %6377 = vmatprep.mubr.f32.mxu0 %v5692
        %6378 = vmatmul.mubr.f32.gmra.mrb[0].mxu0 %v5691
        %v6379 = vpop.f32.mrb[0].mxu0
        %v6380 = vadd.f32 0.0, %v6379
        %v6381 = vpop.f32.mrb[0].mxu0
        %6382 = vmatprep.mubr.f32.mxu0 %v5696
        %6383 = vmatmul.mubr.f32.gmra.mrb[0].mxu0 %v5695
        %v6384 = vpop.f32.mrb[0].mxu0
        %v6385 = vadd.f32 0.0, %v6384
        %v6386 = vpop.f32.mrb[0].mxu0
        %6387 = vmatprep.mubr.f32.mxu0 %v5700
        %6388 = vmatmul.mubr.f32.gmra.mrb[0].mxu0 %v5699
        %v6389 = vpop.f32.mrb[0].mxu0
        %v6390 = vadd.f32 0.0, %v6389
        %v6391 = vpop.f32.mrb[0].mxu0
        %6392 = vmatprep.mubr.f32.mxu0 %v5704
        %6393 = vmatmul.mubr.f32.gmra.mrb[0].mxu0 %v5703
        %v6394 = vpop.f32.mrb[0].mxu0
        %v6395 = vadd.f32 0.0, %v6394
        %v6396 = vpop.f32.mrb[0].mxu0
        %6397 = vmatprep.mubr.f32.mxu0 %v5708
        %6398 = vmatmul.mubr.f32.gmra.mrb[0].mxu0 %v5707
        %v6399 = vpop.f32.mrb[0].mxu0
        %v6400 = vadd.f32 0.0, %v6399
        %v6401 = vpop.f32.mrb[0].mxu0
        %6402 = vmatprep.mubr.f32.mxu0 %v5712
        %6403 = vmatmul.mubr.f32.gmra.mrb[0].mxu0 %v5711
        %v6404 = vpop.f32.mrb[0].mxu0
        %v6405 = vadd.f32 0.0, %v6404
        %v6406 = vpop.f32.mrb[0].mxu0
        %6407 = vmatprep.mubr.f32.mxu0 %v5716
        %6408 = vmatmul.mubr.f32.gmra.mrb[0].mxu0 %v5715
        %v6409 = vpop.f32.mrb[0].mxu0
        %v6410 = vadd.f32 0.0, %v6409
        %v6411 = vpop.f32.mrb[0].mxu0
        %6412 = vmatprep.mubr.f32.mxu0 %v5720
        %6413 = vmatmul.mubr.f32.gmra.mrb[0].mxu0 %v5719
        %v6414 = vpop.f32.mrb[0].mxu0
        %v6415 = vadd.f32 0.0, %v6414
        %v6416 = vpop.f32.mrb[0].mxu0
        %6417 = vmatprep.mubr.f32.mxu0 %v5724
        %6418 = vmatmul.mubr.f32.gmra.mrb[0].mxu0 %v5723
        %v6419 = vpop.f32.mrb[0].mxu0
        %v6420 = vadd.f32 0.0, %v6419
        %v6421 = vpop.f32.mrb[0].mxu0
        %6422 = vmatprep.mubr.f32.mxu0 %v5728
        %6423 = vmatmul.mubr.f32.gmra.mrb[0].mxu0 %v5727
        %v6424 = vpop.f32.mrb[0].mxu0
        %v6425 = vadd.f32 0.0, %v6424
        %v6426 = vpop.f32.mrb[0].mxu0
        %6427 = vmatprep.mubr.f32.mxu0 %v5732
        %6428 = vmatmul.mubr.f32.gmra.mrb[0].mxu0 %v5731
        %v6429 = vpop.f32.mrb[0].mxu0
        %v6430 = vadd.f32 0.0, %v6429
        %v6431 = vpop.f32.mrb[0].mxu0
        %6432 = vmatprep.mubr.f32.mxu0 %v5736
        %6433 = vmatmul.mubr.f32.gmra.mrb[0].mxu0 %v5735
        %v6434 = vpop.f32.mrb[0].mxu0
        %v6435 = vadd.f32 0.0, %v6434
        %v6436 = vpop.f32.mrb[0].mxu0
        %6437 = vmatprep.mubr.f32.mxu0 %v5740
        %6438 = vmatmul.mubr.f32.gmra.mrb[0].mxu0 %v5739
        %v6439 = vpop.f32.mrb[0].mxu0
        %v6440 = vadd.f32 0.0, %v6439
        %v6441 = vpop.f32.mrb[0].mxu0
        %6442 = vmatprep.mubr.f32.mxu0 %v5744
        %6443 = vmatmul.mubr.f32.gmra.mrb[0].mxu0 %v5743
        %v6444 = vpop.f32.mrb[0].mxu0
        %v6445 = vadd.f32 0.0, %v6444
        %v6446 = vpop.f32.mrb[0].mxu0
        %6447 = vmatprep.mubr.f32.mxu0 %v5748
        %6448 = vmatmul.mubr.f32.gmra.mrb[0].mxu0 %v5747
        %v6449 = vpop.f32.mrb[0].mxu0
        %v6450 = vadd.f32 0.0, %v6449
        %v6451 = vpop.f32.mrb[0].mxu0
        %6452 = vmatprep.mubr.f32.mxu0 %v5752
        %6453 = vmatmul.mubr.f32.gmra.mrb[0].mxu0 %v5751
        %v6454 = vpop.f32.mrb[0].mxu0
        %v6455 = vadd.f32 0.0, %v6454
        %v6456 = vpop.f32.mrb[0].mxu0
        %6457 = vmatprep.mubr.f32.mxu0 %v5756
        %6458 = vmatmul.mubr.f32.gmra.mrb[0].mxu0 %v5755
        %v6459 = vpop.f32.mrb[0].mxu0
        %v6460 = vadd.f32 0.0, %v6459
        %v6461 = vpop.f32.mrb[0].mxu0
        %6462 = vmatprep.mubr.f32.mxu0 %v5760
        %6463 = vmatmul.mubr.f32.gmra.mrb[0].mxu0 %v5759
        %v6464 = vpop.f32.mrb[0].mxu0
        %v6465 = vadd.f32 0.0, %v6464
        %v6466 = vpop.f32.mrb[0].mxu0
        %6467 = vdwg.mxu0
        %6468 = vmatprep.subr.mxu0 0.0
        %6469 = vmatpush1.msra.mxu0 %v5219
        %6470 = vmatprep.subr.mxu0 0.0
        %6471 = vmatpush1.msra.mxu0 %v5220
        %6472 = vmatprep.subr.mxu0 0.0
        %6473 = vmatpush1.msra.mxu0 %v5221
        %6474 = vmatprep.subr.mxu0 0.0
        %6475 = vmatpush1.msra.mxu0 %v5222
        %6476 = vmatprep.subr.mxu0 0.0
        %6477 = vmatpush1.msra.mxu0 %v5223
        %6478 = vmatprep.subr.mxu0 0.0
        %6479 = vmatpush1.msra.mxu0 %v5224
        %6480 = vmatprep.subr.mxu0 0.0
        %6481 = vmatpush1.msra.mxu0 %v5225
        %6482 = vmatprep.subr.mxu0 0.0
        %6483 = vmatpush1.msra.mxu0 %v5226
        %6484 = vmatprep.subr.mxu0 0.0
        %6485 = vmatpush1.msra.mxu0 %v5227
        %6486 = vmatprep.subr.mxu0 0.0
        %6487 = vmatpush1.msra.mxu0 %v5228
        %6488 = vmatprep.subr.mxu0 0.0
        %6489 = vmatpush1.msra.mxu0 %v5229
        %6490 = vmatprep.subr.mxu0 0.0
        %6491 = vmatpush1.msra.mxu0 %v5230
        %6492 = vmatprep.subr.mxu0 0.0
        %6493 = vmatpush1.msra.mxu0 %v5231
        %6494 = vmatprep.subr.mxu0 0.0
        %6495 = vmatpush1.msra.mxu0 %v5232
        %6496 = vmatprep.subr.mxu0 0.0
        %6497 = vmatpush1.msra.mxu0 %v5233
        %6498 = vmatprep.subr.mxu0 0.0
        %6499 = vmatpush1.msra.mxu0 %v5234
        %6500 = vmatprep.subr.mxu0 0.0
        %6501 = vmatpush1.msra.mxu0 %v5235
        %6502 = vmatprep.subr.mxu0 0.0
        %6503 = vmatpush1.msra.mxu0 %v5236
        %6504 = vmatprep.subr.mxu0 0.0
        %6505 = vmatpush1.msra.mxu0 %v5237
        %6506 = vmatprep.subr.mxu0 0.0
        %6507 = vmatpush1.msra.mxu0 %v5238
        %6508 = vmatprep.subr.mxu0 0.0
        %6509 = vmatpush1.msra.mxu0 %v5239
        %6510 = vmatprep.subr.mxu0 0.0
        %6511 = vmatpush1.msra.mxu0 %v5240
        %6512 = vmatprep.subr.mxu0 0.0
        %6513 = vmatpush1.msra.mxu0 %v5241
        %6514 = vmatprep.subr.mxu0 0.0
        %6515 = vmatpush1.msra.mxu0 %v5242
        %6516 = vmatprep.subr.mxu0 0.0
        %6517 = vmatpush1.msra.mxu0 %v5243
        %6518 = vmatprep.subr.mxu0 0.0
        %6519 = vmatpush1.msra.mxu0 %v5244
        %6520 = vmatprep.subr.mxu0 0.0
        %6521 = vmatpush1.msra.mxu0 %v5245
        %6522 = vmatprep.subr.mxu0 0.0
        %6523 = vmatpush1.msra.mxu0 %v5246
        %6524 = vmatprep.subr.mxu0 0.0
        %6525 = vmatpush1.msra.mxu0 %v5247
        %6526 = vmatprep.subr.mxu0 0.0
        %6527 = vmatpush1.msra.mxu0 %v5248
        %6528 = vmatprep.subr.mxu0 0.0
        %6529 = vmatpush1.msra.mxu0 %v5249
        %6530 = vmatprep.subr.mxu0 0.0
        %6531 = vmatpush1.msra.mxu0 %v5250
        %6532 = vmatprep.mubr.f32.mxu0 %v5254
        %6533 = vmatmul.mubr.f32.gmra.mrb[0].mxu0 %v5253
        %v6534 = vpop.f32.mrb[0].mxu0
        %v6535 = vadd.f32 %v5830, %v6534
        %v6536 = vpop.f32.mrb[0].mxu0
        %6537 = vmatprep.mubr.f32.mxu0 %v5258
        %6538 = vmatmul.mubr.f32.gmra.mrb[0].mxu0 %v5257
        %v6539 = vpop.f32.mrb[0].mxu0
        %v6540 = vadd.f32 %v5835, %v6539
        %v6541 = vpop.f32.mrb[0].mxu0
        %6542 = vmatprep.mubr.f32.mxu0 %v5262
        %6543 = vmatmul.mubr.f32.gmra.mrb[0].mxu0 %v5261
        %v6544 = vpop.f32.mrb[0].mxu0
        %v6545 = vadd.f32 %v5840, %v6544
        %v6546 = vpop.f32.mrb[0].mxu0
        %6547 = vmatprep.mubr.f32.mxu0 %v5266
        %6548 = vmatmul.mubr.f32.gmra.mrb[0].mxu0 %v5265
        %v6549 = vpop.f32.mrb[0].mxu0
        %v6550 = vadd.f32 %v5845, %v6549
        %v6551 = vpop.f32.mrb[0].mxu0
        %6552 = vmatprep.mubr.f32.mxu0 %v5270
        %6553 = vmatmul.mubr.f32.gmra.mrb[0].mxu0 %v5269
        %v6554 = vpop.f32.mrb[0].mxu0
        %v6555 = vadd.f32 %v5850, %v6554
        %v6556 = vpop.f32.mrb[0].mxu0
        %6557 = vmatprep.mubr.f32.mxu0 %v5274
        %6558 = vmatmul.mubr.f32.gmra.mrb[0].mxu0 %v5273
        %v6559 = vpop.f32.mrb[0].mxu0
        %v6560 = vadd.f32 %v5855, %v6559
        %v6561 = vpop.f32.mrb[0].mxu0
        %6562 = vmatprep.mubr.f32.mxu0 %v5278
        %6563 = vmatmul.mubr.f32.gmra.mrb[0].mxu0 %v5277
        %v6564 = vpop.f32.mrb[0].mxu0
        %v6565 = vadd.f32 %v5860, %v6564
        %v6566 = vpop.f32.mrb[0].mxu0
        %6567 = vmatprep.mubr.f32.mxu0 %v5282
        %6568 = vmatmul.mubr.f32.gmra.mrb[0].mxu0 %v5281
        %v6569 = vpop.f32.mrb[0].mxu0
        %v6570 = vadd.f32 %v5865, %v6569
        %v6571 = vpop.f32.mrb[0].mxu0
        %6572 = vmatprep.mubr.f32.mxu0 %v5286
        %6573 = vmatmul.mubr.f32.gmra.mrb[0].mxu0 %v5285
        %v6574 = vpop.f32.mrb[0].mxu0
        %v6575 = vadd.f32 %v5870, %v6574
        %v6576 = vpop.f32.mrb[0].mxu0
        %6577 = vmatprep.mubr.f32.mxu0 %v5290
        %6578 = vmatmul.mubr.f32.gmra.mrb[0].mxu0 %v5289
        %v6579 = vpop.f32.mrb[0].mxu0
        %v6580 = vadd.f32 %v5875, %v6579
        %v6581 = vpop.f32.mrb[0].mxu0
        %6582 = vmatprep.mubr.f32.mxu0 %v5294
        %6583 = vmatmul.mubr.f32.gmra.mrb[0].mxu0 %v5293
        %v6584 = vpop.f32.mrb[0].mxu0
        %v6585 = vadd.f32 %v5880, %v6584
        %v6586 = vpop.f32.mrb[0].mxu0
        %6587 = vmatprep.mubr.f32.mxu0 %v5298
        %6588 = vmatmul.mubr.f32.gmra.mrb[0].mxu0 %v5297
        %v6589 = vpop.f32.mrb[0].mxu0
        %v6590 = vadd.f32 %v5885, %v6589
        %v6591 = vpop.f32.mrb[0].mxu0
        %6592 = vmatprep.mubr.f32.mxu0 %v5302
        %6593 = vmatmul.mubr.f32.gmra.mrb[0].mxu0 %v5301
        %v6594 = vpop.f32.mrb[0].mxu0
        %v6595 = vadd.f32 %v5890, %v6594
        %v6596 = vpop.f32.mrb[0].mxu0
        %6597 = vmatprep.mubr.f32.mxu0 %v5306
        %6598 = vmatmul.mubr.f32.gmra.mrb[0].mxu0 %v5305
        %v6599 = vpop.f32.mrb[0].mxu0
        %v6600 = vadd.f32 %v5895, %v6599
        %v6601 = vpop.f32.mrb[0].mxu0
        %6602 = vmatprep.mubr.f32.mxu0 %v5310
        %6603 = vmatmul.mubr.f32.gmra.mrb[0].mxu0 %v5309
        %v6604 = vpop.f32.mrb[0].mxu0
        %v6605 = vadd.f32 %v5900, %v6604
        %v6606 = vpop.f32.mrb[0].mxu0
        %6607 = vmatprep.mubr.f32.mxu0 %v5314
        %6608 = vmatmul.mubr.f32.gmra.mrb[0].mxu0 %v5313
        %v6609 = vpop.f32.mrb[0].mxu0
        %v6610 = vadd.f32 %v5905, %v6609
        %v6611 = vpop.f32.mrb[0].mxu0
        %6612 = vmatprep.mubr.f32.mxu0 %v5318
        %6613 = vmatmul.mubr.f32.gmra.mrb[0].mxu0 %v5317
        %v6614 = vpop.f32.mrb[0].mxu0
        %v6615 = vadd.f32 %v5910, %v6614
        %v6616 = vpop.f32.mrb[0].mxu0
        %6617 = vmatprep.mubr.f32.mxu0 %v5322
        %6618 = vmatmul.mubr.f32.gmra.mrb[0].mxu0 %v5321
        %v6619 = vpop.f32.mrb[0].mxu0
        %v6620 = vadd.f32 %v5915, %v6619
        %v6621 = vpop.f32.mrb[0].mxu0
        %6622 = vmatprep.mubr.f32.mxu0 %v5326
        %6623 = vmatmul.mubr.f32.gmra.mrb[0].mxu0 %v5325
        %v6624 = vpop.f32.mrb[0].mxu0
        %v6625 = vadd.f32 %v5920, %v6624
        %v6626 = vpop.f32.mrb[0].mxu0
        %6627 = vmatprep.mubr.f32.mxu0 %v5330
        %6628 = vmatmul.mubr.f32.gmra.mrb[0].mxu0 %v5329
        %v6629 = vpop.f32.mrb[0].mxu0
        %v6630 = vadd.f32 %v5925, %v6629
        %v6631 = vpop.f32.mrb[0].mxu0
        %6632 = vmatprep.mubr.f32.mxu0 %v5334
        %6633 = vmatmul.mubr.f32.gmra.mrb[0].mxu0 %v5333
        %v6634 = vpop.f32.mrb[0].mxu0
        %v6635 = vadd.f32 %v5930, %v6634
        %v6636 = vpop.f32.mrb[0].mxu0
        %6637 = vmatprep.mubr.f32.mxu0 %v5338
        %6638 = vmatmul.mubr.f32.gmra.mrb[0].mxu0 %v5337
        %v6639 = vpop.f32.mrb[0].mxu0
        %v6640 = vadd.f32 %v5935, %v6639
        %v6641 = vpop.f32.mrb[0].mxu0
        %6642 = vmatprep.mubr.f32.mxu0 %v5342
        %6643 = vmatmul.mubr.f32.gmra.mrb[0].mxu0 %v5341
        %v6644 = vpop.f32.mrb[0].mxu0
        %v6645 = vadd.f32 %v5940, %v6644
        %v6646 = vpop.f32.mrb[0].mxu0
        %6647 = vmatprep.mubr.f32.mxu0 %v5346
        %6648 = vmatmul.mubr.f32.gmra.mrb[0].mxu0 %v5345
        %v6649 = vpop.f32.mrb[0].mxu0
        %v6650 = vadd.f32 %v5945, %v6649
        %v6651 = vpop.f32.mrb[0].mxu0
        %6652 = vmatprep.mubr.f32.mxu0 %v5350
        %6653 = vmatmul.mubr.f32.gmra.mrb[0].mxu0 %v5349
        %v6654 = vpop.f32.mrb[0].mxu0
        %v6655 = vadd.f32 %v5950, %v6654
        %v6656 = vpop.f32.mrb[0].mxu0
        %6657 = vmatprep.mubr.f32.mxu0 %v5354
        %6658 = vmatmul.mubr.f32.gmra.mrb[0].mxu0 %v5353
        %v6659 = vpop.f32.mrb[0].mxu0
        %v6660 = vadd.f32 %v5955, %v6659
        %v6661 = vpop.f32.mrb[0].mxu0
        %6662 = vmatprep.mubr.f32.mxu0 %v5358
        %6663 = vmatmul.mubr.f32.gmra.mrb[0].mxu0 %v5357
        %v6664 = vpop.f32.mrb[0].mxu0
        %v6665 = vadd.f32 %v5960, %v6664
        %v6666 = vpop.f32.mrb[0].mxu0
        %6667 = vmatprep.mubr.f32.mxu0 %v5362
        %6668 = vmatmul.mubr.f32.gmra.mrb[0].mxu0 %v5361
        %v6669 = vpop.f32.mrb[0].mxu0
        %v6670 = vadd.f32 %v5965, %v6669
        %v6671 = vpop.f32.mrb[0].mxu0
        %6672 = vmatprep.mubr.f32.mxu0 %v5366
        %6673 = vmatmul.mubr.f32.gmra.mrb[0].mxu0 %v5365
        %v6674 = vpop.f32.mrb[0].mxu0
        %v6675 = vadd.f32 %v5970, %v6674
        %v6676 = vpop.f32.mrb[0].mxu0
        %6677 = vmatprep.mubr.f32.mxu0 %v5370
        %6678 = vmatmul.mubr.f32.gmra.mrb[0].mxu0 %v5369
        %v6679 = vpop.f32.mrb[0].mxu0
        %v6680 = vadd.f32 %v5975, %v6679
        %v6681 = vpop.f32.mrb[0].mxu0
        %6682 = vmatprep.mubr.f32.mxu0 %v5374
        %6683 = vmatmul.mubr.f32.gmra.mrb[0].mxu0 %v5373
        %v6684 = vpop.f32.mrb[0].mxu0
        %v6685 = vadd.f32 %v5980, %v6684
        %v6686 = vpop.f32.mrb[0].mxu0
        %6687 = vmatprep.mubr.f32.mxu0 %v5378
        %6688 = vmatmul.mubr.f32.gmra.mrb[0].mxu0 %v5377
        %v6689 = vpop.f32.mrb[0].mxu0
        %v6690 = vadd.f32 %v5985, %v6689
        %v6691 = vpop.f32.mrb[0].mxu0
        %6692 = vmatprep.mubr.f32.mxu0 %v5382
        %6693 = vmatmul.mubr.f32.gmra.mrb[0].mxu0 %v5381
        %v6694 = vpop.f32.mrb[0].mxu0
        %v6695 = vadd.f32 %v5990, %v6694
        %v6696 = vpop.f32.mrb[0].mxu0
        %6697 = vmatprep.mubr.f32.mxu0 %v5386
        %6698 = vmatmul.mubr.f32.gmra.mrb[0].mxu0 %v5385
        %v6699 = vpop.f32.mrb[0].mxu0
        %v6700 = vadd.f32 %v5995, %v6699
        %v6701 = vpop.f32.mrb[0].mxu0
        %6702 = vmatprep.mubr.f32.mxu0 %v5390
        %6703 = vmatmul.mubr.f32.gmra.mrb[0].mxu0 %v5389
        %v6704 = vpop.f32.mrb[0].mxu0
        %v6705 = vadd.f32 %v6000, %v6704
        %v6706 = vpop.f32.mrb[0].mxu0
        %6707 = vmatprep.mubr.f32.mxu0 %v5394
        %6708 = vmatmul.mubr.f32.gmra.mrb[0].mxu0 %v5393
        %v6709 = vpop.f32.mrb[0].mxu0
        %v6710 = vadd.f32 %v6005, %v6709
        %v6711 = vpop.f32.mrb[0].mxu0
        %6712 = vmatprep.mubr.f32.mxu0 %v5398
        %6713 = vmatmul.mubr.f32.gmra.mrb[0].mxu0 %v5397
        %v6714 = vpop.f32.mrb[0].mxu0
        %v6715 = vadd.f32 %v6010, %v6714
        %v6716 = vpop.f32.mrb[0].mxu0
        %6717 = vmatprep.mubr.f32.mxu0 %v5402
        %6718 = vmatmul.mubr.f32.gmra.mrb[0].mxu0 %v5401
        %v6719 = vpop.f32.mrb[0].mxu0
        %v6720 = vadd.f32 %v6015, %v6719
        %v6721 = vpop.f32.mrb[0].mxu0
        %6722 = vmatprep.mubr.f32.mxu0 %v5406
        %6723 = vmatmul.mubr.f32.gmra.mrb[0].mxu0 %v5405
        %v6724 = vpop.f32.mrb[0].mxu0
        %v6725 = vadd.f32 %v6020, %v6724
        %v6726 = vpop.f32.mrb[0].mxu0
        %6727 = vmatprep.mubr.f32.mxu0 %v5410
        %6728 = vmatmul.mubr.f32.gmra.mrb[0].mxu0 %v5409
        %v6729 = vpop.f32.mrb[0].mxu0
        %v6730 = vadd.f32 %v6025, %v6729
        %v6731 = vpop.f32.mrb[0].mxu0
        %6732 = vmatprep.mubr.f32.mxu0 %v5414
        %6733 = vmatmul.mubr.f32.gmra.mrb[0].mxu0 %v5413
        %v6734 = vpop.f32.mrb[0].mxu0
        %v6735 = vadd.f32 %v6030, %v6734
        %v6736 = vpop.f32.mrb[0].mxu0
        %6737 = vmatprep.mubr.f32.mxu0 %v5418
        %6738 = vmatmul.mubr.f32.gmra.mrb[0].mxu0 %v5417
        %v6739 = vpop.f32.mrb[0].mxu0
        %v6740 = vadd.f32 %v6035, %v6739
        %v6741 = vpop.f32.mrb[0].mxu0
        %6742 = vmatprep.mubr.f32.mxu0 %v5422
        %6743 = vmatmul.mubr.f32.gmra.mrb[0].mxu0 %v5421
        %v6744 = vpop.f32.mrb[0].mxu0
        %v6745 = vadd.f32 %v6040, %v6744
        %v6746 = vpop.f32.mrb[0].mxu0
        %6747 = vmatprep.mubr.f32.mxu0 %v5426
        %6748 = vmatmul.mubr.f32.gmra.mrb[0].mxu0 %v5425
        %v6749 = vpop.f32.mrb[0].mxu0
        %v6750 = vadd.f32 %v6045, %v6749
        %v6751 = vpop.f32.mrb[0].mxu0
        %6752 = vmatprep.mubr.f32.mxu0 %v5430
        %6753 = vmatmul.mubr.f32.gmra.mrb[0].mxu0 %v5429
        %v6754 = vpop.f32.mrb[0].mxu0
        %v6755 = vadd.f32 %v6050, %v6754
        %v6756 = vpop.f32.mrb[0].mxu0
        %6757 = vmatprep.mubr.f32.mxu0 %v5434
        %6758 = vmatmul.mubr.f32.gmra.mrb[0].mxu0 %v5433
        %v6759 = vpop.f32.mrb[0].mxu0
        %v6760 = vadd.f32 %v6055, %v6759
        %v6761 = vpop.f32.mrb[0].mxu0
        %6762 = vmatprep.mubr.f32.mxu0 %v5438
        %6763 = vmatmul.mubr.f32.gmra.mrb[0].mxu0 %v5437
        %v6764 = vpop.f32.mrb[0].mxu0
        %v6765 = vadd.f32 %v6060, %v6764
        %v6766 = vpop.f32.mrb[0].mxu0
        %6767 = vmatprep.mubr.f32.mxu0 %v5442
        %6768 = vmatmul.mubr.f32.gmra.mrb[0].mxu0 %v5441
        %v6769 = vpop.f32.mrb[0].mxu0
        %v6770 = vadd.f32 %v6065, %v6769
        %v6771 = vpop.f32.mrb[0].mxu0
        %6772 = vmatprep.mubr.f32.mxu0 %v5446
        %6773 = vmatmul.mubr.f32.gmra.mrb[0].mxu0 %v5445
        %v6774 = vpop.f32.mrb[0].mxu0
        %v6775 = vadd.f32 %v6070, %v6774
        %v6776 = vpop.f32.mrb[0].mxu0
        %6777 = vmatprep.mubr.f32.mxu0 %v5450
        %6778 = vmatmul.mubr.f32.gmra.mrb[0].mxu0 %v5449
        %v6779 = vpop.f32.mrb[0].mxu0
        %v6780 = vadd.f32 %v6075, %v6779
        %v6781 = vpop.f32.mrb[0].mxu0
        %6782 = vmatprep.mubr.f32.mxu0 %v5454
        %6783 = vmatmul.mubr.f32.gmra.mrb[0].mxu0 %v5453
        %v6784 = vpop.f32.mrb[0].mxu0
        %v6785 = vadd.f32 %v6080, %v6784
        %v6786 = vpop.f32.mrb[0].mxu0
        %6787 = vmatprep.mubr.f32.mxu0 %v5458
        %6788 = vmatmul.mubr.f32.gmra.mrb[0].mxu0 %v5457
        %v6789 = vpop.f32.mrb[0].mxu0
        %v6790 = vadd.f32 %v6085, %v6789
        %v6791 = vpop.f32.mrb[0].mxu0
        %6792 = vmatprep.mubr.f32.mxu0 %v5462
        %6793 = vmatmul.mubr.f32.gmra.mrb[0].mxu0 %v5461
        %v6794 = vpop.f32.mrb[0].mxu0
        %v6795 = vadd.f32 %v6090, %v6794
        %v6796 = vpop.f32.mrb[0].mxu0
        %6797 = vmatprep.mubr.f32.mxu0 %v5466
        %6798 = vmatmul.mubr.f32.gmra.mrb[0].mxu0 %v5465
        %v6799 = vpop.f32.mrb[0].mxu0
        %v6800 = vadd.f32 %v6095, %v6799
        %v6801 = vpop.f32.mrb[0].mxu0
        %6802 = vmatprep.mubr.f32.mxu0 %v5470
        %6803 = vmatmul.mubr.f32.gmra.mrb[0].mxu0 %v5469
        %v6804 = vpop.f32.mrb[0].mxu0
        %v6805 = vadd.f32 %v6100, %v6804
        %v6806 = vpop.f32.mrb[0].mxu0
        %6807 = vmatprep.mubr.f32.mxu0 %v5474
        %6808 = vmatmul.mubr.f32.gmra.mrb[0].mxu0 %v5473
        %v6809 = vpop.f32.mrb[0].mxu0
        %v6810 = vadd.f32 %v6105, %v6809
        %v6811 = vpop.f32.mrb[0].mxu0
        %6812 = vmatprep.mubr.f32.mxu0 %v5478
        %6813 = vmatmul.mubr.f32.gmra.mrb[0].mxu0 %v5477
        %v6814 = vpop.f32.mrb[0].mxu0
        %v6815 = vadd.f32 %v6110, %v6814
        %v6816 = vpop.f32.mrb[0].mxu0
        %6817 = vmatprep.mubr.f32.mxu0 %v5482
        %6818 = vmatmul.mubr.f32.gmra.mrb[0].mxu0 %v5481
        %v6819 = vpop.f32.mrb[0].mxu0
        %v6820 = vadd.f32 %v6115, %v6819
        %v6821 = vpop.f32.mrb[0].mxu0
        %6822 = vmatprep.mubr.f32.mxu0 %v5486
        %6823 = vmatmul.mubr.f32.gmra.mrb[0].mxu0 %v5485
        %v6824 = vpop.f32.mrb[0].mxu0
        %v6825 = vadd.f32 %v6120, %v6824
        %v6826 = vpop.f32.mrb[0].mxu0
        %6827 = vmatprep.mubr.f32.mxu0 %v5490
        %6828 = vmatmul.mubr.f32.gmra.mrb[0].mxu0 %v5489
        %v6829 = vpop.f32.mrb[0].mxu0
        %v6830 = vadd.f32 %v6125, %v6829
        %v6831 = vpop.f32.mrb[0].mxu0
        %6832 = vmatprep.mubr.f32.mxu0 %v5494
        %6833 = vmatmul.mubr.f32.gmra.mrb[0].mxu0 %v5493
        %v6834 = vpop.f32.mrb[0].mxu0
        %v6835 = vadd.f32 %v6130, %v6834
        %v6836 = vpop.f32.mrb[0].mxu0
        %6837 = vmatprep.mubr.f32.mxu0 %v5498
        %6838 = vmatmul.mubr.f32.gmra.mrb[0].mxu0 %v5497
        %v6839 = vpop.f32.mrb[0].mxu0
        %v6840 = vadd.f32 %v6135, %v6839
        %v6841 = vpop.f32.mrb[0].mxu0
        %6842 = vmatprep.mubr.f32.mxu0 %v5502
        %6843 = vmatmul.mubr.f32.gmra.mrb[0].mxu0 %v5501
        %v6844 = vpop.f32.mrb[0].mxu0
        %v6845 = vadd.f32 %v6140, %v6844
        %v6846 = vpop.f32.mrb[0].mxu0
        %6847 = vmatprep.mubr.f32.mxu0 %v5506
        %6848 = vmatmul.mubr.f32.gmra.mrb[0].mxu0 %v5505
        %v6849 = vpop.f32.mrb[0].mxu0
        %v6850 = vadd.f32 %v6145, %v6849
        %v6851 = vpop.f32.mrb[0].mxu0
        %6852 = vmatprep.mubr.f32.mxu0 %v5510
        %6853 = vmatmul.mubr.f32.gmra.mrb[0].mxu0 %v5509
        %v6854 = vpop.f32.mrb[0].mxu0
        %v6855 = vadd.f32 %v6150, %v6854
        %v6856 = vpop.f32.mrb[0].mxu0
        %6857 = vmatprep.mubr.f32.mxu0 %v5514
        %6858 = vmatmul.mubr.f32.gmra.mrb[0].mxu0 %v5513
        %v6859 = vpop.f32.mrb[0].mxu0
        %v6860 = vadd.f32 %v6155, %v6859
        %v6861 = vpop.f32.mrb[0].mxu0
        %6862 = vmatprep.mubr.f32.mxu0 %v5518
        %6863 = vmatmul.mubr.f32.gmra.mrb[0].mxu0 %v5517
        %v6864 = vpop.f32.mrb[0].mxu0
        %v6865 = vadd.f32 %v6160, %v6864
        %v6866 = vpop.f32.mrb[0].mxu0
        %6867 = vmatprep.mubr.f32.mxu0 %v5522
        %6868 = vmatmul.mubr.f32.gmra.mrb[0].mxu0 %v5521
        %v6869 = vpop.f32.mrb[0].mxu0
        %v6870 = vadd.f32 %v6165, %v6869
        %v6871 = vpop.f32.mrb[0].mxu0
        %6872 = vmatprep.mubr.f32.mxu0 %v5526
        %6873 = vmatmul.mubr.f32.gmra.mrb[0].mxu0 %v5525
        %v6874 = vpop.f32.mrb[0].mxu0
        %v6875 = vadd.f32 %v6170, %v6874
        %v6876 = vpop.f32.mrb[0].mxu0
        %6877 = vmatprep.mubr.f32.mxu0 %v5530
        %6878 = vmatmul.mubr.f32.gmra.mrb[0].mxu0 %v5529
        %v6879 = vpop.f32.mrb[0].mxu0
        %v6880 = vadd.f32 %v6175, %v6879
        %v6881 = vpop.f32.mrb[0].mxu0
        %6882 = vmatprep.mubr.f32.mxu0 %v5534
        %6883 = vmatmul.mubr.f32.gmra.mrb[0].mxu0 %v5533
        %v6884 = vpop.f32.mrb[0].mxu0
        %v6885 = vadd.f32 %v6180, %v6884
        %v6886 = vpop.f32.mrb[0].mxu0
        %6887 = vmatprep.mubr.f32.mxu0 %v5538
        %6888 = vmatmul.mubr.f32.gmra.mrb[0].mxu0 %v5537
        %v6889 = vpop.f32.mrb[0].mxu0
        %v6890 = vadd.f32 %v6185, %v6889
        %v6891 = vpop.f32.mrb[0].mxu0
        %6892 = vmatprep.mubr.f32.mxu0 %v5542
        %6893 = vmatmul.mubr.f32.gmra.mrb[0].mxu0 %v5541
        %v6894 = vpop.f32.mrb[0].mxu0
        %v6895 = vadd.f32 %v6190, %v6894
        %v6896 = vpop.f32.mrb[0].mxu0
        %6897 = vmatprep.mubr.f32.mxu0 %v5546
        %6898 = vmatmul.mubr.f32.gmra.mrb[0].mxu0 %v5545
        %v6899 = vpop.f32.mrb[0].mxu0
        %v6900 = vadd.f32 %v6195, %v6899
        %v6901 = vpop.f32.mrb[0].mxu0
        %6902 = vmatprep.mubr.f32.mxu0 %v5550
        %6903 = vmatmul.mubr.f32.gmra.mrb[0].mxu0 %v5549
        %v6904 = vpop.f32.mrb[0].mxu0
        %v6905 = vadd.f32 %v6200, %v6904
        %v6906 = vpop.f32.mrb[0].mxu0
        %6907 = vmatprep.mubr.f32.mxu0 %v5554
        %6908 = vmatmul.mubr.f32.gmra.mrb[0].mxu0 %v5553
        %v6909 = vpop.f32.mrb[0].mxu0
        %v6910 = vadd.f32 %v6205, %v6909
        %v6911 = vpop.f32.mrb[0].mxu0
        %6912 = vmatprep.mubr.f32.mxu0 %v5558
        %6913 = vmatmul.mubr.f32.gmra.mrb[0].mxu0 %v5557
        %v6914 = vpop.f32.mrb[0].mxu0
        %v6915 = vadd.f32 %v6210, %v6914
        %v6916 = vpop.f32.mrb[0].mxu0
        %6917 = vmatprep.mubr.f32.mxu0 %v5562
        %6918 = vmatmul.mubr.f32.gmra.mrb[0].mxu0 %v5561
        %v6919 = vpop.f32.mrb[0].mxu0
        %v6920 = vadd.f32 %v6215, %v6919
        %v6921 = vpop.f32.mrb[0].mxu0
        %6922 = vmatprep.mubr.f32.mxu0 %v5566
        %6923 = vmatmul.mubr.f32.gmra.mrb[0].mxu0 %v5565
        %v6924 = vpop.f32.mrb[0].mxu0
        %v6925 = vadd.f32 %v6220, %v6924
        %v6926 = vpop.f32.mrb[0].mxu0
        %6927 = vmatprep.mubr.f32.mxu0 %v5570
        %6928 = vmatmul.mubr.f32.gmra.mrb[0].mxu0 %v5569
        %v6929 = vpop.f32.mrb[0].mxu0
        %v6930 = vadd.f32 %v6225, %v6929
        %v6931 = vpop.f32.mrb[0].mxu0
        %6932 = vmatprep.mubr.f32.mxu0 %v5574
        %6933 = vmatmul.mubr.f32.gmra.mrb[0].mxu0 %v5573
        %v6934 = vpop.f32.mrb[0].mxu0
        %v6935 = vadd.f32 %v6230, %v6934
        %v6936 = vpop.f32.mrb[0].mxu0
        %6937 = vmatprep.mubr.f32.mxu0 %v5578
        %6938 = vmatmul.mubr.f32.gmra.mrb[0].mxu0 %v5577
        %v6939 = vpop.f32.mrb[0].mxu0
        %v6940 = vadd.f32 %v6235, %v6939
        %v6941 = vpop.f32.mrb[0].mxu0
        %6942 = vmatprep.mubr.f32.mxu0 %v5582
        %6943 = vmatmul.mubr.f32.gmra.mrb[0].mxu0 %v5581
        %v6944 = vpop.f32.mrb[0].mxu0
        %v6945 = vadd.f32 %v6240, %v6944
        %v6946 = vpop.f32.mrb[0].mxu0
        %6947 = vmatprep.mubr.f32.mxu0 %v5586
        %6948 = vmatmul.mubr.f32.gmra.mrb[0].mxu0 %v5585
        %v6949 = vpop.f32.mrb[0].mxu0
        %v6950 = vadd.f32 %v6245, %v6949
        %v6951 = vpop.f32.mrb[0].mxu0
        %6952 = vmatprep.mubr.f32.mxu0 %v5590
        %6953 = vmatmul.mubr.f32.gmra.mrb[0].mxu0 %v5589
        %v6954 = vpop.f32.mrb[0].mxu0
        %v6955 = vadd.f32 %v6250, %v6954
        %v6956 = vpop.f32.mrb[0].mxu0
        %6957 = vmatprep.mubr.f32.mxu0 %v5594
        %6958 = vmatmul.mubr.f32.gmra.mrb[0].mxu0 %v5593
        %v6959 = vpop.f32.mrb[0].mxu0
        %v6960 = vadd.f32 %v6255, %v6959
        %v6961 = vpop.f32.mrb[0].mxu0
        %6962 = vmatprep.mubr.f32.mxu0 %v5598
        %6963 = vmatmul.mubr.f32.gmra.mrb[0].mxu0 %v5597
        %v6964 = vpop.f32.mrb[0].mxu0
        %v6965 = vadd.f32 %v6260, %v6964
        %v6966 = vpop.f32.mrb[0].mxu0
        %6967 = vmatprep.mubr.f32.mxu0 %v5602
        %6968 = vmatmul.mubr.f32.gmra.mrb[0].mxu0 %v5601
        %v6969 = vpop.f32.mrb[0].mxu0
        %v6970 = vadd.f32 %v6265, %v6969
        %v6971 = vpop.f32.mrb[0].mxu0
        %6972 = vmatprep.mubr.f32.mxu0 %v5606
        %6973 = vmatmul.mubr.f32.gmra.mrb[0].mxu0 %v5605
        %v6974 = vpop.f32.mrb[0].mxu0
        %v6975 = vadd.f32 %v6270, %v6974
        %v6976 = vpop.f32.mrb[0].mxu0
        %6977 = vmatprep.mubr.f32.mxu0 %v5610
        %6978 = vmatmul.mubr.f32.gmra.mrb[0].mxu0 %v5609
        %v6979 = vpop.f32.mrb[0].mxu0
        %v6980 = vadd.f32 %v6275, %v6979
        %v6981 = vpop.f32.mrb[0].mxu0
        %6982 = vmatprep.mubr.f32.mxu0 %v5614
        %6983 = vmatmul.mubr.f32.gmra.mrb[0].mxu0 %v5613
        %v6984 = vpop.f32.mrb[0].mxu0
        %v6985 = vadd.f32 %v6280, %v6984
        %v6986 = vpop.f32.mrb[0].mxu0
        %6987 = vmatprep.mubr.f32.mxu0 %v5618
        %6988 = vmatmul.mubr.f32.gmra.mrb[0].mxu0 %v5617
        %v6989 = vpop.f32.mrb[0].mxu0
        %v6990 = vadd.f32 %v6285, %v6989
        %v6991 = vpop.f32.mrb[0].mxu0
        %6992 = vmatprep.mubr.f32.mxu0 %v5622
        %6993 = vmatmul.mubr.f32.gmra.mrb[0].mxu0 %v5621
        %v6994 = vpop.f32.mrb[0].mxu0
        %v6995 = vadd.f32 %v6290, %v6994
        %v6996 = vpop.f32.mrb[0].mxu0
        %6997 = vmatprep.mubr.f32.mxu0 %v5626
        %6998 = vmatmul.mubr.f32.gmra.mrb[0].mxu0 %v5625
        %v6999 = vpop.f32.mrb[0].mxu0
        %v7000 = vadd.f32 %v6295, %v6999
        %v7001 = vpop.f32.mrb[0].mxu0
        %7002 = vmatprep.mubr.f32.mxu0 %v5630
        %7003 = vmatmul.mubr.f32.gmra.mrb[0].mxu0 %v5629
        %v7004 = vpop.f32.mrb[0].mxu0
        %v7005 = vadd.f32 %v6300, %v7004
        %v7006 = vpop.f32.mrb[0].mxu0
        %7007 = vmatprep.mubr.f32.mxu0 %v5634
        %7008 = vmatmul.mubr.f32.gmra.mrb[0].mxu0 %v5633
        %v7009 = vpop.f32.mrb[0].mxu0
        %v7010 = vadd.f32 %v6305, %v7009
        %v7011 = vpop.f32.mrb[0].mxu0
        %7012 = vmatprep.mubr.f32.mxu0 %v5638
        %7013 = vmatmul.mubr.f32.gmra.mrb[0].mxu0 %v5637
        %v7014 = vpop.f32.mrb[0].mxu0
        %v7015 = vadd.f32 %v6310, %v7014
        %v7016 = vpop.f32.mrb[0].mxu0
        %7017 = vmatprep.mubr.f32.mxu0 %v5642
        %7018 = vmatmul.mubr.f32.gmra.mrb[0].mxu0 %v5641
        %v7019 = vpop.f32.mrb[0].mxu0
        %v7020 = vadd.f32 %v6315, %v7019
        %v7021 = vpop.f32.mrb[0].mxu0
        %7022 = vmatprep.mubr.f32.mxu0 %v5646
        %7023 = vmatmul.mubr.f32.gmra.mrb[0].mxu0 %v5645
        %v7024 = vpop.f32.mrb[0].mxu0
        %v7025 = vadd.f32 %v6320, %v7024
        %v7026 = vpop.f32.mrb[0].mxu0
        %7027 = vmatprep.mubr.f32.mxu0 %v5650
        %7028 = vmatmul.mubr.f32.gmra.mrb[0].mxu0 %v5649
        %v7029 = vpop.f32.mrb[0].mxu0
        %v7030 = vadd.f32 %v6325, %v7029
        %v7031 = vpop.f32.mrb[0].mxu0
        %7032 = vmatprep.mubr.f32.mxu0 %v5654
        %7033 = vmatmul.mubr.f32.gmra.mrb[0].mxu0 %v5653
        %v7034 = vpop.f32.mrb[0].mxu0
        %v7035 = vadd.f32 %v6330, %v7034
        %v7036 = vpop.f32.mrb[0].mxu0
        %7037 = vmatprep.mubr.f32.mxu0 %v5658
        %7038 = vmatmul.mubr.f32.gmra.mrb[0].mxu0 %v5657
        %v7039 = vpop.f32.mrb[0].mxu0
        %v7040 = vadd.f32 %v6335, %v7039
        %v7041 = vpop.f32.mrb[0].mxu0
        %7042 = vmatprep.mubr.f32.mxu0 %v5662
        %7043 = vmatmul.mubr.f32.gmra.mrb[0].mxu0 %v5661
        %v7044 = vpop.f32.mrb[0].mxu0
        %v7045 = vadd.f32 %v6340, %v7044
        %v7046 = vpop.f32.mrb[0].mxu0
        %7047 = vmatprep.mubr.f32.mxu0 %v5666
        %7048 = vmatmul.mubr.f32.gmra.mrb[0].mxu0 %v5665
        %v7049 = vpop.f32.mrb[0].mxu0
        %v7050 = vadd.f32 %v6345, %v7049
        %v7051 = vpop.f32.mrb[0].mxu0
        %7052 = vmatprep.mubr.f32.mxu0 %v5670
        %7053 = vmatmul.mubr.f32.gmra.mrb[0].mxu0 %v5669
        %v7054 = vpop.f32.mrb[0].mxu0
        %v7055 = vadd.f32 %v6350, %v7054
        %v7056 = vpop.f32.mrb[0].mxu0
        %7057 = vmatprep.mubr.f32.mxu0 %v5674
        %7058 = vmatmul.mubr.f32.gmra.mrb[0].mxu0 %v5673
        %v7059 = vpop.f32.mrb[0].mxu0
        %v7060 = vadd.f32 %v6355, %v7059
        %v7061 = vpop.f32.mrb[0].mxu0
        %7062 = vmatprep.mubr.f32.mxu0 %v5678
        %7063 = vmatmul.mubr.f32.gmra.mrb[0].mxu0 %v5677
        %v7064 = vpop.f32.mrb[0].mxu0
        %v7065 = vadd.f32 %v6360, %v7064
        %v7066 = vpop.f32.mrb[0].mxu0
        %7067 = vmatprep.mubr.f32.mxu0 %v5682
        %7068 = vmatmul.mubr.f32.gmra.mrb[0].mxu0 %v5681
        %v7069 = vpop.f32.mrb[0].mxu0
        %v7070 = vadd.f32 %v6365, %v7069
        %v7071 = vpop.f32.mrb[0].mxu0
        %7072 = vmatprep.mubr.f32.mxu0 %v5686
        %7073 = vmatmul.mubr.f32.gmra.mrb[0].mxu0 %v5685
        %v7074 = vpop.f32.mrb[0].mxu0
        %v7075 = vadd.f32 %v6370, %v7074
        %v7076 = vpop.f32.mrb[0].mxu0
        %7077 = vmatprep.mubr.f32.mxu0 %v5690
        %7078 = vmatmul.mubr.f32.gmra.mrb[0].mxu0 %v5689
        %v7079 = vpop.f32.mrb[0].mxu0
        %v7080 = vadd.f32 %v6375, %v7079
        %v7081 = vpop.f32.mrb[0].mxu0
        %7082 = vmatprep.mubr.f32.mxu0 %v5694
        %7083 = vmatmul.mubr.f32.gmra.mrb[0].mxu0 %v5693
        %v7084 = vpop.f32.mrb[0].mxu0
        %v7085 = vadd.f32 %v6380, %v7084
        %v7086 = vpop.f32.mrb[0].mxu0
        %7087 = vmatprep.mubr.f32.mxu0 %v5698
        %7088 = vmatmul.mubr.f32.gmra.mrb[0].mxu0 %v5697
        %v7089 = vpop.f32.mrb[0].mxu0
        %v7090 = vadd.f32 %v6385, %v7089
        %v7091 = vpop.f32.mrb[0].mxu0
        %7092 = vmatprep.mubr.f32.mxu0 %v5702
        %7093 = vmatmul.mubr.f32.gmra.mrb[0].mxu0 %v5701
        %v7094 = vpop.f32.mrb[0].mxu0
        %v7095 = vadd.f32 %v6390, %v7094
        %v7096 = vpop.f32.mrb[0].mxu0
        %7097 = vmatprep.mubr.f32.mxu0 %v5706
        %7098 = vmatmul.mubr.f32.gmra.mrb[0].mxu0 %v5705
        %v7099 = vpop.f32.mrb[0].mxu0
        %v7100 = vadd.f32 %v6395, %v7099
        %v7101 = vpop.f32.mrb[0].mxu0
        %7102 = vmatprep.mubr.f32.mxu0 %v5710
        %7103 = vmatmul.mubr.f32.gmra.mrb[0].mxu0 %v5709
        %v7104 = vpop.f32.mrb[0].mxu0
        %v7105 = vadd.f32 %v6400, %v7104
        %v7106 = vpop.f32.mrb[0].mxu0
        %7107 = vmatprep.mubr.f32.mxu0 %v5714
        %7108 = vmatmul.mubr.f32.gmra.mrb[0].mxu0 %v5713
        %v7109 = vpop.f32.mrb[0].mxu0
        %v7110 = vadd.f32 %v6405, %v7109
        %v7111 = vpop.f32.mrb[0].mxu0
        %7112 = vmatprep.mubr.f32.mxu0 %v5718
        %7113 = vmatmul.mubr.f32.gmra.mrb[0].mxu0 %v5717
        %v7114 = vpop.f32.mrb[0].mxu0
        %v7115 = vadd.f32 %v6410, %v7114
        %v7116 = vpop.f32.mrb[0].mxu0
        %7117 = vmatprep.mubr.f32.mxu0 %v5722
        %7118 = vmatmul.mubr.f32.gmra.mrb[0].mxu0 %v5721
        %v7119 = vpop.f32.mrb[0].mxu0
        %v7120 = vadd.f32 %v6415, %v7119
        %v7121 = vpop.f32.mrb[0].mxu0
        %7122 = vmatprep.mubr.f32.mxu0 %v5726
        %7123 = vmatmul.mubr.f32.gmra.mrb[0].mxu0 %v5725
        %v7124 = vpop.f32.mrb[0].mxu0
        %v7125 = vadd.f32 %v6420, %v7124
        %v7126 = vpop.f32.mrb[0].mxu0
        %7127 = vmatprep.mubr.f32.mxu0 %v5730
        %7128 = vmatmul.mubr.f32.gmra.mrb[0].mxu0 %v5729
        %v7129 = vpop.f32.mrb[0].mxu0
        %v7130 = vadd.f32 %v6425, %v7129
        %v7131 = vpop.f32.mrb[0].mxu0
        %7132 = vmatprep.mubr.f32.mxu0 %v5734
        %7133 = vmatmul.mubr.f32.gmra.mrb[0].mxu0 %v5733
        %v7134 = vpop.f32.mrb[0].mxu0
        %v7135 = vadd.f32 %v6430, %v7134
        %v7136 = vpop.f32.mrb[0].mxu0
        %7137 = vmatprep.mubr.f32.mxu0 %v5738
        %7138 = vmatmul.mubr.f32.gmra.mrb[0].mxu0 %v5737
        %v7139 = vpop.f32.mrb[0].mxu0
        %v7140 = vadd.f32 %v6435, %v7139
        %v7141 = vpop.f32.mrb[0].mxu0
        %7142 = vmatprep.mubr.f32.mxu0 %v5742
        %7143 = vmatmul.mubr.f32.gmra.mrb[0].mxu0 %v5741
        %v7144 = vpop.f32.mrb[0].mxu0
        %v7145 = vadd.f32 %v6440, %v7144
        %v7146 = vpop.f32.mrb[0].mxu0
        %7147 = vmatprep.mubr.f32.mxu0 %v5746
        %7148 = vmatmul.mubr.f32.gmra.mrb[0].mxu0 %v5745
        %v7149 = vpop.f32.mrb[0].mxu0
        %v7150 = vadd.f32 %v6445, %v7149
        %v7151 = vpop.f32.mrb[0].mxu0
        %7152 = vmatprep.mubr.f32.mxu0 %v5750
        %7153 = vmatmul.mubr.f32.gmra.mrb[0].mxu0 %v5749
        %v7154 = vpop.f32.mrb[0].mxu0
        %v7155 = vadd.f32 %v6450, %v7154
        %v7156 = vpop.f32.mrb[0].mxu0
        %7157 = vmatprep.mubr.f32.mxu0 %v5754
        %7158 = vmatmul.mubr.f32.gmra.mrb[0].mxu0 %v5753
        %v7159 = vpop.f32.mrb[0].mxu0
        %v7160 = vadd.f32 %v6455, %v7159
        %v7161 = vpop.f32.mrb[0].mxu0
        %7162 = vmatprep.mubr.f32.mxu0 %v5758
        %7163 = vmatmul.mubr.f32.gmra.mrb[0].mxu0 %v5757
        %v7164 = vpop.f32.mrb[0].mxu0
        %v7165 = vadd.f32 %v6460, %v7164
        %v7166 = vpop.f32.mrb[0].mxu0
        %7167 = vmatprep.mubr.f32.mxu0 %v5762
        %7168 = vmatmul.mubr.f32.gmra.mrb[0].mxu0 %v5761
        %v7169 = vpop.f32.mrb[0].mxu0
        %v7170 = vadd.f32 %v6465, %v7169
        %v7171 = vpop.f32.mrb[0].mxu0
        %7172 = vdwg.mxu0
        %v7173 = vld [vmem:[#allocation21] sm:$0xff]
        %v7174 = vld [vmem:[#allocation21 + $0x8] sm:$0xff]
        %v7175 = vld [vmem:[#allocation21 + $0x10] sm:$0xff]
        %v7176 = vld [vmem:[#allocation21 + $0x18] sm:$0xff]
        %v7178 = vsel %vm1487, %v6535, 0
        %v7181 = vsel %vm1487, %v6540, 0
        %v7184 = vsel %vm1487, %v6545, 0
        %v7187 = vsel %vm1487, %v6550, 0
        %v7190 = vsel %vm1487, %v6555, 0
        %v7193 = vsel %vm1487, %v6560, 0
        %v7196 = vsel %vm1487, %v6565, 0
        %v7199 = vsel %vm1487, %v6570, 0
        %v7202 = vsel %vm1487, %v6575, 0
        %v7205 = vsel %vm1487, %v6580, 0
        %v7208 = vsel %vm1487, %v6585, 0
        %v7211 = vsel %vm1487, %v6590, 0
        %v7214 = vsel %vm1487, %v6595, 0
        %v7217 = vsel %vm1487, %v6600, 0
        %v7220 = vsel %vm1487, %v6605, 0
        %v7223 = vsel %vm1487, %v6610, 0
        %v7226 = vsel %vm1487, %v6615, 0
        %v7229 = vsel %vm1487, %v6620, 0
        %v7232 = vsel %vm1487, %v6625, 0
        %v7235 = vsel %vm1487, %v6630, 0
        %v7238 = vsel %vm1487, %v6635, 0
        %v7241 = vsel %vm1487, %v6640, 0
        %v7244 = vsel %vm1487, %v6645, 0
        %v7247 = vsel %vm1487, %v6650, 0
        %v7250 = vsel %vm1487, %v6655, 0
        %v7253 = vsel %vm1487, %v6660, 0
        %v7256 = vsel %vm1487, %v6665, 0
        %v7259 = vsel %vm1487, %v6670, 0
        %v7262 = vsel %vm1487, %v6675, 0
        %v7265 = vsel %vm1487, %v6680, 0
        %v7268 = vsel %vm1487, %v6685, 0
        %v7271 = vsel %vm1487, %v6690, 0
        %v7274 = vsel %vm1487, %v6695, 0
        %v7277 = vsel %vm1487, %v6700, 0
        %v7280 = vsel %vm1487, %v6705, 0
        %v7283 = vsel %vm1487, %v6710, 0
        %v7286 = vsel %vm1487, %v6715, 0
        %v7289 = vsel %vm1487, %v6720, 0
        %v7292 = vsel %vm1487, %v6725, 0
        %v7295 = vsel %vm1487, %v6730, 0
        %v7298 = vsel %vm1487, %v6735, 0
        %v7301 = vsel %vm1487, %v6740, 0
        %v7304 = vsel %vm1487, %v6745, 0
        %v7307 = vsel %vm1487, %v6750, 0
        %v7310 = vsel %vm1487, %v6755, 0
        %v7313 = vsel %vm1487, %v6760, 0
        %v7316 = vsel %vm1487, %v6765, 0
        %v7319 = vsel %vm1487, %v6770, 0
        %v7322 = vsel %vm1487, %v6775, 0
        %v7325 = vsel %vm1487, %v6780, 0
        %v7328 = vsel %vm1487, %v6785, 0
        %v7331 = vsel %vm1487, %v6790, 0
        %v7334 = vsel %vm1487, %v6795, 0
        %v7337 = vsel %vm1487, %v6800, 0
        %v7340 = vsel %vm1487, %v6805, 0
        %v7343 = vsel %vm1487, %v6810, 0
        %v7346 = vsel %vm1487, %v6815, 0
        %v7349 = vsel %vm1487, %v6820, 0
        %v7352 = vsel %vm1487, %v6825, 0
        %v7355 = vsel %vm1487, %v6830, 0
        %v7358 = vsel %vm1487, %v6835, 0
        %v7361 = vsel %vm1487, %v6840, 0
        %v7364 = vsel %vm1487, %v6845, 0
        %v7367 = vsel %vm1487, %v6850, 0
        %v7370 = vsel %vm1487, %v6855, 0
        %v7373 = vsel %vm1487, %v6860, 0
        %v7376 = vsel %vm1487, %v6865, 0
        %v7379 = vsel %vm1487, %v6870, 0
        %v7382 = vsel %vm1487, %v6875, 0
        %v7385 = vsel %vm1487, %v6880, 0
        %v7388 = vsel %vm1487, %v6885, 0
        %v7391 = vsel %vm1487, %v6890, 0
        %v7394 = vsel %vm1487, %v6895, 0
        %v7397 = vsel %vm1487, %v6900, 0
        %v7400 = vsel %vm1487, %v6905, 0
        %v7403 = vsel %vm1487, %v6910, 0
        %v7406 = vsel %vm1487, %v6915, 0
        %v7409 = vsel %vm1487, %v6920, 0
        %v7412 = vsel %vm1487, %v6925, 0
        %v7415 = vsel %vm1487, %v6930, 0
        %v7418 = vsel %vm1487, %v6935, 0
        %v7421 = vsel %vm1487, %v6940, 0
        %v7424 = vsel %vm1487, %v6945, 0
        %v7427 = vsel %vm1487, %v6950, 0
        %v7430 = vsel %vm1487, %v6955, 0
        %v7433 = vsel %vm1487, %v6960, 0
        %v7436 = vsel %vm1487, %v6965, 0
        %v7439 = vsel %vm1487, %v6970, 0
        %v7442 = vsel %vm1487, %v6975, 0
        %v7445 = vsel %vm1487, %v6980, 0
        %v7448 = vsel %vm1487, %v6985, 0
        %v7451 = vsel %vm1487, %v6990, 0
        %v7454 = vsel %vm1487, %v6995, 0
        %v7457 = vsel %vm1487, %v7000, 0
        %v7460 = vsel %vm1487, %v7005, 0
        %v7463 = vsel %vm1487, %v7010, 0
        %v7466 = vsel %vm1487, %v7015, 0
        %v7469 = vsel %vm1487, %v7020, 0
        %v7472 = vsel %vm1487, %v7025, 0
        %v7475 = vsel %vm1487, %v7030, 0
        %v7478 = vsel %vm1487, %v7035, 0
        %v7481 = vsel %vm1487, %v7040, 0
        %v7484 = vsel %vm1487, %v7045, 0
        %v7487 = vsel %vm1487, %v7050, 0
        %v7490 = vsel %vm1487, %v7055, 0
        %v7493 = vsel %vm1487, %v7060, 0
        %v7496 = vsel %vm1487, %v7065, 0
        %v7499 = vsel %vm1487, %v7070, 0
        %v7502 = vsel %vm1487, %v7075, 0
        %v7505 = vsel %vm1487, %v7080, 0
        %v7508 = vsel %vm1487, %v7085, 0
        %v7511 = vsel %vm1487, %v7090, 0
        %v7514 = vsel %vm1487, %v7095, 0
        %v7517 = vsel %vm1487, %v7100, 0
        %v7520 = vsel %vm1487, %v7105, 0
        %v7523 = vsel %vm1487, %v7110, 0
        %v7526 = vsel %vm1487, %v7115, 0
        %v7529 = vsel %vm1487, %v7120, 0
        %v7532 = vsel %vm1487, %v7125, 0
        %v7535 = vsel %vm1487, %v7130, 0
        %v7538 = vsel %vm1487, %v7135, 0
        %v7541 = vsel %vm1487, %v7140, 0
        %v7544 = vsel %vm1487, %v7145, 0
        %v7547 = vsel %vm1487, %v7150, 0
        %v7550 = vsel %vm1487, %v7155, 0
        %v7553 = vsel %vm1487, %v7160, 0
        %v7556 = vsel %vm1487, %v7165, 0
        %v7559 = vsel %vm1487, %v7170, 0
        %7561 = vmatprep.subr.mxu0 0.0
        %7562 = vmatpush1.msra.mxu0 %v7173
        %7563 = vmatprep.subr.mxu0 0.0
        %7564 = vmatpush1.msra.mxu0 %v7174
        %7565 = vmatprep.subr.mxu0 0.0
        %7566 = vmatpush1.msra.mxu0 %v7175
        %7567 = vmatprep.subr.mxu0 0.0
        %7568 = vmatpush1.msra.mxu0 %v7176
        %7569 = vmatprep.subr.mxu0 0.0
        %7570 = vmatpush1.msra.mxu0 0.0
        %7571 = vmatprep.subr.mxu0 0.0
        %7572 = vmatpush1.msra.mxu0 0.0
        %7573 = vmatprep.subr.mxu0 0.0
        %7574 = vmatpush1.msra.mxu0 0.0
        %7575 = vmatprep.subr.mxu0 0.0
        %7576 = vmatpush1.msra.mxu0 0.0
        %7577 = vmatprep.subr.mxu0 0.0
        %7578 = vmatpush1.msra.mxu0 0.0
        %7579 = vmatprep.subr.mxu0 0.0
        %7580 = vmatpush1.msra.mxu0 0.0
        %7581 = vmatprep.subr.mxu0 0.0
        %7582 = vmatpush1.msra.mxu0 0.0
        %7583 = vmatprep.subr.mxu0 0.0
        %7584 = vmatpush1.msra.mxu0 0.0
        %7585 = vmatprep.subr.mxu0 0.0
        %7586 = vmatpush1.msra.mxu0 0.0
        %7587 = vmatprep.subr.mxu0 0.0
        %7588 = vmatpush1.msra.mxu0 0.0
        %7589 = vmatprep.subr.mxu0 0.0
        %7590 = vmatpush1.msra.mxu0 0.0
        %7591 = vmatprep.subr.mxu0 0.0
        %7592 = vmatpush1.msra.mxu0 0.0
        %7593 = vmatprep.subr.mxu0 0.0
        %7594 = vmatpush1.msra.mxu0 0.0
        %7595 = vmatprep.subr.mxu0 0.0
        %7596 = vmatpush1.msra.mxu0 0.0
        %7597 = vmatprep.subr.mxu0 0.0
        %7598 = vmatpush1.msra.mxu0 0.0
        %7599 = vmatprep.subr.mxu0 0.0
        %7600 = vmatpush1.msra.mxu0 0.0
        %7601 = vmatprep.subr.mxu0 0.0
        %7602 = vmatpush1.msra.mxu0 0.0
        %7603 = vmatprep.subr.mxu0 0.0
        %7604 = vmatpush1.msra.mxu0 0.0
        %7605 = vmatprep.subr.mxu0 0.0
        %7606 = vmatpush1.msra.mxu0 0.0
        %7607 = vmatprep.subr.mxu0 0.0
        %7608 = vmatpush1.msra.mxu0 0.0
        %7609 = vmatprep.subr.mxu0 0.0
        %7610 = vmatpush1.msra.mxu0 0.0
        %7611 = vmatprep.subr.mxu0 0.0
        %7612 = vmatpush1.msra.mxu0 0.0
        %7613 = vmatprep.subr.mxu0 0.0
        %7614 = vmatpush1.msra.mxu0 0.0
        %7615 = vmatprep.subr.mxu0 0.0
        %7616 = vmatpush1.msra.mxu0 0.0
        %7617 = vmatprep.subr.mxu0 0.0
        %7618 = vmatpush1.msra.mxu0 0.0
        %7619 = vmatprep.subr.mxu0 0.0
        %7620 = vmatpush1.msra.mxu0 0.0
        %7621 = vmatprep.subr.mxu0 0.0
        %7622 = vmatpush1.msra.mxu0 0.0
        %7623 = vmatprep.subr.mxu0 0.0
        %7624 = vmatpush1.msra.mxu0 0.0
        %7625 = vmatprep.mubr.f32.mxu0 0.0
        %7626 = vmatmul.mubr.f32.gmra.mrb[0].mxu0 %v7178
        %v7627 = vpop.f32.mrb[0].mxu0
        %v7628 = vadd.f32 0.0, %v7627
        %v7629 = vpop.f32.mrb[0].mxu0
        %7630 = vmatprep.mubr.f32.mxu0 0.0
        %7631 = vmatmul.mubr.f32.gmra.mrb[0].mxu0 %v7181
        %v7632 = vpop.f32.mrb[0].mxu0
        %v7633 = vadd.f32 0.0, %v7632
        %v7634 = vpop.f32.mrb[0].mxu0
        %7635 = vmatprep.mubr.f32.mxu0 0.0
        %7636 = vmatmul.mubr.f32.gmra.mrb[0].mxu0 %v7184
        %v7637 = vpop.f32.mrb[0].mxu0
        %v7638 = vadd.f32 0.0, %v7637
        %v7639 = vpop.f32.mrb[0].mxu0
        %7640 = vmatprep.mubr.f32.mxu0 0.0
        %7641 = vmatmul.mubr.f32.gmra.mrb[0].mxu0 %v7187
        %v7642 = vpop.f32.mrb[0].mxu0
        %v7643 = vadd.f32 0.0, %v7642
        %v7644 = vpop.f32.mrb[0].mxu0
        %7645 = vmatprep.mubr.f32.mxu0 0.0
        %7646 = vmatmul.mubr.f32.gmra.mrb[0].mxu0 %v7190
        %v7647 = vpop.f32.mrb[0].mxu0
        %v7648 = vadd.f32 0.0, %v7647
        %v7649 = vpop.f32.mrb[0].mxu0
        %7650 = vmatprep.mubr.f32.mxu0 0.0
        %7651 = vmatmul.mubr.f32.gmra.mrb[0].mxu0 %v7193
        %v7652 = vpop.f32.mrb[0].mxu0
        %v7653 = vadd.f32 0.0, %v7652
        %v7654 = vpop.f32.mrb[0].mxu0
        %7655 = vmatprep.mubr.f32.mxu0 0.0
        %7656 = vmatmul.mubr.f32.gmra.mrb[0].mxu0 %v7196
        %v7657 = vpop.f32.mrb[0].mxu0
        %v7658 = vadd.f32 0.0, %v7657
        %v7659 = vpop.f32.mrb[0].mxu0
        %7660 = vmatprep.mubr.f32.mxu0 0.0
        %7661 = vmatmul.mubr.f32.gmra.mrb[0].mxu0 %v7199
        %v7662 = vpop.f32.mrb[0].mxu0
        %v7663 = vadd.f32 0.0, %v7662
        %v7664 = vpop.f32.mrb[0].mxu0
        %7665 = vmatprep.mubr.f32.mxu0 0.0
        %7666 = vmatmul.mubr.f32.gmra.mrb[0].mxu0 %v7202
        %v7667 = vpop.f32.mrb[0].mxu0
        %v7668 = vadd.f32 0.0, %v7667
        %v7669 = vpop.f32.mrb[0].mxu0
        %7670 = vmatprep.mubr.f32.mxu0 0.0
        %7671 = vmatmul.mubr.f32.gmra.mrb[0].mxu0 %v7205
        %v7672 = vpop.f32.mrb[0].mxu0
        %v7673 = vadd.f32 0.0, %v7672
        %v7674 = vpop.f32.mrb[0].mxu0
        %7675 = vmatprep.mubr.f32.mxu0 0.0
        %7676 = vmatmul.mubr.f32.gmra.mrb[0].mxu0 %v7208
        %v7677 = vpop.f32.mrb[0].mxu0
        %v7678 = vadd.f32 0.0, %v7677
        %v7679 = vpop.f32.mrb[0].mxu0
        %7680 = vmatprep.mubr.f32.mxu0 0.0
        %7681 = vmatmul.mubr.f32.gmra.mrb[0].mxu0 %v7211
        %v7682 = vpop.f32.mrb[0].mxu0
        %v7683 = vadd.f32 0.0, %v7682
        %v7684 = vpop.f32.mrb[0].mxu0
        %7685 = vmatprep.mubr.f32.mxu0 0.0
        %7686 = vmatmul.mubr.f32.gmra.mrb[0].mxu0 %v7214
        %v7687 = vpop.f32.mrb[0].mxu0
        %v7688 = vadd.f32 0.0, %v7687
        %v7689 = vpop.f32.mrb[0].mxu0
        %7690 = vmatprep.mubr.f32.mxu0 0.0
        %7691 = vmatmul.mubr.f32.gmra.mrb[0].mxu0 %v7217
        %v7692 = vpop.f32.mrb[0].mxu0
        %v7693 = vadd.f32 0.0, %v7692
        %v7694 = vpop.f32.mrb[0].mxu0
        %7695 = vmatprep.mubr.f32.mxu0 0.0
        %7696 = vmatmul.mubr.f32.gmra.mrb[0].mxu0 %v7220
        %v7697 = vpop.f32.mrb[0].mxu0
        %v7698 = vadd.f32 0.0, %v7697
        %v7699 = vpop.f32.mrb[0].mxu0
        %7700 = vmatprep.mubr.f32.mxu0 0.0
        %7701 = vmatmul.mubr.f32.gmra.mrb[0].mxu0 %v7223
        %v7702 = vpop.f32.mrb[0].mxu0
        %v7703 = vadd.f32 0.0, %v7702
        %v7704 = vpop.f32.mrb[0].mxu0
        %7705 = vmatprep.mubr.f32.mxu0 0.0
        %7706 = vmatmul.mubr.f32.gmra.mrb[0].mxu0 %v7226
        %v7707 = vpop.f32.mrb[0].mxu0
        %v7708 = vadd.f32 0.0, %v7707
        %v7709 = vpop.f32.mrb[0].mxu0
        %7710 = vmatprep.mubr.f32.mxu0 0.0
        %7711 = vmatmul.mubr.f32.gmra.mrb[0].mxu0 %v7229
        %v7712 = vpop.f32.mrb[0].mxu0
        %v7713 = vadd.f32 0.0, %v7712
        %v7714 = vpop.f32.mrb[0].mxu0
        %7715 = vmatprep.mubr.f32.mxu0 0.0
        %7716 = vmatmul.mubr.f32.gmra.mrb[0].mxu0 %v7232
        %v7717 = vpop.f32.mrb[0].mxu0
        %v7718 = vadd.f32 0.0, %v7717
        %v7719 = vpop.f32.mrb[0].mxu0
        %7720 = vmatprep.mubr.f32.mxu0 0.0
        %7721 = vmatmul.mubr.f32.gmra.mrb[0].mxu0 %v7235
        %v7722 = vpop.f32.mrb[0].mxu0
        %v7723 = vadd.f32 0.0, %v7722
        %v7724 = vpop.f32.mrb[0].mxu0
        %7725 = vmatprep.mubr.f32.mxu0 0.0
        %7726 = vmatmul.mubr.f32.gmra.mrb[0].mxu0 %v7238
        %v7727 = vpop.f32.mrb[0].mxu0
        %v7728 = vadd.f32 0.0, %v7727
        %v7729 = vpop.f32.mrb[0].mxu0
        %7730 = vmatprep.mubr.f32.mxu0 0.0
        %7731 = vmatmul.mubr.f32.gmra.mrb[0].mxu0 %v7241
        %v7732 = vpop.f32.mrb[0].mxu0
        %v7733 = vadd.f32 0.0, %v7732
        %v7734 = vpop.f32.mrb[0].mxu0
        %7735 = vmatprep.mubr.f32.mxu0 0.0
        %7736 = vmatmul.mubr.f32.gmra.mrb[0].mxu0 %v7244
        %v7737 = vpop.f32.mrb[0].mxu0
        %v7738 = vadd.f32 0.0, %v7737
        %v7739 = vpop.f32.mrb[0].mxu0
        %7740 = vmatprep.mubr.f32.mxu0 0.0
        %7741 = vmatmul.mubr.f32.gmra.mrb[0].mxu0 %v7247
        %v7742 = vpop.f32.mrb[0].mxu0
        %v7743 = vadd.f32 0.0, %v7742
        %v7744 = vpop.f32.mrb[0].mxu0
        %7745 = vmatprep.mubr.f32.mxu0 0.0
        %7746 = vmatmul.mubr.f32.gmra.mrb[0].mxu0 %v7250
        %v7747 = vpop.f32.mrb[0].mxu0
        %v7748 = vadd.f32 0.0, %v7747
        %v7749 = vpop.f32.mrb[0].mxu0
        %7750 = vmatprep.mubr.f32.mxu0 0.0
        %7751 = vmatmul.mubr.f32.gmra.mrb[0].mxu0 %v7253
        %v7752 = vpop.f32.mrb[0].mxu0
        %v7753 = vadd.f32 0.0, %v7752
        %v7754 = vpop.f32.mrb[0].mxu0
        %7755 = vmatprep.mubr.f32.mxu0 0.0
        %7756 = vmatmul.mubr.f32.gmra.mrb[0].mxu0 %v7256
        %v7757 = vpop.f32.mrb[0].mxu0
        %v7758 = vadd.f32 0.0, %v7757
        %v7759 = vpop.f32.mrb[0].mxu0
        %7760 = vmatprep.mubr.f32.mxu0 0.0
        %7761 = vmatmul.mubr.f32.gmra.mrb[0].mxu0 %v7259
        %v7762 = vpop.f32.mrb[0].mxu0
        %v7763 = vadd.f32 0.0, %v7762
        %v7764 = vpop.f32.mrb[0].mxu0
        %7765 = vmatprep.mubr.f32.mxu0 0.0
        %7766 = vmatmul.mubr.f32.gmra.mrb[0].mxu0 %v7262
        %v7767 = vpop.f32.mrb[0].mxu0
        %v7768 = vadd.f32 0.0, %v7767
        %v7769 = vpop.f32.mrb[0].mxu0
        %7770 = vmatprep.mubr.f32.mxu0 0.0
        %7771 = vmatmul.mubr.f32.gmra.mrb[0].mxu0 %v7265
        %v7772 = vpop.f32.mrb[0].mxu0
        %v7773 = vadd.f32 0.0, %v7772
        %v7774 = vpop.f32.mrb[0].mxu0
        %7775 = vmatprep.mubr.f32.mxu0 0.0
        %7776 = vmatmul.mubr.f32.gmra.mrb[0].mxu0 %v7268
        %v7777 = vpop.f32.mrb[0].mxu0
        %v7778 = vadd.f32 0.0, %v7777
        %v7779 = vpop.f32.mrb[0].mxu0
        %7780 = vmatprep.mubr.f32.mxu0 0.0
        %7781 = vmatmul.mubr.f32.gmra.mrb[0].mxu0 %v7271
        %v7782 = vpop.f32.mrb[0].mxu0
        %v7783 = vadd.f32 0.0, %v7782
        %v7784 = vpop.f32.mrb[0].mxu0
        %7785 = vmatprep.mubr.f32.mxu0 0.0
        %7786 = vmatmul.mubr.f32.gmra.mrb[0].mxu0 %v7274
        %v7787 = vpop.f32.mrb[0].mxu0
        %v7788 = vadd.f32 0.0, %v7787
        %v7789 = vpop.f32.mrb[0].mxu0
        %7790 = vmatprep.mubr.f32.mxu0 0.0
        %7791 = vmatmul.mubr.f32.gmra.mrb[0].mxu0 %v7277
        %v7792 = vpop.f32.mrb[0].mxu0
        %v7793 = vadd.f32 0.0, %v7792
        %v7794 = vpop.f32.mrb[0].mxu0
        %7795 = vmatprep.mubr.f32.mxu0 0.0
        %7796 = vmatmul.mubr.f32.gmra.mrb[0].mxu0 %v7280
        %v7797 = vpop.f32.mrb[0].mxu0
        %v7798 = vadd.f32 0.0, %v7797
        %v7799 = vpop.f32.mrb[0].mxu0
        %7800 = vmatprep.mubr.f32.mxu0 0.0
        %7801 = vmatmul.mubr.f32.gmra.mrb[0].mxu0 %v7283
        %v7802 = vpop.f32.mrb[0].mxu0
        %v7803 = vadd.f32 0.0, %v7802
        %v7804 = vpop.f32.mrb[0].mxu0
        %7805 = vmatprep.mubr.f32.mxu0 0.0
        %7806 = vmatmul.mubr.f32.gmra.mrb[0].mxu0 %v7286
        %v7807 = vpop.f32.mrb[0].mxu0
        %v7808 = vadd.f32 0.0, %v7807
        %v7809 = vpop.f32.mrb[0].mxu0
        %7810 = vmatprep.mubr.f32.mxu0 0.0
        %7811 = vmatmul.mubr.f32.gmra.mrb[0].mxu0 %v7289
        %v7812 = vpop.f32.mrb[0].mxu0
        %v7813 = vadd.f32 0.0, %v7812
        %v7814 = vpop.f32.mrb[0].mxu0
        %7815 = vmatprep.mubr.f32.mxu0 0.0
        %7816 = vmatmul.mubr.f32.gmra.mrb[0].mxu0 %v7292
        %v7817 = vpop.f32.mrb[0].mxu0
        %v7818 = vadd.f32 0.0, %v7817
        %v7819 = vpop.f32.mrb[0].mxu0
        %7820 = vmatprep.mubr.f32.mxu0 0.0
        %7821 = vmatmul.mubr.f32.gmra.mrb[0].mxu0 %v7295
        %v7822 = vpop.f32.mrb[0].mxu0
        %v7823 = vadd.f32 0.0, %v7822
        %v7824 = vpop.f32.mrb[0].mxu0
        %7825 = vmatprep.mubr.f32.mxu0 0.0
        %7826 = vmatmul.mubr.f32.gmra.mrb[0].mxu0 %v7298
        %v7827 = vpop.f32.mrb[0].mxu0
        %v7828 = vadd.f32 0.0, %v7827
        %v7829 = vpop.f32.mrb[0].mxu0
        %7830 = vmatprep.mubr.f32.mxu0 0.0
        %7831 = vmatmul.mubr.f32.gmra.mrb[0].mxu0 %v7301
        %v7832 = vpop.f32.mrb[0].mxu0
        %v7833 = vadd.f32 0.0, %v7832
        %v7834 = vpop.f32.mrb[0].mxu0
        %7835 = vmatprep.mubr.f32.mxu0 0.0
        %7836 = vmatmul.mubr.f32.gmra.mrb[0].mxu0 %v7304
        %v7837 = vpop.f32.mrb[0].mxu0
        %v7838 = vadd.f32 0.0, %v7837
        %v7839 = vpop.f32.mrb[0].mxu0
        %7840 = vmatprep.mubr.f32.mxu0 0.0
        %7841 = vmatmul.mubr.f32.gmra.mrb[0].mxu0 %v7307
        %v7842 = vpop.f32.mrb[0].mxu0
        %v7843 = vadd.f32 0.0, %v7842
        %v7844 = vpop.f32.mrb[0].mxu0
        %7845 = vmatprep.mubr.f32.mxu0 0.0
        %7846 = vmatmul.mubr.f32.gmra.mrb[0].mxu0 %v7310
        %v7847 = vpop.f32.mrb[0].mxu0
        %v7848 = vadd.f32 0.0, %v7847
        %v7849 = vpop.f32.mrb[0].mxu0
        %7850 = vmatprep.mubr.f32.mxu0 0.0
        %7851 = vmatmul.mubr.f32.gmra.mrb[0].mxu0 %v7313
        %v7852 = vpop.f32.mrb[0].mxu0
        %v7853 = vadd.f32 0.0, %v7852
        %v7854 = vpop.f32.mrb[0].mxu0
        %7855 = vmatprep.mubr.f32.mxu0 0.0
        %7856 = vmatmul.mubr.f32.gmra.mrb[0].mxu0 %v7316
        %v7857 = vpop.f32.mrb[0].mxu0
        %v7858 = vadd.f32 0.0, %v7857
        %v7859 = vpop.f32.mrb[0].mxu0
        %7860 = vmatprep.mubr.f32.mxu0 0.0
        %7861 = vmatmul.mubr.f32.gmra.mrb[0].mxu0 %v7319
        %v7862 = vpop.f32.mrb[0].mxu0
        %v7863 = vadd.f32 0.0, %v7862
        %v7864 = vpop.f32.mrb[0].mxu0
        %7865 = vmatprep.mubr.f32.mxu0 0.0
        %7866 = vmatmul.mubr.f32.gmra.mrb[0].mxu0 %v7322
        %v7867 = vpop.f32.mrb[0].mxu0
        %v7868 = vadd.f32 0.0, %v7867
        %v7869 = vpop.f32.mrb[0].mxu0
        %7870 = vmatprep.mubr.f32.mxu0 0.0
        %7871 = vmatmul.mubr.f32.gmra.mrb[0].mxu0 %v7325
        %v7872 = vpop.f32.mrb[0].mxu0
        %v7873 = vadd.f32 0.0, %v7872
        %v7874 = vpop.f32.mrb[0].mxu0
        %7875 = vmatprep.mubr.f32.mxu0 0.0
        %7876 = vmatmul.mubr.f32.gmra.mrb[0].mxu0 %v7328
        %v7877 = vpop.f32.mrb[0].mxu0
        %v7878 = vadd.f32 0.0, %v7877
        %v7879 = vpop.f32.mrb[0].mxu0
        %7880 = vmatprep.mubr.f32.mxu0 0.0
        %7881 = vmatmul.mubr.f32.gmra.mrb[0].mxu0 %v7331
        %v7882 = vpop.f32.mrb[0].mxu0
        %v7883 = vadd.f32 0.0, %v7882
        %v7884 = vpop.f32.mrb[0].mxu0
        %7885 = vmatprep.mubr.f32.mxu0 0.0
        %7886 = vmatmul.mubr.f32.gmra.mrb[0].mxu0 %v7334
        %v7887 = vpop.f32.mrb[0].mxu0
        %v7888 = vadd.f32 0.0, %v7887
        %v7889 = vpop.f32.mrb[0].mxu0
        %7890 = vmatprep.mubr.f32.mxu0 0.0
        %7891 = vmatmul.mubr.f32.gmra.mrb[0].mxu0 %v7337
        %v7892 = vpop.f32.mrb[0].mxu0
        %v7893 = vadd.f32 0.0, %v7892
        %v7894 = vpop.f32.mrb[0].mxu0
        %7895 = vmatprep.mubr.f32.mxu0 0.0
        %7896 = vmatmul.mubr.f32.gmra.mrb[0].mxu0 %v7340
        %v7897 = vpop.f32.mrb[0].mxu0
        %v7898 = vadd.f32 0.0, %v7897
        %v7899 = vpop.f32.mrb[0].mxu0
        %7900 = vmatprep.mubr.f32.mxu0 0.0
        %7901 = vmatmul.mubr.f32.gmra.mrb[0].mxu0 %v7343
        %v7902 = vpop.f32.mrb[0].mxu0
        %v7903 = vadd.f32 0.0, %v7902
        %v7904 = vpop.f32.mrb[0].mxu0
        %7905 = vmatprep.mubr.f32.mxu0 0.0
        %7906 = vmatmul.mubr.f32.gmra.mrb[0].mxu0 %v7346
        %v7907 = vpop.f32.mrb[0].mxu0
        %v7908 = vadd.f32 0.0, %v7907
        %v7909 = vpop.f32.mrb[0].mxu0
        %7910 = vmatprep.mubr.f32.mxu0 0.0
        %7911 = vmatmul.mubr.f32.gmra.mrb[0].mxu0 %v7349
        %v7912 = vpop.f32.mrb[0].mxu0
        %v7913 = vadd.f32 0.0, %v7912
        %v7914 = vpop.f32.mrb[0].mxu0
        %7915 = vmatprep.mubr.f32.mxu0 0.0
        %7916 = vmatmul.mubr.f32.gmra.mrb[0].mxu0 %v7352
        %v7917 = vpop.f32.mrb[0].mxu0
        %v7918 = vadd.f32 0.0, %v7917
        %v7919 = vpop.f32.mrb[0].mxu0
        %7920 = vmatprep.mubr.f32.mxu0 0.0
        %7921 = vmatmul.mubr.f32.gmra.mrb[0].mxu0 %v7355
        %v7922 = vpop.f32.mrb[0].mxu0
        %v7923 = vadd.f32 0.0, %v7922
        %v7924 = vpop.f32.mrb[0].mxu0
        %7925 = vmatprep.mubr.f32.mxu0 0.0
        %7926 = vmatmul.mubr.f32.gmra.mrb[0].mxu0 %v7358
        %v7927 = vpop.f32.mrb[0].mxu0
        %v7928 = vadd.f32 0.0, %v7927
        %v7929 = vpop.f32.mrb[0].mxu0
        %7930 = vmatprep.mubr.f32.mxu0 0.0
        %7931 = vmatmul.mubr.f32.gmra.mrb[0].mxu0 %v7361
        %v7932 = vpop.f32.mrb[0].mxu0
        %v7933 = vadd.f32 0.0, %v7932
        %v7934 = vpop.f32.mrb[0].mxu0
        %7935 = vmatprep.mubr.f32.mxu0 0.0
        %7936 = vmatmul.mubr.f32.gmra.mrb[0].mxu0 %v7364
        %v7937 = vpop.f32.mrb[0].mxu0
        %v7938 = vadd.f32 0.0, %v7937
        %v7939 = vpop.f32.mrb[0].mxu0
        %7940 = vmatprep.mubr.f32.mxu0 0.0
        %7941 = vmatmul.mubr.f32.gmra.mrb[0].mxu0 %v7367
        %v7942 = vpop.f32.mrb[0].mxu0
        %v7943 = vadd.f32 0.0, %v7942
        %v7944 = vpop.f32.mrb[0].mxu0
        %7945 = vmatprep.mubr.f32.mxu0 0.0
        %7946 = vmatmul.mubr.f32.gmra.mrb[0].mxu0 %v7370
        %v7947 = vpop.f32.mrb[0].mxu0
        %v7948 = vadd.f32 0.0, %v7947
        %v7949 = vpop.f32.mrb[0].mxu0
        %7950 = vmatprep.mubr.f32.mxu0 0.0
        %7951 = vmatmul.mubr.f32.gmra.mrb[0].mxu0 %v7373
        %v7952 = vpop.f32.mrb[0].mxu0
        %v7953 = vadd.f32 0.0, %v7952
        %v7954 = vpop.f32.mrb[0].mxu0
        %7955 = vmatprep.mubr.f32.mxu0 0.0
        %7956 = vmatmul.mubr.f32.gmra.mrb[0].mxu0 %v7376
        %v7957 = vpop.f32.mrb[0].mxu0
        %v7958 = vadd.f32 0.0, %v7957
        %v7959 = vpop.f32.mrb[0].mxu0
        %7960 = vmatprep.mubr.f32.mxu0 0.0
        %7961 = vmatmul.mubr.f32.gmra.mrb[0].mxu0 %v7379
        %v7962 = vpop.f32.mrb[0].mxu0
        %v7963 = vadd.f32 0.0, %v7962
        %v7964 = vpop.f32.mrb[0].mxu0
        %7965 = vmatprep.mubr.f32.mxu0 0.0
        %7966 = vmatmul.mubr.f32.gmra.mrb[0].mxu0 %v7382
        %v7967 = vpop.f32.mrb[0].mxu0
        %v7968 = vadd.f32 0.0, %v7967
        %v7969 = vpop.f32.mrb[0].mxu0
        %7970 = vmatprep.mubr.f32.mxu0 0.0
        %7971 = vmatmul.mubr.f32.gmra.mrb[0].mxu0 %v7385
        %v7972 = vpop.f32.mrb[0].mxu0
        %v7973 = vadd.f32 0.0, %v7972
        %v7974 = vpop.f32.mrb[0].mxu0
        %7975 = vmatprep.mubr.f32.mxu0 0.0
        %7976 = vmatmul.mubr.f32.gmra.mrb[0].mxu0 %v7388
        %v7977 = vpop.f32.mrb[0].mxu0
        %v7978 = vadd.f32 0.0, %v7977
        %v7979 = vpop.f32.mrb[0].mxu0
        %7980 = vmatprep.mubr.f32.mxu0 0.0
        %7981 = vmatmul.mubr.f32.gmra.mrb[0].mxu0 %v7391
        %v7982 = vpop.f32.mrb[0].mxu0
        %v7983 = vadd.f32 0.0, %v7982
        %v7984 = vpop.f32.mrb[0].mxu0
        %7985 = vmatprep.mubr.f32.mxu0 0.0
        %7986 = vmatmul.mubr.f32.gmra.mrb[0].mxu0 %v7394
        %v7987 = vpop.f32.mrb[0].mxu0
        %v7988 = vadd.f32 0.0, %v7987
        %v7989 = vpop.f32.mrb[0].mxu0
        %7990 = vmatprep.mubr.f32.mxu0 0.0
        %7991 = vmatmul.mubr.f32.gmra.mrb[0].mxu0 %v7397
        %v7992 = vpop.f32.mrb[0].mxu0
        %v7993 = vadd.f32 0.0, %v7992
        %v7994 = vpop.f32.mrb[0].mxu0
        %7995 = vmatprep.mubr.f32.mxu0 0.0
        %7996 = vmatmul.mubr.f32.gmra.mrb[0].mxu0 %v7400
        %v7997 = vpop.f32.mrb[0].mxu0
        %v7998 = vadd.f32 0.0, %v7997
        %v7999 = vpop.f32.mrb[0].mxu0
        %8000 = vmatprep.mubr.f32.mxu0 0.0
        %8001 = vmatmul.mubr.f32.gmra.mrb[0].mxu0 %v7403
        %v8002 = vpop.f32.mrb[0].mxu0
        %v8003 = vadd.f32 0.0, %v8002
        %v8004 = vpop.f32.mrb[0].mxu0
        %8005 = vmatprep.mubr.f32.mxu0 0.0
        %8006 = vmatmul.mubr.f32.gmra.mrb[0].mxu0 %v7406
        %v8007 = vpop.f32.mrb[0].mxu0
        %v8008 = vadd.f32 0.0, %v8007
        %v8009 = vpop.f32.mrb[0].mxu0
        %8010 = vmatprep.mubr.f32.mxu0 0.0
        %8011 = vmatmul.mubr.f32.gmra.mrb[0].mxu0 %v7409
        %v8012 = vpop.f32.mrb[0].mxu0
        %v8013 = vadd.f32 0.0, %v8012
        %v8014 = vpop.f32.mrb[0].mxu0
        %8015 = vmatprep.mubr.f32.mxu0 0.0
        %8016 = vmatmul.mubr.f32.gmra.mrb[0].mxu0 %v7412
        %v8017 = vpop.f32.mrb[0].mxu0
        %v8018 = vadd.f32 0.0, %v8017
        %v8019 = vpop.f32.mrb[0].mxu0
        %8020 = vmatprep.mubr.f32.mxu0 0.0
        %8021 = vmatmul.mubr.f32.gmra.mrb[0].mxu0 %v7415
        %v8022 = vpop.f32.mrb[0].mxu0
        %v8023 = vadd.f32 0.0, %v8022
        %v8024 = vpop.f32.mrb[0].mxu0
        %8025 = vmatprep.mubr.f32.mxu0 0.0
        %8026 = vmatmul.mubr.f32.gmra.mrb[0].mxu0 %v7418
        %v8027 = vpop.f32.mrb[0].mxu0
        %v8028 = vadd.f32 0.0, %v8027
        %v8029 = vpop.f32.mrb[0].mxu0
        %8030 = vmatprep.mubr.f32.mxu0 0.0
        %8031 = vmatmul.mubr.f32.gmra.mrb[0].mxu0 %v7421
        %v8032 = vpop.f32.mrb[0].mxu0
        %v8033 = vadd.f32 0.0, %v8032
        %v8034 = vpop.f32.mrb[0].mxu0
        %8035 = vmatprep.mubr.f32.mxu0 0.0
        %8036 = vmatmul.mubr.f32.gmra.mrb[0].mxu0 %v7424
        %v8037 = vpop.f32.mrb[0].mxu0
        %v8038 = vadd.f32 0.0, %v8037
        %v8039 = vpop.f32.mrb[0].mxu0
        %8040 = vmatprep.mubr.f32.mxu0 0.0
        %8041 = vmatmul.mubr.f32.gmra.mrb[0].mxu0 %v7427
        %v8042 = vpop.f32.mrb[0].mxu0
        %v8043 = vadd.f32 0.0, %v8042
        %v8044 = vpop.f32.mrb[0].mxu0
        %8045 = vmatprep.mubr.f32.mxu0 0.0
        %8046 = vmatmul.mubr.f32.gmra.mrb[0].mxu0 %v7430
        %v8047 = vpop.f32.mrb[0].mxu0
        %v8048 = vadd.f32 0.0, %v8047
        %v8049 = vpop.f32.mrb[0].mxu0
        %8050 = vmatprep.mubr.f32.mxu0 0.0
        %8051 = vmatmul.mubr.f32.gmra.mrb[0].mxu0 %v7433
        %v8052 = vpop.f32.mrb[0].mxu0
        %v8053 = vadd.f32 0.0, %v8052
        %v8054 = vpop.f32.mrb[0].mxu0
        %8055 = vmatprep.mubr.f32.mxu0 0.0
        %8056 = vmatmul.mubr.f32.gmra.mrb[0].mxu0 %v7436
        %v8057 = vpop.f32.mrb[0].mxu0
        %v8058 = vadd.f32 0.0, %v8057
        %v8059 = vpop.f32.mrb[0].mxu0
        %8060 = vmatprep.mubr.f32.mxu0 0.0
        %8061 = vmatmul.mubr.f32.gmra.mrb[0].mxu0 %v7439
        %v8062 = vpop.f32.mrb[0].mxu0
        %v8063 = vadd.f32 0.0, %v8062
        %v8064 = vpop.f32.mrb[0].mxu0
        %8065 = vmatprep.mubr.f32.mxu0 0.0
        %8066 = vmatmul.mubr.f32.gmra.mrb[0].mxu0 %v7442
        %v8067 = vpop.f32.mrb[0].mxu0
        %v8068 = vadd.f32 0.0, %v8067
        %v8069 = vpop.f32.mrb[0].mxu0
        %8070 = vmatprep.mubr.f32.mxu0 0.0
        %8071 = vmatmul.mubr.f32.gmra.mrb[0].mxu0 %v7445
        %v8072 = vpop.f32.mrb[0].mxu0
        %v8073 = vadd.f32 0.0, %v8072
        %v8074 = vpop.f32.mrb[0].mxu0
        %8075 = vmatprep.mubr.f32.mxu0 0.0
        %8076 = vmatmul.mubr.f32.gmra.mrb[0].mxu0 %v7448
        %v8077 = vpop.f32.mrb[0].mxu0
        %v8078 = vadd.f32 0.0, %v8077
        %v8079 = vpop.f32.mrb[0].mxu0
        %8080 = vmatprep.mubr.f32.mxu0 0.0
        %8081 = vmatmul.mubr.f32.gmra.mrb[0].mxu0 %v7451
        %v8082 = vpop.f32.mrb[0].mxu0
        %v8083 = vadd.f32 0.0, %v8082
        %v8084 = vpop.f32.mrb[0].mxu0
        %8085 = vmatprep.mubr.f32.mxu0 0.0
        %8086 = vmatmul.mubr.f32.gmra.mrb[0].mxu0 %v7454
        %v8087 = vpop.f32.mrb[0].mxu0
        %v8088 = vadd.f32 0.0, %v8087
        %v8089 = vpop.f32.mrb[0].mxu0
        %8090 = vmatprep.mubr.f32.mxu0 0.0
        %8091 = vmatmul.mubr.f32.gmra.mrb[0].mxu0 %v7457
        %v8092 = vpop.f32.mrb[0].mxu0
        %v8093 = vadd.f32 0.0, %v8092
        %v8094 = vpop.f32.mrb[0].mxu0
        %8095 = vmatprep.mubr.f32.mxu0 0.0
        %8096 = vmatmul.mubr.f32.gmra.mrb[0].mxu0 %v7460
        %v8097 = vpop.f32.mrb[0].mxu0
        %v8098 = vadd.f32 0.0, %v8097
        %v8099 = vpop.f32.mrb[0].mxu0
        %8100 = vmatprep.mubr.f32.mxu0 0.0
        %8101 = vmatmul.mubr.f32.gmra.mrb[0].mxu0 %v7463
        %v8102 = vpop.f32.mrb[0].mxu0
        %v8103 = vadd.f32 0.0, %v8102
        %v8104 = vpop.f32.mrb[0].mxu0
        %8105 = vmatprep.mubr.f32.mxu0 0.0
        %8106 = vmatmul.mubr.f32.gmra.mrb[0].mxu0 %v7466
        %v8107 = vpop.f32.mrb[0].mxu0
        %v8108 = vadd.f32 0.0, %v8107
        %v8109 = vpop.f32.mrb[0].mxu0
        %8110 = vmatprep.mubr.f32.mxu0 0.0
        %8111 = vmatmul.mubr.f32.gmra.mrb[0].mxu0 %v7469
        %v8112 = vpop.f32.mrb[0].mxu0
        %v8113 = vadd.f32 0.0, %v8112
        %v8114 = vpop.f32.mrb[0].mxu0
        %8115 = vmatprep.mubr.f32.mxu0 0.0
        %8116 = vmatmul.mubr.f32.gmra.mrb[0].mxu0 %v7472
        %v8117 = vpop.f32.mrb[0].mxu0
        %v8118 = vadd.f32 0.0, %v8117
        %v8119 = vpop.f32.mrb[0].mxu0
        %8120 = vmatprep.mubr.f32.mxu0 0.0
        %8121 = vmatmul.mubr.f32.gmra.mrb[0].mxu0 %v7475
        %v8122 = vpop.f32.mrb[0].mxu0
        %v8123 = vadd.f32 0.0, %v8122
        %v8124 = vpop.f32.mrb[0].mxu0
        %8125 = vmatprep.mubr.f32.mxu0 0.0
        %8126 = vmatmul.mubr.f32.gmra.mrb[0].mxu0 %v7478
        %v8127 = vpop.f32.mrb[0].mxu0
        %v8128 = vadd.f32 0.0, %v8127
        %v8129 = vpop.f32.mrb[0].mxu0
        %8130 = vmatprep.mubr.f32.mxu0 0.0
        %8131 = vmatmul.mubr.f32.gmra.mrb[0].mxu0 %v7481
        %v8132 = vpop.f32.mrb[0].mxu0
        %v8133 = vadd.f32 0.0, %v8132
        %v8134 = vpop.f32.mrb[0].mxu0
        %8135 = vmatprep.mubr.f32.mxu0 0.0
        %8136 = vmatmul.mubr.f32.gmra.mrb[0].mxu0 %v7484
        %v8137 = vpop.f32.mrb[0].mxu0
        %v8138 = vadd.f32 0.0, %v8137
        %v8139 = vpop.f32.mrb[0].mxu0
        %8140 = vmatprep.mubr.f32.mxu0 0.0
        %8141 = vmatmul.mubr.f32.gmra.mrb[0].mxu0 %v7487
        %v8142 = vpop.f32.mrb[0].mxu0
        %v8143 = vadd.f32 0.0, %v8142
        %v8144 = vpop.f32.mrb[0].mxu0
        %8145 = vmatprep.mubr.f32.mxu0 0.0
        %8146 = vmatmul.mubr.f32.gmra.mrb[0].mxu0 %v7490
        %v8147 = vpop.f32.mrb[0].mxu0
        %v8148 = vadd.f32 0.0, %v8147
        %v8149 = vpop.f32.mrb[0].mxu0
        %8150 = vmatprep.mubr.f32.mxu0 0.0
        %8151 = vmatmul.mubr.f32.gmra.mrb[0].mxu0 %v7493
        %v8152 = vpop.f32.mrb[0].mxu0
        %v8153 = vadd.f32 0.0, %v8152
        %v8154 = vpop.f32.mrb[0].mxu0
        %8155 = vmatprep.mubr.f32.mxu0 0.0
        %8156 = vmatmul.mubr.f32.gmra.mrb[0].mxu0 %v7496
        %v8157 = vpop.f32.mrb[0].mxu0
        %v8158 = vadd.f32 0.0, %v8157
        %v8159 = vpop.f32.mrb[0].mxu0
        %8160 = vmatprep.mubr.f32.mxu0 0.0
        %8161 = vmatmul.mubr.f32.gmra.mrb[0].mxu0 %v7499
        %v8162 = vpop.f32.mrb[0].mxu0
        %v8163 = vadd.f32 0.0, %v8162
        %v8164 = vpop.f32.mrb[0].mxu0
        %8165 = vmatprep.mubr.f32.mxu0 0.0
        %8166 = vmatmul.mubr.f32.gmra.mrb[0].mxu0 %v7502
        %v8167 = vpop.f32.mrb[0].mxu0
        %v8168 = vadd.f32 0.0, %v8167
        %v8169 = vpop.f32.mrb[0].mxu0
        %8170 = vmatprep.mubr.f32.mxu0 0.0
        %8171 = vmatmul.mubr.f32.gmra.mrb[0].mxu0 %v7505
        %v8172 = vpop.f32.mrb[0].mxu0
        %v8173 = vadd.f32 0.0, %v8172
        %v8174 = vpop.f32.mrb[0].mxu0
        %8175 = vmatprep.mubr.f32.mxu0 0.0
        %8176 = vmatmul.mubr.f32.gmra.mrb[0].mxu0 %v7508
        %v8177 = vpop.f32.mrb[0].mxu0
        %v8178 = vadd.f32 0.0, %v8177
        %v8179 = vpop.f32.mrb[0].mxu0
        %8180 = vmatprep.mubr.f32.mxu0 0.0
        %8181 = vmatmul.mubr.f32.gmra.mrb[0].mxu0 %v7511
        %v8182 = vpop.f32.mrb[0].mxu0
        %v8183 = vadd.f32 0.0, %v8182
        %v8184 = vpop.f32.mrb[0].mxu0
        %8185 = vmatprep.mubr.f32.mxu0 0.0
        %8186 = vmatmul.mubr.f32.gmra.mrb[0].mxu0 %v7514
        %v8187 = vpop.f32.mrb[0].mxu0
        %v8188 = vadd.f32 0.0, %v8187
        %v8189 = vpop.f32.mrb[0].mxu0
        %8190 = vmatprep.mubr.f32.mxu0 0.0
        %8191 = vmatmul.mubr.f32.gmra.mrb[0].mxu0 %v7517
        %v8192 = vpop.f32.mrb[0].mxu0
        %v8193 = vadd.f32 0.0, %v8192
        %v8194 = vpop.f32.mrb[0].mxu0
        %8195 = vmatprep.mubr.f32.mxu0 0.0
        %8196 = vmatmul.mubr.f32.gmra.mrb[0].mxu0 %v7520
        %v8197 = vpop.f32.mrb[0].mxu0
        %v8198 = vadd.f32 0.0, %v8197
        %v8199 = vpop.f32.mrb[0].mxu0
        %8200 = vmatprep.mubr.f32.mxu0 0.0
        %8201 = vmatmul.mubr.f32.gmra.mrb[0].mxu0 %v7523
        %v8202 = vpop.f32.mrb[0].mxu0
        %v8203 = vadd.f32 0.0, %v8202
        %v8204 = vpop.f32.mrb[0].mxu0
        %8205 = vmatprep.mubr.f32.mxu0 0.0
        %8206 = vmatmul.mubr.f32.gmra.mrb[0].mxu0 %v7526
        %v8207 = vpop.f32.mrb[0].mxu0
        %v8208 = vadd.f32 0.0, %v8207
        %v8209 = vpop.f32.mrb[0].mxu0
        %8210 = vmatprep.mubr.f32.mxu0 0.0
        %8211 = vmatmul.mubr.f32.gmra.mrb[0].mxu0 %v7529
        %v8212 = vpop.f32.mrb[0].mxu0
        %v8213 = vadd.f32 0.0, %v8212
        %v8214 = vpop.f32.mrb[0].mxu0
        %8215 = vmatprep.mubr.f32.mxu0 0.0
        %8216 = vmatmul.mubr.f32.gmra.mrb[0].mxu0 %v7532
        %v8217 = vpop.f32.mrb[0].mxu0
        %v8218 = vadd.f32 0.0, %v8217
        %v8219 = vpop.f32.mrb[0].mxu0
        %8220 = vmatprep.mubr.f32.mxu0 0.0
        %8221 = vmatmul.mubr.f32.gmra.mrb[0].mxu0 %v7535
        %v8222 = vpop.f32.mrb[0].mxu0
        %v8223 = vadd.f32 0.0, %v8222
        %v8224 = vpop.f32.mrb[0].mxu0
        %8225 = vmatprep.mubr.f32.mxu0 0.0
        %8226 = vmatmul.mubr.f32.gmra.mrb[0].mxu0 %v7538
        %v8227 = vpop.f32.mrb[0].mxu0
        %v8228 = vadd.f32 0.0, %v8227
        %v8229 = vpop.f32.mrb[0].mxu0
        %8230 = vmatprep.mubr.f32.mxu0 0.0
        %8231 = vmatmul.mubr.f32.gmra.mrb[0].mxu0 %v7541
        %v8232 = vpop.f32.mrb[0].mxu0
        %v8233 = vadd.f32 0.0, %v8232
        %v8234 = vpop.f32.mrb[0].mxu0
        %8235 = vmatprep.mubr.f32.mxu0 0.0
        %8236 = vmatmul.mubr.f32.gmra.mrb[0].mxu0 %v7544
        %v8237 = vpop.f32.mrb[0].mxu0
        %v8238 = vadd.f32 0.0, %v8237
        %v8239 = vpop.f32.mrb[0].mxu0
        %8240 = vmatprep.mubr.f32.mxu0 0.0
        %8241 = vmatmul.mubr.f32.gmra.mrb[0].mxu0 %v7547
        %v8242 = vpop.f32.mrb[0].mxu0
        %v8243 = vadd.f32 0.0, %v8242
        %v8244 = vpop.f32.mrb[0].mxu0
        %8245 = vmatprep.mubr.f32.mxu0 0.0
        %8246 = vmatmul.mubr.f32.gmra.mrb[0].mxu0 %v7550
        %v8247 = vpop.f32.mrb[0].mxu0
        %v8248 = vadd.f32 0.0, %v8247
        %v8249 = vpop.f32.mrb[0].mxu0
        %8250 = vmatprep.mubr.f32.mxu0 0.0
        %8251 = vmatmul.mubr.f32.gmra.mrb[0].mxu0 %v7553
        %v8252 = vpop.f32.mrb[0].mxu0
        %v8253 = vadd.f32 0.0, %v8252
        %v8254 = vpop.f32.mrb[0].mxu0
        %8255 = vmatprep.mubr.f32.mxu0 0.0
        %8256 = vmatmul.mubr.f32.gmra.mrb[0].mxu0 %v7556
        %v8257 = vpop.f32.mrb[0].mxu0
        %v8258 = vadd.f32 0.0, %v8257
        %v8259 = vpop.f32.mrb[0].mxu0
        %8260 = vmatprep.mubr.f32.mxu0 0.0
        %8261 = vmatmul.mubr.f32.gmra.mrb[0].mxu0 %v7559
        %v8262 = vpop.f32.mrb[0].mxu0
        %v8263 = vadd.f32 0.0, %v8262
        %v8264 = vpop.f32.mrb[0].mxu0
        %8265 = vdwg.mxu0
        %vm8266 = vcmask 523264
        %8267 = vst.msk [vmem:[%s1027] sm:$0xff] %vm8266, %v7628
        %8268 = vst.msk [vmem:[%s1027 + $0x8] sm:$0xff] %vm8266, %v7633
        %8269 = vst.msk [vmem:[%s1027 + $0x10] sm:$0xff] %vm8266, %v7638
        %8270 = vst.msk [vmem:[%s1027 + $0x18] sm:$0xff] %vm8266, %v7643
        %8271 = vst.msk [vmem:[%s1027 + $0x20] sm:$0xff] %vm8266, %v7648
        %8272 = vst.msk [vmem:[%s1027 + $0x28] sm:$0xff] %vm8266, %v7653
        %8273 = vst.msk [vmem:[%s1027 + $0x30] sm:$0xff] %vm8266, %v7658
        %8274 = vst.msk [vmem:[%s1027 + $0x38] sm:$0xff] %vm8266, %v7663
        %8275 = vst.msk [vmem:[%s1027 + $0x40] sm:$0xff] %vm8266, %v7668
        %8276 = vst.msk [vmem:[%s1027 + $0x48] sm:$0xff] %vm8266, %v7673
        %8277 = vst.msk [vmem:[%s1027 + $0x50] sm:$0xff] %vm8266, %v7678
        %8278 = vst.msk [vmem:[%s1027 + $0x58] sm:$0xff] %vm8266, %v7683
        %8279 = vst.msk [vmem:[%s1027 + $0x60] sm:$0xff] %vm8266, %v7688
        %8280 = vst.msk [vmem:[%s1027 + $0x68] sm:$0xff] %vm8266, %v7693
        %8281 = vst.msk [vmem:[%s1027 + $0x70] sm:$0xff] %vm8266, %v7698
        %8282 = vst.msk [vmem:[%s1027 + $0x78] sm:$0xff] %vm8266, %v7703
        %8283 = vst.msk [vmem:[%s1027 + $0x80] sm:$0xff] %vm8266, %v7708
        %8284 = vst.msk [vmem:[%s1027 + $0x88] sm:$0xff] %vm8266, %v7713
        %8285 = vst.msk [vmem:[%s1027 + $0x90] sm:$0xff] %vm8266, %v7718
        %8286 = vst.msk [vmem:[%s1027 + $0x98] sm:$0xff] %vm8266, %v7723
        %8287 = vst.msk [vmem:[%s1027 + $0xa0] sm:$0xff] %vm8266, %v7728
        %8288 = vst.msk [vmem:[%s1027 + $0xa8] sm:$0xff] %vm8266, %v7733
        %8289 = vst.msk [vmem:[%s1027 + $0xb0] sm:$0xff] %vm8266, %v7738
        %8290 = vst.msk [vmem:[%s1027 + $0xb8] sm:$0xff] %vm8266, %v7743
        %8291 = vst.msk [vmem:[%s1027 + $0xc0] sm:$0xff] %vm8266, %v7748
        %8292 = vst.msk [vmem:[%s1027 + $0xc8] sm:$0xff] %vm8266, %v7753
        %8293 = vst.msk [vmem:[%s1027 + $0xd0] sm:$0xff] %vm8266, %v7758
        %8294 = vst.msk [vmem:[%s1027 + $0xd8] sm:$0xff] %vm8266, %v7763
        %8295 = vst.msk [vmem:[%s1027 + $0xe0] sm:$0xff] %vm8266, %v7768
        %8296 = vst.msk [vmem:[%s1027 + $0xe8] sm:$0xff] %vm8266, %v7773
        %8297 = vst.msk [vmem:[%s1027 + $0xf0] sm:$0xff] %vm8266, %v7778
        %8298 = vst.msk [vmem:[%s1027 + $0xf8] sm:$0xff] %vm8266, %v7783
        %8299 = vst.msk [vmem:[%s1027 + $0x100] sm:$0xff] %vm8266, %v7788
        %8300 = vst.msk [vmem:[%s1027 + $0x108] sm:$0xff] %vm8266, %v7793
        %8301 = vst.msk [vmem:[%s1027 + $0x110] sm:$0xff] %vm8266, %v7798
        %8302 = vst.msk [vmem:[%s1027 + $0x118] sm:$0xff] %vm8266, %v7803
        %8303 = vst.msk [vmem:[%s1027 + $0x120] sm:$0xff] %vm8266, %v7808
        %8304 = vst.msk [vmem:[%s1027 + $0x128] sm:$0xff] %vm8266, %v7813
        %8305 = vst.msk [vmem:[%s1027 + $0x130] sm:$0xff] %vm8266, %v7818
        %8306 = vst.msk [vmem:[%s1027 + $0x138] sm:$0xff] %vm8266, %v7823
        %8307 = vst.msk [vmem:[%s1027 + $0x140] sm:$0xff] %vm8266, %v7828
        %8308 = vst.msk [vmem:[%s1027 + $0x148] sm:$0xff] %vm8266, %v7833
        %8309 = vst.msk [vmem:[%s1027 + $0x150] sm:$0xff] %vm8266, %v7838
        %8310 = vst.msk [vmem:[%s1027 + $0x158] sm:$0xff] %vm8266, %v7843
        %8311 = vst.msk [vmem:[%s1027 + $0x160] sm:$0xff] %vm8266, %v7848
        %8312 = vst.msk [vmem:[%s1027 + $0x168] sm:$0xff] %vm8266, %v7853
        %8313 = vst.msk [vmem:[%s1027 + $0x170] sm:$0xff] %vm8266, %v7858
        %8314 = vst.msk [vmem:[%s1027 + $0x178] sm:$0xff] %vm8266, %v7863
        %8315 = vst.msk [vmem:[%s1027 + $0x180] sm:$0xff] %vm8266, %v7868
        %8316 = vst.msk [vmem:[%s1027 + $0x188] sm:$0xff] %vm8266, %v7873
        %8317 = vst.msk [vmem:[%s1027 + $0x190] sm:$0xff] %vm8266, %v7878
        %8318 = vst.msk [vmem:[%s1027 + $0x198] sm:$0xff] %vm8266, %v7883
        %8319 = vst.msk [vmem:[%s1027 + $0x1a0] sm:$0xff] %vm8266, %v7888
        %8320 = vst.msk [vmem:[%s1027 + $0x1a8] sm:$0xff] %vm8266, %v7893
        %8321 = vst.msk [vmem:[%s1027 + $0x1b0] sm:$0xff] %vm8266, %v7898
        %8322 = vst.msk [vmem:[%s1027 + $0x1b8] sm:$0xff] %vm8266, %v7903
        %8323 = vst.msk [vmem:[%s1027 + $0x1c0] sm:$0xff] %vm8266, %v7908
        %8324 = vst.msk [vmem:[%s1027 + $0x1c8] sm:$0xff] %vm8266, %v7913
        %8325 = vst.msk [vmem:[%s1027 + $0x1d0] sm:$0xff] %vm8266, %v7918
        %8326 = vst.msk [vmem:[%s1027 + $0x1d8] sm:$0xff] %vm8266, %v7923
        %8327 = vst.msk [vmem:[%s1027 + $0x1e0] sm:$0xff] %vm8266, %v7928
        %8328 = vst.msk [vmem:[%s1027 + $0x1e8] sm:$0xff] %vm8266, %v7933
        %8329 = vst.msk [vmem:[%s1027 + $0x1f0] sm:$0xff] %vm8266, %v7938
        %8330 = vst.msk [vmem:[%s1027 + $0x1f8] sm:$0xff] %vm8266, %v7943
        %8331 = vst.msk [vmem:[%s1027 + $0x200] sm:$0xff] %vm8266, %v7948
        %8332 = vst.msk [vmem:[%s1027 + $0x208] sm:$0xff] %vm8266, %v7953
        %8333 = vst.msk [vmem:[%s1027 + $0x210] sm:$0xff] %vm8266, %v7958
        %8334 = vst.msk [vmem:[%s1027 + $0x218] sm:$0xff] %vm8266, %v7963
        %8335 = vst.msk [vmem:[%s1027 + $0x220] sm:$0xff] %vm8266, %v7968
        %8336 = vst.msk [vmem:[%s1027 + $0x228] sm:$0xff] %vm8266, %v7973
        %8337 = vst.msk [vmem:[%s1027 + $0x230] sm:$0xff] %vm8266, %v7978
        %8338 = vst.msk [vmem:[%s1027 + $0x238] sm:$0xff] %vm8266, %v7983
        %8339 = vst.msk [vmem:[%s1027 + $0x240] sm:$0xff] %vm8266, %v7988
        %8340 = vst.msk [vmem:[%s1027 + $0x248] sm:$0xff] %vm8266, %v7993
        %8341 = vst.msk [vmem:[%s1027 + $0x250] sm:$0xff] %vm8266, %v7998
        %8342 = vst.msk [vmem:[%s1027 + $0x258] sm:$0xff] %vm8266, %v8003
        %8343 = vst.msk [vmem:[%s1027 + $0x260] sm:$0xff] %vm8266, %v8008
        %8344 = vst.msk [vmem:[%s1027 + $0x268] sm:$0xff] %vm8266, %v8013
        %8345 = vst.msk [vmem:[%s1027 + $0x270] sm:$0xff] %vm8266, %v8018
        %8346 = vst.msk [vmem:[%s1027 + $0x278] sm:$0xff] %vm8266, %v8023
        %8347 = vst.msk [vmem:[%s1027 + $0x280] sm:$0xff] %vm8266, %v8028
        %8348 = vst.msk [vmem:[%s1027 + $0x288] sm:$0xff] %vm8266, %v8033
        %8349 = vst.msk [vmem:[%s1027 + $0x290] sm:$0xff] %vm8266, %v8038
        %8350 = vst.msk [vmem:[%s1027 + $0x298] sm:$0xff] %vm8266, %v8043
        %8351 = vst.msk [vmem:[%s1027 + $0x2a0] sm:$0xff] %vm8266, %v8048
        %8352 = vst.msk [vmem:[%s1027 + $0x2a8] sm:$0xff] %vm8266, %v8053
        %8353 = vst.msk [vmem:[%s1027 + $0x2b0] sm:$0xff] %vm8266, %v8058
        %8354 = vst.msk [vmem:[%s1027 + $0x2b8] sm:$0xff] %vm8266, %v8063
        %8355 = vst.msk [vmem:[%s1027 + $0x2c0] sm:$0xff] %vm8266, %v8068
        %8356 = vst.msk [vmem:[%s1027 + $0x2c8] sm:$0xff] %vm8266, %v8073
        %8357 = vst.msk [vmem:[%s1027 + $0x2d0] sm:$0xff] %vm8266, %v8078
        %8358 = vst.msk [vmem:[%s1027 + $0x2d8] sm:$0xff] %vm8266, %v8083
        %8359 = vst.msk [vmem:[%s1027 + $0x2e0] sm:$0xff] %vm8266, %v8088
        %8360 = vst.msk [vmem:[%s1027 + $0x2e8] sm:$0xff] %vm8266, %v8093
        %8361 = vst.msk [vmem:[%s1027 + $0x2f0] sm:$0xff] %vm8266, %v8098
        %8362 = vst.msk [vmem:[%s1027 + $0x2f8] sm:$0xff] %vm8266, %v8103
        %8363 = vst.msk [vmem:[%s1027 + $0x300] sm:$0xff] %vm8266, %v8108
        %8364 = vst.msk [vmem:[%s1027 + $0x308] sm:$0xff] %vm8266, %v8113
        %8365 = vst.msk [vmem:[%s1027 + $0x310] sm:$0xff] %vm8266, %v8118
        %8366 = vst.msk [vmem:[%s1027 + $0x318] sm:$0xff] %vm8266, %v8123
        %8367 = vst.msk [vmem:[%s1027 + $0x320] sm:$0xff] %vm8266, %v8128
        %8368 = vst.msk [vmem:[%s1027 + $0x328] sm:$0xff] %vm8266, %v8133
        %8369 = vst.msk [vmem:[%s1027 + $0x330] sm:$0xff] %vm8266, %v8138
        %8370 = vst.msk [vmem:[%s1027 + $0x338] sm:$0xff] %vm8266, %v8143
        %8371 = vst.msk [vmem:[%s1027 + $0x340] sm:$0xff] %vm8266, %v8148
        %8372 = vst.msk [vmem:[%s1027 + $0x348] sm:$0xff] %vm8266, %v8153
        %8373 = vst.msk [vmem:[%s1027 + $0x350] sm:$0xff] %vm8266, %v8158
        %8374 = vst.msk [vmem:[%s1027 + $0x358] sm:$0xff] %vm8266, %v8163
        %8375 = vst.msk [vmem:[%s1027 + $0x360] sm:$0xff] %vm8266, %v8168
        %8376 = vst.msk [vmem:[%s1027 + $0x368] sm:$0xff] %vm8266, %v8173
        %8377 = vst.msk [vmem:[%s1027 + $0x370] sm:$0xff] %vm8266, %v8178
        %8378 = vst.msk [vmem:[%s1027 + $0x378] sm:$0xff] %vm8266, %v8183
        %8379 = vst.msk [vmem:[%s1027 + $0x380] sm:$0xff] %vm8266, %v8188
        %8380 = vst.msk [vmem:[%s1027 + $0x388] sm:$0xff] %vm8266, %v8193
        %8381 = vst.msk [vmem:[%s1027 + $0x390] sm:$0xff] %vm8266, %v8198
        %8382 = vst.msk [vmem:[%s1027 + $0x398] sm:$0xff] %vm8266, %v8203
        %8383 = vst.msk [vmem:[%s1027 + $0x3a0] sm:$0xff] %vm8266, %v8208
        %8384 = vst.msk [vmem:[%s1027 + $0x3a8] sm:$0xff] %vm8266, %v8213
        %8385 = vst.msk [vmem:[%s1027 + $0x3b0] sm:$0xff] %vm8266, %v8218
        %8386 = vst.msk [vmem:[%s1027 + $0x3b8] sm:$0xff] %vm8266, %v8223
        %8387 = vst.msk [vmem:[%s1027 + $0x3c0] sm:$0xff] %vm8266, %v8228
        %8388 = vst.msk [vmem:[%s1027 + $0x3c8] sm:$0xff] %vm8266, %v8233
        %8389 = vst.msk [vmem:[%s1027 + $0x3d0] sm:$0xff] %vm8266, %v8238
        %8390 = vst.msk [vmem:[%s1027 + $0x3d8] sm:$0xff] %vm8266, %v8243
        %8391 = vst.msk [vmem:[%s1027 + $0x3e0] sm:$0xff] %vm8266, %v8248
        %8392 = vst.msk [vmem:[%s1027 + $0x3e8] sm:$0xff] %vm8266, %v8253
        %8393 = vst.msk [vmem:[%s1027 + $0x3f0] sm:$0xff] %vm8266, %v8258
        %8394 = vst.msk [vmem:[%s1027 + $0x3f8] sm:$0xff] %vm8266, %v8263
        %p8395 = scmp.lt.s32.totalorder %s43, 1
        %s8396 = scalar_select %p8395, %s43, 1
        %s8397 = smul.addr %s8396, 128
        %s8398 = smul.addr %s8397, 8
        %s8399 = scalar_lea.vmem %s25, %s8398
        // Predicated region
        $region173: #{tpu_custom_call.1} parent=119 // pred_check
          %p8400 = pneg %p611
        $region174: #{tpu_custom_call.1} parent=119 // pred_check_branch
          %8402 = sbr.rel (%p8400) target = $region176
        $region175: #{tpu_custom_call.1} parent=119 // pred_region
          _
        $region176: #{tpu_custom_call.1} parent=119 // pred_fallthru
          _
      $region120: #{tpu_custom_call.1} parent=5 // pred_fallthru
        _
      %p8403 = scmp.le.s32.totalorder 2, %s38
      // Predicated region
      $region177: #{tpu_custom_call.1} parent=5 // pred_check
        %p8404 = pneg %p8403
      $region178: #{tpu_custom_call.1} parent=5 // pred_check_branch
        %8406 = sbr.rel (%p8404) target = $region180
      $region179: #{tpu_custom_call.1} parent=5 // pred_region
        %s8407 = ssub.s32 %s38, 2
        // Predicated region
        $region181: #{tpu_custom_call.1} parent=179 // pred_check
          %p8408 = pneg %p617
        $region182: #{tpu_custom_call.1} parent=179 // pred_check_branch
          %8410 = sbr.rel (%p8408) target = $region184
        $region183: #{tpu_custom_call.1} parent=179 // pred_region
          %p8411 = scmp.lt.s32.totalorder %s44, 1
          %s8412 = scalar_select %p8411, %s44, 1
          %s8413 = smul.addr %s8412, 128
          %s8414 = smul.addr %s8413, 8
          %s8415 = scalar_lea.vmem %s25, %s8414
        $region184: #{tpu_custom_call.1} parent=179 // pred_fallthru
          _
      $region180: #{tpu_custom_call.1} parent=5 // pred_fallthru
        _
    $region6: #{tpu_custom_call.1} parent=1 // loop_footer
      %s42 = sadd.s32 1, %s38
    $region7: #{tpu_custom_call.1} parent=1 // loop_footer_branch
      %37 = sbr.rel target = $region3
    $region8: #{tpu_custom_call.1} parent=1 // loop_exit
      _
    %8416 = vsyncpa [#allocation3], 1
    %s8417 = scalar_lea.sflag [#allocation3], 1
    %8418 = vsyncpa %s8417, 1
    %8419 = vsyncpa [#allocation5], 1
    %8420 = vsyncpa [#allocation8], 1
    %8421 = vsyncpa [#allocation11], 1
    %8422 = vsyncpa [#allocation14], 1
    %8423 = vsyncpa [#allocation17], 1
    %8424 = vsyncpa [#allocation20], 1

</llo_original>
